<compile_context>
chip_gen: v7x
topology: tpu7x:2x2x1
jax: 0.10.0
libtpu: 0.0.40
codegen_flags: <defaults>
</compile_context>

<pallas_src>
import functools

import jax
import jax.numpy as jnp
import numpy as np
from jax.experimental import pallas as pl
from jax.experimental.pallas import tpu as pltpu


# ---------------------------------------------------------------------------
# Fused Pallas kernel: apply the whole predicted layer stack to one
# (object, N-tile). Activations never leave VMEM/vregs between layers.
# ---------------------------------------------------------------------------
def _hyperfc_apply_kernel(obj_idx_ref, x_ref, bias_ref, *refs,
                          layer_couts, norm_relu_flags, layer_dtypes):
    del obj_idx_ref  # Only consumed by the BlockSpec index_maps (scalar prefetch).
    n_layers = len(norm_relu_flags)
    o_ref = refs[n_layers]

    bias_all = bias_ref[0]                       # (n_layers, Cmax) f32, tiny

    # (tile_n, Cin); no-op cast when x dtype already matches layer 0's dtype.
    h = x_ref[0].astype(layer_dtypes[0])
    for li in range(n_layers):
        w = refs[li][0]                          # (Cin_l, Cout_l), pre-cast W^T
        co = layer_couts[li]
        # MXU matmul, f32 accumulation.
        y = jnp.dot(h, w, preferred_element_type=jnp.float32)
        y = y + bias_all[li, :co][None, :]
        if norm_relu_flags[li]:
            # LayerNorm(out_ch, elementwise_affine=False), eps=1e-5, then ReLU.
            mean = jnp.mean(y, axis=-1, keepdims=True)
            c = y - mean                         # reused for var AND normalize
            var = jnp.mean(c * c, axis=-1, keepdims=True)
            y = jnp.maximum(c * jax.lax.rsqrt(var + 1e-5), 0.0)
        if li + 1 < n_layers:
            # Fuse the next matmul's operand cast into the epilogue
            # (no-op when the next layer runs in f32).
            h = y.astype(layer_dtypes[li + 1])
        else:
            h = y                                # final layer stays f32 for the store
    o_ref[0] = h.astype(o_ref.dtype)


def hyperfc_apply(predicted_layers, obj_idx, x, *, tile_n=1024,
                  matmul_dtype=jnp.bfloat16, first_layer_f32=True,
                  out_dtype=None):
    """Apply the HyperFC-predicted per-object network to x.

    predicted_layers: list of (w_t, bias, apply_norm_relu):
        w_t:  (num_objects, Cin_l, Cout_l)   pre-transposed W^T (f32)
        bias: (num_objects, 1, Cout_l)       (f32)
    obj_idx: (B,) int32 — which object's predicted network each batch item uses.
    x: (B, N, in_ch).  Returns (B, N, out_ch) in out_dtype (default: x.dtype).
    """
    B, N, c_in = x.shape
    tile_n = min(tile_n, N)
    assert N % tile_n == 0 and tile_n % 8 == 0, "N must be a multiple of tile_n (mult of 8)"
    n_layers = len(predicted_layers)
    layer_couts = tuple(int(p[0].shape[-1]) for p in predicted_layers)
    c_out = layer_couts[-1]
    max_co = max(layer_couts)
    norm_relu_flags = tuple(bool(p[2]) for p in predicted_layers)
    num_objects = predicted_layers[0][0].shape[0]
    if out_dtype is None:
        out_dtype = x.dtype

    # Per-layer matmul dtype: layer 0 optionally kept f32 (K = c_in is tiny, so
    # the first matmul is nearly free and the raw inputs keep full precision).
    layer_dtypes = tuple(
        np.dtype(jnp.float32) if (li == 0 and first_layer_f32) else np.dtype(matmul_dtype)
        for li in range(n_layers))

    # Pre-cast weights once (outside the kernel): halves weight DMA bytes for
    # bf16 and removes a per-grid-step VPU cast of a VMEM-resident block.
    w_tables = [p[0].astype(layer_dtypes[li]) for li, p in enumerate(predicted_layers)]

    # Pack all per-layer biases into one (num_objects, n_layers, max_co) f32
    # table -> a single DMA descriptor per object change.
    bias_tab = jnp.zeros((num_objects, n_layers, max_co), jnp.float32)
    for li, (_, bias, _) in enumerate(predicted_layers):
        bias_tab = bias_tab.at[:, li, :layer_couts[li]].set(bias[:, 0, :].astype(jnp.float32))

    grid = (B, N // tile_n)  # B outer, N-tile inner (weights resident across N tiles)

    def x_map(b, j, obj):
        return (b, j, 0)

    def o_map(b, j, obj):
        return (b, j, 0)

    def wb_map(b, j, obj):
        # Gather the selected object's predicted params straight from the table.
        # Depends only on the B axis -> stays resident in VMEM across N tiles.
        return (obj[b], 0, 0)

    in_specs = [pl.BlockSpec((1, tile_n, c_in), x_map),
                pl.BlockSpec((1, n_layers, max_co), wb_map)]
    for w_t in w_tables:
        _, ci, co = w_t.shape
        in_specs.append(pl.BlockSpec((1, ci, co), wb_map))

    kern = functools.partial(_hyperfc_apply_kernel,
                             layer_couts=layer_couts,
                             norm_relu_flags=norm_relu_flags,
                             layer_dtypes=layer_dtypes)

    return pl.pallas_call(
        kern,
        out_shape=jax.ShapeDtypeStruct((B, N, c_out), out_dtype),
        grid_spec=pltpu.PrefetchScalarGridSpec(
            num_scalar_prefetch=1,
            grid=grid,
            in_specs=in_specs,
            out_specs=pl.BlockSpec((1, tile_n, c_out), o_map),
        ),
        compiler_params=pltpu.CompilerParams(
            # Both axes write disjoint output blocks -> both may be sharded
            # across the 2 TensorCores on v7x even when B == 1. The weight
            # index_map depends only on b, so residency is preserved.
            dimension_semantics=("parallel", "parallel"),
            vmem_limit_bytes=32 * 1024 * 1024,
        ),
    )(obj_idx.astype(jnp.int32), x, bias_tab, *w_tables)


# ---------------------------------------------------------------------------
# Hypernetwork (HyperFC.forward proper) — tiny per-object work, plain JAX.
# ---------------------------------------------------------------------------
def _kaiming_normal(key, out_features, in_features, scale=1.0):
    std = (2.0 / in_features) ** 0.5
    return jax.random.normal(key, (out_features, in_features), jnp.float32) * std * scale


def _fc_block_init(key, in_features, out_features, hidden_ch, num_hidden_layers,
                   last_layer_scale=1.0):
    """pytorch_prototyping.FCBlock(outermost_linear=True): kaiming weights, zero bias.
    last_layer_scale=0.1 reproduces last_hyper_layer_init."""
    dims = ([(in_features, hidden_ch)]
            + [(hidden_ch, hidden_ch)] * num_hidden_layers
            + [(hidden_ch, out_features)])
    keys = jax.random.split(key, len(dims))
    layers = []
    for li, (ci, co) in enumerate(dims):
        scale = last_layer_scale if li == len(dims) - 1 else 1.0
        layers.append((_kaiming_normal(keys[li], co, ci, scale),
                       jnp.zeros((co,), jnp.float32)))
    return layers


def _fc_block_apply(layers, h):
    """Linear -> LayerNorm (affine is identity at init) -> ReLU, last layer linear."""
    n = len(layers)
    for li, (w, b) in enumerate(layers):
        h = h @ w.T + b
        if li < n - 1:
            mean = jnp.mean(h, axis=-1, keepdims=True)
            var = jnp.mean(jnp.square(h - mean), axis=-1, keepdims=True)
            h = (h - mean) * jax.lax.rsqrt(var + 1e-5)
            h = jnp.maximum(h, 0.0)
    return h


def init_hyperfc(key, hyper_in_ch, hyper_num_hidden_layers, hyper_hidden_ch,
                 hidden_ch, num_hidden_layers, in_ch, out_ch, outermost_linear=False):
    """Builds HyperFC: one hypernetwork (HyperLinear.hypo_params) per predicted layer."""
    layer_dims = ([(in_ch, hidden_ch)]
                  + [(hidden_ch, hidden_ch)] * num_hidden_layers
                  + [(hidden_ch, out_ch)])
    keys = jax.random.split(key, len(layer_dims))
    layers = []
    for li, (ci, co) in enumerate(layer_dims):
        is_last = li == len(layer_dims) - 1
        apply_norm_relu = not (is_last and outermost_linear)   # HyperLayer vs HyperLinear
        hypo_net = _fc_block_init(keys[li], hyper_in_ch, ci * co + co,
                                  hyper_hidden_ch, hyper_num_hidden_layers,
                                  last_layer_scale=0.1)
        layers.append((hypo_net, ci, co, apply_norm_relu))
    return layers


def hyperfc_forward(hyper_layers, hyper_input):
    """HyperFC.forward: predict the per-object BatchLinear params.

    Returns [(w_t, bias, apply_norm_relu)] with the weight stored PRE-TRANSPOSED
    as (num_objects, Cin, Cout) — transpose done once here, so the apply kernel
    runs a plain (N, Cin) @ (Cin, Cout) MXU matmul with Cout on the lane axis.
    """
    predicted = []
    for hypo_net, ci, co, apply_norm_relu in hyper_layers:
        hypo = _fc_block_apply(hypo_net, hyper_input)               # (num_obj, ci*co+co)
        w = hypo[:, : ci * co].reshape(-1, co, ci)                  # PyTorch view: (out, in)
        w_t = jnp.transpose(w, (0, 2, 1))                           # (num_obj, Cin, Cout)
        bias = hypo[:, ci * co: ci * co + co].reshape(-1, 1, co)    # (num_obj, 1, Cout)
        predicted.append((w_t, bias, apply_norm_relu))
    return predicted


# ---------------------------------------------------------------------------
# Pure-JAX reference of the predicted network (matches PyTorch math, f32).
# ---------------------------------------------------------------------------
def reference_apply(predicted_layers, obj_idx, x):
    h = x
    for w_t, bias, apply_norm_relu in predicted_layers:
        w = w_t[obj_idx]      # (B, Cin, Cout) == W^T, so x @ W^T == x @ w
        b = bias[obj_idx]     # (B, 1, Cout)
        y = jnp.einsum("bnc,bco->bno", h, w,
                       precision=jax.lax.Precision.HIGHEST) + b
        if apply_norm_relu:
            mean = jnp.mean(y, axis=-1, keepdims=True)
            var = jnp.mean(jnp.square(y - mean), axis=-1, keepdims=True)
            y = (y - mean) * jax.lax.rsqrt(var + 1e-5)
            y = jnp.maximum(y, 0.0)
        h = y
    return h


if __name__ == "__main__":
    key = jax.random.PRNGKey(0)
    k_hyper, k_lat, k_x = jax.random.split(key, 3)

    # Small but lane/MXU-friendly config (channels multiples of 128, N tiled by 1024).
    hyper_in_ch, hyper_num_hidden_layers, hyper_hidden_ch = 16, 1, 64
    hidden_ch, num_hidden_layers = 128, 1
    in_ch, out_ch = 16, 128
    num_objects, B, N = 4, 2, 2048

    hyper_layers = init_hyperfc(
        k_hyper, hyper_in_ch, hyper_num_hidden_layers, hyper_hidden_ch,
        hidden_ch, num_hidden_layers, in_ch, out_ch, outermost_linear=False)

    # One latent (hyper_input) per object; HyperFC.forward predicts each object's net.
    hyper_input = jax.random.normal(k_lat, (num_objects, hyper_in_ch), jnp.float32)
    predicted = hyperfc_forward(hyper_layers, hyper_input)

    obj_idx = jnp.array([1, 3], dtype=jnp.int32)
    x = jax.random.normal(k_x, (B, N, in_ch), jnp.float32)

    ref = reference_apply(predicted, obj_idx, x)

    # f32 MXU path: tight check against the f32 reference.
    out_f32 = jax.block_until_ready(
        hyperfc_apply(predicted, obj_idx, x, matmul_dtype=jnp.float32))
    assert out_f32.shape == (B, N, out_ch)
    assert jnp.allclose(out_f32, ref, atol=1e-4, rtol=1e-4), "f32 kernel mismatch vs reference"

    # bf16-operand MXU path (default / perf path, layer 0 kept f32): loose check.
    out_bf16 = jax.block_until_ready(hyperfc_apply(predicted, obj_idx, x))
    assert out_bf16.shape == (B, N, out_ch)
    assert jnp.allclose(out_bf16, ref, atol=7e-2, rtol=7e-2), "bf16 kernel mismatch vs reference"

    # bf16 output store (halves HBM writeback — the main v5e/v6e lever): loose check.
    out_bf16_store = jax.block_until_ready(
        hyperfc_apply(predicted, obj_idx, x, out_dtype=jnp.bfloat16))
    assert out_bf16_store.dtype == jnp.bfloat16
    assert jnp.allclose(out_bf16_store.astype(jnp.float32), ref, atol=1e-1, rtol=1e-1), \
        "bf16-output kernel mismatch vs reference"

    print("KERNEL_OK")
</pallas_src>

<mosaic_0001>
module attributes {stable_mosaic.version = 11 : i64} {
  func.func @_hyperfc_apply_kernel(%arg0: i32, %arg1: i32, %arg2: memref<2xi32, #tpu.memory_space<smem>>, %arg3: memref<1x1024x16xf32, #tpu.memory_space<vmem>>, %arg4: memref<1x3x128xf32, #tpu.memory_space<vmem>>, %arg5: memref<1x16x128xf32, #tpu.memory_space<vmem>>, %arg6: memref<1x128x128xf32, #tpu.memory_space<vmem>>, %arg7: memref<1x128x128xf32, #tpu.memory_space<vmem>>, %arg8: memref<1x1024x128xf32, #tpu.memory_space<vmem>>) attributes {dimension_semantics = [#tpu.dimension_semantics<parallel>, #tpu.dimension_semantics<parallel>], iteration_bounds = array<i64: 2, 2>, scalar_prefetch = 1 : i64, scratch_operands = 0 : i64, tpu.core_type = #tpu.core_type<tc>, window_params = [{transform_indices = @transform_0, window_bounds = array<i64: 1, 1024, 16>}, {transform_indices = @transform_1, window_bounds = array<i64: 1, 3, 128>}, {transform_indices = @transform_2, window_bounds = array<i64: 1, 16, 128>}, {transform_indices = @transform_3, window_bounds = array<i64: 1, 128, 128>}, {transform_indices = @transform_4, window_bounds = array<i64: 1, 128, 128>}, {transform_indices = @transform_5, window_bounds = array<i64: 1, 1024, 128>}]} {
    %c0 = arith.constant 0 : index
    %c0_0 = arith.constant 0 : index
    %c0_1 = arith.constant 0 : index
    %0 = vector.load %arg4[%c0, %c0_0, %c0_1] : memref<1x3x128xf32, #tpu.memory_space<vmem>>, vector<1x3x128xf32>
    %1 = vector.shape_cast %0 : vector<1x3x128xf32> to vector<3x128xf32>
    %c0_2 = arith.constant 0 : index
    %c0_3 = arith.constant 0 : index
    %c0_4 = arith.constant 0 : index
    %2 = vector.load %arg3[%c0_2, %c0_3, %c0_4] : memref<1x1024x16xf32, #tpu.memory_space<vmem>>, vector<1x1024x16xf32>
    %3 = vector.shape_cast %2 : vector<1x1024x16xf32> to vector<1024x16xf32>
    %c0_5 = arith.constant 0 : index
    %c0_6 = arith.constant 0 : index
    %c0_7 = arith.constant 0 : index
    %4 = vector.load %arg5[%c0_5, %c0_6, %c0_7] : memref<1x16x128xf32, #tpu.memory_space<vmem>>, vector<1x16x128xf32>
    %5 = vector.shape_cast %4 : vector<1x16x128xf32> to vector<16x128xf32>
    %cst = arith.constant dense<0.000000e+00> : vector<1024x128xf32>
    %6 = tpu.matmul %3, %5, %cst {dimension_numbers = #tpu.dot_dimension_numbers<[1], [0], [0], [1], [0, 0, 1, 1], [], []>} : vector<1024x16xf32>, vector<16x128xf32>, vector<1024x128xf32> -> vector<1024x128xf32>
    %7 = vector.extract_strided_slice %1 {offsets = [0, 0], sizes = [1, 128], strides = [1, 1]} : vector<3x128xf32> to vector<1x128xf32>
    %8 = vector.shape_cast %7 : vector<1x128xf32> to vector<128xf32>
    %9 = vector.shape_cast %8 : vector<128xf32> to vector<1x128xf32>
    %10 = vector.broadcast %9 : vector<1x128xf32> to vector<1024x128xf32>
    %11 = arith.addf %6, %10 : vector<1024x128xf32>
    %cst_8 = arith.constant dense<0.000000e+00> : vector<1024xf32>
    %12 = vector.multi_reduction <add>, %11, %cst_8 [1] : vector<1024x128xf32> to vector<1024xf32>
    %13 = vector.shape_cast %12 : vector<1024xf32> to vector<1024x1xf32>
    %cst_9 = arith.constant 1.280000e+02 : f32
    %14 = vector.broadcast %cst_9 : f32 to vector<1024x1xf32>
    %15 = arith.divf %13, %14 : vector<1024x1xf32>
    %16 = vector.broadcast %15 : vector<1024x1xf32> to vector<1024x128xf32>
    %17 = arith.subf %11, %16 : vector<1024x128xf32>
    %18 = arith.mulf %17, %17 : vector<1024x128xf32>
    %cst_10 = arith.constant dense<0.000000e+00> : vector<1024xf32>
    %19 = vector.multi_reduction <add>, %18, %cst_10 [1] : vector<1024x128xf32> to vector<1024xf32>
    %20 = vector.shape_cast %19 : vector<1024xf32> to vector<1024x1xf32>
    %cst_11 = arith.constant 1.280000e+02 : f32
    %21 = vector.broadcast %cst_11 : f32 to vector<1024x1xf32>
    %22 = arith.divf %20, %21 : vector<1024x1xf32>
    %cst_12 = arith.constant 9.99999974E-6 : f32
    %23 = vector.broadcast %cst_12 : f32 to vector<1024x1xf32>
    %24 = arith.addf %22, %23 : vector<1024x1xf32>
    %25 = math.rsqrt %24 : vector<1024x1xf32>
    %26 = vector.broadcast %25 : vector<1024x1xf32> to vector<1024x128xf32>
    %27 = arith.mulf %17, %26 : vector<1024x128xf32>
    %cst_13 = arith.constant 0.000000e+00 : f32
    %28 = vector.broadcast %cst_13 : f32 to vector<1024x128xf32>
    %29 = arith.maximumf %27, %28 : vector<1024x128xf32>
    %c0_14 = arith.constant 0 : index
    %c0_15 = arith.constant 0 : index
    %c0_16 = arith.constant 0 : index
    %30 = vector.load %arg6[%c0_14, %c0_15, %c0_16] : memref<1x128x128xf32, #tpu.memory_space<vmem>>, vector<1x128x128xf32>
    %31 = vector.shape_cast %30 : vector<1x128x128xf32> to vector<128x128xf32>
    %cst_17 = arith.constant dense<0.000000e+00> : vector<1024x128xf32>
    %32 = tpu.matmul %29, %31, %cst_17 {dimension_numbers = #tpu.dot_dimension_numbers<[1], [0], [0], [1], [0, 0, 1, 1], [], []>} : vector<1024x128xf32>, vector<128x128xf32>, vector<1024x128xf32> -> vector<1024x128xf32>
    %33 = vector.extract_strided_slice %1 {offsets = [1, 0], sizes = [1, 128], strides = [1, 1]} : vector<3x128xf32> to vector<1x128xf32>
    %34 = vector.shape_cast %33 : vector<1x128xf32> to vector<128xf32>
    %35 = vector.shape_cast %34 : vector<128xf32> to vector<1x128xf32>
    %36 = vector.broadcast %35 : vector<1x128xf32> to vector<1024x128xf32>
    %37 = arith.addf %32, %36 : vector<1024x128xf32>
    %cst_18 = arith.constant dense<0.000000e+00> : vector<1024xf32>
    %38 = vector.multi_reduction <add>, %37, %cst_18 [1] : vector<1024x128xf32> to vector<1024xf32>
    %39 = vector.shape_cast %38 : vector<1024xf32> to vector<1024x1xf32>
    %cst_19 = arith.constant 1.280000e+02 : f32
    %40 = vector.broadcast %cst_19 : f32 to vector<1024x1xf32>
    %41 = arith.divf %39, %40 : vector<1024x1xf32>
    %42 = vector.broadcast %41 : vector<1024x1xf32> to vector<1024x128xf32>
    %43 = arith.subf %37, %42 : vector<1024x128xf32>
    %44 = arith.mulf %43, %43 : vector<1024x128xf32>
    %cst_20 = arith.constant dense<0.000000e+00> : vector<1024xf32>
    %45 = vector.multi_reduction <add>, %44, %cst_20 [1] : vector<1024x128xf32> to vector<1024xf32>
    %46 = vector.shape_cast %45 : vector<1024xf32> to vector<1024x1xf32>
    %cst_21 = arith.constant 1.280000e+02 : f32
    %47 = vector.broadcast %cst_21 : f32 to vector<1024x1xf32>
    %48 = arith.divf %46, %47 : vector<1024x1xf32>
    %cst_22 = arith.constant 9.99999974E-6 : f32
    %49 = vector.broadcast %cst_22 : f32 to vector<1024x1xf32>
    %50 = arith.addf %48, %49 : vector<1024x1xf32>
    %51 = math.rsqrt %50 : vector<1024x1xf32>
    %52 = vector.broadcast %51 : vector<1024x1xf32> to vector<1024x128xf32>
    %53 = arith.mulf %43, %52 : vector<1024x128xf32>
    %cst_23 = arith.constant 0.000000e+00 : f32
    %54 = vector.broadcast %cst_23 : f32 to vector<1024x128xf32>
    %55 = arith.maximumf %53, %54 : vector<1024x128xf32>
    %c0_24 = arith.constant 0 : index
    %c0_25 = arith.constant 0 : index
    %c0_26 = arith.constant 0 : index
    %56 = vector.load %arg7[%c0_24, %c0_25, %c0_26] : memref<1x128x128xf32, #tpu.memory_space<vmem>>, vector<1x128x128xf32>
    %57 = vector.shape_cast %56 : vector<1x128x128xf32> to vector<128x128xf32>
    %cst_27 = arith.constant dense<0.000000e+00> : vector<1024x128xf32>
    %58 = tpu.matmul %55, %57, %cst_27 {dimension_numbers = #tpu.dot_dimension_numbers<[1], [0], [0], [1], [0, 0, 1, 1], [], []>} : vector<1024x128xf32>, vector<128x128xf32>, vector<1024x128xf32> -> vector<1024x128xf32>
    %59 = vector.extract_strided_slice %1 {offsets = [2, 0], sizes = [1, 128], strides = [1, 1]} : vector<3x128xf32> to vector<1x128xf32>
    %60 = vector.shape_cast %59 : vector<1x128xf32> to vector<128xf32>
    %61 = vector.shape_cast %60 : vector<128xf32> to vector<1x128xf32>
    %62 = vector.broadcast %61 : vector<1x128xf32> to vector<1024x128xf32>
    %63 = arith.addf %58, %62 : vector<1024x128xf32>
    %cst_28 = arith.constant dense<0.000000e+00> : vector<1024xf32>
    %64 = vector.multi_reduction <add>, %63, %cst_28 [1] : vector<1024x128xf32> to vector<1024xf32>
    %65 = vector.shape_cast %64 : vector<1024xf32> to vector<1024x1xf32>
    %cst_29 = arith.constant 1.280000e+02 : f32
    %66 = vector.broadcast %cst_29 : f32 to vector<1024x1xf32>
    %67 = arith.divf %65, %66 : vector<1024x1xf32>
    %68 = vector.broadcast %67 : vector<1024x1xf32> to vector<1024x128xf32>
    %69 = arith.subf %63, %68 : vector<1024x128xf32>
    %70 = arith.mulf %69, %69 : vector<1024x128xf32>
    %cst_30 = arith.constant dense<0.000000e+00> : vector<1024xf32>
    %71 = vector.multi_reduction <add>, %70, %cst_30 [1] : vector<1024x128xf32> to vector<1024xf32>
    %72 = vector.shape_cast %71 : vector<1024xf32> to vector<1024x1xf32>
    %cst_31 = arith.constant 1.280000e+02 : f32
    %73 = vector.broadcast %cst_31 : f32 to vector<1024x1xf32>
    %74 = arith.divf %72, %73 : vector<1024x1xf32>
    %cst_32 = arith.constant 9.99999974E-6 : f32
    %75 = vector.broadcast %cst_32 : f32 to vector<1024x1xf32>
    %76 = arith.addf %74, %75 : vector<1024x1xf32>
    %77 = math.rsqrt %76 : vector<1024x1xf32>
    %78 = vector.broadcast %77 : vector<1024x1xf32> to vector<1024x128xf32>
    %79 = arith.mulf %69, %78 : vector<1024x128xf32>
    %cst_33 = arith.constant 0.000000e+00 : f32
    %80 = vector.broadcast %cst_33 : f32 to vector<1024x128xf32>
    %81 = arith.maximumf %79, %80 : vector<1024x128xf32>
    %c0_34 = arith.constant 0 : index
    %c0_35 = arith.constant 0 : index
    %c0_36 = arith.constant 0 : index
    %82 = vector.load %arg8[%c0_34, %c0_35, %c0_36] : memref<1x1024x128xf32, #tpu.memory_space<vmem>>, vector<1x1024x128xf32>
    %83 = vector.shape_cast %82 : vector<1x1024x128xf32> to vector<1024x128xf32>
    %84 = vector.shape_cast %81 : vector<1024x128xf32> to vector<1x1024x128xf32>
    tpu.vector_store %arg8[%c0_34, %c0_35, %c0_36], %84 {strides = array<i32>} : memref<1x1024x128xf32, #tpu.memory_space<vmem>>, vector<1x1024x128xf32>,
    return
  }
  func.func @transform_0(%arg0: i32, %arg1: i32, %arg2: memref<2xi32, #tpu.memory_space<smem>>) -> (i32, i32, i32) {
    %c0_i32 = arith.constant 0 : i32
    %c0_i32_0 = arith.constant 0 : i32
    return %arg0, %arg1, %c0_i32 : i32, i32, i32
  }
  func.func @transform_1(%arg0: i32, %arg1: i32, %arg2: memref<2xi32, #tpu.memory_space<smem>>) -> (i32, i32, i32) {
    %0 = arith.index_cast %arg0 : i32 to index
    %1 = memref.load %arg2[%0] : memref<2xi32, #tpu.memory_space<smem>>
    %c0_i32 = arith.constant 0 : i32
    %c0_i32_0 = arith.constant 0 : i32
    %c0_i32_1 = arith.constant 0 : i32
    return %1, %c0_i32, %c0_i32_0 : i32, i32, i32
  }
  func.func @transform_2(%arg0: i32, %arg1: i32, %arg2: memref<2xi32, #tpu.memory_space<smem>>) -> (i32, i32, i32) {
    %0 = arith.index_cast %arg0 : i32 to index
    %1 = memref.load %arg2[%0] : memref<2xi32, #tpu.memory_space<smem>>
    %c0_i32 = arith.constant 0 : i32
    %c0_i32_0 = arith.constant 0 : i32
    %c0_i32_1 = arith.constant 0 : i32
    return %1, %c0_i32, %c0_i32_0 : i32, i32, i32
  }
  func.func @transform_3(%arg0: i32, %arg1: i32, %arg2: memref<2xi32, #tpu.memory_space<smem>>) -> (i32, i32, i32) {
    %0 = arith.index_cast %arg0 : i32 to index
    %1 = memref.load %arg2[%0] : memref<2xi32, #tpu.memory_space<smem>>
    %c0_i32 = arith.constant 0 : i32
    %c0_i32_0 = arith.constant 0 : i32
    %c0_i32_1 = arith.constant 0 : i32
    return %1, %c0_i32, %c0_i32_0 : i32, i32, i32
  }
  func.func @transform_4(%arg0: i32, %arg1: i32, %arg2: memref<2xi32, #tpu.memory_space<smem>>) -> (i32, i32, i32) {
    %0 = arith.index_cast %arg0 : i32 to index
    %1 = memref.load %arg2[%0] : memref<2xi32, #tpu.memory_space<smem>>
    %c0_i32 = arith.constant 0 : i32
    %c0_i32_0 = arith.constant 0 : i32
    %c0_i32_1 = arith.constant 0 : i32
    return %1, %c0_i32, %c0_i32_0 : i32, i32, i32
  }
  func.func @transform_5(%arg0: i32, %arg1: i32, %arg2: memref<2xi32, #tpu.memory_space<smem>>) -> (i32, i32, i32) {
    %c0_i32 = arith.constant 0 : i32
    %c0_i32_0 = arith.constant 0 : i32
    return %arg0, %arg1, %c0_i32 : i32, i32, i32
  }
}

</mosaic_0001>

<llo_original>
// kernel: tpu_custom_call.1
$region0: #{tpu_custom_call.1}
  #allocation0 [shape = 'u32[]', space=smem, size = 0x4, offset = 0x4, fixed_abs, tag = 'smem constant byte address 0x4 - core index']
  #allocation1 [shape = 'u32[144,128]{1,0:T(1,128)}', space=vmem, size = 0x12000, scoped, tag = 'internal scratch']
  #allocation2 [shape = 's32[1]{0}', space=sflag, size = 0x4, scoped, tag = 'scoped memory for tpu_custom_call.1']
  #allocation3 [shape = 'u8[512]{0}', space=smem, size = 0x200, scoped, tag = 'prefetched SMEM operand 0']
  %s0 = inlined_call_operand.vmem [shape: s32[2], index: 0, kind: input, shape index: {}]
  %s1 = inlined_call_operand.vmem [shape: f32[2,2048,16], index: 1, kind: input, shape index: {}]
  %s2 = inlined_call_operand.vmem [shape: f32[4,3,128], index: 2, kind: input, shape index: {}]
  %s3 = inlined_call_operand.vmem [shape: f32[4,16,128], index: 3, kind: input, shape index: {}]
  %s4 = inlined_call_operand.vmem [shape: f32[4,128,128], index: 4, kind: input, shape index: {}]
  %s5 = inlined_call_operand.vmem [shape: f32[4,128,128], index: 5, kind: input, shape index: {}]
  %s6 = inlined_call_operand.hbm [shape: f32[2,2048,128], index: 6, kind: output, shape index: {}]
  %s7 = sld [smem:[#allocation0]]
  $region53: #{tpu_custom_call.1} parent=0
    _
  %s9 = ssub.s32 1, %s7
  %s10 = scalar_select 0, %s9, %s7
  %s11 = sshll.u32 %s0, 4
  %s12 = int_to_ptr.vmem [resolvable:$true] %s11
  %14 = dma.vmem_to_smem %s12, 16, [#allocation3], [#allocation2]
  %15 = dma.done [#allocation2], 16
  %16 = sfence
  $region1: #{tpu_custom_call.1} parent=0
    #allocation4 [shape = 'u8[1048576]{0}', space=vmem, size = 0x100000, scoped, tag = 'output window, operand 0']
    #allocation5 [shape = 's32[2]{0}', space=sflag, size = 0x8, scoped, tag = 'scoped memory for tpu_custom_call.1']
    %17 = vsyncpa [#allocation5], 0
    %s18 = scalar_lea.sflag [#allocation5], 1
    %19 = vsyncpa %s18, 0
    loop: start=0, step=1, limit=6
    $region2: #{tpu_custom_call.1} parent=1 // loop_pre_header
      _
    $region3: #{tpu_custom_call.1} parent=1 // loop_header
      %s21 = sphi 0, %s25
      %p22 = scmp.ge.s32.totalorder %s21, 6
      %s28 = sphi 0, %s40
      %s29 = sphi 0, %s36
      %s30 = sphi 0, %s28
      %s31 = sphi 0, %s29
      %s32 = sphi 0, %s30
      %s33 = sphi 0, %s31
      %s45 = sphi 0, %s47
      %s48 = sphi 0, %s45
      %s49 = sphi 0, %s48
      %s65 = sphi 0, %s49
      %s73 = sphi 0, %s75
      %s76 = sphi 0, %s73
      %s77 = sphi 0, %s76
      %s93 = sphi 0, %s77
      %s101 = sphi 0, %s103
      %s104 = sphi 0, %s101
      %s105 = sphi 0, %s104
      %s121 = sphi 0, %s105
      %s129 = sphi 0, %s131
      %s132 = sphi 0, %s129
      %s133 = sphi 0, %s132
      %s149 = sphi 0, %s133
      %s157 = sphi 0, %s159
      %s160 = sphi 0, %s157
      %s161 = sphi 0, %s160
      %s177 = sphi 0, %s161
      %s185 = sphi 0, %s187
      %s188 = sphi 0, %s185
      %s189 = sphi 0, %s188
      %s205 = sphi 0, %s189
    $region4: #{tpu_custom_call.1} parent=1 // loop_header_branch
      %24 = sbr.rel (%p22) target = $region8
    $region5: #{tpu_custom_call.1} parent=1 // loop_body
      %s26 = ssub.s32 %s21, 1
      %s27 = ssub.s32 %s21, 2
      %s34 = sadd.s32 1, %s29
      %p35 = scmp.ge.s32.totalorder %s34, 2
      %s36 = scalar_select %p35, 0, %s34
      %s37 = sadd.s32 1, %s28
      %s38 = scalar_select %p35, %s37, %s28
      %p39 = scmp.ge.s32.totalorder %s38, 2
      %s40 = scalar_select %p39, 0, %s38
      %s41 = ssub.s32 %s28, %s40
      %s42 = ssub.s32 %s29, %s36
      %s43 = sor.u32 %s41, %s42
      %p44 = scmp.eq.s32.totalorder %s43, 0
      %s46 = sadd.s32 %s45, 1
      %s47 = scalar_select %p44, %s45, %s46
      %p50 = pneg %p44
      %p51 = scmp.eq.s32.totalorder %s21, 3
      %p52 = por %p50, %p51
      %p53 = scmp.ne.s32.totalorder %s45, %s48
      %p54 = scmp.eq.s32.totalorder %s21, 0
      %p55 = por %p53, %p54
      %p56 = scmp.ne.s32.totalorder %s45, %s48
      %p57 = scmp.eq.s32.totalorder %s26, 3
      %p58 = por %p56, %p57
      %p59 = scmp.ne.s32.totalorder %s48, %s49
      %p60 = scmp.eq.s32.totalorder %s26, 0
      %p61 = por %p59, %p60
      %p62 = scmp.ne.s32.totalorder %s48, %s49
      %p63 = scmp.eq.s32.totalorder %s27, 3
      %p64 = por %p62, %p63
      %p66 = scmp.ne.s32.totalorder %s49, %s65
      %p67 = scmp.eq.s32.totalorder %s27, 0
      %p68 = por %p66, %p67
      %s69 = sld [smem:[#allocation3 + %s28]]
      %s70 = sld [smem:[#allocation3 + %s40]]
      %s71 = ssub.s32 %s69, %s70
      %p72 = scmp.eq.s32.totalorder %s71, 0
      %s74 = sadd.s32 %s73, 1
      %s75 = scalar_select %p72, %s73, %s74
      %p78 = pneg %p72
      %p79 = scmp.eq.s32.totalorder %s21, 3
      %p80 = por %p78, %p79
      %p81 = scmp.ne.s32.totalorder %s73, %s76
      %p82 = scmp.eq.s32.totalorder %s21, 0
      %p83 = por %p81, %p82
      %p84 = scmp.ne.s32.totalorder %s73, %s76
      %p85 = scmp.eq.s32.totalorder %s26, 3
      %p86 = por %p84, %p85
      %p87 = scmp.ne.s32.totalorder %s76, %s77
      %p88 = scmp.eq.s32.totalorder %s26, 0
      %p89 = por %p87, %p88
      %p90 = scmp.ne.s32.totalorder %s76, %s77
      %p91 = scmp.eq.s32.totalorder %s27, 3
      %p92 = por %p90, %p91
      %p94 = scmp.ne.s32.totalorder %s77, %s93
      %p95 = scmp.eq.s32.totalorder %s27, 0
      %p96 = por %p94, %p95
      %s97 = sld [smem:[#allocation3 + %s28]]
      %s98 = sld [smem:[#allocation3 + %s40]]
      %s99 = ssub.s32 %s97, %s98
      %p100 = scmp.eq.s32.totalorder %s99, 0
      %s102 = sadd.s32 %s101, 1
      %s103 = scalar_select %p100, %s101, %s102
      %p106 = pneg %p100
      %p107 = scmp.eq.s32.totalorder %s21, 3
      %p108 = por %p106, %p107
      %p109 = scmp.ne.s32.totalorder %s101, %s104
      %p110 = scmp.eq.s32.totalorder %s21, 0
      %p111 = por %p109, %p110
      %p112 = scmp.ne.s32.totalorder %s101, %s104
      %p113 = scmp.eq.s32.totalorder %s26, 3
      %p114 = por %p112, %p113
      %p115 = scmp.ne.s32.totalorder %s104, %s105
      %p116 = scmp.eq.s32.totalorder %s26, 0
      %p117 = por %p115, %p116
      %p118 = scmp.ne.s32.totalorder %s104, %s105
      %p119 = scmp.eq.s32.totalorder %s27, 3
      %p120 = por %p118, %p119
      %p122 = scmp.ne.s32.totalorder %s105, %s121
      %p123 = scmp.eq.s32.totalorder %s27, 0
      %p124 = por %p122, %p123
      %s125 = sld [smem:[#allocation3 + %s28]]
      %s126 = sld [smem:[#allocation3 + %s40]]
      %s127 = ssub.s32 %s125, %s126
      %p128 = scmp.eq.s32.totalorder %s127, 0
      %s130 = sadd.s32 %s129, 1
      %s131 = scalar_select %p128, %s129, %s130
      %p134 = pneg %p128
      %p135 = scmp.eq.s32.totalorder %s21, 3
      %p136 = por %p134, %p135
      %p137 = scmp.ne.s32.totalorder %s129, %s132
      %p138 = scmp.eq.s32.totalorder %s21, 0
      %p139 = por %p137, %p138
      %p140 = scmp.ne.s32.totalorder %s129, %s132
      %p141 = scmp.eq.s32.totalorder %s26, 3
      %p142 = por %p140, %p141
      %p143 = scmp.ne.s32.totalorder %s132, %s133
      %p144 = scmp.eq.s32.totalorder %s26, 0
      %p145 = por %p143, %p144
      %p146 = scmp.ne.s32.totalorder %s132, %s133
      %p147 = scmp.eq.s32.totalorder %s27, 3
      %p148 = por %p146, %p147
      %p150 = scmp.ne.s32.totalorder %s133, %s149
      %p151 = scmp.eq.s32.totalorder %s27, 0
      %p152 = por %p150, %p151
      %s153 = sld [smem:[#allocation3 + %s28]]
      %s154 = sld [smem:[#allocation3 + %s40]]
      %s155 = ssub.s32 %s153, %s154
      %p156 = scmp.eq.s32.totalorder %s155, 0
      %s158 = sadd.s32 %s157, 1
      %s159 = scalar_select %p156, %s157, %s158
      %p162 = pneg %p156
      %p163 = scmp.eq.s32.totalorder %s21, 3
      %p164 = por %p162, %p163
      %p165 = scmp.ne.s32.totalorder %s157, %s160
      %p166 = scmp.eq.s32.totalorder %s21, 0
      %p167 = por %p165, %p166
      %p168 = scmp.ne.s32.totalorder %s157, %s160
      %p169 = scmp.eq.s32.totalorder %s26, 3
      %p170 = por %p168, %p169
      %p171 = scmp.ne.s32.totalorder %s160, %s161
      %p172 = scmp.eq.s32.totalorder %s26, 0
      %p173 = por %p171, %p172
      %p174 = scmp.ne.s32.totalorder %s160, %s161
      %p175 = scmp.eq.s32.totalorder %s27, 3
      %p176 = por %p174, %p175
      %p178 = scmp.ne.s32.totalorder %s161, %s177
      %p179 = scmp.eq.s32.totalorder %s27, 0
      %p180 = por %p178, %p179
      %s181 = ssub.s32 %s28, %s40
      %s182 = ssub.s32 %s29, %s36
      %s183 = sor.u32 %s181, %s182
      %p184 = scmp.eq.s32.totalorder %s183, 0
      %s186 = sadd.s32 %s185, 1
      %s187 = scalar_select %p184, %s185, %s186
      %p190 = pneg %p184
      %p191 = scmp.eq.s32.totalorder %s21, 3
      %p192 = por %p190, %p191
      %p193 = scmp.ne.s32.totalorder %s185, %s188
      %p194 = scmp.eq.s32.totalorder %s21, 0
      %p195 = por %p193, %p194
      %p196 = scmp.ne.s32.totalorder %s185, %s188
      %p197 = scmp.eq.s32.totalorder %s26, 3
      %p198 = por %p196, %p197
      %p199 = scmp.ne.s32.totalorder %s188, %s189
      %p200 = scmp.eq.s32.totalorder %s26, 0
      %p201 = por %p199, %p200
      %p202 = scmp.ne.s32.totalorder %s188, %s189
      %p203 = scmp.eq.s32.totalorder %s27, 3
      %p204 = por %p202, %p203
      %p206 = scmp.ne.s32.totalorder %s189, %s205
      %p207 = scmp.eq.s32.totalorder %s27, 0
      %p208 = por %p206, %p207
      %p209 = scmp.le.s32.totalorder 1, %s21
      %p210 = scmp.lt.s32.totalorder %s21, 5
      %p211 = pnand %p209, %p210
      %p212 = pneg %p211
      // Predicated region
      $region9: #{tpu_custom_call.1} parent=5 // pred_check
        _
      $region10: #{tpu_custom_call.1} parent=5 // pred_check_branch
        %214 = sbr.rel (%p211) target = $region12
      $region11: #{tpu_custom_call.1} parent=5 // pred_region
        %s215 = ssub.s32 %s21, 1
      $region12: #{tpu_custom_call.1} parent=5 // pred_fallthru
        _
      %p216 = scmp.lt.s32.totalorder %s21, 4
      // Predicated region
      $region13: #{tpu_custom_call.1} parent=5 // pred_check
        %p217 = pneg %p216
      $region14: #{tpu_custom_call.1} parent=5 // pred_check_branch
        %219 = sbr.rel (%p217) target = $region16
      $region15: #{tpu_custom_call.1} parent=5 // pred_region
        // Predicated region
        $region17: #{tpu_custom_call.1} parent=15 // pred_check
          %p220 = pneg %p55
        $region18: #{tpu_custom_call.1} parent=15 // pred_check_branch
          %222 = sbr.rel (%p220) target = $region20
        $region19: #{tpu_custom_call.1} parent=15 // pred_region
          %s223 = smul.u32 128, %s29
          %p224 = scmp.lt.s32.totalorder %s28, 1
          %s225 = scalar_select %p224, %s28, 1
          %p226 = scmp.lt.s32.totalorder %s223, 255
          %s227 = scalar_select %p226, %s223, 255
          %s228 = smul.addr %s225, 256
          %s229 = sadd.s32 %s227, %s228
          %s230 = smul.addr %s229, 8
          %s231 = scalar_lea.vmem %s1, %s230
          %s232 = smul.u32 128, %s29
        $region20: #{tpu_custom_call.1} parent=15 // pred_fallthru
          _
        // Predicated region
        $region21: #{tpu_custom_call.1} parent=15 // pred_check
          %p233 = pneg %p83
        $region22: #{tpu_custom_call.1} parent=15 // pred_check_branch
          %235 = sbr.rel (%p233) target = $region24
        $region23: #{tpu_custom_call.1} parent=15 // pred_region
          %s236 = sld [smem:[#allocation3 + %s28]]
          %p237 = scmp.lt.s32.totalorder %s236, 3
          %s238 = scalar_select %p237, %s236, 3
          %s239 = smul.addr %s238, 4
          %s240 = scalar_lea.vmem %s2, %s239
          %s241 = sld [smem:[#allocation3 + %s28]]
        $region24: #{tpu_custom_call.1} parent=15 // pred_fallthru
          _
        // Predicated region
        $region25: #{tpu_custom_call.1} parent=15 // pred_check
          %p242 = pneg %p111
        $region26: #{tpu_custom_call.1} parent=15 // pred_check_branch
          %244 = sbr.rel (%p242) target = $region28
        $region27: #{tpu_custom_call.1} parent=15 // pred_region
          %s245 = sld [smem:[#allocation3 + %s28]]
          %p246 = scmp.lt.s32.totalorder %s245, 3
          %s247 = scalar_select %p246, %s245, 3
          %s248 = smul.addr %s247, 2
          %s249 = smul.addr %s248, 8
          %s250 = scalar_lea.vmem %s3, %s249
          %s251 = sld [smem:[#allocation3 + %s28]]
        $region28: #{tpu_custom_call.1} parent=15 // pred_fallthru
          _
        // Predicated region
        $region29: #{tpu_custom_call.1} parent=15 // pred_check
          %p252 = pneg %p139
        $region30: #{tpu_custom_call.1} parent=15 // pred_check_branch
          %254 = sbr.rel (%p252) target = $region32
        $region31: #{tpu_custom_call.1} parent=15 // pred_region
          %s255 = sld [smem:[#allocation3 + %s28]]
          %p256 = scmp.lt.s32.totalorder %s255, 3
          %s257 = scalar_select %p256, %s255, 3
          %s258 = smul.addr %s257, 16
          %s259 = smul.addr %s258, 8
          %s260 = scalar_lea.vmem %s4, %s259
          %s261 = sld [smem:[#allocation3 + %s28]]
        $region32: #{tpu_custom_call.1} parent=15 // pred_fallthru
          _
        // Predicated region
        $region33: #{tpu_custom_call.1} parent=15 // pred_check
          %p262 = pneg %p167
        $region34: #{tpu_custom_call.1} parent=15 // pred_check_branch
          %264 = sbr.rel (%p262) target = $region36
        $region35: #{tpu_custom_call.1} parent=15 // pred_region
          %s265 = sld [smem:[#allocation3 + %s28]]
          %p266 = scmp.lt.s32.totalorder %s265, 3
          %s267 = scalar_select %p266, %s265, 3
          %s268 = smul.addr %s267, 16
          %s269 = smul.addr %s268, 8
          %s270 = scalar_lea.vmem %s5, %s269
          %s271 = sld [smem:[#allocation3 + %s28]]
        $region36: #{tpu_custom_call.1} parent=15 // pred_fallthru
          _
      $region16: #{tpu_custom_call.1} parent=5 // pred_fallthru
        _
      %p272 = scmp.le.s32.totalorder 1, %s21
      %p273 = scmp.lt.s32.totalorder %s21, 5
      %p274 = pnand %p272, %p273
      %p275 = pneg %p274
      // Predicated region
      $region37: #{tpu_custom_call.1} parent=5 // pred_check
        _
      $region38: #{tpu_custom_call.1} parent=5 // pred_check_branch
        %277 = sbr.rel (%p274) target = $region40
      $region39: #{tpu_custom_call.1} parent=5 // pred_region
        %s278 = ssub.s32 %s21, 1
        %s279 = smul.u32 128, %s31
        %p280 = scmp.lt.s32.totalorder %s30, 1
        %s281 = scalar_select %p280, %s30, 1
        %p282 = scmp.lt.s32.totalorder %s279, 255
        %s283 = scalar_select %p282, %s279, 255
        %s284 = smul.addr %s281, 256
        %s285 = sadd.s32 %s283, %s284
        %s286 = smul.addr %s285, 8
        %s287 = scalar_lea.vmem %s1, %s286
        %p288 = pneg %p61
        %p289 = pneg %p58
        %s290 = sld [smem:[#allocation3 + %s30]]
        %p291 = scmp.lt.s32.totalorder %s290, 3
        %s292 = scalar_select %p291, %s290, 3
        %s293 = smul.addr %s292, 4
        %s294 = scalar_lea.vmem %s2, %s293
        %p295 = pneg %p89
        %p296 = pneg %p86
        %s297 = sld [smem:[#allocation3 + %s30]]
        %p298 = scmp.lt.s32.totalorder %s297, 3
        %s299 = scalar_select %p298, %s297, 3
        %s300 = smul.addr %s299, 2
        %s301 = smul.addr %s300, 8
        %s302 = scalar_lea.vmem %s3, %s301
        %p303 = pneg %p117
        %p304 = pneg %p114
        %s305 = sld [smem:[#allocation3 + %s30]]
        %p306 = scmp.lt.s32.totalorder %s305, 3
        %s307 = scalar_select %p306, %s305, 3
        %s308 = smul.addr %s307, 16
        %s309 = smul.addr %s308, 8
        %s310 = scalar_lea.vmem %s4, %s309
        %p311 = pneg %p145
        %p312 = pneg %p142
        %s313 = sld [smem:[#allocation3 + %s30]]
        %p314 = scmp.lt.s32.totalorder %s313, 3
        %s315 = scalar_select %p314, %s313, 3
        %s316 = smul.addr %s315, 16
        %s317 = smul.addr %s316, 8
        %s318 = scalar_lea.vmem %s5, %s317
        %p319 = pneg %p173
        %p320 = pneg %p170
        %p321 = pneg %p201
        %p322 = pneg %p198
        %s323 = sand.u32 %s188, 1
        %s324 = scalar_lea.sflag [#allocation5], %s323
        %s325 = sand.u32 %s188, 1
        %s326 = smul.addr %s325, 1024
        %s327 = scalar_lea.vmem [#allocation4], %s326
        %s328 = smul.u32 128, %s31
        %p329 = scmp.lt.s32.totalorder %s30, 1
        %s330 = scalar_select %p329, %s30, 1
        %p331 = scmp.lt.s32.totalorder %s328, 255
        %s332 = scalar_select %p331, %s328, 255
        %s333 = smul.addr %s330, 256
        %s334 = sadd.s32 %s332, %s333
        %s335 = smul.addr %s334, 8
        %s336 = scalar_lea.vmem %s1, %s335
        %s337 = smul.u32 128, %s31
        %s338 = sld [smem:[#allocation3 + %s30]]
        %p339 = scmp.lt.s32.totalorder %s338, 3
        %s340 = scalar_select %p339, %s338, 3
        %s341 = smul.addr %s340, 4
        %s342 = scalar_lea.vmem %s2, %s341
        %s343 = sld [smem:[#allocation3 + %s30]]
        %s344 = sld [smem:[#allocation3 + %s30]]
        %p345 = scmp.lt.s32.totalorder %s344, 3
        %s346 = scalar_select %p345, %s344, 3
        %s347 = smul.addr %s346, 2
        %s348 = smul.addr %s347, 8
        %s349 = scalar_lea.vmem %s3, %s348
        %s350 = sld [smem:[#allocation3 + %s30]]
        %s351 = sld [smem:[#allocation3 + %s30]]
        %p352 = scmp.lt.s32.totalorder %s351, 3
        %s353 = scalar_select %p352, %s351, 3
        %s354 = smul.addr %s353, 16
        %s355 = smul.addr %s354, 8
        %s356 = scalar_lea.vmem %s4, %s355
        %s357 = sld [smem:[#allocation3 + %s30]]
        %s358 = sld [smem:[#allocation3 + %s30]]
        %p359 = scmp.lt.s32.totalorder %s358, 3
        %s360 = scalar_select %p359, %s358, 3
        %s361 = smul.addr %s360, 16
        %s362 = smul.addr %s361, 8
        %s363 = scalar_lea.vmem %s5, %s362
        %s364 = sld [smem:[#allocation3 + %s30]]
        %s365 = smul.u32 128, %s31
        %v366 = vld [vmem:[%s342] sm:$0x7]
        %v367 = vld [vmem:[%s336] sm:$0xff]
        %v368 = vld [vmem:[%s336 + $0x8] sm:$0xff]
        %v369 = vld [vmem:[%s336 + $0x10] sm:$0xff]
        %v370 = vld [vmem:[%s336 + $0x18] sm:$0xff]
        %v371 = vld [vmem:[%s336 + $0x20] sm:$0xff]
        %v372 = vld [vmem:[%s336 + $0x28] sm:$0xff]
        %v373 = vld [vmem:[%s336 + $0x30] sm:$0xff]
        %v374 = vld [vmem:[%s336 + $0x38] sm:$0xff]
        %v375 = vld [vmem:[%s336 + $0x40] sm:$0xff]
        %v376 = vld [vmem:[%s336 + $0x48] sm:$0xff]
        %v377 = vld [vmem:[%s336 + $0x50] sm:$0xff]
        %v378 = vld [vmem:[%s336 + $0x58] sm:$0xff]
        %v379 = vld [vmem:[%s336 + $0x60] sm:$0xff]
        %v380 = vld [vmem:[%s336 + $0x68] sm:$0xff]
        %v381 = vld [vmem:[%s336 + $0x70] sm:$0xff]
        %v382 = vld [vmem:[%s336 + $0x78] sm:$0xff]
        %v383 = vld [vmem:[%s336 + $0x80] sm:$0xff]
        %v384 = vld [vmem:[%s336 + $0x88] sm:$0xff]
        %v385 = vld [vmem:[%s336 + $0x90] sm:$0xff]
        %v386 = vld [vmem:[%s336 + $0x98] sm:$0xff]
        %v387 = vld [vmem:[%s336 + $0xa0] sm:$0xff]
        %v388 = vld [vmem:[%s336 + $0xa8] sm:$0xff]
        %v389 = vld [vmem:[%s336 + $0xb0] sm:$0xff]
        %v390 = vld [vmem:[%s336 + $0xb8] sm:$0xff]
        %v391 = vld [vmem:[%s336 + $0xc0] sm:$0xff]
        %v392 = vld [vmem:[%s336 + $0xc8] sm:$0xff]
        %v393 = vld [vmem:[%s336 + $0xd0] sm:$0xff]
        %v394 = vld [vmem:[%s336 + $0xd8] sm:$0xff]
        %v395 = vld [vmem:[%s336 + $0xe0] sm:$0xff]
        %v396 = vld [vmem:[%s336 + $0xe8] sm:$0xff]
        %v397 = vld [vmem:[%s336 + $0xf0] sm:$0xff]
        %v398 = vld [vmem:[%s336 + $0xf8] sm:$0xff]
        %v399 = vld [vmem:[%s336 + $0x100] sm:$0xff]
        %v400 = vld [vmem:[%s336 + $0x108] sm:$0xff]
        %v401 = vld [vmem:[%s336 + $0x110] sm:$0xff]
        %v402 = vld [vmem:[%s336 + $0x118] sm:$0xff]
        %v403 = vld [vmem:[%s336 + $0x120] sm:$0xff]
        %v404 = vld [vmem:[%s336 + $0x128] sm:$0xff]
        %v405 = vld [vmem:[%s336 + $0x130] sm:$0xff]
        %v406 = vld [vmem:[%s336 + $0x138] sm:$0xff]
        %v407 = vld [vmem:[%s336 + $0x140] sm:$0xff]
        %v408 = vld [vmem:[%s336 + $0x148] sm:$0xff]
        %v409 = vld [vmem:[%s336 + $0x150] sm:$0xff]
        %v410 = vld [vmem:[%s336 + $0x158] sm:$0xff]
        %v411 = vld [vmem:[%s336 + $0x160] sm:$0xff]
        %v412 = vld [vmem:[%s336 + $0x168] sm:$0xff]
        %v413 = vld [vmem:[%s336 + $0x170] sm:$0xff]
        %v414 = vld [vmem:[%s336 + $0x178] sm:$0xff]
        %v415 = vld [vmem:[%s336 + $0x180] sm:$0xff]
        %v416 = vld [vmem:[%s336 + $0x188] sm:$0xff]
        %v417 = vld [vmem:[%s336 + $0x190] sm:$0xff]
        %v418 = vld [vmem:[%s336 + $0x198] sm:$0xff]
        %v419 = vld [vmem:[%s336 + $0x1a0] sm:$0xff]
        %v420 = vld [vmem:[%s336 + $0x1a8] sm:$0xff]
        %v421 = vld [vmem:[%s336 + $0x1b0] sm:$0xff]
        %v422 = vld [vmem:[%s336 + $0x1b8] sm:$0xff]
        %v423 = vld [vmem:[%s336 + $0x1c0] sm:$0xff]
        %v424 = vld [vmem:[%s336 + $0x1c8] sm:$0xff]
        %v425 = vld [vmem:[%s336 + $0x1d0] sm:$0xff]
        %v426 = vld [vmem:[%s336 + $0x1d8] sm:$0xff]
        %v427 = vld [vmem:[%s336 + $0x1e0] sm:$0xff]
        %v428 = vld [vmem:[%s336 + $0x1e8] sm:$0xff]
        %v429 = vld [vmem:[%s336 + $0x1f0] sm:$0xff]
        %v430 = vld [vmem:[%s336 + $0x1f8] sm:$0xff]
        %v431 = vld [vmem:[%s336 + $0x200] sm:$0xff]
        %v432 = vld [vmem:[%s336 + $0x208] sm:$0xff]
        %v433 = vld [vmem:[%s336 + $0x210] sm:$0xff]
        %v434 = vld [vmem:[%s336 + $0x218] sm:$0xff]
        %v435 = vld [vmem:[%s336 + $0x220] sm:$0xff]
        %v436 = vld [vmem:[%s336 + $0x228] sm:$0xff]
        %v437 = vld [vmem:[%s336 + $0x230] sm:$0xff]
        %v438 = vld [vmem:[%s336 + $0x238] sm:$0xff]
        %v439 = vld [vmem:[%s336 + $0x240] sm:$0xff]
        %v440 = vld [vmem:[%s336 + $0x248] sm:$0xff]
        %v441 = vld [vmem:[%s336 + $0x250] sm:$0xff]
        %v442 = vld [vmem:[%s336 + $0x258] sm:$0xff]
        %v443 = vld [vmem:[%s336 + $0x260] sm:$0xff]
        %v444 = vld [vmem:[%s336 + $0x268] sm:$0xff]
        %v445 = vld [vmem:[%s336 + $0x270] sm:$0xff]
        %v446 = vld [vmem:[%s336 + $0x278] sm:$0xff]
        %v447 = vld [vmem:[%s336 + $0x280] sm:$0xff]
        %v448 = vld [vmem:[%s336 + $0x288] sm:$0xff]
        %v449 = vld [vmem:[%s336 + $0x290] sm:$0xff]
        %v450 = vld [vmem:[%s336 + $0x298] sm:$0xff]
        %v451 = vld [vmem:[%s336 + $0x2a0] sm:$0xff]
        %v452 = vld [vmem:[%s336 + $0x2a8] sm:$0xff]
        %v453 = vld [vmem:[%s336 + $0x2b0] sm:$0xff]
        %v454 = vld [vmem:[%s336 + $0x2b8] sm:$0xff]
        %v455 = vld [vmem:[%s336 + $0x2c0] sm:$0xff]
        %v456 = vld [vmem:[%s336 + $0x2c8] sm:$0xff]
        %v457 = vld [vmem:[%s336 + $0x2d0] sm:$0xff]
        %v458 = vld [vmem:[%s336 + $0x2d8] sm:$0xff]
        %v459 = vld [vmem:[%s336 + $0x2e0] sm:$0xff]
        %v460 = vld [vmem:[%s336 + $0x2e8] sm:$0xff]
        %v461 = vld [vmem:[%s336 + $0x2f0] sm:$0xff]
        %v462 = vld [vmem:[%s336 + $0x2f8] sm:$0xff]
        %v463 = vld [vmem:[%s336 + $0x300] sm:$0xff]
        %v464 = vld [vmem:[%s336 + $0x308] sm:$0xff]
        %v465 = vld [vmem:[%s336 + $0x310] sm:$0xff]
        %v466 = vld [vmem:[%s336 + $0x318] sm:$0xff]
        %v467 = vld [vmem:[%s336 + $0x320] sm:$0xff]
        %v468 = vld [vmem:[%s336 + $0x328] sm:$0xff]
        %v469 = vld [vmem:[%s336 + $0x330] sm:$0xff]
        %v470 = vld [vmem:[%s336 + $0x338] sm:$0xff]
        %v471 = vld [vmem:[%s336 + $0x340] sm:$0xff]
        %v472 = vld [vmem:[%s336 + $0x348] sm:$0xff]
        %v473 = vld [vmem:[%s336 + $0x350] sm:$0xff]
        %v474 = vld [vmem:[%s336 + $0x358] sm:$0xff]
        %v475 = vld [vmem:[%s336 + $0x360] sm:$0xff]
        %v476 = vld [vmem:[%s336 + $0x368] sm:$0xff]
        %v477 = vld [vmem:[%s336 + $0x370] sm:$0xff]
        %v478 = vld [vmem:[%s336 + $0x378] sm:$0xff]
        %v479 = vld [vmem:[%s336 + $0x380] sm:$0xff]
        %v480 = vld [vmem:[%s336 + $0x388] sm:$0xff]
        %v481 = vld [vmem:[%s336 + $0x390] sm:$0xff]
        %v482 = vld [vmem:[%s336 + $0x398] sm:$0xff]
        %v483 = vld [vmem:[%s336 + $0x3a0] sm:$0xff]
        %v484 = vld [vmem:[%s336 + $0x3a8] sm:$0xff]
        %v485 = vld [vmem:[%s336 + $0x3b0] sm:$0xff]
        %v486 = vld [vmem:[%s336 + $0x3b8] sm:$0xff]
        %v487 = vld [vmem:[%s336 + $0x3c0] sm:$0xff]
        %v488 = vld [vmem:[%s336 + $0x3c8] sm:$0xff]
        %v489 = vld [vmem:[%s336 + $0x3d0] sm:$0xff]
        %v490 = vld [vmem:[%s336 + $0x3d8] sm:$0xff]
        %v491 = vld [vmem:[%s336 + $0x3e0] sm:$0xff]
        %v492 = vld [vmem:[%s336 + $0x3e8] sm:$0xff]
        %v493 = vld [vmem:[%s336 + $0x3f0] sm:$0xff]
        %v494 = vld [vmem:[%s336 + $0x3f8] sm:$0xff]
        %v495 = vld [vmem:[%s349] sm:$0xff]
        %v496 = vld [vmem:[%s349 + $0x8] sm:$0xff]
        %v497 = vlaneseq
        %v498 = vshrl.u32 %v497, 7
        %v499 = vsub.s32 0, %v498
        %v500 = vrot.slane %v366, %v499
        %vm501 = vcmask 130048
        %v503 = vsel %vm501, %v367, 0
        %v506 = vsel %vm501, %v368, 0
        %v509 = vsel %vm501, %v369, 0
        %v512 = vsel %vm501, %v370, 0
        %v515 = vsel %vm501, %v371, 0
        %v518 = vsel %vm501, %v372, 0
        %v521 = vsel %vm501, %v373, 0
        %v524 = vsel %vm501, %v374, 0
        %v527 = vsel %vm501, %v375, 0
        %v530 = vsel %vm501, %v376, 0
        %v533 = vsel %vm501, %v377, 0
        %v536 = vsel %vm501, %v378, 0
        %v539 = vsel %vm501, %v379, 0
        %v542 = vsel %vm501, %v380, 0
        %v545 = vsel %vm501, %v381, 0
        %v548 = vsel %vm501, %v382, 0
        %v551 = vsel %vm501, %v383, 0
        %v554 = vsel %vm501, %v384, 0
        %v557 = vsel %vm501, %v385, 0
        %v560 = vsel %vm501, %v386, 0
        %v563 = vsel %vm501, %v387, 0
        %v566 = vsel %vm501, %v388, 0
        %v569 = vsel %vm501, %v389, 0
        %v572 = vsel %vm501, %v390, 0
        %v575 = vsel %vm501, %v391, 0
        %v578 = vsel %vm501, %v392, 0
        %v581 = vsel %vm501, %v393, 0
        %v584 = vsel %vm501, %v394, 0
        %v587 = vsel %vm501, %v395, 0
        %v590 = vsel %vm501, %v396, 0
        %v593 = vsel %vm501, %v397, 0
        %v596 = vsel %vm501, %v398, 0
        %v599 = vsel %vm501, %v399, 0
        %v602 = vsel %vm501, %v400, 0
        %v605 = vsel %vm501, %v401, 0
        %v608 = vsel %vm501, %v402, 0
        %v611 = vsel %vm501, %v403, 0
        %v614 = vsel %vm501, %v404, 0
        %v617 = vsel %vm501, %v405, 0
        %v620 = vsel %vm501, %v406, 0
        %v623 = vsel %vm501, %v407, 0
        %v626 = vsel %vm501, %v408, 0
        %v629 = vsel %vm501, %v409, 0
        %v632 = vsel %vm501, %v410, 0
        %v635 = vsel %vm501, %v411, 0
        %v638 = vsel %vm501, %v412, 0
        %v641 = vsel %vm501, %v413, 0
        %v644 = vsel %vm501, %v414, 0
        %v647 = vsel %vm501, %v415, 0
        %v650 = vsel %vm501, %v416, 0
        %v653 = vsel %vm501, %v417, 0
        %v656 = vsel %vm501, %v418, 0
        %v659 = vsel %vm501, %v419, 0
        %v662 = vsel %vm501, %v420, 0
        %v665 = vsel %vm501, %v421, 0
        %v668 = vsel %vm501, %v422, 0
        %v671 = vsel %vm501, %v423, 0
        %v674 = vsel %vm501, %v424, 0
        %v677 = vsel %vm501, %v425, 0
        %v680 = vsel %vm501, %v426, 0
        %v683 = vsel %vm501, %v427, 0
        %v686 = vsel %vm501, %v428, 0
        %v689 = vsel %vm501, %v429, 0
        %v692 = vsel %vm501, %v430, 0
        %v695 = vsel %vm501, %v431, 0
        %v698 = vsel %vm501, %v432, 0
        %v701 = vsel %vm501, %v433, 0
        %v704 = vsel %vm501, %v434, 0
        %v707 = vsel %vm501, %v435, 0
        %v710 = vsel %vm501, %v436, 0
        %v713 = vsel %vm501, %v437, 0
        %v716 = vsel %vm501, %v438, 0
        %v719 = vsel %vm501, %v439, 0
        %v722 = vsel %vm501, %v440, 0
        %v725 = vsel %vm501, %v441, 0
        %v728 = vsel %vm501, %v442, 0
        %v731 = vsel %vm501, %v443, 0
        %v734 = vsel %vm501, %v444, 0
        %v737 = vsel %vm501, %v445, 0
        %v740 = vsel %vm501, %v446, 0
        %v743 = vsel %vm501, %v447, 0
        %v746 = vsel %vm501, %v448, 0
        %v749 = vsel %vm501, %v449, 0
        %v752 = vsel %vm501, %v450, 0
        %v755 = vsel %vm501, %v451, 0
        %v758 = vsel %vm501, %v452, 0
        %v761 = vsel %vm501, %v453, 0
        %v764 = vsel %vm501, %v454, 0
        %v767 = vsel %vm501, %v455, 0
        %v770 = vsel %vm501, %v456, 0
        %v773 = vsel %vm501, %v457, 0
        %v776 = vsel %vm501, %v458, 0
        %v779 = vsel %vm501, %v459, 0
        %v782 = vsel %vm501, %v460, 0
        %v785 = vsel %vm501, %v461, 0
        %v788 = vsel %vm501, %v462, 0
        %v791 = vsel %vm501, %v463, 0
        %v794 = vsel %vm501, %v464, 0
        %v797 = vsel %vm501, %v465, 0
        %v800 = vsel %vm501, %v466, 0
        %v803 = vsel %vm501, %v467, 0
        %v806 = vsel %vm501, %v468, 0
        %v809 = vsel %vm501, %v469, 0
        %v812 = vsel %vm501, %v470, 0
        %v815 = vsel %vm501, %v471, 0
        %v818 = vsel %vm501, %v472, 0
        %v821 = vsel %vm501, %v473, 0
        %v824 = vsel %vm501, %v474, 0
        %v827 = vsel %vm501, %v475, 0
        %v830 = vsel %vm501, %v476, 0
        %v833 = vsel %vm501, %v477, 0
        %v836 = vsel %vm501, %v478, 0
        %v839 = vsel %vm501, %v479, 0
        %v842 = vsel %vm501, %v480, 0
        %v845 = vsel %vm501, %v481, 0
        %v848 = vsel %vm501, %v482, 0
        %v851 = vsel %vm501, %v483, 0
        %v854 = vsel %vm501, %v484, 0
        %v857 = vsel %vm501, %v485, 0
        %v860 = vsel %vm501, %v486, 0
        %v863 = vsel %vm501, %v487, 0
        %v866 = vsel %vm501, %v488, 0
        %v869 = vsel %vm501, %v489, 0
        %v872 = vsel %vm501, %v490, 0
        %v875 = vsel %vm501, %v491, 0
        %v878 = vsel %vm501, %v492, 0
        %v881 = vsel %vm501, %v493, 0
        %v884 = vsel %vm501, %v494, 0
        %886 = vmatprep.subr.mxu0 0.0
        %887 = vmatpush1.msra.mxu0 %v495
        %888 = vmatprep.subr.mxu0 0.0
        %889 = vmatpush1.msra.mxu0 %v496
        %890 = vmatprep.subr.mxu0 0.0
        %891 = vmatpush1.msra.mxu0 0.0
        %892 = vmatprep.subr.mxu0 0.0
        %893 = vmatpush1.msra.mxu0 0.0
        %894 = vmatprep.subr.mxu0 0.0
        %895 = vmatpush1.msra.mxu0 0.0
        %896 = vmatprep.subr.mxu0 0.0
        %897 = vmatpush1.msra.mxu0 0.0
        %898 = vmatprep.subr.mxu0 0.0
        %899 = vmatpush1.msra.mxu0 0.0
        %900 = vmatprep.subr.mxu0 0.0
        %901 = vmatpush1.msra.mxu0 0.0
        %902 = vmatprep.subr.mxu0 0.0
        %903 = vmatpush1.msra.mxu0 0.0
        %904 = vmatprep.subr.mxu0 0.0
        %905 = vmatpush1.msra.mxu0 0.0
        %906 = vmatprep.subr.mxu0 0.0
        %907 = vmatpush1.msra.mxu0 0.0
        %908 = vmatprep.subr.mxu0 0.0
        %909 = vmatpush1.msra.mxu0 0.0
        %910 = vmatprep.subr.mxu0 0.0
        %911 = vmatpush1.msra.mxu0 0.0
        %912 = vmatprep.subr.mxu0 0.0
        %913 = vmatpush1.msra.mxu0 0.0
        %914 = vmatprep.subr.mxu0 0.0
        %915 = vmatpush1.msra.mxu0 0.0
        %916 = vmatprep.subr.mxu0 0.0
        %917 = vmatpush1.msra.mxu0 0.0
        %918 = vmatprep.subr.mxu0 0.0
        %919 = vmatpush1.msra.mxu0 0.0
        %920 = vmatprep.subr.mxu0 0.0
        %921 = vmatpush1.msra.mxu0 0.0
        %922 = vmatprep.subr.mxu0 0.0
        %923 = vmatpush1.msra.mxu0 0.0
        %924 = vmatprep.subr.mxu0 0.0
        %925 = vmatpush1.msra.mxu0 0.0
        %926 = vmatprep.subr.mxu0 0.0
        %927 = vmatpush1.msra.mxu0 0.0
        %928 = vmatprep.subr.mxu0 0.0
        %929 = vmatpush1.msra.mxu0 0.0
        %930 = vmatprep.subr.mxu0 0.0
        %931 = vmatpush1.msra.mxu0 0.0
        %932 = vmatprep.subr.mxu0 0.0
        %933 = vmatpush1.msra.mxu0 0.0
        %934 = vmatprep.subr.mxu0 0.0
        %935 = vmatpush1.msra.mxu0 0.0
        %936 = vmatprep.subr.mxu0 0.0
        %937 = vmatpush1.msra.mxu0 0.0
        %938 = vmatprep.subr.mxu0 0.0
        %939 = vmatpush1.msra.mxu0 0.0
        %940 = vmatprep.subr.mxu0 0.0
        %941 = vmatpush1.msra.mxu0 0.0
        %942 = vmatprep.subr.mxu0 0.0
        %943 = vmatpush1.msra.mxu0 0.0
        %944 = vmatprep.subr.mxu0 0.0
        %945 = vmatpush1.msra.mxu0 0.0
        %946 = vmatprep.subr.mxu0 0.0
        %947 = vmatpush1.msra.mxu0 0.0
        %948 = vmatprep.subr.mxu0 0.0
        %949 = vmatpush1.msra.mxu0 0.0
        %950 = vmatprep.mubr.f32.mxu0 0.0
        %951 = vmatmul.mubr.f32.gmra.mrb[0].mxu0 %v503
        %v952 = vpop.f32.mrb[0].mxu0
        %v953 = vadd.f32 %v500, %v952
        %v954 = vpop.f32.mrb[0].mxu0
        %955 = vmatprep.mubr.f32.mxu0 0.0
        %956 = vmatmul.mubr.f32.gmra.mrb[0].mxu0 %v506
        %v957 = vpop.f32.mrb[0].mxu0
        %v958 = vadd.f32 %v500, %v957
        %v959 = vpop.f32.mrb[0].mxu0
        %960 = vmatprep.mubr.f32.mxu0 0.0
        %961 = vmatmul.mubr.f32.gmra.mrb[0].mxu0 %v509
        %v962 = vpop.f32.mrb[0].mxu0
        %v963 = vadd.f32 %v500, %v962
        %v964 = vpop.f32.mrb[0].mxu0
        %965 = vmatprep.mubr.f32.mxu0 0.0
        %966 = vmatmul.mubr.f32.gmra.mrb[0].mxu0 %v512
        %v967 = vpop.f32.mrb[0].mxu0
        %v968 = vadd.f32 %v500, %v967
        %v969 = vpop.f32.mrb[0].mxu0
        %970 = vmatprep.mubr.f32.mxu0 0.0
        %971 = vmatmul.mubr.f32.gmra.mrb[0].mxu0 %v515
        %v972 = vpop.f32.mrb[0].mxu0
        %v973 = vadd.f32 %v500, %v972
        %v974 = vpop.f32.mrb[0].mxu0
        %975 = vmatprep.mubr.f32.mxu0 0.0
        %976 = vmatmul.mubr.f32.gmra.mrb[0].mxu0 %v518
        %v977 = vpop.f32.mrb[0].mxu0
        %v978 = vadd.f32 %v500, %v977
        %v979 = vpop.f32.mrb[0].mxu0
        %980 = vmatprep.mubr.f32.mxu0 0.0
        %981 = vmatmul.mubr.f32.gmra.mrb[0].mxu0 %v521
        %v982 = vpop.f32.mrb[0].mxu0
        %v983 = vadd.f32 %v500, %v982
        %v984 = vpop.f32.mrb[0].mxu0
        %985 = vmatprep.mubr.f32.mxu0 0.0
        %986 = vmatmul.mubr.f32.gmra.mrb[0].mxu0 %v524
        %v987 = vpop.f32.mrb[0].mxu0
        %v988 = vadd.f32 %v500, %v987
        %v989 = vpop.f32.mrb[0].mxu0
        %990 = vmatprep.mubr.f32.mxu0 0.0
        %991 = vmatmul.mubr.f32.gmra.mrb[0].mxu0 %v527
        %v992 = vpop.f32.mrb[0].mxu0
        %v993 = vadd.f32 %v500, %v992
        %v994 = vpop.f32.mrb[0].mxu0
        %995 = vmatprep.mubr.f32.mxu0 0.0
        %996 = vmatmul.mubr.f32.gmra.mrb[0].mxu0 %v530
        %v997 = vpop.f32.mrb[0].mxu0
        %v998 = vadd.f32 %v500, %v997
        %v999 = vpop.f32.mrb[0].mxu0
        %1000 = vmatprep.mubr.f32.mxu0 0.0
        %1001 = vmatmul.mubr.f32.gmra.mrb[0].mxu0 %v533
        %v1002 = vpop.f32.mrb[0].mxu0
        %v1003 = vadd.f32 %v500, %v1002
        %v1004 = vpop.f32.mrb[0].mxu0
        %1005 = vmatprep.mubr.f32.mxu0 0.0
        %1006 = vmatmul.mubr.f32.gmra.mrb[0].mxu0 %v536
        %v1007 = vpop.f32.mrb[0].mxu0
        %v1008 = vadd.f32 %v500, %v1007
        %v1009 = vpop.f32.mrb[0].mxu0
        %1010 = vmatprep.mubr.f32.mxu0 0.0
        %1011 = vmatmul.mubr.f32.gmra.mrb[0].mxu0 %v539
        %v1012 = vpop.f32.mrb[0].mxu0
        %v1013 = vadd.f32 %v500, %v1012
        %v1014 = vpop.f32.mrb[0].mxu0
        %1015 = vmatprep.mubr.f32.mxu0 0.0
        %1016 = vmatmul.mubr.f32.gmra.mrb[0].mxu0 %v542
        %v1017 = vpop.f32.mrb[0].mxu0
        %v1018 = vadd.f32 %v500, %v1017
        %v1019 = vpop.f32.mrb[0].mxu0
        %1020 = vmatprep.mubr.f32.mxu0 0.0
        %1021 = vmatmul.mubr.f32.gmra.mrb[0].mxu0 %v545
        %v1022 = vpop.f32.mrb[0].mxu0
        %v1023 = vadd.f32 %v500, %v1022
        %v1024 = vpop.f32.mrb[0].mxu0
        %1025 = vmatprep.mubr.f32.mxu0 0.0
        %1026 = vmatmul.mubr.f32.gmra.mrb[0].mxu0 %v548
        %v1027 = vpop.f32.mrb[0].mxu0
        %v1028 = vadd.f32 %v500, %v1027
        %v1029 = vpop.f32.mrb[0].mxu0
        %1030 = vmatprep.mubr.f32.mxu0 0.0
        %1031 = vmatmul.mubr.f32.gmra.mrb[0].mxu0 %v551
        %v1032 = vpop.f32.mrb[0].mxu0
        %v1033 = vadd.f32 %v500, %v1032
        %v1034 = vpop.f32.mrb[0].mxu0
        %1035 = vmatprep.mubr.f32.mxu0 0.0
        %1036 = vmatmul.mubr.f32.gmra.mrb[0].mxu0 %v554
        %v1037 = vpop.f32.mrb[0].mxu0
        %v1038 = vadd.f32 %v500, %v1037
        %v1039 = vpop.f32.mrb[0].mxu0
        %1040 = vmatprep.mubr.f32.mxu0 0.0
        %1041 = vmatmul.mubr.f32.gmra.mrb[0].mxu0 %v557
        %v1042 = vpop.f32.mrb[0].mxu0
        %v1043 = vadd.f32 %v500, %v1042
        %v1044 = vpop.f32.mrb[0].mxu0
        %1045 = vmatprep.mubr.f32.mxu0 0.0
        %1046 = vmatmul.mubr.f32.gmra.mrb[0].mxu0 %v560
        %v1047 = vpop.f32.mrb[0].mxu0
        %v1048 = vadd.f32 %v500, %v1047
        %v1049 = vpop.f32.mrb[0].mxu0
        %1050 = vmatprep.mubr.f32.mxu0 0.0
        %1051 = vmatmul.mubr.f32.gmra.mrb[0].mxu0 %v563
        %v1052 = vpop.f32.mrb[0].mxu0
        %v1053 = vadd.f32 %v500, %v1052
        %v1054 = vpop.f32.mrb[0].mxu0
        %1055 = vmatprep.mubr.f32.mxu0 0.0
        %1056 = vmatmul.mubr.f32.gmra.mrb[0].mxu0 %v566
        %v1057 = vpop.f32.mrb[0].mxu0
        %v1058 = vadd.f32 %v500, %v1057
        %v1059 = vpop.f32.mrb[0].mxu0
        %1060 = vmatprep.mubr.f32.mxu0 0.0
        %1061 = vmatmul.mubr.f32.gmra.mrb[0].mxu0 %v569
        %v1062 = vpop.f32.mrb[0].mxu0
        %v1063 = vadd.f32 %v500, %v1062
        %v1064 = vpop.f32.mrb[0].mxu0
        %1065 = vmatprep.mubr.f32.mxu0 0.0
        %1066 = vmatmul.mubr.f32.gmra.mrb[0].mxu0 %v572
        %v1067 = vpop.f32.mrb[0].mxu0
        %v1068 = vadd.f32 %v500, %v1067
        %v1069 = vpop.f32.mrb[0].mxu0
        %1070 = vmatprep.mubr.f32.mxu0 0.0
        %1071 = vmatmul.mubr.f32.gmra.mrb[0].mxu0 %v575
        %v1072 = vpop.f32.mrb[0].mxu0
        %v1073 = vadd.f32 %v500, %v1072
        %v1074 = vpop.f32.mrb[0].mxu0
        %1075 = vmatprep.mubr.f32.mxu0 0.0
        %1076 = vmatmul.mubr.f32.gmra.mrb[0].mxu0 %v578
        %v1077 = vpop.f32.mrb[0].mxu0
        %v1078 = vadd.f32 %v500, %v1077
        %v1079 = vpop.f32.mrb[0].mxu0
        %1080 = vmatprep.mubr.f32.mxu0 0.0
        %1081 = vmatmul.mubr.f32.gmra.mrb[0].mxu0 %v581
        %v1082 = vpop.f32.mrb[0].mxu0
        %v1083 = vadd.f32 %v500, %v1082
        %v1084 = vpop.f32.mrb[0].mxu0
        %1085 = vmatprep.mubr.f32.mxu0 0.0
        %1086 = vmatmul.mubr.f32.gmra.mrb[0].mxu0 %v584
        %v1087 = vpop.f32.mrb[0].mxu0
        %v1088 = vadd.f32 %v500, %v1087
        %v1089 = vpop.f32.mrb[0].mxu0
        %1090 = vmatprep.mubr.f32.mxu0 0.0
        %1091 = vmatmul.mubr.f32.gmra.mrb[0].mxu0 %v587
        %v1092 = vpop.f32.mrb[0].mxu0
        %v1093 = vadd.f32 %v500, %v1092
        %v1094 = vpop.f32.mrb[0].mxu0
        %1095 = vmatprep.mubr.f32.mxu0 0.0
        %1096 = vmatmul.mubr.f32.gmra.mrb[0].mxu0 %v590
        %v1097 = vpop.f32.mrb[0].mxu0
        %v1098 = vadd.f32 %v500, %v1097
        %v1099 = vpop.f32.mrb[0].mxu0
        %1100 = vmatprep.mubr.f32.mxu0 0.0
        %1101 = vmatmul.mubr.f32.gmra.mrb[0].mxu0 %v593
        %v1102 = vpop.f32.mrb[0].mxu0
        %v1103 = vadd.f32 %v500, %v1102
        %v1104 = vpop.f32.mrb[0].mxu0
        %1105 = vmatprep.mubr.f32.mxu0 0.0
        %1106 = vmatmul.mubr.f32.gmra.mrb[0].mxu0 %v596
        %v1107 = vpop.f32.mrb[0].mxu0
        %v1108 = vadd.f32 %v500, %v1107
        %v1109 = vpop.f32.mrb[0].mxu0
        %1110 = vmatprep.mubr.f32.mxu0 0.0
        %1111 = vmatmul.mubr.f32.gmra.mrb[0].mxu0 %v599
        %v1112 = vpop.f32.mrb[0].mxu0
        %v1113 = vadd.f32 %v500, %v1112
        %v1114 = vpop.f32.mrb[0].mxu0
        %1115 = vmatprep.mubr.f32.mxu0 0.0
        %1116 = vmatmul.mubr.f32.gmra.mrb[0].mxu0 %v602
        %v1117 = vpop.f32.mrb[0].mxu0
        %v1118 = vadd.f32 %v500, %v1117
        %v1119 = vpop.f32.mrb[0].mxu0
        %1120 = vmatprep.mubr.f32.mxu0 0.0
        %1121 = vmatmul.mubr.f32.gmra.mrb[0].mxu0 %v605
        %v1122 = vpop.f32.mrb[0].mxu0
        %v1123 = vadd.f32 %v500, %v1122
        %v1124 = vpop.f32.mrb[0].mxu0
        %1125 = vmatprep.mubr.f32.mxu0 0.0
        %1126 = vmatmul.mubr.f32.gmra.mrb[0].mxu0 %v608
        %v1127 = vpop.f32.mrb[0].mxu0
        %v1128 = vadd.f32 %v500, %v1127
        %v1129 = vpop.f32.mrb[0].mxu0
        %1130 = vmatprep.mubr.f32.mxu0 0.0
        %1131 = vmatmul.mubr.f32.gmra.mrb[0].mxu0 %v611
        %v1132 = vpop.f32.mrb[0].mxu0
        %v1133 = vadd.f32 %v500, %v1132
        %v1134 = vpop.f32.mrb[0].mxu0
        %1135 = vmatprep.mubr.f32.mxu0 0.0
        %1136 = vmatmul.mubr.f32.gmra.mrb[0].mxu0 %v614
        %v1137 = vpop.f32.mrb[0].mxu0
        %v1138 = vadd.f32 %v500, %v1137
        %v1139 = vpop.f32.mrb[0].mxu0
        %1140 = vmatprep.mubr.f32.mxu0 0.0
        %1141 = vmatmul.mubr.f32.gmra.mrb[0].mxu0 %v617
        %v1142 = vpop.f32.mrb[0].mxu0
        %v1143 = vadd.f32 %v500, %v1142
        %v1144 = vpop.f32.mrb[0].mxu0
        %1145 = vmatprep.mubr.f32.mxu0 0.0
        %1146 = vmatmul.mubr.f32.gmra.mrb[0].mxu0 %v620
        %v1147 = vpop.f32.mrb[0].mxu0
        %v1148 = vadd.f32 %v500, %v1147
        %v1149 = vpop.f32.mrb[0].mxu0
        %1150 = vmatprep.mubr.f32.mxu0 0.0
        %1151 = vmatmul.mubr.f32.gmra.mrb[0].mxu0 %v623
        %v1152 = vpop.f32.mrb[0].mxu0
        %v1153 = vadd.f32 %v500, %v1152
        %v1154 = vpop.f32.mrb[0].mxu0
        %1155 = vmatprep.mubr.f32.mxu0 0.0
        %1156 = vmatmul.mubr.f32.gmra.mrb[0].mxu0 %v626
        %v1157 = vpop.f32.mrb[0].mxu0
        %v1158 = vadd.f32 %v500, %v1157
        %v1159 = vpop.f32.mrb[0].mxu0
        %1160 = vmatprep.mubr.f32.mxu0 0.0
        %1161 = vmatmul.mubr.f32.gmra.mrb[0].mxu0 %v629
        %v1162 = vpop.f32.mrb[0].mxu0
        %v1163 = vadd.f32 %v500, %v1162
        %v1164 = vpop.f32.mrb[0].mxu0
        %1165 = vmatprep.mubr.f32.mxu0 0.0
        %1166 = vmatmul.mubr.f32.gmra.mrb[0].mxu0 %v632
        %v1167 = vpop.f32.mrb[0].mxu0
        %v1168 = vadd.f32 %v500, %v1167
        %v1169 = vpop.f32.mrb[0].mxu0
        %1170 = vmatprep.mubr.f32.mxu0 0.0
        %1171 = vmatmul.mubr.f32.gmra.mrb[0].mxu0 %v635
        %v1172 = vpop.f32.mrb[0].mxu0
        %v1173 = vadd.f32 %v500, %v1172
        %v1174 = vpop.f32.mrb[0].mxu0
        %1175 = vmatprep.mubr.f32.mxu0 0.0
        %1176 = vmatmul.mubr.f32.gmra.mrb[0].mxu0 %v638
        %v1177 = vpop.f32.mrb[0].mxu0
        %v1178 = vadd.f32 %v500, %v1177
        %v1179 = vpop.f32.mrb[0].mxu0
        %1180 = vmatprep.mubr.f32.mxu0 0.0
        %1181 = vmatmul.mubr.f32.gmra.mrb[0].mxu0 %v641
        %v1182 = vpop.f32.mrb[0].mxu0
        %v1183 = vadd.f32 %v500, %v1182
        %v1184 = vpop.f32.mrb[0].mxu0
        %1185 = vmatprep.mubr.f32.mxu0 0.0
        %1186 = vmatmul.mubr.f32.gmra.mrb[0].mxu0 %v644
        %v1187 = vpop.f32.mrb[0].mxu0
        %v1188 = vadd.f32 %v500, %v1187
        %v1189 = vpop.f32.mrb[0].mxu0
        %1190 = vmatprep.mubr.f32.mxu0 0.0
        %1191 = vmatmul.mubr.f32.gmra.mrb[0].mxu0 %v647
        %v1192 = vpop.f32.mrb[0].mxu0
        %v1193 = vadd.f32 %v500, %v1192
        %v1194 = vpop.f32.mrb[0].mxu0
        %1195 = vmatprep.mubr.f32.mxu0 0.0
        %1196 = vmatmul.mubr.f32.gmra.mrb[0].mxu0 %v650
        %v1197 = vpop.f32.mrb[0].mxu0
        %v1198 = vadd.f32 %v500, %v1197
        %v1199 = vpop.f32.mrb[0].mxu0
        %1200 = vmatprep.mubr.f32.mxu0 0.0
        %1201 = vmatmul.mubr.f32.gmra.mrb[0].mxu0 %v653
        %v1202 = vpop.f32.mrb[0].mxu0
        %v1203 = vadd.f32 %v500, %v1202
        %v1204 = vpop.f32.mrb[0].mxu0
        %1205 = vmatprep.mubr.f32.mxu0 0.0
        %1206 = vmatmul.mubr.f32.gmra.mrb[0].mxu0 %v656
        %v1207 = vpop.f32.mrb[0].mxu0
        %v1208 = vadd.f32 %v500, %v1207
        %v1209 = vpop.f32.mrb[0].mxu0
        %1210 = vmatprep.mubr.f32.mxu0 0.0
        %1211 = vmatmul.mubr.f32.gmra.mrb[0].mxu0 %v659
        %v1212 = vpop.f32.mrb[0].mxu0
        %v1213 = vadd.f32 %v500, %v1212
        %v1214 = vpop.f32.mrb[0].mxu0
        %1215 = vmatprep.mubr.f32.mxu0 0.0
        %1216 = vmatmul.mubr.f32.gmra.mrb[0].mxu0 %v662
        %v1217 = vpop.f32.mrb[0].mxu0
        %v1218 = vadd.f32 %v500, %v1217
        %v1219 = vpop.f32.mrb[0].mxu0
        %1220 = vmatprep.mubr.f32.mxu0 0.0
        %1221 = vmatmul.mubr.f32.gmra.mrb[0].mxu0 %v665
        %v1222 = vpop.f32.mrb[0].mxu0
        %v1223 = vadd.f32 %v500, %v1222
        %v1224 = vpop.f32.mrb[0].mxu0
        %1225 = vmatprep.mubr.f32.mxu0 0.0
        %1226 = vmatmul.mubr.f32.gmra.mrb[0].mxu0 %v668
        %v1227 = vpop.f32.mrb[0].mxu0
        %v1228 = vadd.f32 %v500, %v1227
        %v1229 = vpop.f32.mrb[0].mxu0
        %1230 = vmatprep.mubr.f32.mxu0 0.0
        %1231 = vmatmul.mubr.f32.gmra.mrb[0].mxu0 %v671
        %v1232 = vpop.f32.mrb[0].mxu0
        %v1233 = vadd.f32 %v500, %v1232
        %v1234 = vpop.f32.mrb[0].mxu0
        %1235 = vmatprep.mubr.f32.mxu0 0.0
        %1236 = vmatmul.mubr.f32.gmra.mrb[0].mxu0 %v674
        %v1237 = vpop.f32.mrb[0].mxu0
        %v1238 = vadd.f32 %v500, %v1237
        %v1239 = vpop.f32.mrb[0].mxu0
        %1240 = vmatprep.mubr.f32.mxu0 0.0
        %1241 = vmatmul.mubr.f32.gmra.mrb[0].mxu0 %v677
        %v1242 = vpop.f32.mrb[0].mxu0
        %v1243 = vadd.f32 %v500, %v1242
        %v1244 = vpop.f32.mrb[0].mxu0
        %1245 = vmatprep.mubr.f32.mxu0 0.0
        %1246 = vmatmul.mubr.f32.gmra.mrb[0].mxu0 %v680
        %v1247 = vpop.f32.mrb[0].mxu0
        %v1248 = vadd.f32 %v500, %v1247
        %v1249 = vpop.f32.mrb[0].mxu0
        %1250 = vmatprep.mubr.f32.mxu0 0.0
        %1251 = vmatmul.mubr.f32.gmra.mrb[0].mxu0 %v683
        %v1252 = vpop.f32.mrb[0].mxu0
        %v1253 = vadd.f32 %v500, %v1252
        %v1254 = vpop.f32.mrb[0].mxu0
        %1255 = vmatprep.mubr.f32.mxu0 0.0
        %1256 = vmatmul.mubr.f32.gmra.mrb[0].mxu0 %v686
        %v1257 = vpop.f32.mrb[0].mxu0
        %v1258 = vadd.f32 %v500, %v1257
        %v1259 = vpop.f32.mrb[0].mxu0
        %1260 = vmatprep.mubr.f32.mxu0 0.0
        %1261 = vmatmul.mubr.f32.gmra.mrb[0].mxu0 %v689
        %v1262 = vpop.f32.mrb[0].mxu0
        %v1263 = vadd.f32 %v500, %v1262
        %v1264 = vpop.f32.mrb[0].mxu0
        %1265 = vmatprep.mubr.f32.mxu0 0.0
        %1266 = vmatmul.mubr.f32.gmra.mrb[0].mxu0 %v692
        %v1267 = vpop.f32.mrb[0].mxu0
        %v1268 = vadd.f32 %v500, %v1267
        %v1269 = vpop.f32.mrb[0].mxu0
        %1270 = vmatprep.mubr.f32.mxu0 0.0
        %1271 = vmatmul.mubr.f32.gmra.mrb[0].mxu0 %v695
        %v1272 = vpop.f32.mrb[0].mxu0
        %v1273 = vadd.f32 %v500, %v1272
        %v1274 = vpop.f32.mrb[0].mxu0
        %1275 = vmatprep.mubr.f32.mxu0 0.0
        %1276 = vmatmul.mubr.f32.gmra.mrb[0].mxu0 %v698
        %v1277 = vpop.f32.mrb[0].mxu0
        %v1278 = vadd.f32 %v500, %v1277
        %v1279 = vpop.f32.mrb[0].mxu0
        %1280 = vmatprep.mubr.f32.mxu0 0.0
        %1281 = vmatmul.mubr.f32.gmra.mrb[0].mxu0 %v701
        %v1282 = vpop.f32.mrb[0].mxu0
        %v1283 = vadd.f32 %v500, %v1282
        %v1284 = vpop.f32.mrb[0].mxu0
        %1285 = vmatprep.mubr.f32.mxu0 0.0
        %1286 = vmatmul.mubr.f32.gmra.mrb[0].mxu0 %v704
        %v1287 = vpop.f32.mrb[0].mxu0
        %v1288 = vadd.f32 %v500, %v1287
        %v1289 = vpop.f32.mrb[0].mxu0
        %1290 = vmatprep.mubr.f32.mxu0 0.0
        %1291 = vmatmul.mubr.f32.gmra.mrb[0].mxu0 %v707
        %v1292 = vpop.f32.mrb[0].mxu0
        %v1293 = vadd.f32 %v500, %v1292
        %v1294 = vpop.f32.mrb[0].mxu0
        %1295 = vmatprep.mubr.f32.mxu0 0.0
        %1296 = vmatmul.mubr.f32.gmra.mrb[0].mxu0 %v710
        %v1297 = vpop.f32.mrb[0].mxu0
        %v1298 = vadd.f32 %v500, %v1297
        %v1299 = vpop.f32.mrb[0].mxu0
        %1300 = vmatprep.mubr.f32.mxu0 0.0
        %1301 = vmatmul.mubr.f32.gmra.mrb[0].mxu0 %v713
        %v1302 = vpop.f32.mrb[0].mxu0
        %v1303 = vadd.f32 %v500, %v1302
        %v1304 = vpop.f32.mrb[0].mxu0
        %1305 = vmatprep.mubr.f32.mxu0 0.0
        %1306 = vmatmul.mubr.f32.gmra.mrb[0].mxu0 %v716
        %v1307 = vpop.f32.mrb[0].mxu0
        %v1308 = vadd.f32 %v500, %v1307
        %v1309 = vpop.f32.mrb[0].mxu0
        %1310 = vmatprep.mubr.f32.mxu0 0.0
        %1311 = vmatmul.mubr.f32.gmra.mrb[0].mxu0 %v719
        %v1312 = vpop.f32.mrb[0].mxu0
        %v1313 = vadd.f32 %v500, %v1312
        %v1314 = vpop.f32.mrb[0].mxu0
        %1315 = vmatprep.mubr.f32.mxu0 0.0
        %1316 = vmatmul.mubr.f32.gmra.mrb[0].mxu0 %v722
        %v1317 = vpop.f32.mrb[0].mxu0
        %v1318 = vadd.f32 %v500, %v1317
        %v1319 = vpop.f32.mrb[0].mxu0
        %1320 = vmatprep.mubr.f32.mxu0 0.0
        %1321 = vmatmul.mubr.f32.gmra.mrb[0].mxu0 %v725
        %v1322 = vpop.f32.mrb[0].mxu0
        %v1323 = vadd.f32 %v500, %v1322
        %v1324 = vpop.f32.mrb[0].mxu0
        %1325 = vmatprep.mubr.f32.mxu0 0.0
        %1326 = vmatmul.mubr.f32.gmra.mrb[0].mxu0 %v728
        %v1327 = vpop.f32.mrb[0].mxu0
        %v1328 = vadd.f32 %v500, %v1327
        %v1329 = vpop.f32.mrb[0].mxu0
        %1330 = vmatprep.mubr.f32.mxu0 0.0
        %1331 = vmatmul.mubr.f32.gmra.mrb[0].mxu0 %v731
        %v1332 = vpop.f32.mrb[0].mxu0
        %v1333 = vadd.f32 %v500, %v1332
        %v1334 = vpop.f32.mrb[0].mxu0
        %1335 = vmatprep.mubr.f32.mxu0 0.0
        %1336 = vmatmul.mubr.f32.gmra.mrb[0].mxu0 %v734
        %v1337 = vpop.f32.mrb[0].mxu0
        %v1338 = vadd.f32 %v500, %v1337
        %v1339 = vpop.f32.mrb[0].mxu0
        %1340 = vmatprep.mubr.f32.mxu0 0.0
        %1341 = vmatmul.mubr.f32.gmra.mrb[0].mxu0 %v737
        %v1342 = vpop.f32.mrb[0].mxu0
        %v1343 = vadd.f32 %v500, %v1342
        %v1344 = vpop.f32.mrb[0].mxu0
        %1345 = vmatprep.mubr.f32.mxu0 0.0
        %1346 = vmatmul.mubr.f32.gmra.mrb[0].mxu0 %v740
        %v1347 = vpop.f32.mrb[0].mxu0
        %v1348 = vadd.f32 %v500, %v1347
        %v1349 = vpop.f32.mrb[0].mxu0
        %1350 = vmatprep.mubr.f32.mxu0 0.0
        %1351 = vmatmul.mubr.f32.gmra.mrb[0].mxu0 %v743
        %v1352 = vpop.f32.mrb[0].mxu0
        %v1353 = vadd.f32 %v500, %v1352
        %v1354 = vpop.f32.mrb[0].mxu0
        %1355 = vmatprep.mubr.f32.mxu0 0.0
        %1356 = vmatmul.mubr.f32.gmra.mrb[0].mxu0 %v746
        %v1357 = vpop.f32.mrb[0].mxu0
        %v1358 = vadd.f32 %v500, %v1357
        %v1359 = vpop.f32.mrb[0].mxu0
        %1360 = vmatprep.mubr.f32.mxu0 0.0
        %1361 = vmatmul.mubr.f32.gmra.mrb[0].mxu0 %v749
        %v1362 = vpop.f32.mrb[0].mxu0
        %v1363 = vadd.f32 %v500, %v1362
        %v1364 = vpop.f32.mrb[0].mxu0
        %1365 = vmatprep.mubr.f32.mxu0 0.0
        %1366 = vmatmul.mubr.f32.gmra.mrb[0].mxu0 %v752
        %v1367 = vpop.f32.mrb[0].mxu0
        %v1368 = vadd.f32 %v500, %v1367
        %v1369 = vpop.f32.mrb[0].mxu0
        %1370 = vmatprep.mubr.f32.mxu0 0.0
        %1371 = vmatmul.mubr.f32.gmra.mrb[0].mxu0 %v755
        %v1372 = vpop.f32.mrb[0].mxu0
        %v1373 = vadd.f32 %v500, %v1372
        %v1374 = vpop.f32.mrb[0].mxu0
        %1375 = vmatprep.mubr.f32.mxu0 0.0
        %1376 = vmatmul.mubr.f32.gmra.mrb[0].mxu0 %v758
        %v1377 = vpop.f32.mrb[0].mxu0
        %v1378 = vadd.f32 %v500, %v1377
        %v1379 = vpop.f32.mrb[0].mxu0
        %1380 = vmatprep.mubr.f32.mxu0 0.0
        %1381 = vmatmul.mubr.f32.gmra.mrb[0].mxu0 %v761
        %v1382 = vpop.f32.mrb[0].mxu0
        %v1383 = vadd.f32 %v500, %v1382
        %v1384 = vpop.f32.mrb[0].mxu0
        %1385 = vmatprep.mubr.f32.mxu0 0.0
        %1386 = vmatmul.mubr.f32.gmra.mrb[0].mxu0 %v764
        %v1387 = vpop.f32.mrb[0].mxu0
        %v1388 = vadd.f32 %v500, %v1387
        %v1389 = vpop.f32.mrb[0].mxu0
        %1390 = vmatprep.mubr.f32.mxu0 0.0
        %1391 = vmatmul.mubr.f32.gmra.mrb[0].mxu0 %v767
        %v1392 = vpop.f32.mrb[0].mxu0
        %v1393 = vadd.f32 %v500, %v1392
        %v1394 = vpop.f32.mrb[0].mxu0
        %1395 = vmatprep.mubr.f32.mxu0 0.0
        %1396 = vmatmul.mubr.f32.gmra.mrb[0].mxu0 %v770
        %v1397 = vpop.f32.mrb[0].mxu0
        %v1398 = vadd.f32 %v500, %v1397
        %v1399 = vpop.f32.mrb[0].mxu0
        %1400 = vmatprep.mubr.f32.mxu0 0.0
        %1401 = vmatmul.mubr.f32.gmra.mrb[0].mxu0 %v773
        %v1402 = vpop.f32.mrb[0].mxu0
        %v1403 = vadd.f32 %v500, %v1402
        %v1404 = vpop.f32.mrb[0].mxu0
        %1405 = vmatprep.mubr.f32.mxu0 0.0
        %1406 = vmatmul.mubr.f32.gmra.mrb[0].mxu0 %v776
        %v1407 = vpop.f32.mrb[0].mxu0
        %v1408 = vadd.f32 %v500, %v1407
        %v1409 = vpop.f32.mrb[0].mxu0
        %1410 = vmatprep.mubr.f32.mxu0 0.0
        %1411 = vmatmul.mubr.f32.gmra.mrb[0].mxu0 %v779
        %v1412 = vpop.f32.mrb[0].mxu0
        %v1413 = vadd.f32 %v500, %v1412
        %v1414 = vpop.f32.mrb[0].mxu0
        %1415 = vmatprep.mubr.f32.mxu0 0.0
        %1416 = vmatmul.mubr.f32.gmra.mrb[0].mxu0 %v782
        %v1417 = vpop.f32.mrb[0].mxu0
        %v1418 = vadd.f32 %v500, %v1417
        %v1419 = vpop.f32.mrb[0].mxu0
        %1420 = vmatprep.mubr.f32.mxu0 0.0
        %1421 = vmatmul.mubr.f32.gmra.mrb[0].mxu0 %v785
        %v1422 = vpop.f32.mrb[0].mxu0
        %v1423 = vadd.f32 %v500, %v1422
        %v1424 = vpop.f32.mrb[0].mxu0
        %1425 = vmatprep.mubr.f32.mxu0 0.0
        %1426 = vmatmul.mubr.f32.gmra.mrb[0].mxu0 %v788
        %v1427 = vpop.f32.mrb[0].mxu0
        %v1428 = vadd.f32 %v500, %v1427
        %v1429 = vpop.f32.mrb[0].mxu0
        %1430 = vmatprep.mubr.f32.mxu0 0.0
        %1431 = vmatmul.mubr.f32.gmra.mrb[0].mxu0 %v791
        %v1432 = vpop.f32.mrb[0].mxu0
        %v1433 = vadd.f32 %v500, %v1432
        %v1434 = vpop.f32.mrb[0].mxu0
        %1435 = vmatprep.mubr.f32.mxu0 0.0
        %1436 = vmatmul.mubr.f32.gmra.mrb[0].mxu0 %v794
        %v1437 = vpop.f32.mrb[0].mxu0
        %v1438 = vadd.f32 %v500, %v1437
        %v1439 = vpop.f32.mrb[0].mxu0
        %1440 = vmatprep.mubr.f32.mxu0 0.0
        %1441 = vmatmul.mubr.f32.gmra.mrb[0].mxu0 %v797
        %v1442 = vpop.f32.mrb[0].mxu0
        %v1443 = vadd.f32 %v500, %v1442
        %v1444 = vpop.f32.mrb[0].mxu0
        %1445 = vmatprep.mubr.f32.mxu0 0.0
        %1446 = vmatmul.mubr.f32.gmra.mrb[0].mxu0 %v800
        %v1447 = vpop.f32.mrb[0].mxu0
        %v1448 = vadd.f32 %v500, %v1447
        %v1449 = vpop.f32.mrb[0].mxu0
        %1450 = vmatprep.mubr.f32.mxu0 0.0
        %1451 = vmatmul.mubr.f32.gmra.mrb[0].mxu0 %v803
        %v1452 = vpop.f32.mrb[0].mxu0
        %v1453 = vadd.f32 %v500, %v1452
        %v1454 = vpop.f32.mrb[0].mxu0
        %1455 = vmatprep.mubr.f32.mxu0 0.0
        %1456 = vmatmul.mubr.f32.gmra.mrb[0].mxu0 %v806
        %v1457 = vpop.f32.mrb[0].mxu0
        %v1458 = vadd.f32 %v500, %v1457
        %v1459 = vpop.f32.mrb[0].mxu0
        %1460 = vmatprep.mubr.f32.mxu0 0.0
        %1461 = vmatmul.mubr.f32.gmra.mrb[0].mxu0 %v809
        %v1462 = vpop.f32.mrb[0].mxu0
        %v1463 = vadd.f32 %v500, %v1462
        %v1464 = vpop.f32.mrb[0].mxu0
        %1465 = vmatprep.mubr.f32.mxu0 0.0
        %1466 = vmatmul.mubr.f32.gmra.mrb[0].mxu0 %v812
        %v1467 = vpop.f32.mrb[0].mxu0
        %v1468 = vadd.f32 %v500, %v1467
        %v1469 = vpop.f32.mrb[0].mxu0
        %1470 = vmatprep.mubr.f32.mxu0 0.0
        %1471 = vmatmul.mubr.f32.gmra.mrb[0].mxu0 %v815
        %v1472 = vpop.f32.mrb[0].mxu0
        %v1473 = vadd.f32 %v500, %v1472
        %v1474 = vpop.f32.mrb[0].mxu0
        %1475 = vmatprep.mubr.f32.mxu0 0.0
        %1476 = vmatmul.mubr.f32.gmra.mrb[0].mxu0 %v818
        %v1477 = vpop.f32.mrb[0].mxu0
        %v1478 = vadd.f32 %v500, %v1477
        %v1479 = vpop.f32.mrb[0].mxu0
        %1480 = vmatprep.mubr.f32.mxu0 0.0
        %1481 = vmatmul.mubr.f32.gmra.mrb[0].mxu0 %v821
        %v1482 = vpop.f32.mrb[0].mxu0
        %v1483 = vadd.f32 %v500, %v1482
        %v1484 = vpop.f32.mrb[0].mxu0
        %1485 = vmatprep.mubr.f32.mxu0 0.0
        %1486 = vmatmul.mubr.f32.gmra.mrb[0].mxu0 %v824
        %v1487 = vpop.f32.mrb[0].mxu0
        %v1488 = vadd.f32 %v500, %v1487
        %v1489 = vpop.f32.mrb[0].mxu0
        %1490 = vmatprep.mubr.f32.mxu0 0.0
        %1491 = vmatmul.mubr.f32.gmra.mrb[0].mxu0 %v827
        %v1492 = vpop.f32.mrb[0].mxu0
        %v1493 = vadd.f32 %v500, %v1492
        %v1494 = vpop.f32.mrb[0].mxu0
        %1495 = vmatprep.mubr.f32.mxu0 0.0
        %1496 = vmatmul.mubr.f32.gmra.mrb[0].mxu0 %v830
        %v1497 = vpop.f32.mrb[0].mxu0
        %v1498 = vadd.f32 %v500, %v1497
        %v1499 = vpop.f32.mrb[0].mxu0
        %1500 = vmatprep.mubr.f32.mxu0 0.0
        %1501 = vmatmul.mubr.f32.gmra.mrb[0].mxu0 %v833
        %v1502 = vpop.f32.mrb[0].mxu0
        %v1503 = vadd.f32 %v500, %v1502
        %v1504 = vpop.f32.mrb[0].mxu0
        %1505 = vmatprep.mubr.f32.mxu0 0.0
        %1506 = vmatmul.mubr.f32.gmra.mrb[0].mxu0 %v836
        %v1507 = vpop.f32.mrb[0].mxu0
        %v1508 = vadd.f32 %v500, %v1507
        %v1509 = vpop.f32.mrb[0].mxu0
        %1510 = vmatprep.mubr.f32.mxu0 0.0
        %1511 = vmatmul.mubr.f32.gmra.mrb[0].mxu0 %v839
        %v1512 = vpop.f32.mrb[0].mxu0
        %v1513 = vadd.f32 %v500, %v1512
        %v1514 = vpop.f32.mrb[0].mxu0
        %1515 = vmatprep.mubr.f32.mxu0 0.0
        %1516 = vmatmul.mubr.f32.gmra.mrb[0].mxu0 %v842
        %v1517 = vpop.f32.mrb[0].mxu0
        %v1518 = vadd.f32 %v500, %v1517
        %v1519 = vpop.f32.mrb[0].mxu0
        %1520 = vmatprep.mubr.f32.mxu0 0.0
        %1521 = vmatmul.mubr.f32.gmra.mrb[0].mxu0 %v845
        %v1522 = vpop.f32.mrb[0].mxu0
        %v1523 = vadd.f32 %v500, %v1522
        %v1524 = vpop.f32.mrb[0].mxu0
        %1525 = vmatprep.mubr.f32.mxu0 0.0
        %1526 = vmatmul.mubr.f32.gmra.mrb[0].mxu0 %v848
        %v1527 = vpop.f32.mrb[0].mxu0
        %v1528 = vadd.f32 %v500, %v1527
        %v1529 = vpop.f32.mrb[0].mxu0
        %1530 = vmatprep.mubr.f32.mxu0 0.0
        %1531 = vmatmul.mubr.f32.gmra.mrb[0].mxu0 %v851
        %v1532 = vpop.f32.mrb[0].mxu0
        %v1533 = vadd.f32 %v500, %v1532
        %v1534 = vpop.f32.mrb[0].mxu0
        %1535 = vmatprep.mubr.f32.mxu0 0.0
        %1536 = vmatmul.mubr.f32.gmra.mrb[0].mxu0 %v854
        %v1537 = vpop.f32.mrb[0].mxu0
        %v1538 = vadd.f32 %v500, %v1537
        %v1539 = vpop.f32.mrb[0].mxu0
        %1540 = vmatprep.mubr.f32.mxu0 0.0
        %1541 = vmatmul.mubr.f32.gmra.mrb[0].mxu0 %v857
        %v1542 = vpop.f32.mrb[0].mxu0
        %v1543 = vadd.f32 %v500, %v1542
        %v1544 = vpop.f32.mrb[0].mxu0
        %1545 = vmatprep.mubr.f32.mxu0 0.0
        %1546 = vmatmul.mubr.f32.gmra.mrb[0].mxu0 %v860
        %v1547 = vpop.f32.mrb[0].mxu0
        %v1548 = vadd.f32 %v500, %v1547
        %v1549 = vpop.f32.mrb[0].mxu0
        %1550 = vmatprep.mubr.f32.mxu0 0.0
        %1551 = vmatmul.mubr.f32.gmra.mrb[0].mxu0 %v863
        %v1552 = vpop.f32.mrb[0].mxu0
        %v1553 = vadd.f32 %v500, %v1552
        %v1554 = vpop.f32.mrb[0].mxu0
        %1555 = vmatprep.mubr.f32.mxu0 0.0
        %1556 = vmatmul.mubr.f32.gmra.mrb[0].mxu0 %v866
        %v1557 = vpop.f32.mrb[0].mxu0
        %v1558 = vadd.f32 %v500, %v1557
        %v1559 = vpop.f32.mrb[0].mxu0
        %1560 = vmatprep.mubr.f32.mxu0 0.0
        %1561 = vmatmul.mubr.f32.gmra.mrb[0].mxu0 %v869
        %v1562 = vpop.f32.mrb[0].mxu0
        %v1563 = vadd.f32 %v500, %v1562
        %v1564 = vpop.f32.mrb[0].mxu0
        %1565 = vmatprep.mubr.f32.mxu0 0.0
        %1566 = vmatmul.mubr.f32.gmra.mrb[0].mxu0 %v872
        %v1567 = vpop.f32.mrb[0].mxu0
        %v1568 = vadd.f32 %v500, %v1567
        %v1569 = vpop.f32.mrb[0].mxu0
        %1570 = vmatprep.mubr.f32.mxu0 0.0
        %1571 = vmatmul.mubr.f32.gmra.mrb[0].mxu0 %v875
        %v1572 = vpop.f32.mrb[0].mxu0
        %v1573 = vadd.f32 %v500, %v1572
        %v1574 = vpop.f32.mrb[0].mxu0
        %1575 = vmatprep.mubr.f32.mxu0 0.0
        %1576 = vmatmul.mubr.f32.gmra.mrb[0].mxu0 %v878
        %v1577 = vpop.f32.mrb[0].mxu0
        %v1578 = vadd.f32 %v500, %v1577
        %v1579 = vpop.f32.mrb[0].mxu0
        %1580 = vmatprep.mubr.f32.mxu0 0.0
        %1581 = vmatmul.mubr.f32.gmra.mrb[0].mxu0 %v881
        %v1582 = vpop.f32.mrb[0].mxu0
        %v1583 = vadd.f32 %v500, %v1582
        %v1584 = vpop.f32.mrb[0].mxu0
        %1585 = vmatprep.mubr.f32.mxu0 0.0
        %1586 = vmatmul.mubr.f32.gmra.mrb[0].mxu0 %v884
        %v1587 = vpop.f32.mrb[0].mxu0
        %v1588 = vadd.f32 %v500, %v1587
        %v1589 = vpop.f32.mrb[0].mxu0
        %1590 = vdwg.mxu0
        %1591 = vadd.xlane.f32.xlu0 %v953
        %v1592 = vpop.xlane.xlu0 %1591
        %1593 = vadd.xlane.f32.xlu0 %v958
        %v1594 = vpop.xlane.xlu0 %1593
        %1595 = vadd.xlane.f32.xlu0 %v963
        %v1596 = vpop.xlane.xlu0 %1595
        %1597 = vadd.xlane.f32.xlu0 %v968
        %v1598 = vpop.xlane.xlu0 %1597
        %1599 = vadd.xlane.f32.xlu0 %v973
        %v1600 = vpop.xlane.xlu0 %1599
        %1601 = vadd.xlane.f32.xlu0 %v978
        %v1602 = vpop.xlane.xlu0 %1601
        %1603 = vadd.xlane.f32.xlu0 %v983
        %v1604 = vpop.xlane.xlu0 %1603
        %1605 = vadd.xlane.f32.xlu0 %v988
        %v1606 = vpop.xlane.xlu0 %1605
        %1607 = vadd.xlane.f32.xlu0 %v993
        %v1608 = vpop.xlane.xlu0 %1607
        %1609 = vadd.xlane.f32.xlu0 %v998
        %v1610 = vpop.xlane.xlu0 %1609
        %1611 = vadd.xlane.f32.xlu0 %v1003
        %v1612 = vpop.xlane.xlu0 %1611
        %1613 = vadd.xlane.f32.xlu0 %v1008
        %v1614 = vpop.xlane.xlu0 %1613
        %1615 = vadd.xlane.f32.xlu0 %v1013
        %v1616 = vpop.xlane.xlu0 %1615
        %1617 = vadd.xlane.f32.xlu0 %v1018
        %v1618 = vpop.xlane.xlu0 %1617
        %1619 = vadd.xlane.f32.xlu0 %v1023
        %v1620 = vpop.xlane.xlu0 %1619
        %1621 = vadd.xlane.f32.xlu0 %v1028
        %v1622 = vpop.xlane.xlu0 %1621
        %1623 = vadd.xlane.f32.xlu0 %v1033
        %v1624 = vpop.xlane.xlu0 %1623
        %1625 = vadd.xlane.f32.xlu0 %v1038
        %v1626 = vpop.xlane.xlu0 %1625
        %1627 = vadd.xlane.f32.xlu0 %v1043
        %v1628 = vpop.xlane.xlu0 %1627
        %1629 = vadd.xlane.f32.xlu0 %v1048
        %v1630 = vpop.xlane.xlu0 %1629
        %1631 = vadd.xlane.f32.xlu0 %v1053
        %v1632 = vpop.xlane.xlu0 %1631
        %1633 = vadd.xlane.f32.xlu0 %v1058
        %v1634 = vpop.xlane.xlu0 %1633
        %1635 = vadd.xlane.f32.xlu0 %v1063
        %v1636 = vpop.xlane.xlu0 %1635
        %1637 = vadd.xlane.f32.xlu0 %v1068
        %v1638 = vpop.xlane.xlu0 %1637
        %1639 = vadd.xlane.f32.xlu0 %v1073
        %v1640 = vpop.xlane.xlu0 %1639
        %1641 = vadd.xlane.f32.xlu0 %v1078
        %v1642 = vpop.xlane.xlu0 %1641
        %1643 = vadd.xlane.f32.xlu0 %v1083
        %v1644 = vpop.xlane.xlu0 %1643
        %1645 = vadd.xlane.f32.xlu0 %v1088
        %v1646 = vpop.xlane.xlu0 %1645
        %1647 = vadd.xlane.f32.xlu0 %v1093
        %v1648 = vpop.xlane.xlu0 %1647
        %1649 = vadd.xlane.f32.xlu0 %v1098
        %v1650 = vpop.xlane.xlu0 %1649
        %1651 = vadd.xlane.f32.xlu0 %v1103
        %v1652 = vpop.xlane.xlu0 %1651
        %1653 = vadd.xlane.f32.xlu0 %v1108
        %v1654 = vpop.xlane.xlu0 %1653
        %1655 = vadd.xlane.f32.xlu0 %v1113
        %v1656 = vpop.xlane.xlu0 %1655
        %1657 = vadd.xlane.f32.xlu0 %v1118
        %v1658 = vpop.xlane.xlu0 %1657
        %1659 = vadd.xlane.f32.xlu0 %v1123
        %v1660 = vpop.xlane.xlu0 %1659
        %1661 = vadd.xlane.f32.xlu0 %v1128
        %v1662 = vpop.xlane.xlu0 %1661
        %1663 = vadd.xlane.f32.xlu0 %v1133
        %v1664 = vpop.xlane.xlu0 %1663
        %1665 = vadd.xlane.f32.xlu0 %v1138
        %v1666 = vpop.xlane.xlu0 %1665
        %1667 = vadd.xlane.f32.xlu0 %v1143
        %v1668 = vpop.xlane.xlu0 %1667
        %1669 = vadd.xlane.f32.xlu0 %v1148
        %v1670 = vpop.xlane.xlu0 %1669
        %1671 = vadd.xlane.f32.xlu0 %v1153
        %v1672 = vpop.xlane.xlu0 %1671
        %1673 = vadd.xlane.f32.xlu0 %v1158
        %v1674 = vpop.xlane.xlu0 %1673
        %1675 = vadd.xlane.f32.xlu0 %v1163
        %v1676 = vpop.xlane.xlu0 %1675
        %1677 = vadd.xlane.f32.xlu0 %v1168
        %v1678 = vpop.xlane.xlu0 %1677
        %1679 = vadd.xlane.f32.xlu0 %v1173
        %v1680 = vpop.xlane.xlu0 %1679
        %1681 = vadd.xlane.f32.xlu0 %v1178
        %v1682 = vpop.xlane.xlu0 %1681
        %1683 = vadd.xlane.f32.xlu0 %v1183
        %v1684 = vpop.xlane.xlu0 %1683
        %1685 = vadd.xlane.f32.xlu0 %v1188
        %v1686 = vpop.xlane.xlu0 %1685
        %1687 = vadd.xlane.f32.xlu0 %v1193
        %v1688 = vpop.xlane.xlu0 %1687
        %1689 = vadd.xlane.f32.xlu0 %v1198
        %v1690 = vpop.xlane.xlu0 %1689
        %1691 = vadd.xlane.f32.xlu0 %v1203
        %v1692 = vpop.xlane.xlu0 %1691
        %1693 = vadd.xlane.f32.xlu0 %v1208
        %v1694 = vpop.xlane.xlu0 %1693
        %1695 = vadd.xlane.f32.xlu0 %v1213
        %v1696 = vpop.xlane.xlu0 %1695
        %1697 = vadd.xlane.f32.xlu0 %v1218
        %v1698 = vpop.xlane.xlu0 %1697
        %1699 = vadd.xlane.f32.xlu0 %v1223
        %v1700 = vpop.xlane.xlu0 %1699
        %1701 = vadd.xlane.f32.xlu0 %v1228
        %v1702 = vpop.xlane.xlu0 %1701
        %1703 = vadd.xlane.f32.xlu0 %v1233
        %v1704 = vpop.xlane.xlu0 %1703
        %1705 = vadd.xlane.f32.xlu0 %v1238
        %v1706 = vpop.xlane.xlu0 %1705
        %1707 = vadd.xlane.f32.xlu0 %v1243
        %v1708 = vpop.xlane.xlu0 %1707
        %1709 = vadd.xlane.f32.xlu0 %v1248
        %v1710 = vpop.xlane.xlu0 %1709
        %1711 = vadd.xlane.f32.xlu0 %v1253
        %v1712 = vpop.xlane.xlu0 %1711
        %1713 = vadd.xlane.f32.xlu0 %v1258
        %v1714 = vpop.xlane.xlu0 %1713
        %1715 = vadd.xlane.f32.xlu0 %v1263
        %v1716 = vpop.xlane.xlu0 %1715
        %1717 = vadd.xlane.f32.xlu0 %v1268
        %v1718 = vpop.xlane.xlu0 %1717
        %1719 = vadd.xlane.f32.xlu0 %v1273
        %v1720 = vpop.xlane.xlu0 %1719
        %1721 = vadd.xlane.f32.xlu0 %v1278
        %v1722 = vpop.xlane.xlu0 %1721
        %1723 = vadd.xlane.f32.xlu0 %v1283
        %v1724 = vpop.xlane.xlu0 %1723
        %1725 = vadd.xlane.f32.xlu0 %v1288
        %v1726 = vpop.xlane.xlu0 %1725
        %1727 = vadd.xlane.f32.xlu0 %v1293
        %v1728 = vpop.xlane.xlu0 %1727
        %1729 = vadd.xlane.f32.xlu0 %v1298
        %v1730 = vpop.xlane.xlu0 %1729
        %1731 = vadd.xlane.f32.xlu0 %v1303
        %v1732 = vpop.xlane.xlu0 %1731
        %1733 = vadd.xlane.f32.xlu0 %v1308
        %v1734 = vpop.xlane.xlu0 %1733
        %1735 = vadd.xlane.f32.xlu0 %v1313
        %v1736 = vpop.xlane.xlu0 %1735
        %1737 = vadd.xlane.f32.xlu0 %v1318
        %v1738 = vpop.xlane.xlu0 %1737
        %1739 = vadd.xlane.f32.xlu0 %v1323
        %v1740 = vpop.xlane.xlu0 %1739
        %1741 = vadd.xlane.f32.xlu0 %v1328
        %v1742 = vpop.xlane.xlu0 %1741
        %1743 = vadd.xlane.f32.xlu0 %v1333
        %v1744 = vpop.xlane.xlu0 %1743
        %1745 = vadd.xlane.f32.xlu0 %v1338
        %v1746 = vpop.xlane.xlu0 %1745
        %1747 = vadd.xlane.f32.xlu0 %v1343
        %v1748 = vpop.xlane.xlu0 %1747
        %1749 = vadd.xlane.f32.xlu0 %v1348
        %v1750 = vpop.xlane.xlu0 %1749
        %1751 = vadd.xlane.f32.xlu0 %v1353
        %v1752 = vpop.xlane.xlu0 %1751
        %1753 = vadd.xlane.f32.xlu0 %v1358
        %v1754 = vpop.xlane.xlu0 %1753
        %1755 = vadd.xlane.f32.xlu0 %v1363
        %v1756 = vpop.xlane.xlu0 %1755
        %1757 = vadd.xlane.f32.xlu0 %v1368
        %v1758 = vpop.xlane.xlu0 %1757
        %1759 = vadd.xlane.f32.xlu0 %v1373
        %v1760 = vpop.xlane.xlu0 %1759
        %1761 = vadd.xlane.f32.xlu0 %v1378
        %v1762 = vpop.xlane.xlu0 %1761
        %1763 = vadd.xlane.f32.xlu0 %v1383
        %v1764 = vpop.xlane.xlu0 %1763
        %1765 = vadd.xlane.f32.xlu0 %v1388
        %v1766 = vpop.xlane.xlu0 %1765
        %1767 = vadd.xlane.f32.xlu0 %v1393
        %v1768 = vpop.xlane.xlu0 %1767
        %1769 = vadd.xlane.f32.xlu0 %v1398
        %v1770 = vpop.xlane.xlu0 %1769
        %1771 = vadd.xlane.f32.xlu0 %v1403
        %v1772 = vpop.xlane.xlu0 %1771
        %1773 = vadd.xlane.f32.xlu0 %v1408
        %v1774 = vpop.xlane.xlu0 %1773
        %1775 = vadd.xlane.f32.xlu0 %v1413
        %v1776 = vpop.xlane.xlu0 %1775
        %1777 = vadd.xlane.f32.xlu0 %v1418
        %v1778 = vpop.xlane.xlu0 %1777
        %1779 = vadd.xlane.f32.xlu0 %v1423
        %v1780 = vpop.xlane.xlu0 %1779
        %1781 = vadd.xlane.f32.xlu0 %v1428
        %v1782 = vpop.xlane.xlu0 %1781
        %1783 = vadd.xlane.f32.xlu0 %v1433
        %v1784 = vpop.xlane.xlu0 %1783
        %1785 = vadd.xlane.f32.xlu0 %v1438
        %v1786 = vpop.xlane.xlu0 %1785
        %1787 = vadd.xlane.f32.xlu0 %v1443
        %v1788 = vpop.xlane.xlu0 %1787
        %1789 = vadd.xlane.f32.xlu0 %v1448
        %v1790 = vpop.xlane.xlu0 %1789
        %1791 = vadd.xlane.f32.xlu0 %v1453
        %v1792 = vpop.xlane.xlu0 %1791
        %1793 = vadd.xlane.f32.xlu0 %v1458
        %v1794 = vpop.xlane.xlu0 %1793
        %1795 = vadd.xlane.f32.xlu0 %v1463
        %v1796 = vpop.xlane.xlu0 %1795
        %1797 = vadd.xlane.f32.xlu0 %v1468
        %v1798 = vpop.xlane.xlu0 %1797
        %1799 = vadd.xlane.f32.xlu0 %v1473
        %v1800 = vpop.xlane.xlu0 %1799
        %1801 = vadd.xlane.f32.xlu0 %v1478
        %v1802 = vpop.xlane.xlu0 %1801
        %1803 = vadd.xlane.f32.xlu0 %v1483
        %v1804 = vpop.xlane.xlu0 %1803
        %1805 = vadd.xlane.f32.xlu0 %v1488
        %v1806 = vpop.xlane.xlu0 %1805
        %1807 = vadd.xlane.f32.xlu0 %v1493
        %v1808 = vpop.xlane.xlu0 %1807
        %1809 = vadd.xlane.f32.xlu0 %v1498
        %v1810 = vpop.xlane.xlu0 %1809
        %1811 = vadd.xlane.f32.xlu0 %v1503
        %v1812 = vpop.xlane.xlu0 %1811
        %1813 = vadd.xlane.f32.xlu0 %v1508
        %v1814 = vpop.xlane.xlu0 %1813
        %1815 = vadd.xlane.f32.xlu0 %v1513
        %v1816 = vpop.xlane.xlu0 %1815
        %1817 = vadd.xlane.f32.xlu0 %v1518
        %v1818 = vpop.xlane.xlu0 %1817
        %1819 = vadd.xlane.f32.xlu0 %v1523
        %v1820 = vpop.xlane.xlu0 %1819
        %1821 = vadd.xlane.f32.xlu0 %v1528
        %v1822 = vpop.xlane.xlu0 %1821
        %1823 = vadd.xlane.f32.xlu0 %v1533
        %v1824 = vpop.xlane.xlu0 %1823
        %1825 = vadd.xlane.f32.xlu0 %v1538
        %v1826 = vpop.xlane.xlu0 %1825
        %1827 = vadd.xlane.f32.xlu0 %v1543
        %v1828 = vpop.xlane.xlu0 %1827
        %1829 = vadd.xlane.f32.xlu0 %v1548
        %v1830 = vpop.xlane.xlu0 %1829
        %1831 = vadd.xlane.f32.xlu0 %v1553
        %v1832 = vpop.xlane.xlu0 %1831
        %1833 = vadd.xlane.f32.xlu0 %v1558
        %v1834 = vpop.xlane.xlu0 %1833
        %1835 = vadd.xlane.f32.xlu0 %v1563
        %v1836 = vpop.xlane.xlu0 %1835
        %1837 = vadd.xlane.f32.xlu0 %v1568
        %v1838 = vpop.xlane.xlu0 %1837
        %1839 = vadd.xlane.f32.xlu0 %v1573
        %v1840 = vpop.xlane.xlu0 %1839
        %1841 = vadd.xlane.f32.xlu0 %v1578
        %v1842 = vpop.xlane.xlu0 %1841
        %1843 = vadd.xlane.f32.xlu0 %v1583
        %v1844 = vpop.xlane.xlu0 %1843
        %1845 = vadd.xlane.f32.xlu0 %v1588
        %v1846 = vpop.xlane.xlu0 %1845
        %v1847 = vrcp.pop 128.0
        %v1848 = vmul.f32 %v1592, %v1847
        %v1849 = vmul.f32 %v1594, %v1847
        %v1850 = vmul.f32 %v1596, %v1847
        %v1851 = vmul.f32 %v1598, %v1847
        %v1852 = vmul.f32 %v1600, %v1847
        %v1853 = vmul.f32 %v1602, %v1847
        %v1854 = vmul.f32 %v1604, %v1847
        %v1855 = vmul.f32 %v1606, %v1847
        %v1856 = vmul.f32 %v1608, %v1847
        %v1857 = vmul.f32 %v1610, %v1847
        %v1858 = vmul.f32 %v1612, %v1847
        %v1859 = vmul.f32 %v1614, %v1847
        %v1860 = vmul.f32 %v1616, %v1847
        %v1861 = vmul.f32 %v1618, %v1847
        %v1862 = vmul.f32 %v1620, %v1847
        %v1863 = vmul.f32 %v1622, %v1847
        %v1864 = vmul.f32 %v1624, %v1847
        %v1865 = vmul.f32 %v1626, %v1847
        %v1866 = vmul.f32 %v1628, %v1847
        %v1867 = vmul.f32 %v1630, %v1847
        %v1868 = vmul.f32 %v1632, %v1847
        %v1869 = vmul.f32 %v1634, %v1847
        %v1870 = vmul.f32 %v1636, %v1847
        %v1871 = vmul.f32 %v1638, %v1847
        %v1872 = vmul.f32 %v1640, %v1847
        %v1873 = vmul.f32 %v1642, %v1847
        %v1874 = vmul.f32 %v1644, %v1847
        %v1875 = vmul.f32 %v1646, %v1847
        %v1876 = vmul.f32 %v1648, %v1847
        %v1877 = vmul.f32 %v1650, %v1847
        %v1878 = vmul.f32 %v1652, %v1847
        %v1879 = vmul.f32 %v1654, %v1847
        %v1880 = vmul.f32 %v1656, %v1847
        %v1881 = vmul.f32 %v1658, %v1847
        %v1882 = vmul.f32 %v1660, %v1847
        %v1883 = vmul.f32 %v1662, %v1847
        %v1884 = vmul.f32 %v1664, %v1847
        %v1885 = vmul.f32 %v1666, %v1847
        %v1886 = vmul.f32 %v1668, %v1847
        %v1887 = vmul.f32 %v1670, %v1847
        %v1888 = vmul.f32 %v1672, %v1847
        %v1889 = vmul.f32 %v1674, %v1847
        %v1890 = vmul.f32 %v1676, %v1847
        %v1891 = vmul.f32 %v1678, %v1847
        %v1892 = vmul.f32 %v1680, %v1847
        %v1893 = vmul.f32 %v1682, %v1847
        %v1894 = vmul.f32 %v1684, %v1847
        %v1895 = vmul.f32 %v1686, %v1847
        %v1896 = vmul.f32 %v1688, %v1847
        %v1897 = vmul.f32 %v1690, %v1847
        %v1898 = vmul.f32 %v1692, %v1847
        %v1899 = vmul.f32 %v1694, %v1847
        %v1900 = vmul.f32 %v1696, %v1847
        %v1901 = vmul.f32 %v1698, %v1847
        %v1902 = vmul.f32 %v1700, %v1847
        %v1903 = vmul.f32 %v1702, %v1847
        %v1904 = vmul.f32 %v1704, %v1847
        %v1905 = vmul.f32 %v1706, %v1847
        %v1906 = vmul.f32 %v1708, %v1847
        %v1907 = vmul.f32 %v1710, %v1847
        %v1908 = vmul.f32 %v1712, %v1847
        %v1909 = vmul.f32 %v1714, %v1847
        %v1910 = vmul.f32 %v1716, %v1847
        %v1911 = vmul.f32 %v1718, %v1847
        %v1912 = vmul.f32 %v1720, %v1847
        %v1913 = vmul.f32 %v1722, %v1847
        %v1914 = vmul.f32 %v1724, %v1847
        %v1915 = vmul.f32 %v1726, %v1847
        %v1916 = vmul.f32 %v1728, %v1847
        %v1917 = vmul.f32 %v1730, %v1847
        %v1918 = vmul.f32 %v1732, %v1847
        %v1919 = vmul.f32 %v1734, %v1847
        %v1920 = vmul.f32 %v1736, %v1847
        %v1921 = vmul.f32 %v1738, %v1847
        %v1922 = vmul.f32 %v1740, %v1847
        %v1923 = vmul.f32 %v1742, %v1847
        %v1924 = vmul.f32 %v1744, %v1847
        %v1925 = vmul.f32 %v1746, %v1847
        %v1926 = vmul.f32 %v1748, %v1847
        %v1927 = vmul.f32 %v1750, %v1847
        %v1928 = vmul.f32 %v1752, %v1847
        %v1929 = vmul.f32 %v1754, %v1847
        %v1930 = vmul.f32 %v1756, %v1847
        %v1931 = vmul.f32 %v1758, %v1847
        %v1932 = vmul.f32 %v1760, %v1847
        %v1933 = vmul.f32 %v1762, %v1847
        %v1934 = vmul.f32 %v1764, %v1847
        %v1935 = vmul.f32 %v1766, %v1847
        %v1936 = vmul.f32 %v1768, %v1847
        %v1937 = vmul.f32 %v1770, %v1847
        %v1938 = vmul.f32 %v1772, %v1847
        %v1939 = vmul.f32 %v1774, %v1847
        %v1940 = vmul.f32 %v1776, %v1847
        %v1941 = vmul.f32 %v1778, %v1847
        %v1942 = vmul.f32 %v1780, %v1847
        %v1943 = vmul.f32 %v1782, %v1847
        %v1944 = vmul.f32 %v1784, %v1847
        %v1945 = vmul.f32 %v1786, %v1847
        %v1946 = vmul.f32 %v1788, %v1847
        %v1947 = vmul.f32 %v1790, %v1847
        %v1948 = vmul.f32 %v1792, %v1847
        %v1949 = vmul.f32 %v1794, %v1847
        %v1950 = vmul.f32 %v1796, %v1847
        %v1951 = vmul.f32 %v1798, %v1847
        %v1952 = vmul.f32 %v1800, %v1847
        %v1953 = vmul.f32 %v1802, %v1847
        %v1954 = vmul.f32 %v1804, %v1847
        %v1955 = vmul.f32 %v1806, %v1847
        %v1956 = vmul.f32 %v1808, %v1847
        %v1957 = vmul.f32 %v1810, %v1847
        %v1958 = vmul.f32 %v1812, %v1847
        %v1959 = vmul.f32 %v1814, %v1847
        %v1960 = vmul.f32 %v1816, %v1847
        %v1961 = vmul.f32 %v1818, %v1847
        %v1962 = vmul.f32 %v1820, %v1847
        %v1963 = vmul.f32 %v1822, %v1847
        %v1964 = vmul.f32 %v1824, %v1847
        %v1965 = vmul.f32 %v1826, %v1847
        %v1966 = vmul.f32 %v1828, %v1847
        %v1967 = vmul.f32 %v1830, %v1847
        %v1968 = vmul.f32 %v1832, %v1847
        %v1969 = vmul.f32 %v1834, %v1847
        %v1970 = vmul.f32 %v1836, %v1847
        %v1971 = vmul.f32 %v1838, %v1847
        %v1972 = vmul.f32 %v1840, %v1847
        %v1973 = vmul.f32 %v1842, %v1847
        %v1974 = vmul.f32 %v1844, %v1847
        %v1975 = vmul.f32 %v1846, %v1847
        %v1976 = vsub.f32 %v953, %v1848
        %v1977 = vsub.f32 %v958, %v1849
        %v1978 = vsub.f32 %v963, %v1850
        %v1979 = vsub.f32 %v968, %v1851
        %v1980 = vsub.f32 %v973, %v1852
        %v1981 = vsub.f32 %v978, %v1853
        %v1982 = vsub.f32 %v983, %v1854
        %v1983 = vsub.f32 %v988, %v1855
        %v1984 = vsub.f32 %v993, %v1856
        %v1985 = vsub.f32 %v998, %v1857
        %v1986 = vsub.f32 %v1003, %v1858
        %v1987 = vsub.f32 %v1008, %v1859
        %v1988 = vsub.f32 %v1013, %v1860
        %v1989 = vsub.f32 %v1018, %v1861
        %v1990 = vsub.f32 %v1023, %v1862
        %v1991 = vsub.f32 %v1028, %v1863
        %v1992 = vsub.f32 %v1033, %v1864
        %v1993 = vsub.f32 %v1038, %v1865
        %v1994 = vsub.f32 %v1043, %v1866
        %v1995 = vsub.f32 %v1048, %v1867
        %v1996 = vsub.f32 %v1053, %v1868
        %v1997 = vsub.f32 %v1058, %v1869
        %v1998 = vsub.f32 %v1063, %v1870
        %v1999 = vsub.f32 %v1068, %v1871
        %v2000 = vsub.f32 %v1073, %v1872
        %v2001 = vsub.f32 %v1078, %v1873
        %v2002 = vsub.f32 %v1083, %v1874
        %v2003 = vsub.f32 %v1088, %v1875
        %v2004 = vsub.f32 %v1093, %v1876
        %v2005 = vsub.f32 %v1098, %v1877
        %v2006 = vsub.f32 %v1103, %v1878
        %v2007 = vsub.f32 %v1108, %v1879
        %v2008 = vsub.f32 %v1113, %v1880
        %v2009 = vsub.f32 %v1118, %v1881
        %v2010 = vsub.f32 %v1123, %v1882
        %v2011 = vsub.f32 %v1128, %v1883
        %v2012 = vsub.f32 %v1133, %v1884
        %v2013 = vsub.f32 %v1138, %v1885
        %v2014 = vsub.f32 %v1143, %v1886
        %v2015 = vsub.f32 %v1148, %v1887
        %v2016 = vsub.f32 %v1153, %v1888
        %v2017 = vsub.f32 %v1158, %v1889
        %v2018 = vsub.f32 %v1163, %v1890
        %v2019 = vsub.f32 %v1168, %v1891
        %v2020 = vsub.f32 %v1173, %v1892
        %v2021 = vsub.f32 %v1178, %v1893
        %v2022 = vsub.f32 %v1183, %v1894
        %v2023 = vsub.f32 %v1188, %v1895
        %v2024 = vsub.f32 %v1193, %v1896
        %v2025 = vsub.f32 %v1198, %v1897
        %v2026 = vsub.f32 %v1203, %v1898
        %v2027 = vsub.f32 %v1208, %v1899
        %v2028 = vsub.f32 %v1213, %v1900
        %v2029 = vsub.f32 %v1218, %v1901
        %v2030 = vsub.f32 %v1223, %v1902
        %v2031 = vsub.f32 %v1228, %v1903
        %v2032 = vsub.f32 %v1233, %v1904
        %v2033 = vsub.f32 %v1238, %v1905
        %v2034 = vsub.f32 %v1243, %v1906
        %v2035 = vsub.f32 %v1248, %v1907
        %v2036 = vsub.f32 %v1253, %v1908
        %v2037 = vsub.f32 %v1258, %v1909
        %v2038 = vsub.f32 %v1263, %v1910
        %v2039 = vsub.f32 %v1268, %v1911
        %v2040 = vsub.f32 %v1273, %v1912
        %v2041 = vsub.f32 %v1278, %v1913
        %v2042 = vsub.f32 %v1283, %v1914
        %v2043 = vsub.f32 %v1288, %v1915
        %v2044 = vsub.f32 %v1293, %v1916
        %v2045 = vsub.f32 %v1298, %v1917
        %v2046 = vsub.f32 %v1303, %v1918
        %v2047 = vsub.f32 %v1308, %v1919
        %v2048 = vsub.f32 %v1313, %v1920
        %v2049 = vsub.f32 %v1318, %v1921
        %v2050 = vsub.f32 %v1323, %v1922
        %v2051 = vsub.f32 %v1328, %v1923
        %v2052 = vsub.f32 %v1333, %v1924
        %v2053 = vsub.f32 %v1338, %v1925
        %v2054 = vsub.f32 %v1343, %v1926
        %v2055 = vsub.f32 %v1348, %v1927
        %v2056 = vsub.f32 %v1353, %v1928
        %v2057 = vsub.f32 %v1358, %v1929
        %v2058 = vsub.f32 %v1363, %v1930
        %v2059 = vsub.f32 %v1368, %v1931
        %v2060 = vsub.f32 %v1373, %v1932
        %v2061 = vsub.f32 %v1378, %v1933
        %v2062 = vsub.f32 %v1383, %v1934
        %v2063 = vsub.f32 %v1388, %v1935
        %v2064 = vsub.f32 %v1393, %v1936
        %v2065 = vsub.f32 %v1398, %v1937
        %v2066 = vsub.f32 %v1403, %v1938
        %v2067 = vsub.f32 %v1408, %v1939
        %v2068 = vsub.f32 %v1413, %v1940
        %v2069 = vsub.f32 %v1418, %v1941
        %v2070 = vsub.f32 %v1423, %v1942
        %v2071 = vsub.f32 %v1428, %v1943
        %v2072 = vsub.f32 %v1433, %v1944
        %v2073 = vsub.f32 %v1438, %v1945
        %v2074 = vsub.f32 %v1443, %v1946
        %v2075 = vsub.f32 %v1448, %v1947
        %v2076 = vsub.f32 %v1453, %v1948
        %v2077 = vsub.f32 %v1458, %v1949
        %v2078 = vsub.f32 %v1463, %v1950
        %v2079 = vsub.f32 %v1468, %v1951
        %v2080 = vsub.f32 %v1473, %v1952
        %v2081 = vsub.f32 %v1478, %v1953
        %v2082 = vsub.f32 %v1483, %v1954
        %v2083 = vsub.f32 %v1488, %v1955
        %v2084 = vsub.f32 %v1493, %v1956
        %v2085 = vsub.f32 %v1498, %v1957
        %v2086 = vsub.f32 %v1503, %v1958
        %v2087 = vsub.f32 %v1508, %v1959
        %v2088 = vsub.f32 %v1513, %v1960
        %v2089 = vsub.f32 %v1518, %v1961
        %v2090 = vsub.f32 %v1523, %v1962
        %v2091 = vsub.f32 %v1528, %v1963
        %v2092 = vsub.f32 %v1533, %v1964
        %v2093 = vsub.f32 %v1538, %v1965
        %v2094 = vsub.f32 %v1543, %v1966
        %v2095 = vsub.f32 %v1548, %v1967
        %v2096 = vsub.f32 %v1553, %v1968
        %v2097 = vsub.f32 %v1558, %v1969
        %v2098 = vsub.f32 %v1563, %v1970
        %v2099 = vsub.f32 %v1568, %v1971
        %v2100 = vsub.f32 %v1573, %v1972
        %v2101 = vsub.f32 %v1578, %v1973
        %v2102 = vsub.f32 %v1583, %v1974
        %v2103 = vsub.f32 %v1588, %v1975
        %v2104 = vmul.f32 %v1976, %v1976
        %v2105 = vmul.f32 %v1977, %v1977
        %v2106 = vmul.f32 %v1978, %v1978
        %v2107 = vmul.f32 %v1979, %v1979
        %v2108 = vmul.f32 %v1980, %v1980
        %v2109 = vmul.f32 %v1981, %v1981
        %v2110 = vmul.f32 %v1982, %v1982
        %v2111 = vmul.f32 %v1983, %v1983
        %v2112 = vmul.f32 %v1984, %v1984
        %v2113 = vmul.f32 %v1985, %v1985
        %v2114 = vmul.f32 %v1986, %v1986
        %v2115 = vmul.f32 %v1987, %v1987
        %v2116 = vmul.f32 %v1988, %v1988
        %v2117 = vmul.f32 %v1989, %v1989
        %v2118 = vmul.f32 %v1990, %v1990
        %v2119 = vmul.f32 %v1991, %v1991
        %v2120 = vmul.f32 %v1992, %v1992
        %v2121 = vmul.f32 %v1993, %v1993
        %v2122 = vmul.f32 %v1994, %v1994
        %v2123 = vmul.f32 %v1995, %v1995
        %v2124 = vmul.f32 %v1996, %v1996
        %v2125 = vmul.f32 %v1997, %v1997
        %v2126 = vmul.f32 %v1998, %v1998
        %v2127 = vmul.f32 %v1999, %v1999
        %v2128 = vmul.f32 %v2000, %v2000
        %v2129 = vmul.f32 %v2001, %v2001
        %v2130 = vmul.f32 %v2002, %v2002
        %v2131 = vmul.f32 %v2003, %v2003
        %v2132 = vmul.f32 %v2004, %v2004
        %v2133 = vmul.f32 %v2005, %v2005
        %v2134 = vmul.f32 %v2006, %v2006
        %v2135 = vmul.f32 %v2007, %v2007
        %v2136 = vmul.f32 %v2008, %v2008
        %v2137 = vmul.f32 %v2009, %v2009
        %v2138 = vmul.f32 %v2010, %v2010
        %v2139 = vmul.f32 %v2011, %v2011
        %v2140 = vmul.f32 %v2012, %v2012
        %v2141 = vmul.f32 %v2013, %v2013
        %v2142 = vmul.f32 %v2014, %v2014
        %v2143 = vmul.f32 %v2015, %v2015
        %v2144 = vmul.f32 %v2016, %v2016
        %v2145 = vmul.f32 %v2017, %v2017
        %v2146 = vmul.f32 %v2018, %v2018
        %v2147 = vmul.f32 %v2019, %v2019
        %v2148 = vmul.f32 %v2020, %v2020
        %v2149 = vmul.f32 %v2021, %v2021
        %v2150 = vmul.f32 %v2022, %v2022
        %v2151 = vmul.f32 %v2023, %v2023
        %v2152 = vmul.f32 %v2024, %v2024
        %v2153 = vmul.f32 %v2025, %v2025
        %v2154 = vmul.f32 %v2026, %v2026
        %v2155 = vmul.f32 %v2027, %v2027
        %v2156 = vmul.f32 %v2028, %v2028
        %v2157 = vmul.f32 %v2029, %v2029
        %v2158 = vmul.f32 %v2030, %v2030
        %v2159 = vmul.f32 %v2031, %v2031
        %v2160 = vmul.f32 %v2032, %v2032
        %v2161 = vmul.f32 %v2033, %v2033
        %v2162 = vmul.f32 %v2034, %v2034
        %v2163 = vmul.f32 %v2035, %v2035
        %v2164 = vmul.f32 %v2036, %v2036
        %v2165 = vmul.f32 %v2037, %v2037
        %v2166 = vmul.f32 %v2038, %v2038
        %v2167 = vmul.f32 %v2039, %v2039
        %v2168 = vmul.f32 %v2040, %v2040
        %v2169 = vmul.f32 %v2041, %v2041
        %v2170 = vmul.f32 %v2042, %v2042
        %v2171 = vmul.f32 %v2043, %v2043
        %v2172 = vmul.f32 %v2044, %v2044
        %v2173 = vmul.f32 %v2045, %v2045
        %v2174 = vmul.f32 %v2046, %v2046
        %v2175 = vmul.f32 %v2047, %v2047
        %v2176 = vmul.f32 %v2048, %v2048
        %v2177 = vmul.f32 %v2049, %v2049
        %v2178 = vmul.f32 %v2050, %v2050
        %v2179 = vmul.f32 %v2051, %v2051
        %v2180 = vmul.f32 %v2052, %v2052
        %v2181 = vmul.f32 %v2053, %v2053
        %v2182 = vmul.f32 %v2054, %v2054
        %v2183 = vmul.f32 %v2055, %v2055
        %v2184 = vmul.f32 %v2056, %v2056
        %v2185 = vmul.f32 %v2057, %v2057
        %v2186 = vmul.f32 %v2058, %v2058
        %v2187 = vmul.f32 %v2059, %v2059
        %v2188 = vmul.f32 %v2060, %v2060
        %v2189 = vmul.f32 %v2061, %v2061
        %v2190 = vmul.f32 %v2062, %v2062
        %v2191 = vmul.f32 %v2063, %v2063
        %v2192 = vmul.f32 %v2064, %v2064
        %v2193 = vmul.f32 %v2065, %v2065
        %v2194 = vmul.f32 %v2066, %v2066
        %v2195 = vmul.f32 %v2067, %v2067
        %v2196 = vmul.f32 %v2068, %v2068
        %v2197 = vmul.f32 %v2069, %v2069
        %v2198 = vmul.f32 %v2070, %v2070
        %v2199 = vmul.f32 %v2071, %v2071
        %v2200 = vmul.f32 %v2072, %v2072
        %v2201 = vmul.f32 %v2073, %v2073
        %v2202 = vmul.f32 %v2074, %v2074
        %v2203 = vmul.f32 %v2075, %v2075
        %v2204 = vmul.f32 %v2076, %v2076
        %v2205 = vmul.f32 %v2077, %v2077
        %v2206 = vmul.f32 %v2078, %v2078
        %v2207 = vmul.f32 %v2079, %v2079
        %v2208 = vmul.f32 %v2080, %v2080
        %v2209 = vmul.f32 %v2081, %v2081
        %v2210 = vmul.f32 %v2082, %v2082
        %v2211 = vmul.f32 %v2083, %v2083
        %v2212 = vmul.f32 %v2084, %v2084
        %v2213 = vmul.f32 %v2085, %v2085
        %v2214 = vmul.f32 %v2086, %v2086
        %v2215 = vmul.f32 %v2087, %v2087
        %v2216 = vmul.f32 %v2088, %v2088
        %v2217 = vmul.f32 %v2089, %v2089
        %v2218 = vmul.f32 %v2090, %v2090
        %v2219 = vmul.f32 %v2091, %v2091
        %v2220 = vmul.f32 %v2092, %v2092
        %v2221 = vmul.f32 %v2093, %v2093
        %v2222 = vmul.f32 %v2094, %v2094
        %v2223 = vmul.f32 %v2095, %v2095
        %v2224 = vmul.f32 %v2096, %v2096
        %v2225 = vmul.f32 %v2097, %v2097
        %v2226 = vmul.f32 %v2098, %v2098
        %v2227 = vmul.f32 %v2099, %v2099
        %v2228 = vmul.f32 %v2100, %v2100
        %v2229 = vmul.f32 %v2101, %v2101
        %v2230 = vmul.f32 %v2102, %v2102
        %v2231 = vmul.f32 %v2103, %v2103
        %2232 = vadd.xlane.f32.xlu0 %v2104
        %v2233 = vpop.xlane.xlu0 %2232
        %2234 = vadd.xlane.f32.xlu0 %v2105
        %v2235 = vpop.xlane.xlu0 %2234
        %2236 = vadd.xlane.f32.xlu0 %v2106
        %v2237 = vpop.xlane.xlu0 %2236
        %2238 = vadd.xlane.f32.xlu0 %v2107
        %v2239 = vpop.xlane.xlu0 %2238
        %2240 = vadd.xlane.f32.xlu0 %v2108
        %v2241 = vpop.xlane.xlu0 %2240
        %2242 = vadd.xlane.f32.xlu0 %v2109
        %v2243 = vpop.xlane.xlu0 %2242
        %2244 = vadd.xlane.f32.xlu0 %v2110
        %v2245 = vpop.xlane.xlu0 %2244
        %2246 = vadd.xlane.f32.xlu0 %v2111
        %v2247 = vpop.xlane.xlu0 %2246
        %2248 = vadd.xlane.f32.xlu0 %v2112
        %v2249 = vpop.xlane.xlu0 %2248
        %2250 = vadd.xlane.f32.xlu0 %v2113
        %v2251 = vpop.xlane.xlu0 %2250
        %2252 = vadd.xlane.f32.xlu0 %v2114
        %v2253 = vpop.xlane.xlu0 %2252
        %2254 = vadd.xlane.f32.xlu0 %v2115
        %v2255 = vpop.xlane.xlu0 %2254
        %2256 = vadd.xlane.f32.xlu0 %v2116
        %v2257 = vpop.xlane.xlu0 %2256
        %2258 = vadd.xlane.f32.xlu0 %v2117
        %v2259 = vpop.xlane.xlu0 %2258
        %2260 = vadd.xlane.f32.xlu0 %v2118
        %v2261 = vpop.xlane.xlu0 %2260
        %2262 = vadd.xlane.f32.xlu0 %v2119
        %v2263 = vpop.xlane.xlu0 %2262
        %2264 = vadd.xlane.f32.xlu0 %v2120
        %v2265 = vpop.xlane.xlu0 %2264
        %2266 = vadd.xlane.f32.xlu0 %v2121
        %v2267 = vpop.xlane.xlu0 %2266
        %2268 = vadd.xlane.f32.xlu0 %v2122
        %v2269 = vpop.xlane.xlu0 %2268
        %2270 = vadd.xlane.f32.xlu0 %v2123
        %v2271 = vpop.xlane.xlu0 %2270
        %2272 = vadd.xlane.f32.xlu0 %v2124
        %v2273 = vpop.xlane.xlu0 %2272
        %2274 = vadd.xlane.f32.xlu0 %v2125
        %v2275 = vpop.xlane.xlu0 %2274
        %2276 = vadd.xlane.f32.xlu0 %v2126
        %v2277 = vpop.xlane.xlu0 %2276
        %2278 = vadd.xlane.f32.xlu0 %v2127
        %v2279 = vpop.xlane.xlu0 %2278
        %2280 = vadd.xlane.f32.xlu0 %v2128
        %v2281 = vpop.xlane.xlu0 %2280
        %2282 = vadd.xlane.f32.xlu0 %v2129
        %v2283 = vpop.xlane.xlu0 %2282
        %2284 = vadd.xlane.f32.xlu0 %v2130
        %v2285 = vpop.xlane.xlu0 %2284
        %2286 = vadd.xlane.f32.xlu0 %v2131
        %v2287 = vpop.xlane.xlu0 %2286
        %2288 = vadd.xlane.f32.xlu0 %v2132
        %v2289 = vpop.xlane.xlu0 %2288
        %2290 = vadd.xlane.f32.xlu0 %v2133
        %v2291 = vpop.xlane.xlu0 %2290
        %2292 = vadd.xlane.f32.xlu0 %v2134
        %v2293 = vpop.xlane.xlu0 %2292
        %2294 = vadd.xlane.f32.xlu0 %v2135
        %v2295 = vpop.xlane.xlu0 %2294
        %2296 = vadd.xlane.f32.xlu0 %v2136
        %v2297 = vpop.xlane.xlu0 %2296
        %2298 = vadd.xlane.f32.xlu0 %v2137
        %v2299 = vpop.xlane.xlu0 %2298
        %2300 = vadd.xlane.f32.xlu0 %v2138
        %v2301 = vpop.xlane.xlu0 %2300
        %2302 = vadd.xlane.f32.xlu0 %v2139
        %v2303 = vpop.xlane.xlu0 %2302
        %2304 = vadd.xlane.f32.xlu0 %v2140
        %v2305 = vpop.xlane.xlu0 %2304
        %2306 = vadd.xlane.f32.xlu0 %v2141
        %v2307 = vpop.xlane.xlu0 %2306
        %2308 = vadd.xlane.f32.xlu0 %v2142
        %v2309 = vpop.xlane.xlu0 %2308
        %2310 = vadd.xlane.f32.xlu0 %v2143
        %v2311 = vpop.xlane.xlu0 %2310
        %2312 = vadd.xlane.f32.xlu0 %v2144
        %v2313 = vpop.xlane.xlu0 %2312
        %2314 = vadd.xlane.f32.xlu0 %v2145
        %v2315 = vpop.xlane.xlu0 %2314
        %2316 = vadd.xlane.f32.xlu0 %v2146
        %v2317 = vpop.xlane.xlu0 %2316
        %2318 = vadd.xlane.f32.xlu0 %v2147
        %v2319 = vpop.xlane.xlu0 %2318
        %2320 = vadd.xlane.f32.xlu0 %v2148
        %v2321 = vpop.xlane.xlu0 %2320
        %2322 = vadd.xlane.f32.xlu0 %v2149
        %v2323 = vpop.xlane.xlu0 %2322
        %2324 = vadd.xlane.f32.xlu0 %v2150
        %v2325 = vpop.xlane.xlu0 %2324
        %2326 = vadd.xlane.f32.xlu0 %v2151
        %v2327 = vpop.xlane.xlu0 %2326
        %2328 = vadd.xlane.f32.xlu0 %v2152
        %v2329 = vpop.xlane.xlu0 %2328
        %2330 = vadd.xlane.f32.xlu0 %v2153
        %v2331 = vpop.xlane.xlu0 %2330
        %2332 = vadd.xlane.f32.xlu0 %v2154
        %v2333 = vpop.xlane.xlu0 %2332
        %2334 = vadd.xlane.f32.xlu0 %v2155
        %v2335 = vpop.xlane.xlu0 %2334
        %2336 = vadd.xlane.f32.xlu0 %v2156
        %v2337 = vpop.xlane.xlu0 %2336
        %2338 = vadd.xlane.f32.xlu0 %v2157
        %v2339 = vpop.xlane.xlu0 %2338
        %2340 = vadd.xlane.f32.xlu0 %v2158
        %v2341 = vpop.xlane.xlu0 %2340
        %2342 = vadd.xlane.f32.xlu0 %v2159
        %v2343 = vpop.xlane.xlu0 %2342
        %2344 = vadd.xlane.f32.xlu0 %v2160
        %v2345 = vpop.xlane.xlu0 %2344
        %2346 = vadd.xlane.f32.xlu0 %v2161
        %v2347 = vpop.xlane.xlu0 %2346
        %2348 = vadd.xlane.f32.xlu0 %v2162
        %v2349 = vpop.xlane.xlu0 %2348
        %2350 = vadd.xlane.f32.xlu0 %v2163
        %v2351 = vpop.xlane.xlu0 %2350
        %2352 = vadd.xlane.f32.xlu0 %v2164
        %v2353 = vpop.xlane.xlu0 %2352
        %2354 = vadd.xlane.f32.xlu0 %v2165
        %v2355 = vpop.xlane.xlu0 %2354
        %2356 = vadd.xlane.f32.xlu0 %v2166
        %v2357 = vpop.xlane.xlu0 %2356
        %2358 = vadd.xlane.f32.xlu0 %v2167
        %v2359 = vpop.xlane.xlu0 %2358
        %2360 = vadd.xlane.f32.xlu0 %v2168
        %v2361 = vpop.xlane.xlu0 %2360
        %2362 = vadd.xlane.f32.xlu0 %v2169
        %v2363 = vpop.xlane.xlu0 %2362
        %2364 = vadd.xlane.f32.xlu0 %v2170
        %v2365 = vpop.xlane.xlu0 %2364
        %2366 = vadd.xlane.f32.xlu0 %v2171
        %v2367 = vpop.xlane.xlu0 %2366
        %2368 = vadd.xlane.f32.xlu0 %v2172
        %v2369 = vpop.xlane.xlu0 %2368
        %2370 = vadd.xlane.f32.xlu0 %v2173
        %v2371 = vpop.xlane.xlu0 %2370
        %2372 = vadd.xlane.f32.xlu0 %v2174
        %v2373 = vpop.xlane.xlu0 %2372
        %2374 = vadd.xlane.f32.xlu0 %v2175
        %v2375 = vpop.xlane.xlu0 %2374
        %2376 = vadd.xlane.f32.xlu0 %v2176
        %v2377 = vpop.xlane.xlu0 %2376
        %2378 = vadd.xlane.f32.xlu0 %v2177
        %v2379 = vpop.xlane.xlu0 %2378
        %2380 = vadd.xlane.f32.xlu0 %v2178
        %v2381 = vpop.xlane.xlu0 %2380
        %2382 = vadd.xlane.f32.xlu0 %v2179
        %v2383 = vpop.xlane.xlu0 %2382
        %2384 = vadd.xlane.f32.xlu0 %v2180
        %v2385 = vpop.xlane.xlu0 %2384
        %2386 = vadd.xlane.f32.xlu0 %v2181
        %v2387 = vpop.xlane.xlu0 %2386
        %2388 = vadd.xlane.f32.xlu0 %v2182
        %v2389 = vpop.xlane.xlu0 %2388
        %2390 = vadd.xlane.f32.xlu0 %v2183
        %v2391 = vpop.xlane.xlu0 %2390
        %2392 = vadd.xlane.f32.xlu0 %v2184
        %v2393 = vpop.xlane.xlu0 %2392
        %2394 = vadd.xlane.f32.xlu0 %v2185
        %v2395 = vpop.xlane.xlu0 %2394
        %2396 = vadd.xlane.f32.xlu0 %v2186
        %v2397 = vpop.xlane.xlu0 %2396
        %2398 = vadd.xlane.f32.xlu0 %v2187
        %v2399 = vpop.xlane.xlu0 %2398
        %2400 = vadd.xlane.f32.xlu0 %v2188
        %v2401 = vpop.xlane.xlu0 %2400
        %2402 = vadd.xlane.f32.xlu0 %v2189
        %v2403 = vpop.xlane.xlu0 %2402
        %2404 = vadd.xlane.f32.xlu0 %v2190
        %v2405 = vpop.xlane.xlu0 %2404
        %2406 = vadd.xlane.f32.xlu0 %v2191
        %v2407 = vpop.xlane.xlu0 %2406
        %2408 = vadd.xlane.f32.xlu0 %v2192
        %v2409 = vpop.xlane.xlu0 %2408
        %2410 = vadd.xlane.f32.xlu0 %v2193
        %v2411 = vpop.xlane.xlu0 %2410
        %2412 = vadd.xlane.f32.xlu0 %v2194
        %v2413 = vpop.xlane.xlu0 %2412
        %2414 = vadd.xlane.f32.xlu0 %v2195
        %v2415 = vpop.xlane.xlu0 %2414
        %2416 = vadd.xlane.f32.xlu0 %v2196
        %v2417 = vpop.xlane.xlu0 %2416
        %2418 = vadd.xlane.f32.xlu0 %v2197
        %v2419 = vpop.xlane.xlu0 %2418
        %2420 = vadd.xlane.f32.xlu0 %v2198
        %v2421 = vpop.xlane.xlu0 %2420
        %2422 = vadd.xlane.f32.xlu0 %v2199
        %v2423 = vpop.xlane.xlu0 %2422
        %2424 = vadd.xlane.f32.xlu0 %v2200
        %v2425 = vpop.xlane.xlu0 %2424
        %2426 = vadd.xlane.f32.xlu0 %v2201
        %v2427 = vpop.xlane.xlu0 %2426
        %2428 = vadd.xlane.f32.xlu0 %v2202
        %v2429 = vpop.xlane.xlu0 %2428
        %2430 = vadd.xlane.f32.xlu0 %v2203
        %v2431 = vpop.xlane.xlu0 %2430
        %2432 = vadd.xlane.f32.xlu0 %v2204
        %v2433 = vpop.xlane.xlu0 %2432
        %2434 = vadd.xlane.f32.xlu0 %v2205
        %v2435 = vpop.xlane.xlu0 %2434
        %2436 = vadd.xlane.f32.xlu0 %v2206
        %v2437 = vpop.xlane.xlu0 %2436
        %2438 = vadd.xlane.f32.xlu0 %v2207
        %v2439 = vpop.xlane.xlu0 %2438
        %2440 = vadd.xlane.f32.xlu0 %v2208
        %v2441 = vpop.xlane.xlu0 %2440
        %2442 = vadd.xlane.f32.xlu0 %v2209
        %v2443 = vpop.xlane.xlu0 %2442
        %2444 = vadd.xlane.f32.xlu0 %v2210
        %v2445 = vpop.xlane.xlu0 %2444
        %2446 = vadd.xlane.f32.xlu0 %v2211
        %v2447 = vpop.xlane.xlu0 %2446
        %2448 = vadd.xlane.f32.xlu0 %v2212
        %v2449 = vpop.xlane.xlu0 %2448
        %2450 = vadd.xlane.f32.xlu0 %v2213
        %v2451 = vpop.xlane.xlu0 %2450
        %2452 = vadd.xlane.f32.xlu0 %v2214
        %v2453 = vpop.xlane.xlu0 %2452
        %2454 = vadd.xlane.f32.xlu0 %v2215
        %v2455 = vpop.xlane.xlu0 %2454
        %2456 = vadd.xlane.f32.xlu0 %v2216
        %v2457 = vpop.xlane.xlu0 %2456
        %2458 = vadd.xlane.f32.xlu0 %v2217
        %v2459 = vpop.xlane.xlu0 %2458
        %2460 = vadd.xlane.f32.xlu0 %v2218
        %v2461 = vpop.xlane.xlu0 %2460
        %2462 = vadd.xlane.f32.xlu0 %v2219
        %v2463 = vpop.xlane.xlu0 %2462
        %2464 = vadd.xlane.f32.xlu0 %v2220
        %v2465 = vpop.xlane.xlu0 %2464
        %2466 = vadd.xlane.f32.xlu0 %v2221
        %v2467 = vpop.xlane.xlu0 %2466
        %2468 = vadd.xlane.f32.xlu0 %v2222
        %v2469 = vpop.xlane.xlu0 %2468
        %2470 = vadd.xlane.f32.xlu0 %v2223
        %v2471 = vpop.xlane.xlu0 %2470
        %2472 = vadd.xlane.f32.xlu0 %v2224
        %v2473 = vpop.xlane.xlu0 %2472
        %2474 = vadd.xlane.f32.xlu0 %v2225
        %v2475 = vpop.xlane.xlu0 %2474
        %2476 = vadd.xlane.f32.xlu0 %v2226
        %v2477 = vpop.xlane.xlu0 %2476
        %2478 = vadd.xlane.f32.xlu0 %v2227
        %v2479 = vpop.xlane.xlu0 %2478
        %2480 = vadd.xlane.f32.xlu0 %v2228
        %v2481 = vpop.xlane.xlu0 %2480
        %2482 = vadd.xlane.f32.xlu0 %v2229
        %v2483 = vpop.xlane.xlu0 %2482
        %2484 = vadd.xlane.f32.xlu0 %v2230
        %v2485 = vpop.xlane.xlu0 %2484
        %2486 = vadd.xlane.f32.xlu0 %v2231
        %v2487 = vpop.xlane.xlu0 %2486
        %v2488 = vmul.f32 %v2233, %v1847
        %v2489 = vmul.f32 %v2235, %v1847
        %v2490 = vmul.f32 %v2237, %v1847
        %v2491 = vmul.f32 %v2239, %v1847
        %v2492 = vmul.f32 %v2241, %v1847
        %v2493 = vmul.f32 %v2243, %v1847
        %v2494 = vmul.f32 %v2245, %v1847
        %v2495 = vmul.f32 %v2247, %v1847
        %v2496 = vmul.f32 %v2249, %v1847
        %v2497 = vmul.f32 %v2251, %v1847
        %v2498 = vmul.f32 %v2253, %v1847
        %v2499 = vmul.f32 %v2255, %v1847
        %v2500 = vmul.f32 %v2257, %v1847
        %v2501 = vmul.f32 %v2259, %v1847
        %v2502 = vmul.f32 %v2261, %v1847
        %v2503 = vmul.f32 %v2263, %v1847
        %v2504 = vmul.f32 %v2265, %v1847
        %v2505 = vmul.f32 %v2267, %v1847
        %v2506 = vmul.f32 %v2269, %v1847
        %v2507 = vmul.f32 %v2271, %v1847
        %v2508 = vmul.f32 %v2273, %v1847
        %v2509 = vmul.f32 %v2275, %v1847
        %v2510 = vmul.f32 %v2277, %v1847
        %v2511 = vmul.f32 %v2279, %v1847
        %v2512 = vmul.f32 %v2281, %v1847
        %v2513 = vmul.f32 %v2283, %v1847
        %v2514 = vmul.f32 %v2285, %v1847
        %v2515 = vmul.f32 %v2287, %v1847
        %v2516 = vmul.f32 %v2289, %v1847
        %v2517 = vmul.f32 %v2291, %v1847
        %v2518 = vmul.f32 %v2293, %v1847
        %v2519 = vmul.f32 %v2295, %v1847
        %v2520 = vmul.f32 %v2297, %v1847
        %v2521 = vmul.f32 %v2299, %v1847
        %v2522 = vmul.f32 %v2301, %v1847
        %v2523 = vmul.f32 %v2303, %v1847
        %v2524 = vmul.f32 %v2305, %v1847
        %v2525 = vmul.f32 %v2307, %v1847
        %v2526 = vmul.f32 %v2309, %v1847
        %v2527 = vmul.f32 %v2311, %v1847
        %v2528 = vmul.f32 %v2313, %v1847
        %v2529 = vmul.f32 %v2315, %v1847
        %v2530 = vmul.f32 %v2317, %v1847
        %v2531 = vmul.f32 %v2319, %v1847
        %v2532 = vmul.f32 %v2321, %v1847
        %v2533 = vmul.f32 %v2323, %v1847
        %v2534 = vmul.f32 %v2325, %v1847
        %v2535 = vmul.f32 %v2327, %v1847
        %v2536 = vmul.f32 %v2329, %v1847
        %v2537 = vmul.f32 %v2331, %v1847
        %v2538 = vmul.f32 %v2333, %v1847
        %v2539 = vmul.f32 %v2335, %v1847
        %v2540 = vmul.f32 %v2337, %v1847
        %v2541 = vmul.f32 %v2339, %v1847
        %v2542 = vmul.f32 %v2341, %v1847
        %v2543 = vmul.f32 %v2343, %v1847
        %v2544 = vmul.f32 %v2345, %v1847
        %v2545 = vmul.f32 %v2347, %v1847
        %v2546 = vmul.f32 %v2349, %v1847
        %v2547 = vmul.f32 %v2351, %v1847
        %v2548 = vmul.f32 %v2353, %v1847
        %v2549 = vmul.f32 %v2355, %v1847
        %v2550 = vmul.f32 %v2357, %v1847
        %v2551 = vmul.f32 %v2359, %v1847
        %v2552 = vmul.f32 %v2361, %v1847
        %v2553 = vmul.f32 %v2363, %v1847
        %v2554 = vmul.f32 %v2365, %v1847
        %v2555 = vmul.f32 %v2367, %v1847
        %v2556 = vmul.f32 %v2369, %v1847
        %v2557 = vmul.f32 %v2371, %v1847
        %v2558 = vmul.f32 %v2373, %v1847
        %v2559 = vmul.f32 %v2375, %v1847
        %v2560 = vmul.f32 %v2377, %v1847
        %v2561 = vmul.f32 %v2379, %v1847
        %v2562 = vmul.f32 %v2381, %v1847
        %v2563 = vmul.f32 %v2383, %v1847
        %v2564 = vmul.f32 %v2385, %v1847
        %v2565 = vmul.f32 %v2387, %v1847
        %v2566 = vmul.f32 %v2389, %v1847
        %v2567 = vmul.f32 %v2391, %v1847
        %v2568 = vmul.f32 %v2393, %v1847
        %v2569 = vmul.f32 %v2395, %v1847
        %v2570 = vmul.f32 %v2397, %v1847
        %v2571 = vmul.f32 %v2399, %v1847
        %v2572 = vmul.f32 %v2401, %v1847
        %v2573 = vmul.f32 %v2403, %v1847
        %v2574 = vmul.f32 %v2405, %v1847
        %v2575 = vmul.f32 %v2407, %v1847
        %v2576 = vmul.f32 %v2409, %v1847
        %v2577 = vmul.f32 %v2411, %v1847
        %v2578 = vmul.f32 %v2413, %v1847
        %v2579 = vmul.f32 %v2415, %v1847
        %v2580 = vmul.f32 %v2417, %v1847
        %v2581 = vmul.f32 %v2419, %v1847
        %v2582 = vmul.f32 %v2421, %v1847
        %v2583 = vmul.f32 %v2423, %v1847
        %v2584 = vmul.f32 %v2425, %v1847
        %v2585 = vmul.f32 %v2427, %v1847
        %v2586 = vmul.f32 %v2429, %v1847
        %v2587 = vmul.f32 %v2431, %v1847
        %v2588 = vmul.f32 %v2433, %v1847
        %v2589 = vmul.f32 %v2435, %v1847
        %v2590 = vmul.f32 %v2437, %v1847
        %v2591 = vmul.f32 %v2439, %v1847
        %v2592 = vmul.f32 %v2441, %v1847
        %v2593 = vmul.f32 %v2443, %v1847
        %v2594 = vmul.f32 %v2445, %v1847
        %v2595 = vmul.f32 %v2447, %v1847
        %v2596 = vmul.f32 %v2449, %v1847
        %v2597 = vmul.f32 %v2451, %v1847
        %v2598 = vmul.f32 %v2453, %v1847
        %v2599 = vmul.f32 %v2455, %v1847
        %v2600 = vmul.f32 %v2457, %v1847
        %v2601 = vmul.f32 %v2459, %v1847
        %v2602 = vmul.f32 %v2461, %v1847
        %v2603 = vmul.f32 %v2463, %v1847
        %v2604 = vmul.f32 %v2465, %v1847
        %v2605 = vmul.f32 %v2467, %v1847
        %v2606 = vmul.f32 %v2469, %v1847
        %v2607 = vmul.f32 %v2471, %v1847
        %v2608 = vmul.f32 %v2473, %v1847
        %v2609 = vmul.f32 %v2475, %v1847
        %v2610 = vmul.f32 %v2477, %v1847
        %v2611 = vmul.f32 %v2479, %v1847
        %v2612 = vmul.f32 %v2481, %v1847
        %v2613 = vmul.f32 %v2483, %v1847
        %v2614 = vmul.f32 %v2485, %v1847
        %v2615 = vmul.f32 %v2487, %v1847
        %v2616 = vadd.f32 %v2488, 1e-05
        %v2617 = vadd.f32 %v2489, 1e-05
        %v2618 = vadd.f32 %v2490, 1e-05
        %v2619 = vadd.f32 %v2491, 1e-05
        %v2620 = vadd.f32 %v2492, 1e-05
        %v2621 = vadd.f32 %v2493, 1e-05
        %v2622 = vadd.f32 %v2494, 1e-05
        %v2623 = vadd.f32 %v2495, 1e-05
        %v2624 = vadd.f32 %v2496, 1e-05
        %v2625 = vadd.f32 %v2497, 1e-05
        %v2626 = vadd.f32 %v2498, 1e-05
        %v2627 = vadd.f32 %v2499, 1e-05
        %v2628 = vadd.f32 %v2500, 1e-05
        %v2629 = vadd.f32 %v2501, 1e-05
        %v2630 = vadd.f32 %v2502, 1e-05
        %v2631 = vadd.f32 %v2503, 1e-05
        %v2632 = vadd.f32 %v2504, 1e-05
        %v2633 = vadd.f32 %v2505, 1e-05
        %v2634 = vadd.f32 %v2506, 1e-05
        %v2635 = vadd.f32 %v2507, 1e-05
        %v2636 = vadd.f32 %v2508, 1e-05
        %v2637 = vadd.f32 %v2509, 1e-05
        %v2638 = vadd.f32 %v2510, 1e-05
        %v2639 = vadd.f32 %v2511, 1e-05
        %v2640 = vadd.f32 %v2512, 1e-05
        %v2641 = vadd.f32 %v2513, 1e-05
        %v2642 = vadd.f32 %v2514, 1e-05
        %v2643 = vadd.f32 %v2515, 1e-05
        %v2644 = vadd.f32 %v2516, 1e-05
        %v2645 = vadd.f32 %v2517, 1e-05
        %v2646 = vadd.f32 %v2518, 1e-05
        %v2647 = vadd.f32 %v2519, 1e-05
        %v2648 = vadd.f32 %v2520, 1e-05
        %v2649 = vadd.f32 %v2521, 1e-05
        %v2650 = vadd.f32 %v2522, 1e-05
        %v2651 = vadd.f32 %v2523, 1e-05
        %v2652 = vadd.f32 %v2524, 1e-05
        %v2653 = vadd.f32 %v2525, 1e-05
        %v2654 = vadd.f32 %v2526, 1e-05
        %v2655 = vadd.f32 %v2527, 1e-05
        %v2656 = vadd.f32 %v2528, 1e-05
        %v2657 = vadd.f32 %v2529, 1e-05
        %v2658 = vadd.f32 %v2530, 1e-05
        %v2659 = vadd.f32 %v2531, 1e-05
        %v2660 = vadd.f32 %v2532, 1e-05
        %v2661 = vadd.f32 %v2533, 1e-05
        %v2662 = vadd.f32 %v2534, 1e-05
        %v2663 = vadd.f32 %v2535, 1e-05
        %v2664 = vadd.f32 %v2536, 1e-05
        %v2665 = vadd.f32 %v2537, 1e-05
        %v2666 = vadd.f32 %v2538, 1e-05
        %v2667 = vadd.f32 %v2539, 1e-05
        %v2668 = vadd.f32 %v2540, 1e-05
        %v2669 = vadd.f32 %v2541, 1e-05
        %v2670 = vadd.f32 %v2542, 1e-05
        %v2671 = vadd.f32 %v2543, 1e-05
        %v2672 = vadd.f32 %v2544, 1e-05
        %v2673 = vadd.f32 %v2545, 1e-05
        %v2674 = vadd.f32 %v2546, 1e-05
        %v2675 = vadd.f32 %v2547, 1e-05
        %v2676 = vadd.f32 %v2548, 1e-05
        %v2677 = vadd.f32 %v2549, 1e-05
        %v2678 = vadd.f32 %v2550, 1e-05
        %v2679 = vadd.f32 %v2551, 1e-05
        %v2680 = vadd.f32 %v2552, 1e-05
        %v2681 = vadd.f32 %v2553, 1e-05
        %v2682 = vadd.f32 %v2554, 1e-05
        %v2683 = vadd.f32 %v2555, 1e-05
        %v2684 = vadd.f32 %v2556, 1e-05
        %v2685 = vadd.f32 %v2557, 1e-05
        %v2686 = vadd.f32 %v2558, 1e-05
        %v2687 = vadd.f32 %v2559, 1e-05
        %v2688 = vadd.f32 %v2560, 1e-05
        %v2689 = vadd.f32 %v2561, 1e-05
        %v2690 = vadd.f32 %v2562, 1e-05
        %v2691 = vadd.f32 %v2563, 1e-05
        %v2692 = vadd.f32 %v2564, 1e-05
        %v2693 = vadd.f32 %v2565, 1e-05
        %v2694 = vadd.f32 %v2566, 1e-05
        %v2695 = vadd.f32 %v2567, 1e-05
        %v2696 = vadd.f32 %v2568, 1e-05
        %v2697 = vadd.f32 %v2569, 1e-05
        %v2698 = vadd.f32 %v2570, 1e-05
        %v2699 = vadd.f32 %v2571, 1e-05
        %v2700 = vadd.f32 %v2572, 1e-05
        %v2701 = vadd.f32 %v2573, 1e-05
        %v2702 = vadd.f32 %v2574, 1e-05
        %v2703 = vadd.f32 %v2575, 1e-05
        %v2704 = vadd.f32 %v2576, 1e-05
        %v2705 = vadd.f32 %v2577, 1e-05
        %v2706 = vadd.f32 %v2578, 1e-05
        %v2707 = vadd.f32 %v2579, 1e-05
        %v2708 = vadd.f32 %v2580, 1e-05
        %v2709 = vadd.f32 %v2581, 1e-05
        %v2710 = vadd.f32 %v2582, 1e-05
        %v2711 = vadd.f32 %v2583, 1e-05
        %v2712 = vadd.f32 %v2584, 1e-05
        %v2713 = vadd.f32 %v2585, 1e-05
        %v2714 = vadd.f32 %v2586, 1e-05
        %v2715 = vadd.f32 %v2587, 1e-05
        %v2716 = vadd.f32 %v2588, 1e-05
        %v2717 = vadd.f32 %v2589, 1e-05
        %v2718 = vadd.f32 %v2590, 1e-05
        %v2719 = vadd.f32 %v2591, 1e-05
        %v2720 = vadd.f32 %v2592, 1e-05
        %v2721 = vadd.f32 %v2593, 1e-05
        %v2722 = vadd.f32 %v2594, 1e-05
        %v2723 = vadd.f32 %v2595, 1e-05
        %v2724 = vadd.f32 %v2596, 1e-05
        %v2725 = vadd.f32 %v2597, 1e-05
        %v2726 = vadd.f32 %v2598, 1e-05
        %v2727 = vadd.f32 %v2599, 1e-05
        %v2728 = vadd.f32 %v2600, 1e-05
        %v2729 = vadd.f32 %v2601, 1e-05
        %v2730 = vadd.f32 %v2602, 1e-05
        %v2731 = vadd.f32 %v2603, 1e-05
        %v2732 = vadd.f32 %v2604, 1e-05
        %v2733 = vadd.f32 %v2605, 1e-05
        %v2734 = vadd.f32 %v2606, 1e-05
        %v2735 = vadd.f32 %v2607, 1e-05
        %v2736 = vadd.f32 %v2608, 1e-05
        %v2737 = vadd.f32 %v2609, 1e-05
        %v2738 = vadd.f32 %v2610, 1e-05
        %v2739 = vadd.f32 %v2611, 1e-05
        %v2740 = vadd.f32 %v2612, 1e-05
        %v2741 = vadd.f32 %v2613, 1e-05
        %v2742 = vadd.f32 %v2614, 1e-05
        %v2743 = vadd.f32 %v2615, 1e-05
        %v2744 = vrsqrt.pop %v2616
        %v2745 = vrsqrt.pop %v2617
        %v2746 = vrsqrt.pop %v2618
        %v2747 = vrsqrt.pop %v2619
        %v2748 = vrsqrt.pop %v2620
        %v2749 = vrsqrt.pop %v2621
        %v2750 = vrsqrt.pop %v2622
        %v2751 = vrsqrt.pop %v2623
        %v2752 = vrsqrt.pop %v2624
        %v2753 = vrsqrt.pop %v2625
        %v2754 = vrsqrt.pop %v2626
        %v2755 = vrsqrt.pop %v2627
        %v2756 = vrsqrt.pop %v2628
        %v2757 = vrsqrt.pop %v2629
        %v2758 = vrsqrt.pop %v2630
        %v2759 = vrsqrt.pop %v2631
        %v2760 = vrsqrt.pop %v2632
        %v2761 = vrsqrt.pop %v2633
        %v2762 = vrsqrt.pop %v2634
        %v2763 = vrsqrt.pop %v2635
        %v2764 = vrsqrt.pop %v2636
        %v2765 = vrsqrt.pop %v2637
        %v2766 = vrsqrt.pop %v2638
        %v2767 = vrsqrt.pop %v2639
        %v2768 = vrsqrt.pop %v2640
        %v2769 = vrsqrt.pop %v2641
        %v2770 = vrsqrt.pop %v2642
        %v2771 = vrsqrt.pop %v2643
        %v2772 = vrsqrt.pop %v2644
        %v2773 = vrsqrt.pop %v2645
        %v2774 = vrsqrt.pop %v2646
        %v2775 = vrsqrt.pop %v2647
        %v2776 = vrsqrt.pop %v2648
        %v2777 = vrsqrt.pop %v2649
        %v2778 = vrsqrt.pop %v2650
        %v2779 = vrsqrt.pop %v2651
        %v2780 = vrsqrt.pop %v2652
        %v2781 = vrsqrt.pop %v2653
        %v2782 = vrsqrt.pop %v2654
        %v2783 = vrsqrt.pop %v2655
        %v2784 = vrsqrt.pop %v2656
        %v2785 = vrsqrt.pop %v2657
        %v2786 = vrsqrt.pop %v2658
        %v2787 = vrsqrt.pop %v2659
        %v2788 = vrsqrt.pop %v2660
        %v2789 = vrsqrt.pop %v2661
        %v2790 = vrsqrt.pop %v2662
        %v2791 = vrsqrt.pop %v2663
        %v2792 = vrsqrt.pop %v2664
        %v2793 = vrsqrt.pop %v2665
        %v2794 = vrsqrt.pop %v2666
        %v2795 = vrsqrt.pop %v2667
        %v2796 = vrsqrt.pop %v2668
        %v2797 = vrsqrt.pop %v2669
        %v2798 = vrsqrt.pop %v2670
        %v2799 = vrsqrt.pop %v2671
        %v2800 = vrsqrt.pop %v2672
        %v2801 = vrsqrt.pop %v2673
        %v2802 = vrsqrt.pop %v2674
        %v2803 = vrsqrt.pop %v2675
        %v2804 = vrsqrt.pop %v2676
        %v2805 = vrsqrt.pop %v2677
        %v2806 = vrsqrt.pop %v2678
        %v2807 = vrsqrt.pop %v2679
        %v2808 = vrsqrt.pop %v2680
        %v2809 = vrsqrt.pop %v2681
        %v2810 = vrsqrt.pop %v2682
        %v2811 = vrsqrt.pop %v2683
        %v2812 = vrsqrt.pop %v2684
        %v2813 = vrsqrt.pop %v2685
        %v2814 = vrsqrt.pop %v2686
        %v2815 = vrsqrt.pop %v2687
        %v2816 = vrsqrt.pop %v2688
        %v2817 = vrsqrt.pop %v2689
        %v2818 = vrsqrt.pop %v2690
        %v2819 = vrsqrt.pop %v2691
        %v2820 = vrsqrt.pop %v2692
        %v2821 = vrsqrt.pop %v2693
        %v2822 = vrsqrt.pop %v2694
        %v2823 = vrsqrt.pop %v2695
        %v2824 = vrsqrt.pop %v2696
        %v2825 = vrsqrt.pop %v2697
        %v2826 = vrsqrt.pop %v2698
        %v2827 = vrsqrt.pop %v2699
        %v2828 = vrsqrt.pop %v2700
        %v2829 = vrsqrt.pop %v2701
        %v2830 = vrsqrt.pop %v2702
        %v2831 = vrsqrt.pop %v2703
        %v2832 = vrsqrt.pop %v2704
        %v2833 = vrsqrt.pop %v2705
        %v2834 = vrsqrt.pop %v2706
        %v2835 = vrsqrt.pop %v2707
        %v2836 = vrsqrt.pop %v2708
        %v2837 = vrsqrt.pop %v2709
        %v2838 = vrsqrt.pop %v2710
        %v2839 = vrsqrt.pop %v2711
        %v2840 = vrsqrt.pop %v2712
        %v2841 = vrsqrt.pop %v2713
        %v2842 = vrsqrt.pop %v2714
        %v2843 = vrsqrt.pop %v2715
        %v2844 = vrsqrt.pop %v2716
        %v2845 = vrsqrt.pop %v2717
        %v2846 = vrsqrt.pop %v2718
        %v2847 = vrsqrt.pop %v2719
        %v2848 = vrsqrt.pop %v2720
        %v2849 = vrsqrt.pop %v2721
        %v2850 = vrsqrt.pop %v2722
        %v2851 = vrsqrt.pop %v2723
        %v2852 = vrsqrt.pop %v2724
        %v2853 = vrsqrt.pop %v2725
        %v2854 = vrsqrt.pop %v2726
        %v2855 = vrsqrt.pop %v2727
        %v2856 = vrsqrt.pop %v2728
        %v2857 = vrsqrt.pop %v2729
        %v2858 = vrsqrt.pop %v2730
        %v2859 = vrsqrt.pop %v2731
        %v2860 = vrsqrt.pop %v2732
        %v2861 = vrsqrt.pop %v2733
        %v2862 = vrsqrt.pop %v2734
        %v2863 = vrsqrt.pop %v2735
        %v2864 = vrsqrt.pop %v2736
        %v2865 = vrsqrt.pop %v2737
        %v2866 = vrsqrt.pop %v2738
        %v2867 = vrsqrt.pop %v2739
        %v2868 = vrsqrt.pop %v2740
        %v2869 = vrsqrt.pop %v2741
        %v2870 = vrsqrt.pop %v2742
        %v2871 = vrsqrt.pop %v2743
        %v2872 = vmul.f32 %v1976, %v2744
        %v2873 = vmul.f32 %v1977, %v2745
        %v2874 = vmul.f32 %v1978, %v2746
        %v2875 = vmul.f32 %v1979, %v2747
        %v2876 = vmul.f32 %v1980, %v2748
        %v2877 = vmul.f32 %v1981, %v2749
        %v2878 = vmul.f32 %v1982, %v2750
        %v2879 = vmul.f32 %v1983, %v2751
        %v2880 = vmul.f32 %v1984, %v2752
        %v2881 = vmul.f32 %v1985, %v2753
        %v2882 = vmul.f32 %v1986, %v2754
        %v2883 = vmul.f32 %v1987, %v2755
        %v2884 = vmul.f32 %v1988, %v2756
        %v2885 = vmul.f32 %v1989, %v2757
        %v2886 = vmul.f32 %v1990, %v2758
        %v2887 = vmul.f32 %v1991, %v2759
        %v2888 = vmul.f32 %v1992, %v2760
        %v2889 = vmul.f32 %v1993, %v2761
        %v2890 = vmul.f32 %v1994, %v2762
        %v2891 = vmul.f32 %v1995, %v2763
        %v2892 = vmul.f32 %v1996, %v2764
        %v2893 = vmul.f32 %v1997, %v2765
        %v2894 = vmul.f32 %v1998, %v2766
        %v2895 = vmul.f32 %v1999, %v2767
        %v2896 = vmul.f32 %v2000, %v2768
        %v2897 = vmul.f32 %v2001, %v2769
        %v2898 = vmul.f32 %v2002, %v2770
        %v2899 = vmul.f32 %v2003, %v2771
        %v2900 = vmul.f32 %v2004, %v2772
        %v2901 = vmul.f32 %v2005, %v2773
        %v2902 = vmul.f32 %v2006, %v2774
        %v2903 = vmul.f32 %v2007, %v2775
        %v2904 = vmul.f32 %v2008, %v2776
        %v2905 = vmul.f32 %v2009, %v2777
        %v2906 = vmul.f32 %v2010, %v2778
        %v2907 = vmul.f32 %v2011, %v2779
        %v2908 = vmul.f32 %v2012, %v2780
        %v2909 = vmul.f32 %v2013, %v2781
        %v2910 = vmul.f32 %v2014, %v2782
        %v2911 = vmul.f32 %v2015, %v2783
        %v2912 = vmul.f32 %v2016, %v2784
        %v2913 = vmul.f32 %v2017, %v2785
        %v2914 = vmul.f32 %v2018, %v2786
        %v2915 = vmul.f32 %v2019, %v2787
        %v2916 = vmul.f32 %v2020, %v2788
        %v2917 = vmul.f32 %v2021, %v2789
        %v2918 = vmul.f32 %v2022, %v2790
        %v2919 = vmul.f32 %v2023, %v2791
        %v2920 = vmul.f32 %v2024, %v2792
        %v2921 = vmul.f32 %v2025, %v2793
        %v2922 = vmul.f32 %v2026, %v2794
        %v2923 = vmul.f32 %v2027, %v2795
        %v2924 = vmul.f32 %v2028, %v2796
        %v2925 = vmul.f32 %v2029, %v2797
        %v2926 = vmul.f32 %v2030, %v2798
        %v2927 = vmul.f32 %v2031, %v2799
        %v2928 = vmul.f32 %v2032, %v2800
        %v2929 = vmul.f32 %v2033, %v2801
        %v2930 = vmul.f32 %v2034, %v2802
        %v2931 = vmul.f32 %v2035, %v2803
        %v2932 = vmul.f32 %v2036, %v2804
        %v2933 = vmul.f32 %v2037, %v2805
        %v2934 = vmul.f32 %v2038, %v2806
        %v2935 = vmul.f32 %v2039, %v2807
        %v2936 = vmul.f32 %v2040, %v2808
        %v2937 = vmul.f32 %v2041, %v2809
        %v2938 = vmul.f32 %v2042, %v2810
        %v2939 = vmul.f32 %v2043, %v2811
        %v2940 = vmul.f32 %v2044, %v2812
        %v2941 = vmul.f32 %v2045, %v2813
        %v2942 = vmul.f32 %v2046, %v2814
        %v2943 = vmul.f32 %v2047, %v2815
        %v2944 = vmul.f32 %v2048, %v2816
        %v2945 = vmul.f32 %v2049, %v2817
        %v2946 = vmul.f32 %v2050, %v2818
        %v2947 = vmul.f32 %v2051, %v2819
        %v2948 = vmul.f32 %v2052, %v2820
        %v2949 = vmul.f32 %v2053, %v2821
        %v2950 = vmul.f32 %v2054, %v2822
        %v2951 = vmul.f32 %v2055, %v2823
        %v2952 = vmul.f32 %v2056, %v2824
        %v2953 = vmul.f32 %v2057, %v2825
        %v2954 = vmul.f32 %v2058, %v2826
        %v2955 = vmul.f32 %v2059, %v2827
        %v2956 = vmul.f32 %v2060, %v2828
        %v2957 = vmul.f32 %v2061, %v2829
        %v2958 = vmul.f32 %v2062, %v2830
        %v2959 = vmul.f32 %v2063, %v2831
        %v2960 = vmul.f32 %v2064, %v2832
        %v2961 = vmul.f32 %v2065, %v2833
        %v2962 = vmul.f32 %v2066, %v2834
        %v2963 = vmul.f32 %v2067, %v2835
        %v2964 = vmul.f32 %v2068, %v2836
        %v2965 = vmul.f32 %v2069, %v2837
        %v2966 = vmul.f32 %v2070, %v2838
        %v2967 = vmul.f32 %v2071, %v2839
        %v2968 = vmul.f32 %v2072, %v2840
        %v2969 = vmul.f32 %v2073, %v2841
        %v2970 = vmul.f32 %v2074, %v2842
        %v2971 = vmul.f32 %v2075, %v2843
        %v2972 = vmul.f32 %v2076, %v2844
        %v2973 = vmul.f32 %v2077, %v2845
        %v2974 = vmul.f32 %v2078, %v2846
        %v2975 = vmul.f32 %v2079, %v2847
        %v2976 = vmul.f32 %v2080, %v2848
        %v2977 = vmul.f32 %v2081, %v2849
        %v2978 = vmul.f32 %v2082, %v2850
        %v2979 = vmul.f32 %v2083, %v2851
        %v2980 = vmul.f32 %v2084, %v2852
        %v2981 = vmul.f32 %v2085, %v2853
        %v2982 = vmul.f32 %v2086, %v2854
        %v2983 = vmul.f32 %v2087, %v2855
        %v2984 = vmul.f32 %v2088, %v2856
        %v2985 = vmul.f32 %v2089, %v2857
        %v2986 = vmul.f32 %v2090, %v2858
        %v2987 = vmul.f32 %v2091, %v2859
        %v2988 = vmul.f32 %v2092, %v2860
        %v2989 = vmul.f32 %v2093, %v2861
        %v2990 = vmul.f32 %v2094, %v2862
        %v2991 = vmul.f32 %v2095, %v2863
        %v2992 = vmul.f32 %v2096, %v2864
        %v2993 = vmul.f32 %v2097, %v2865
        %v2994 = vmul.f32 %v2098, %v2866
        %v2995 = vmul.f32 %v2099, %v2867
        %v2996 = vmul.f32 %v2100, %v2868
        %v2997 = vmul.f32 %v2101, %v2869
        %v2998 = vmul.f32 %v2102, %v2870
        %v2999 = vmul.f32 %v2103, %v2871
        %v3000 = vmax.f32 %v2872, 0.0
        %v3001 = vmax.f32 %v2873, 0.0
        %v3002 = vmax.f32 %v2874, 0.0
        %v3003 = vmax.f32 %v2875, 0.0
        %v3004 = vmax.f32 %v2876, 0.0
        %v3005 = vmax.f32 %v2877, 0.0
        %v3006 = vmax.f32 %v2878, 0.0
        %v3007 = vmax.f32 %v2879, 0.0
        %v3008 = vmax.f32 %v2880, 0.0
        %v3009 = vmax.f32 %v2881, 0.0
        %v3010 = vmax.f32 %v2882, 0.0
        %v3011 = vmax.f32 %v2883, 0.0
        %v3012 = vmax.f32 %v2884, 0.0
        %v3013 = vmax.f32 %v2885, 0.0
        %v3014 = vmax.f32 %v2886, 0.0
        %v3015 = vmax.f32 %v2887, 0.0
        %v3016 = vmax.f32 %v2888, 0.0
        %v3017 = vmax.f32 %v2889, 0.0
        %v3018 = vmax.f32 %v2890, 0.0
        %v3019 = vmax.f32 %v2891, 0.0
        %v3020 = vmax.f32 %v2892, 0.0
        %v3021 = vmax.f32 %v2893, 0.0
        %v3022 = vmax.f32 %v2894, 0.0
        %v3023 = vmax.f32 %v2895, 0.0
        %v3024 = vmax.f32 %v2896, 0.0
        %v3025 = vmax.f32 %v2897, 0.0
        %v3026 = vmax.f32 %v2898, 0.0
        %v3027 = vmax.f32 %v2899, 0.0
        %v3028 = vmax.f32 %v2900, 0.0
        %v3029 = vmax.f32 %v2901, 0.0
        %v3030 = vmax.f32 %v2902, 0.0
        %v3031 = vmax.f32 %v2903, 0.0
        %v3032 = vmax.f32 %v2904, 0.0
        %v3033 = vmax.f32 %v2905, 0.0
        %v3034 = vmax.f32 %v2906, 0.0
        %v3035 = vmax.f32 %v2907, 0.0
        %v3036 = vmax.f32 %v2908, 0.0
        %v3037 = vmax.f32 %v2909, 0.0
        %v3038 = vmax.f32 %v2910, 0.0
        %v3039 = vmax.f32 %v2911, 0.0
        %v3040 = vmax.f32 %v2912, 0.0
        %v3041 = vmax.f32 %v2913, 0.0
        %v3042 = vmax.f32 %v2914, 0.0
        %v3043 = vmax.f32 %v2915, 0.0
        %v3044 = vmax.f32 %v2916, 0.0
        %v3045 = vmax.f32 %v2917, 0.0
        %v3046 = vmax.f32 %v2918, 0.0
        %v3047 = vmax.f32 %v2919, 0.0
        %v3048 = vmax.f32 %v2920, 0.0
        %v3049 = vmax.f32 %v2921, 0.0
        %v3050 = vmax.f32 %v2922, 0.0
        %v3051 = vmax.f32 %v2923, 0.0
        %v3052 = vmax.f32 %v2924, 0.0
        %v3053 = vmax.f32 %v2925, 0.0
        %v3054 = vmax.f32 %v2926, 0.0
        %v3055 = vmax.f32 %v2927, 0.0
        %v3056 = vmax.f32 %v2928, 0.0
        %v3057 = vmax.f32 %v2929, 0.0
        %v3058 = vmax.f32 %v2930, 0.0
        %v3059 = vmax.f32 %v2931, 0.0
        %v3060 = vmax.f32 %v2932, 0.0
        %v3061 = vmax.f32 %v2933, 0.0
        %v3062 = vmax.f32 %v2934, 0.0
        %v3063 = vmax.f32 %v2935, 0.0
        %v3064 = vmax.f32 %v2936, 0.0
        %v3065 = vmax.f32 %v2937, 0.0
        %v3066 = vmax.f32 %v2938, 0.0
        %v3067 = vmax.f32 %v2939, 0.0
        %v3068 = vmax.f32 %v2940, 0.0
        %v3069 = vmax.f32 %v2941, 0.0
        %v3070 = vmax.f32 %v2942, 0.0
        %v3071 = vmax.f32 %v2943, 0.0
        %v3072 = vmax.f32 %v2944, 0.0
        %v3073 = vmax.f32 %v2945, 0.0
        %v3074 = vmax.f32 %v2946, 0.0
        %v3075 = vmax.f32 %v2947, 0.0
        %v3076 = vmax.f32 %v2948, 0.0
        %v3077 = vmax.f32 %v2949, 0.0
        %v3078 = vmax.f32 %v2950, 0.0
        %v3079 = vmax.f32 %v2951, 0.0
        %v3080 = vmax.f32 %v2952, 0.0
        %v3081 = vmax.f32 %v2953, 0.0
        %v3082 = vmax.f32 %v2954, 0.0
        %v3083 = vmax.f32 %v2955, 0.0
        %v3084 = vmax.f32 %v2956, 0.0
        %v3085 = vmax.f32 %v2957, 0.0
        %v3086 = vmax.f32 %v2958, 0.0
        %v3087 = vmax.f32 %v2959, 0.0
        %v3088 = vmax.f32 %v2960, 0.0
        %v3089 = vmax.f32 %v2961, 0.0
        %v3090 = vmax.f32 %v2962, 0.0
        %v3091 = vmax.f32 %v2963, 0.0
        %v3092 = vmax.f32 %v2964, 0.0
        %v3093 = vmax.f32 %v2965, 0.0
        %v3094 = vmax.f32 %v2966, 0.0
        %v3095 = vmax.f32 %v2967, 0.0
        %v3096 = vmax.f32 %v2968, 0.0
        %v3097 = vmax.f32 %v2969, 0.0
        %v3098 = vmax.f32 %v2970, 0.0
        %v3099 = vmax.f32 %v2971, 0.0
        %v3100 = vmax.f32 %v2972, 0.0
        %v3101 = vmax.f32 %v2973, 0.0
        %v3102 = vmax.f32 %v2974, 0.0
        %v3103 = vmax.f32 %v2975, 0.0
        %v3104 = vmax.f32 %v2976, 0.0
        %v3105 = vmax.f32 %v2977, 0.0
        %v3106 = vmax.f32 %v2978, 0.0
        %v3107 = vmax.f32 %v2979, 0.0
        %v3108 = vmax.f32 %v2980, 0.0
        %v3109 = vmax.f32 %v2981, 0.0
        %v3110 = vmax.f32 %v2982, 0.0
        %v3111 = vmax.f32 %v2983, 0.0
        %v3112 = vmax.f32 %v2984, 0.0
        %v3113 = vmax.f32 %v2985, 0.0
        %v3114 = vmax.f32 %v2986, 0.0
        %v3115 = vmax.f32 %v2987, 0.0
        %v3116 = vmax.f32 %v2988, 0.0
        %v3117 = vmax.f32 %v2989, 0.0
        %v3118 = vmax.f32 %v2990, 0.0
        %v3119 = vmax.f32 %v2991, 0.0
        %v3120 = vmax.f32 %v2992, 0.0
        %v3121 = vmax.f32 %v2993, 0.0
        %v3122 = vmax.f32 %v2994, 0.0
        %v3123 = vmax.f32 %v2995, 0.0
        %v3124 = vmax.f32 %v2996, 0.0
        %v3125 = vmax.f32 %v2997, 0.0
        %v3126 = vmax.f32 %v2998, 0.0
        %v3127 = vmax.f32 %v2999, 0.0
        %v3128 = vld [vmem:[%s356] sm:$0xff]
        %v3129 = vld [vmem:[%s356 + $0x8] sm:$0xff]
        %v3130 = vld [vmem:[%s356 + $0x10] sm:$0xff]
        %v3131 = vld [vmem:[%s356 + $0x18] sm:$0xff]
        %v3132 = vld [vmem:[%s356 + $0x20] sm:$0xff]
        %v3133 = vld [vmem:[%s356 + $0x28] sm:$0xff]
        %v3134 = vld [vmem:[%s356 + $0x30] sm:$0xff]
        %v3135 = vld [vmem:[%s356 + $0x38] sm:$0xff]
        %v3136 = vld [vmem:[%s356 + $0x40] sm:$0xff]
        %v3137 = vld [vmem:[%s356 + $0x48] sm:$0xff]
        %v3138 = vld [vmem:[%s356 + $0x50] sm:$0xff]
        %v3139 = vld [vmem:[%s356 + $0x58] sm:$0xff]
        %v3140 = vld [vmem:[%s356 + $0x60] sm:$0xff]
        %v3141 = vld [vmem:[%s356 + $0x68] sm:$0xff]
        %v3142 = vld [vmem:[%s356 + $0x70] sm:$0xff]
        %v3143 = vld [vmem:[%s356 + $0x78] sm:$0xff]
        %v3144 = vlaneseq
        %v3145 = vshrl.u32 %v3144, 7
        %v3146 = vsub.s32 1, %v3145
        %v3147 = vrot.slane %v366, %v3146
        %3148 = vmatprep.subr.mxu0 0.0
        %3149 = vmatpush1.msra.mxu0 %v3128
        %3150 = vmatprep.subr.mxu0 0.0
        %3151 = vmatpush1.msra.mxu0 %v3129
        %3152 = vmatprep.subr.mxu0 0.0
        %3153 = vmatpush1.msra.mxu0 %v3130
        %3154 = vmatprep.subr.mxu0 0.0
        %3155 = vmatpush1.msra.mxu0 %v3131
        %3156 = vmatprep.subr.mxu0 0.0
        %3157 = vmatpush1.msra.mxu0 %v3132
        %3158 = vmatprep.subr.mxu0 0.0
        %3159 = vmatpush1.msra.mxu0 %v3133
        %3160 = vmatprep.subr.mxu0 0.0
        %3161 = vmatpush1.msra.mxu0 %v3134
        %3162 = vmatprep.subr.mxu0 0.0
        %3163 = vmatpush1.msra.mxu0 %v3135
        %3164 = vmatprep.subr.mxu0 0.0
        %3165 = vmatpush1.msra.mxu0 %v3136
        %3166 = vmatprep.subr.mxu0 0.0
        %3167 = vmatpush1.msra.mxu0 %v3137
        %3168 = vmatprep.subr.mxu0 0.0
        %3169 = vmatpush1.msra.mxu0 %v3138
        %3170 = vmatprep.subr.mxu0 0.0
        %3171 = vmatpush1.msra.mxu0 %v3139
        %3172 = vmatprep.subr.mxu0 0.0
        %3173 = vmatpush1.msra.mxu0 %v3140
        %3174 = vmatprep.subr.mxu0 0.0
        %3175 = vmatpush1.msra.mxu0 %v3141
        %3176 = vmatprep.subr.mxu0 0.0
        %3177 = vmatpush1.msra.mxu0 %v3142
        %3178 = vmatprep.subr.mxu0 0.0
        %3179 = vmatpush1.msra.mxu0 %v3143
        %3180 = vmatprep.subr.mxu0 0.0
        %3181 = vmatpush1.msra.mxu0 0.0
        %3182 = vmatprep.subr.mxu0 0.0
        %3183 = vmatpush1.msra.mxu0 0.0
        %3184 = vmatprep.subr.mxu0 0.0
        %3185 = vmatpush1.msra.mxu0 0.0
        %3186 = vmatprep.subr.mxu0 0.0
        %3187 = vmatpush1.msra.mxu0 0.0
        %3188 = vmatprep.subr.mxu0 0.0
        %3189 = vmatpush1.msra.mxu0 0.0
        %3190 = vmatprep.subr.mxu0 0.0
        %3191 = vmatpush1.msra.mxu0 0.0
        %3192 = vmatprep.subr.mxu0 0.0
        %3193 = vmatpush1.msra.mxu0 0.0
        %3194 = vmatprep.subr.mxu0 0.0
        %3195 = vmatpush1.msra.mxu0 0.0
        %3196 = vmatprep.subr.mxu0 0.0
        %3197 = vmatpush1.msra.mxu0 0.0
        %3198 = vmatprep.subr.mxu0 0.0
        %3199 = vmatpush1.msra.mxu0 0.0
        %3200 = vmatprep.subr.mxu0 0.0
        %3201 = vmatpush1.msra.mxu0 0.0
        %3202 = vmatprep.subr.mxu0 0.0
        %3203 = vmatpush1.msra.mxu0 0.0
        %3204 = vmatprep.subr.mxu0 0.0
        %3205 = vmatpush1.msra.mxu0 0.0
        %3206 = vmatprep.subr.mxu0 0.0
        %3207 = vmatpush1.msra.mxu0 0.0
        %3208 = vmatprep.subr.mxu0 0.0
        %3209 = vmatpush1.msra.mxu0 0.0
        %3210 = vmatprep.subr.mxu0 0.0
        %3211 = vmatpush1.msra.mxu0 0.0
        %3212 = vmatprep.mubr.f32.mxu0 0.0
        %3213 = vmatmul.mubr.f32.gmra.mrb[0].mxu0 %v3000
        %v3214 = vpop.f32.mrb[0].mxu0
        %v3215 = vadd.f32 %v3147, %v3214
        %v3216 = vpop.f32.mrb[0].mxu0
        %3217 = vmatprep.mubr.f32.mxu0 0.0
        %3218 = vmatmul.mubr.f32.gmra.mrb[0].mxu0 %v3001
        %v3219 = vpop.f32.mrb[0].mxu0
        %v3220 = vadd.f32 %v3147, %v3219
        %v3221 = vpop.f32.mrb[0].mxu0
        %3222 = vmatprep.mubr.f32.mxu0 0.0
        %3223 = vmatmul.mubr.f32.gmra.mrb[0].mxu0 %v3002
        %v3224 = vpop.f32.mrb[0].mxu0
        %v3225 = vadd.f32 %v3147, %v3224
        %v3226 = vpop.f32.mrb[0].mxu0
        %3227 = vmatprep.mubr.f32.mxu0 0.0
        %3228 = vmatmul.mubr.f32.gmra.mrb[0].mxu0 %v3003
        %v3229 = vpop.f32.mrb[0].mxu0
        %v3230 = vadd.f32 %v3147, %v3229
        %v3231 = vpop.f32.mrb[0].mxu0
        %3232 = vmatprep.mubr.f32.mxu0 0.0
        %3233 = vmatmul.mubr.f32.gmra.mrb[0].mxu0 %v3004
        %v3234 = vpop.f32.mrb[0].mxu0
        %v3235 = vadd.f32 %v3147, %v3234
        %v3236 = vpop.f32.mrb[0].mxu0
        %3237 = vmatprep.mubr.f32.mxu0 0.0
        %3238 = vmatmul.mubr.f32.gmra.mrb[0].mxu0 %v3005
        %v3239 = vpop.f32.mrb[0].mxu0
        %v3240 = vadd.f32 %v3147, %v3239
        %v3241 = vpop.f32.mrb[0].mxu0
        %3242 = vmatprep.mubr.f32.mxu0 0.0
        %3243 = vmatmul.mubr.f32.gmra.mrb[0].mxu0 %v3006
        %v3244 = vpop.f32.mrb[0].mxu0
        %v3245 = vadd.f32 %v3147, %v3244
        %v3246 = vpop.f32.mrb[0].mxu0
        %3247 = vmatprep.mubr.f32.mxu0 0.0
        %3248 = vmatmul.mubr.f32.gmra.mrb[0].mxu0 %v3007
        %v3249 = vpop.f32.mrb[0].mxu0
        %v3250 = vadd.f32 %v3147, %v3249
        %v3251 = vpop.f32.mrb[0].mxu0
        %3252 = vmatprep.mubr.f32.mxu0 0.0
        %3253 = vmatmul.mubr.f32.gmra.mrb[0].mxu0 %v3008
        %v3254 = vpop.f32.mrb[0].mxu0
        %v3255 = vadd.f32 %v3147, %v3254
        %v3256 = vpop.f32.mrb[0].mxu0
        %3257 = vmatprep.mubr.f32.mxu0 0.0
        %3258 = vmatmul.mubr.f32.gmra.mrb[0].mxu0 %v3009
        %v3259 = vpop.f32.mrb[0].mxu0
        %v3260 = vadd.f32 %v3147, %v3259
        %v3261 = vpop.f32.mrb[0].mxu0
        %3262 = vmatprep.mubr.f32.mxu0 0.0
        %3263 = vmatmul.mubr.f32.gmra.mrb[0].mxu0 %v3010
        %v3264 = vpop.f32.mrb[0].mxu0
        %v3265 = vadd.f32 %v3147, %v3264
        %v3266 = vpop.f32.mrb[0].mxu0
        %3267 = vmatprep.mubr.f32.mxu0 0.0
        %3268 = vmatmul.mubr.f32.gmra.mrb[0].mxu0 %v3011
        %v3269 = vpop.f32.mrb[0].mxu0
        %v3270 = vadd.f32 %v3147, %v3269
        %v3271 = vpop.f32.mrb[0].mxu0
        %3272 = vmatprep.mubr.f32.mxu0 0.0
        %3273 = vmatmul.mubr.f32.gmra.mrb[0].mxu0 %v3012
        %v3274 = vpop.f32.mrb[0].mxu0
        %v3275 = vadd.f32 %v3147, %v3274
        %v3276 = vpop.f32.mrb[0].mxu0
        %3277 = vmatprep.mubr.f32.mxu0 0.0
        %3278 = vmatmul.mubr.f32.gmra.mrb[0].mxu0 %v3013
        %v3279 = vpop.f32.mrb[0].mxu0
        %v3280 = vadd.f32 %v3147, %v3279
        %v3281 = vpop.f32.mrb[0].mxu0
        %3282 = vmatprep.mubr.f32.mxu0 0.0
        %3283 = vmatmul.mubr.f32.gmra.mrb[0].mxu0 %v3014
        %v3284 = vpop.f32.mrb[0].mxu0
        %v3285 = vadd.f32 %v3147, %v3284
        %v3286 = vpop.f32.mrb[0].mxu0
        %3287 = vmatprep.mubr.f32.mxu0 0.0
        %3288 = vmatmul.mubr.f32.gmra.mrb[0].mxu0 %v3015
        %v3289 = vpop.f32.mrb[0].mxu0
        %v3290 = vadd.f32 %v3147, %v3289
        %v3291 = vpop.f32.mrb[0].mxu0
        %3292 = vmatprep.mubr.f32.mxu0 0.0
        %3293 = vmatmul.mubr.f32.gmra.mrb[0].mxu0 %v3016
        %v3294 = vpop.f32.mrb[0].mxu0
        %v3295 = vadd.f32 %v3147, %v3294
        %v3296 = vpop.f32.mrb[0].mxu0
        %3297 = vmatprep.mubr.f32.mxu0 0.0
        %3298 = vmatmul.mubr.f32.gmra.mrb[0].mxu0 %v3017
        %v3299 = vpop.f32.mrb[0].mxu0
        %v3300 = vadd.f32 %v3147, %v3299
        %v3301 = vpop.f32.mrb[0].mxu0
        %3302 = vmatprep.mubr.f32.mxu0 0.0
        %3303 = vmatmul.mubr.f32.gmra.mrb[0].mxu0 %v3018
        %v3304 = vpop.f32.mrb[0].mxu0
        %v3305 = vadd.f32 %v3147, %v3304
        %v3306 = vpop.f32.mrb[0].mxu0
        %3307 = vmatprep.mubr.f32.mxu0 0.0
        %3308 = vmatmul.mubr.f32.gmra.mrb[0].mxu0 %v3019
        %v3309 = vpop.f32.mrb[0].mxu0
        %v3310 = vadd.f32 %v3147, %v3309
        %v3311 = vpop.f32.mrb[0].mxu0
        %3312 = vmatprep.mubr.f32.mxu0 0.0
        %3313 = vmatmul.mubr.f32.gmra.mrb[0].mxu0 %v3020
        %v3314 = vpop.f32.mrb[0].mxu0
        %v3315 = vadd.f32 %v3147, %v3314
        %v3316 = vpop.f32.mrb[0].mxu0
        %3317 = vmatprep.mubr.f32.mxu0 0.0
        %3318 = vmatmul.mubr.f32.gmra.mrb[0].mxu0 %v3021
        %v3319 = vpop.f32.mrb[0].mxu0
        %v3320 = vadd.f32 %v3147, %v3319
        %v3321 = vpop.f32.mrb[0].mxu0
        %3322 = vmatprep.mubr.f32.mxu0 0.0
        %3323 = vmatmul.mubr.f32.gmra.mrb[0].mxu0 %v3022
        %v3324 = vpop.f32.mrb[0].mxu0
        %v3325 = vadd.f32 %v3147, %v3324
        %v3326 = vpop.f32.mrb[0].mxu0
        %3327 = vmatprep.mubr.f32.mxu0 0.0
        %3328 = vmatmul.mubr.f32.gmra.mrb[0].mxu0 %v3023
        %v3329 = vpop.f32.mrb[0].mxu0
        %v3330 = vadd.f32 %v3147, %v3329
        %v3331 = vpop.f32.mrb[0].mxu0
        %3332 = vmatprep.mubr.f32.mxu0 0.0
        %3333 = vmatmul.mubr.f32.gmra.mrb[0].mxu0 %v3024
        %v3334 = vpop.f32.mrb[0].mxu0
        %v3335 = vadd.f32 %v3147, %v3334
        %v3336 = vpop.f32.mrb[0].mxu0
        %3337 = vmatprep.mubr.f32.mxu0 0.0
        %3338 = vmatmul.mubr.f32.gmra.mrb[0].mxu0 %v3025
        %v3339 = vpop.f32.mrb[0].mxu0
        %v3340 = vadd.f32 %v3147, %v3339
        %v3341 = vpop.f32.mrb[0].mxu0
        %3342 = vmatprep.mubr.f32.mxu0 0.0
        %3343 = vmatmul.mubr.f32.gmra.mrb[0].mxu0 %v3026
        %v3344 = vpop.f32.mrb[0].mxu0
        %v3345 = vadd.f32 %v3147, %v3344
        %v3346 = vpop.f32.mrb[0].mxu0
        %3347 = vmatprep.mubr.f32.mxu0 0.0
        %3348 = vmatmul.mubr.f32.gmra.mrb[0].mxu0 %v3027
        %v3349 = vpop.f32.mrb[0].mxu0
        %v3350 = vadd.f32 %v3147, %v3349
        %v3351 = vpop.f32.mrb[0].mxu0
        %3352 = vmatprep.mubr.f32.mxu0 0.0
        %3353 = vmatmul.mubr.f32.gmra.mrb[0].mxu0 %v3028
        %v3354 = vpop.f32.mrb[0].mxu0
        %v3355 = vadd.f32 %v3147, %v3354
        %v3356 = vpop.f32.mrb[0].mxu0
        %3357 = vmatprep.mubr.f32.mxu0 0.0
        %3358 = vmatmul.mubr.f32.gmra.mrb[0].mxu0 %v3029
        %v3359 = vpop.f32.mrb[0].mxu0
        %v3360 = vadd.f32 %v3147, %v3359
        %v3361 = vpop.f32.mrb[0].mxu0
        %3362 = vmatprep.mubr.f32.mxu0 0.0
        %3363 = vmatmul.mubr.f32.gmra.mrb[0].mxu0 %v3030
        %v3364 = vpop.f32.mrb[0].mxu0
        %v3365 = vadd.f32 %v3147, %v3364
        %v3366 = vpop.f32.mrb[0].mxu0
        %3367 = vmatprep.mubr.f32.mxu0 0.0
        %3368 = vmatmul.mubr.f32.gmra.mrb[0].mxu0 %v3031
        %v3369 = vpop.f32.mrb[0].mxu0
        %v3370 = vadd.f32 %v3147, %v3369
        %v3371 = vpop.f32.mrb[0].mxu0
        %3372 = vmatprep.mubr.f32.mxu0 0.0
        %3373 = vmatmul.mubr.f32.gmra.mrb[0].mxu0 %v3032
        %v3374 = vpop.f32.mrb[0].mxu0
        %v3375 = vadd.f32 %v3147, %v3374
        %v3376 = vpop.f32.mrb[0].mxu0
        %3377 = vmatprep.mubr.f32.mxu0 0.0
        %3378 = vmatmul.mubr.f32.gmra.mrb[0].mxu0 %v3033
        %v3379 = vpop.f32.mrb[0].mxu0
        %v3380 = vadd.f32 %v3147, %v3379
        %v3381 = vpop.f32.mrb[0].mxu0
        %3382 = vmatprep.mubr.f32.mxu0 0.0
        %3383 = vmatmul.mubr.f32.gmra.mrb[0].mxu0 %v3034
        %v3384 = vpop.f32.mrb[0].mxu0
        %v3385 = vadd.f32 %v3147, %v3384
        %v3386 = vpop.f32.mrb[0].mxu0
        %3387 = vmatprep.mubr.f32.mxu0 0.0
        %3388 = vmatmul.mubr.f32.gmra.mrb[0].mxu0 %v3035
        %v3389 = vpop.f32.mrb[0].mxu0
        %v3390 = vadd.f32 %v3147, %v3389
        %v3391 = vpop.f32.mrb[0].mxu0
        %3392 = vmatprep.mubr.f32.mxu0 0.0
        %3393 = vmatmul.mubr.f32.gmra.mrb[0].mxu0 %v3036
        %v3394 = vpop.f32.mrb[0].mxu0
        %v3395 = vadd.f32 %v3147, %v3394
        %v3396 = vpop.f32.mrb[0].mxu0
        %3397 = vmatprep.mubr.f32.mxu0 0.0
        %3398 = vmatmul.mubr.f32.gmra.mrb[0].mxu0 %v3037
        %v3399 = vpop.f32.mrb[0].mxu0
        %v3400 = vadd.f32 %v3147, %v3399
        %v3401 = vpop.f32.mrb[0].mxu0
        %3402 = vmatprep.mubr.f32.mxu0 0.0
        %3403 = vmatmul.mubr.f32.gmra.mrb[0].mxu0 %v3038
        %v3404 = vpop.f32.mrb[0].mxu0
        %v3405 = vadd.f32 %v3147, %v3404
        %v3406 = vpop.f32.mrb[0].mxu0
        %3407 = vmatprep.mubr.f32.mxu0 0.0
        %3408 = vmatmul.mubr.f32.gmra.mrb[0].mxu0 %v3039
        %v3409 = vpop.f32.mrb[0].mxu0
        %v3410 = vadd.f32 %v3147, %v3409
        %v3411 = vpop.f32.mrb[0].mxu0
        %3412 = vmatprep.mubr.f32.mxu0 0.0
        %3413 = vmatmul.mubr.f32.gmra.mrb[0].mxu0 %v3040
        %v3414 = vpop.f32.mrb[0].mxu0
        %v3415 = vadd.f32 %v3147, %v3414
        %v3416 = vpop.f32.mrb[0].mxu0
        %3417 = vmatprep.mubr.f32.mxu0 0.0
        %3418 = vmatmul.mubr.f32.gmra.mrb[0].mxu0 %v3041
        %v3419 = vpop.f32.mrb[0].mxu0
        %v3420 = vadd.f32 %v3147, %v3419
        %v3421 = vpop.f32.mrb[0].mxu0
        %3422 = vmatprep.mubr.f32.mxu0 0.0
        %3423 = vmatmul.mubr.f32.gmra.mrb[0].mxu0 %v3042
        %v3424 = vpop.f32.mrb[0].mxu0
        %v3425 = vadd.f32 %v3147, %v3424
        %v3426 = vpop.f32.mrb[0].mxu0
        %3427 = vmatprep.mubr.f32.mxu0 0.0
        %3428 = vmatmul.mubr.f32.gmra.mrb[0].mxu0 %v3043
        %v3429 = vpop.f32.mrb[0].mxu0
        %v3430 = vadd.f32 %v3147, %v3429
        %v3431 = vpop.f32.mrb[0].mxu0
        %3432 = vmatprep.mubr.f32.mxu0 0.0
        %3433 = vmatmul.mubr.f32.gmra.mrb[0].mxu0 %v3044
        %v3434 = vpop.f32.mrb[0].mxu0
        %v3435 = vadd.f32 %v3147, %v3434
        %v3436 = vpop.f32.mrb[0].mxu0
        %3437 = vmatprep.mubr.f32.mxu0 0.0
        %3438 = vmatmul.mubr.f32.gmra.mrb[0].mxu0 %v3045
        %v3439 = vpop.f32.mrb[0].mxu0
        %v3440 = vadd.f32 %v3147, %v3439
        %v3441 = vpop.f32.mrb[0].mxu0
        %3442 = vmatprep.mubr.f32.mxu0 0.0
        %3443 = vmatmul.mubr.f32.gmra.mrb[0].mxu0 %v3046
        %v3444 = vpop.f32.mrb[0].mxu0
        %v3445 = vadd.f32 %v3147, %v3444
        %v3446 = vpop.f32.mrb[0].mxu0
        %3447 = vmatprep.mubr.f32.mxu0 0.0
        %3448 = vmatmul.mubr.f32.gmra.mrb[0].mxu0 %v3047
        %v3449 = vpop.f32.mrb[0].mxu0
        %v3450 = vadd.f32 %v3147, %v3449
        %v3451 = vpop.f32.mrb[0].mxu0
        %3452 = vmatprep.mubr.f32.mxu0 0.0
        %3453 = vmatmul.mubr.f32.gmra.mrb[0].mxu0 %v3048
        %v3454 = vpop.f32.mrb[0].mxu0
        %v3455 = vadd.f32 %v3147, %v3454
        %v3456 = vpop.f32.mrb[0].mxu0
        %3457 = vmatprep.mubr.f32.mxu0 0.0
        %3458 = vmatmul.mubr.f32.gmra.mrb[0].mxu0 %v3049
        %v3459 = vpop.f32.mrb[0].mxu0
        %v3460 = vadd.f32 %v3147, %v3459
        %v3461 = vpop.f32.mrb[0].mxu0
        %3462 = vmatprep.mubr.f32.mxu0 0.0
        %3463 = vmatmul.mubr.f32.gmra.mrb[0].mxu0 %v3050
        %v3464 = vpop.f32.mrb[0].mxu0
        %v3465 = vadd.f32 %v3147, %v3464
        %v3466 = vpop.f32.mrb[0].mxu0
        %3467 = vmatprep.mubr.f32.mxu0 0.0
        %3468 = vmatmul.mubr.f32.gmra.mrb[0].mxu0 %v3051
        %v3469 = vpop.f32.mrb[0].mxu0
        %v3470 = vadd.f32 %v3147, %v3469
        %v3471 = vpop.f32.mrb[0].mxu0
        %3472 = vmatprep.mubr.f32.mxu0 0.0
        %3473 = vmatmul.mubr.f32.gmra.mrb[0].mxu0 %v3052
        %v3474 = vpop.f32.mrb[0].mxu0
        %v3475 = vadd.f32 %v3147, %v3474
        %v3476 = vpop.f32.mrb[0].mxu0
        %3477 = vmatprep.mubr.f32.mxu0 0.0
        %3478 = vmatmul.mubr.f32.gmra.mrb[0].mxu0 %v3053
        %v3479 = vpop.f32.mrb[0].mxu0
        %v3480 = vadd.f32 %v3147, %v3479
        %v3481 = vpop.f32.mrb[0].mxu0
        %3482 = vmatprep.mubr.f32.mxu0 0.0
        %3483 = vmatmul.mubr.f32.gmra.mrb[0].mxu0 %v3054
        %v3484 = vpop.f32.mrb[0].mxu0
        %v3485 = vadd.f32 %v3147, %v3484
        %v3486 = vpop.f32.mrb[0].mxu0
        %3487 = vmatprep.mubr.f32.mxu0 0.0
        %3488 = vmatmul.mubr.f32.gmra.mrb[0].mxu0 %v3055
        %v3489 = vpop.f32.mrb[0].mxu0
        %v3490 = vadd.f32 %v3147, %v3489
        %v3491 = vpop.f32.mrb[0].mxu0
        %3492 = vmatprep.mubr.f32.mxu0 0.0
        %3493 = vmatmul.mubr.f32.gmra.mrb[0].mxu0 %v3056
        %v3494 = vpop.f32.mrb[0].mxu0
        %v3495 = vadd.f32 %v3147, %v3494
        %v3496 = vpop.f32.mrb[0].mxu0
        %3497 = vmatprep.mubr.f32.mxu0 0.0
        %3498 = vmatmul.mubr.f32.gmra.mrb[0].mxu0 %v3057
        %v3499 = vpop.f32.mrb[0].mxu0
        %v3500 = vadd.f32 %v3147, %v3499
        %v3501 = vpop.f32.mrb[0].mxu0
        %3502 = vmatprep.mubr.f32.mxu0 0.0
        %3503 = vmatmul.mubr.f32.gmra.mrb[0].mxu0 %v3058
        %v3504 = vpop.f32.mrb[0].mxu0
        %v3505 = vadd.f32 %v3147, %v3504
        %v3506 = vpop.f32.mrb[0].mxu0
        %3507 = vmatprep.mubr.f32.mxu0 0.0
        %3508 = vmatmul.mubr.f32.gmra.mrb[0].mxu0 %v3059
        %v3509 = vpop.f32.mrb[0].mxu0
        %v3510 = vadd.f32 %v3147, %v3509
        %v3511 = vpop.f32.mrb[0].mxu0
        %3512 = vmatprep.mubr.f32.mxu0 0.0
        %3513 = vmatmul.mubr.f32.gmra.mrb[0].mxu0 %v3060
        %v3514 = vpop.f32.mrb[0].mxu0
        %v3515 = vadd.f32 %v3147, %v3514
        %v3516 = vpop.f32.mrb[0].mxu0
        %3517 = vmatprep.mubr.f32.mxu0 0.0
        %3518 = vmatmul.mubr.f32.gmra.mrb[0].mxu0 %v3061
        %v3519 = vpop.f32.mrb[0].mxu0
        %v3520 = vadd.f32 %v3147, %v3519
        %v3521 = vpop.f32.mrb[0].mxu0
        %3522 = vmatprep.mubr.f32.mxu0 0.0
        %3523 = vmatmul.mubr.f32.gmra.mrb[0].mxu0 %v3062
        %v3524 = vpop.f32.mrb[0].mxu0
        %v3525 = vadd.f32 %v3147, %v3524
        %v3526 = vpop.f32.mrb[0].mxu0
        %3527 = vmatprep.mubr.f32.mxu0 0.0
        %3528 = vmatmul.mubr.f32.gmra.mrb[0].mxu0 %v3063
        %v3529 = vpop.f32.mrb[0].mxu0
        %v3530 = vadd.f32 %v3147, %v3529
        %v3531 = vpop.f32.mrb[0].mxu0
        %3532 = vmatprep.mubr.f32.mxu0 0.0
        %3533 = vmatmul.mubr.f32.gmra.mrb[0].mxu0 %v3064
        %v3534 = vpop.f32.mrb[0].mxu0
        %v3535 = vadd.f32 %v3147, %v3534
        %v3536 = vpop.f32.mrb[0].mxu0
        %3537 = vmatprep.mubr.f32.mxu0 0.0
        %3538 = vmatmul.mubr.f32.gmra.mrb[0].mxu0 %v3065
        %v3539 = vpop.f32.mrb[0].mxu0
        %v3540 = vadd.f32 %v3147, %v3539
        %v3541 = vpop.f32.mrb[0].mxu0
        %3542 = vmatprep.mubr.f32.mxu0 0.0
        %3543 = vmatmul.mubr.f32.gmra.mrb[0].mxu0 %v3066
        %v3544 = vpop.f32.mrb[0].mxu0
        %v3545 = vadd.f32 %v3147, %v3544
        %v3546 = vpop.f32.mrb[0].mxu0
        %3547 = vmatprep.mubr.f32.mxu0 0.0
        %3548 = vmatmul.mubr.f32.gmra.mrb[0].mxu0 %v3067
        %v3549 = vpop.f32.mrb[0].mxu0
        %v3550 = vadd.f32 %v3147, %v3549
        %v3551 = vpop.f32.mrb[0].mxu0
        %3552 = vmatprep.mubr.f32.mxu0 0.0
        %3553 = vmatmul.mubr.f32.gmra.mrb[0].mxu0 %v3068
        %v3554 = vpop.f32.mrb[0].mxu0
        %v3555 = vadd.f32 %v3147, %v3554
        %v3556 = vpop.f32.mrb[0].mxu0
        %3557 = vmatprep.mubr.f32.mxu0 0.0
        %3558 = vmatmul.mubr.f32.gmra.mrb[0].mxu0 %v3069
        %v3559 = vpop.f32.mrb[0].mxu0
        %v3560 = vadd.f32 %v3147, %v3559
        %v3561 = vpop.f32.mrb[0].mxu0
        %3562 = vmatprep.mubr.f32.mxu0 0.0
        %3563 = vmatmul.mubr.f32.gmra.mrb[0].mxu0 %v3070
        %v3564 = vpop.f32.mrb[0].mxu0
        %v3565 = vadd.f32 %v3147, %v3564
        %v3566 = vpop.f32.mrb[0].mxu0
        %3567 = vmatprep.mubr.f32.mxu0 0.0
        %3568 = vmatmul.mubr.f32.gmra.mrb[0].mxu0 %v3071
        %v3569 = vpop.f32.mrb[0].mxu0
        %v3570 = vadd.f32 %v3147, %v3569
        %v3571 = vpop.f32.mrb[0].mxu0
        %3572 = vmatprep.mubr.f32.mxu0 0.0
        %3573 = vmatmul.mubr.f32.gmra.mrb[0].mxu0 %v3072
        %v3574 = vpop.f32.mrb[0].mxu0
        %v3575 = vadd.f32 %v3147, %v3574
        %v3576 = vpop.f32.mrb[0].mxu0
        %3577 = vmatprep.mubr.f32.mxu0 0.0
        %3578 = vmatmul.mubr.f32.gmra.mrb[0].mxu0 %v3073
        %v3579 = vpop.f32.mrb[0].mxu0
        %v3580 = vadd.f32 %v3147, %v3579
        %v3581 = vpop.f32.mrb[0].mxu0
        %3582 = vmatprep.mubr.f32.mxu0 0.0
        %3583 = vmatmul.mubr.f32.gmra.mrb[0].mxu0 %v3074
        %v3584 = vpop.f32.mrb[0].mxu0
        %v3585 = vadd.f32 %v3147, %v3584
        %v3586 = vpop.f32.mrb[0].mxu0
        %3587 = vmatprep.mubr.f32.mxu0 0.0
        %3588 = vmatmul.mubr.f32.gmra.mrb[0].mxu0 %v3075
        %v3589 = vpop.f32.mrb[0].mxu0
        %v3590 = vadd.f32 %v3147, %v3589
        %v3591 = vpop.f32.mrb[0].mxu0
        %3592 = vmatprep.mubr.f32.mxu0 0.0
        %3593 = vmatmul.mubr.f32.gmra.mrb[0].mxu0 %v3076
        %v3594 = vpop.f32.mrb[0].mxu0
        %v3595 = vadd.f32 %v3147, %v3594
        %v3596 = vpop.f32.mrb[0].mxu0
        %3597 = vmatprep.mubr.f32.mxu0 0.0
        %3598 = vmatmul.mubr.f32.gmra.mrb[0].mxu0 %v3077
        %v3599 = vpop.f32.mrb[0].mxu0
        %v3600 = vadd.f32 %v3147, %v3599
        %v3601 = vpop.f32.mrb[0].mxu0
        %3602 = vmatprep.mubr.f32.mxu0 0.0
        %3603 = vmatmul.mubr.f32.gmra.mrb[0].mxu0 %v3078
        %v3604 = vpop.f32.mrb[0].mxu0
        %v3605 = vadd.f32 %v3147, %v3604
        %v3606 = vpop.f32.mrb[0].mxu0
        %3607 = vmatprep.mubr.f32.mxu0 0.0
        %3608 = vmatmul.mubr.f32.gmra.mrb[0].mxu0 %v3079
        %v3609 = vpop.f32.mrb[0].mxu0
        %v3610 = vadd.f32 %v3147, %v3609
        %v3611 = vpop.f32.mrb[0].mxu0
        %3612 = vmatprep.mubr.f32.mxu0 0.0
        %3613 = vmatmul.mubr.f32.gmra.mrb[0].mxu0 %v3080
        %v3614 = vpop.f32.mrb[0].mxu0
        %v3615 = vadd.f32 %v3147, %v3614
        %v3616 = vpop.f32.mrb[0].mxu0
        %3617 = vmatprep.mubr.f32.mxu0 0.0
        %3618 = vmatmul.mubr.f32.gmra.mrb[0].mxu0 %v3081
        %v3619 = vpop.f32.mrb[0].mxu0
        %v3620 = vadd.f32 %v3147, %v3619
        %v3621 = vpop.f32.mrb[0].mxu0
        %3622 = vmatprep.mubr.f32.mxu0 0.0
        %3623 = vmatmul.mubr.f32.gmra.mrb[0].mxu0 %v3082
        %v3624 = vpop.f32.mrb[0].mxu0
        %v3625 = vadd.f32 %v3147, %v3624
        %v3626 = vpop.f32.mrb[0].mxu0
        %3627 = vmatprep.mubr.f32.mxu0 0.0
        %3628 = vmatmul.mubr.f32.gmra.mrb[0].mxu0 %v3083
        %v3629 = vpop.f32.mrb[0].mxu0
        %v3630 = vadd.f32 %v3147, %v3629
        %v3631 = vpop.f32.mrb[0].mxu0
        %3632 = vmatprep.mubr.f32.mxu0 0.0
        %3633 = vmatmul.mubr.f32.gmra.mrb[0].mxu0 %v3084
        %v3634 = vpop.f32.mrb[0].mxu0
        %v3635 = vadd.f32 %v3147, %v3634
        %v3636 = vpop.f32.mrb[0].mxu0
        %3637 = vmatprep.mubr.f32.mxu0 0.0
        %3638 = vmatmul.mubr.f32.gmra.mrb[0].mxu0 %v3085
        %v3639 = vpop.f32.mrb[0].mxu0
        %v3640 = vadd.f32 %v3147, %v3639
        %v3641 = vpop.f32.mrb[0].mxu0
        %3642 = vmatprep.mubr.f32.mxu0 0.0
        %3643 = vmatmul.mubr.f32.gmra.mrb[0].mxu0 %v3086
        %v3644 = vpop.f32.mrb[0].mxu0
        %v3645 = vadd.f32 %v3147, %v3644
        %v3646 = vpop.f32.mrb[0].mxu0
        %3647 = vmatprep.mubr.f32.mxu0 0.0
        %3648 = vmatmul.mubr.f32.gmra.mrb[0].mxu0 %v3087
        %v3649 = vpop.f32.mrb[0].mxu0
        %v3650 = vadd.f32 %v3147, %v3649
        %v3651 = vpop.f32.mrb[0].mxu0
        %3652 = vmatprep.mubr.f32.mxu0 0.0
        %3653 = vmatmul.mubr.f32.gmra.mrb[0].mxu0 %v3088
        %v3654 = vpop.f32.mrb[0].mxu0
        %v3655 = vadd.f32 %v3147, %v3654
        %v3656 = vpop.f32.mrb[0].mxu0
        %3657 = vmatprep.mubr.f32.mxu0 0.0
        %3658 = vmatmul.mubr.f32.gmra.mrb[0].mxu0 %v3089
        %v3659 = vpop.f32.mrb[0].mxu0
        %v3660 = vadd.f32 %v3147, %v3659
        %v3661 = vpop.f32.mrb[0].mxu0
        %3662 = vmatprep.mubr.f32.mxu0 0.0
        %3663 = vmatmul.mubr.f32.gmra.mrb[0].mxu0 %v3090
        %v3664 = vpop.f32.mrb[0].mxu0
        %v3665 = vadd.f32 %v3147, %v3664
        %v3666 = vpop.f32.mrb[0].mxu0
        %3667 = vmatprep.mubr.f32.mxu0 0.0
        %3668 = vmatmul.mubr.f32.gmra.mrb[0].mxu0 %v3091
        %v3669 = vpop.f32.mrb[0].mxu0
        %v3670 = vadd.f32 %v3147, %v3669
        %v3671 = vpop.f32.mrb[0].mxu0
        %3672 = vmatprep.mubr.f32.mxu0 0.0
        %3673 = vmatmul.mubr.f32.gmra.mrb[0].mxu0 %v3092
        %v3674 = vpop.f32.mrb[0].mxu0
        %v3675 = vadd.f32 %v3147, %v3674
        %v3676 = vpop.f32.mrb[0].mxu0
        %3677 = vmatprep.mubr.f32.mxu0 0.0
        %3678 = vmatmul.mubr.f32.gmra.mrb[0].mxu0 %v3093
        %v3679 = vpop.f32.mrb[0].mxu0
        %v3680 = vadd.f32 %v3147, %v3679
        %v3681 = vpop.f32.mrb[0].mxu0
        %3682 = vmatprep.mubr.f32.mxu0 0.0
        %3683 = vmatmul.mubr.f32.gmra.mrb[0].mxu0 %v3094
        %v3684 = vpop.f32.mrb[0].mxu0
        %v3685 = vadd.f32 %v3147, %v3684
        %v3686 = vpop.f32.mrb[0].mxu0
        %3687 = vmatprep.mubr.f32.mxu0 0.0
        %3688 = vmatmul.mubr.f32.gmra.mrb[0].mxu0 %v3095
        %v3689 = vpop.f32.mrb[0].mxu0
        %v3690 = vadd.f32 %v3147, %v3689
        %v3691 = vpop.f32.mrb[0].mxu0
        %3692 = vmatprep.mubr.f32.mxu0 0.0
        %3693 = vmatmul.mubr.f32.gmra.mrb[0].mxu0 %v3096
        %v3694 = vpop.f32.mrb[0].mxu0
        %v3695 = vadd.f32 %v3147, %v3694
        %v3696 = vpop.f32.mrb[0].mxu0
        %3697 = vmatprep.mubr.f32.mxu0 0.0
        %3698 = vmatmul.mubr.f32.gmra.mrb[0].mxu0 %v3097
        %v3699 = vpop.f32.mrb[0].mxu0
        %v3700 = vadd.f32 %v3147, %v3699
        %v3701 = vpop.f32.mrb[0].mxu0
        %3702 = vmatprep.mubr.f32.mxu0 0.0
        %3703 = vmatmul.mubr.f32.gmra.mrb[0].mxu0 %v3098
        %v3704 = vpop.f32.mrb[0].mxu0
        %v3705 = vadd.f32 %v3147, %v3704
        %v3706 = vpop.f32.mrb[0].mxu0
        %3707 = vmatprep.mubr.f32.mxu0 0.0
        %3708 = vmatmul.mubr.f32.gmra.mrb[0].mxu0 %v3099
        %v3709 = vpop.f32.mrb[0].mxu0
        %v3710 = vadd.f32 %v3147, %v3709
        %v3711 = vpop.f32.mrb[0].mxu0
        %3712 = vmatprep.mubr.f32.mxu0 0.0
        %3713 = vmatmul.mubr.f32.gmra.mrb[0].mxu0 %v3100
        %v3714 = vpop.f32.mrb[0].mxu0
        %v3715 = vadd.f32 %v3147, %v3714
        %v3716 = vpop.f32.mrb[0].mxu0
        %3717 = vmatprep.mubr.f32.mxu0 0.0
        %3718 = vmatmul.mubr.f32.gmra.mrb[0].mxu0 %v3101
        %v3719 = vpop.f32.mrb[0].mxu0
        %v3720 = vadd.f32 %v3147, %v3719
        %v3721 = vpop.f32.mrb[0].mxu0
        %3722 = vmatprep.mubr.f32.mxu0 0.0
        %3723 = vmatmul.mubr.f32.gmra.mrb[0].mxu0 %v3102
        %v3724 = vpop.f32.mrb[0].mxu0
        %v3725 = vadd.f32 %v3147, %v3724
        %v3726 = vpop.f32.mrb[0].mxu0
        %3727 = vmatprep.mubr.f32.mxu0 0.0
        %3728 = vmatmul.mubr.f32.gmra.mrb[0].mxu0 %v3103
        %v3729 = vpop.f32.mrb[0].mxu0
        %v3730 = vadd.f32 %v3147, %v3729
        %v3731 = vpop.f32.mrb[0].mxu0
        %3732 = vmatprep.mubr.f32.mxu0 0.0
        %3733 = vmatmul.mubr.f32.gmra.mrb[0].mxu0 %v3104
        %v3734 = vpop.f32.mrb[0].mxu0
        %v3735 = vadd.f32 %v3147, %v3734
        %v3736 = vpop.f32.mrb[0].mxu0
        %3737 = vmatprep.mubr.f32.mxu0 0.0
        %3738 = vmatmul.mubr.f32.gmra.mrb[0].mxu0 %v3105
        %v3739 = vpop.f32.mrb[0].mxu0
        %v3740 = vadd.f32 %v3147, %v3739
        %v3741 = vpop.f32.mrb[0].mxu0
        %3742 = vmatprep.mubr.f32.mxu0 0.0
        %3743 = vmatmul.mubr.f32.gmra.mrb[0].mxu0 %v3106
        %v3744 = vpop.f32.mrb[0].mxu0
        %v3745 = vadd.f32 %v3147, %v3744
        %v3746 = vpop.f32.mrb[0].mxu0
        %3747 = vmatprep.mubr.f32.mxu0 0.0
        %3748 = vmatmul.mubr.f32.gmra.mrb[0].mxu0 %v3107
        %v3749 = vpop.f32.mrb[0].mxu0
        %v3750 = vadd.f32 %v3147, %v3749
        %v3751 = vpop.f32.mrb[0].mxu0
        %3752 = vmatprep.mubr.f32.mxu0 0.0
        %3753 = vmatmul.mubr.f32.gmra.mrb[0].mxu0 %v3108
        %v3754 = vpop.f32.mrb[0].mxu0
        %v3755 = vadd.f32 %v3147, %v3754
        %v3756 = vpop.f32.mrb[0].mxu0
        %3757 = vmatprep.mubr.f32.mxu0 0.0
        %3758 = vmatmul.mubr.f32.gmra.mrb[0].mxu0 %v3109
        %v3759 = vpop.f32.mrb[0].mxu0
        %v3760 = vadd.f32 %v3147, %v3759
        %v3761 = vpop.f32.mrb[0].mxu0
        %3762 = vmatprep.mubr.f32.mxu0 0.0
        %3763 = vmatmul.mubr.f32.gmra.mrb[0].mxu0 %v3110
        %v3764 = vpop.f32.mrb[0].mxu0
        %v3765 = vadd.f32 %v3147, %v3764
        %v3766 = vpop.f32.mrb[0].mxu0
        %3767 = vmatprep.mubr.f32.mxu0 0.0
        %3768 = vmatmul.mubr.f32.gmra.mrb[0].mxu0 %v3111
        %v3769 = vpop.f32.mrb[0].mxu0
        %v3770 = vadd.f32 %v3147, %v3769
        %v3771 = vpop.f32.mrb[0].mxu0
        %3772 = vmatprep.mubr.f32.mxu0 0.0
        %3773 = vmatmul.mubr.f32.gmra.mrb[0].mxu0 %v3112
        %v3774 = vpop.f32.mrb[0].mxu0
        %v3775 = vadd.f32 %v3147, %v3774
        %v3776 = vpop.f32.mrb[0].mxu0
        %3777 = vmatprep.mubr.f32.mxu0 0.0
        %3778 = vmatmul.mubr.f32.gmra.mrb[0].mxu0 %v3113
        %v3779 = vpop.f32.mrb[0].mxu0
        %v3780 = vadd.f32 %v3147, %v3779
        %v3781 = vpop.f32.mrb[0].mxu0
        %3782 = vmatprep.mubr.f32.mxu0 0.0
        %3783 = vmatmul.mubr.f32.gmra.mrb[0].mxu0 %v3114
        %v3784 = vpop.f32.mrb[0].mxu0
        %v3785 = vadd.f32 %v3147, %v3784
        %v3786 = vpop.f32.mrb[0].mxu0
        %3787 = vmatprep.mubr.f32.mxu0 0.0
        %3788 = vmatmul.mubr.f32.gmra.mrb[0].mxu0 %v3115
        %v3789 = vpop.f32.mrb[0].mxu0
        %v3790 = vadd.f32 %v3147, %v3789
        %v3791 = vpop.f32.mrb[0].mxu0
        %3792 = vmatprep.mubr.f32.mxu0 0.0
        %3793 = vmatmul.mubr.f32.gmra.mrb[0].mxu0 %v3116
        %v3794 = vpop.f32.mrb[0].mxu0
        %v3795 = vadd.f32 %v3147, %v3794
        %v3796 = vpop.f32.mrb[0].mxu0
        %3797 = vmatprep.mubr.f32.mxu0 0.0
        %3798 = vmatmul.mubr.f32.gmra.mrb[0].mxu0 %v3117
        %v3799 = vpop.f32.mrb[0].mxu0
        %v3800 = vadd.f32 %v3147, %v3799
        %v3801 = vpop.f32.mrb[0].mxu0
        %3802 = vmatprep.mubr.f32.mxu0 0.0
        %3803 = vmatmul.mubr.f32.gmra.mrb[0].mxu0 %v3118
        %v3804 = vpop.f32.mrb[0].mxu0
        %v3805 = vadd.f32 %v3147, %v3804
        %v3806 = vpop.f32.mrb[0].mxu0
        %3807 = vmatprep.mubr.f32.mxu0 0.0
        %3808 = vmatmul.mubr.f32.gmra.mrb[0].mxu0 %v3119
        %v3809 = vpop.f32.mrb[0].mxu0
        %v3810 = vadd.f32 %v3147, %v3809
        %v3811 = vpop.f32.mrb[0].mxu0
        %3812 = vmatprep.mubr.f32.mxu0 0.0
        %3813 = vmatmul.mubr.f32.gmra.mrb[0].mxu0 %v3120
        %v3814 = vpop.f32.mrb[0].mxu0
        %v3815 = vadd.f32 %v3147, %v3814
        %v3816 = vpop.f32.mrb[0].mxu0
        %3817 = vmatprep.mubr.f32.mxu0 0.0
        %3818 = vmatmul.mubr.f32.gmra.mrb[0].mxu0 %v3121
        %v3819 = vpop.f32.mrb[0].mxu0
        %v3820 = vadd.f32 %v3147, %v3819
        %v3821 = vpop.f32.mrb[0].mxu0
        %3822 = vmatprep.mubr.f32.mxu0 0.0
        %3823 = vmatmul.mubr.f32.gmra.mrb[0].mxu0 %v3122
        %v3824 = vpop.f32.mrb[0].mxu0
        %v3825 = vadd.f32 %v3147, %v3824
        %v3826 = vpop.f32.mrb[0].mxu0
        %3827 = vmatprep.mubr.f32.mxu0 0.0
        %3828 = vmatmul.mubr.f32.gmra.mrb[0].mxu0 %v3123
        %v3829 = vpop.f32.mrb[0].mxu0
        %v3830 = vadd.f32 %v3147, %v3829
        %v3831 = vpop.f32.mrb[0].mxu0
        %3832 = vmatprep.mubr.f32.mxu0 0.0
        %3833 = vmatmul.mubr.f32.gmra.mrb[0].mxu0 %v3124
        %v3834 = vpop.f32.mrb[0].mxu0
        %v3835 = vadd.f32 %v3147, %v3834
        %v3836 = vpop.f32.mrb[0].mxu0
        %3837 = vmatprep.mubr.f32.mxu0 0.0
        %3838 = vmatmul.mubr.f32.gmra.mrb[0].mxu0 %v3125
        %v3839 = vpop.f32.mrb[0].mxu0
        %v3840 = vadd.f32 %v3147, %v3839
        %v3841 = vpop.f32.mrb[0].mxu0
        %3842 = vmatprep.mubr.f32.mxu0 0.0
        %3843 = vmatmul.mubr.f32.gmra.mrb[0].mxu0 %v3126
        %v3844 = vpop.f32.mrb[0].mxu0
        %v3845 = vadd.f32 %v3147, %v3844
        %v3846 = vpop.f32.mrb[0].mxu0
        %3847 = vmatprep.mubr.f32.mxu0 0.0
        %3848 = vmatmul.mubr.f32.gmra.mrb[0].mxu0 %v3127
        %v3849 = vpop.f32.mrb[0].mxu0
        %v3850 = vadd.f32 %v3147, %v3849
        %v3851 = vpop.f32.mrb[0].mxu0
        %3852 = vdwg.mxu0
        %3853 = vadd.xlane.f32.xlu0 %v3215
        %v3854 = vpop.xlane.xlu0 %3853
        %3855 = vadd.xlane.f32.xlu0 %v3220
        %v3856 = vpop.xlane.xlu0 %3855
        %3857 = vadd.xlane.f32.xlu0 %v3225
        %v3858 = vpop.xlane.xlu0 %3857
        %3859 = vadd.xlane.f32.xlu0 %v3230
        %v3860 = vpop.xlane.xlu0 %3859
        %3861 = vadd.xlane.f32.xlu0 %v3235
        %v3862 = vpop.xlane.xlu0 %3861
        %3863 = vadd.xlane.f32.xlu0 %v3240
        %v3864 = vpop.xlane.xlu0 %3863
        %3865 = vadd.xlane.f32.xlu0 %v3245
        %v3866 = vpop.xlane.xlu0 %3865
        %3867 = vadd.xlane.f32.xlu0 %v3250
        %v3868 = vpop.xlane.xlu0 %3867
        %3869 = vadd.xlane.f32.xlu0 %v3255
        %v3870 = vpop.xlane.xlu0 %3869
        %3871 = vadd.xlane.f32.xlu0 %v3260
        %v3872 = vpop.xlane.xlu0 %3871
        %3873 = vadd.xlane.f32.xlu0 %v3265
        %v3874 = vpop.xlane.xlu0 %3873
        %3875 = vadd.xlane.f32.xlu0 %v3270
        %v3876 = vpop.xlane.xlu0 %3875
        %3877 = vadd.xlane.f32.xlu0 %v3275
        %v3878 = vpop.xlane.xlu0 %3877
        %3879 = vadd.xlane.f32.xlu0 %v3280
        %v3880 = vpop.xlane.xlu0 %3879
        %3881 = vadd.xlane.f32.xlu0 %v3285
        %v3882 = vpop.xlane.xlu0 %3881
        %3883 = vadd.xlane.f32.xlu0 %v3290
        %v3884 = vpop.xlane.xlu0 %3883
        %3885 = vadd.xlane.f32.xlu0 %v3295
        %v3886 = vpop.xlane.xlu0 %3885
        %3887 = vadd.xlane.f32.xlu0 %v3300
        %v3888 = vpop.xlane.xlu0 %3887
        %3889 = vadd.xlane.f32.xlu0 %v3305
        %v3890 = vpop.xlane.xlu0 %3889
        %3891 = vadd.xlane.f32.xlu0 %v3310
        %v3892 = vpop.xlane.xlu0 %3891
        %3893 = vadd.xlane.f32.xlu0 %v3315
        %v3894 = vpop.xlane.xlu0 %3893
        %3895 = vadd.xlane.f32.xlu0 %v3320
        %v3896 = vpop.xlane.xlu0 %3895
        %3897 = vadd.xlane.f32.xlu0 %v3325
        %v3898 = vpop.xlane.xlu0 %3897
        %3899 = vadd.xlane.f32.xlu0 %v3330
        %v3900 = vpop.xlane.xlu0 %3899
        %3901 = vadd.xlane.f32.xlu0 %v3335
        %v3902 = vpop.xlane.xlu0 %3901
        %3903 = vadd.xlane.f32.xlu0 %v3340
        %v3904 = vpop.xlane.xlu0 %3903
        %3905 = vadd.xlane.f32.xlu0 %v3345
        %v3906 = vpop.xlane.xlu0 %3905
        %3907 = vadd.xlane.f32.xlu0 %v3350
        %v3908 = vpop.xlane.xlu0 %3907
        %3909 = vadd.xlane.f32.xlu0 %v3355
        %v3910 = vpop.xlane.xlu0 %3909
        %3911 = vadd.xlane.f32.xlu0 %v3360
        %v3912 = vpop.xlane.xlu0 %3911
        %3913 = vadd.xlane.f32.xlu0 %v3365
        %v3914 = vpop.xlane.xlu0 %3913
        %3915 = vadd.xlane.f32.xlu0 %v3370
        %v3916 = vpop.xlane.xlu0 %3915
        %3917 = vadd.xlane.f32.xlu0 %v3375
        %v3918 = vpop.xlane.xlu0 %3917
        %3919 = vadd.xlane.f32.xlu0 %v3380
        %v3920 = vpop.xlane.xlu0 %3919
        %3921 = vadd.xlane.f32.xlu0 %v3385
        %v3922 = vpop.xlane.xlu0 %3921
        %3923 = vadd.xlane.f32.xlu0 %v3390
        %v3924 = vpop.xlane.xlu0 %3923
        %3925 = vadd.xlane.f32.xlu0 %v3395
        %v3926 = vpop.xlane.xlu0 %3925
        %3927 = vadd.xlane.f32.xlu0 %v3400
        %v3928 = vpop.xlane.xlu0 %3927
        %3929 = vadd.xlane.f32.xlu0 %v3405
        %v3930 = vpop.xlane.xlu0 %3929
        %3931 = vadd.xlane.f32.xlu0 %v3410
        %v3932 = vpop.xlane.xlu0 %3931
        %3933 = vadd.xlane.f32.xlu0 %v3415
        %v3934 = vpop.xlane.xlu0 %3933
        %3935 = vadd.xlane.f32.xlu0 %v3420
        %v3936 = vpop.xlane.xlu0 %3935
        %3937 = vadd.xlane.f32.xlu0 %v3425
        %v3938 = vpop.xlane.xlu0 %3937
        %3939 = vadd.xlane.f32.xlu0 %v3430
        %v3940 = vpop.xlane.xlu0 %3939
        %3941 = vadd.xlane.f32.xlu0 %v3435
        %v3942 = vpop.xlane.xlu0 %3941
        %3943 = vadd.xlane.f32.xlu0 %v3440
        %v3944 = vpop.xlane.xlu0 %3943
        %3945 = vadd.xlane.f32.xlu0 %v3445
        %v3946 = vpop.xlane.xlu0 %3945
        %3947 = vadd.xlane.f32.xlu0 %v3450
        %v3948 = vpop.xlane.xlu0 %3947
        %3949 = vadd.xlane.f32.xlu0 %v3455
        %v3950 = vpop.xlane.xlu0 %3949
        %3951 = vadd.xlane.f32.xlu0 %v3460
        %v3952 = vpop.xlane.xlu0 %3951
        %3953 = vadd.xlane.f32.xlu0 %v3465
        %v3954 = vpop.xlane.xlu0 %3953
        %3955 = vadd.xlane.f32.xlu0 %v3470
        %v3956 = vpop.xlane.xlu0 %3955
        %3957 = vadd.xlane.f32.xlu0 %v3475
        %v3958 = vpop.xlane.xlu0 %3957
        %3959 = vadd.xlane.f32.xlu0 %v3480
        %v3960 = vpop.xlane.xlu0 %3959
        %3961 = vadd.xlane.f32.xlu0 %v3485
        %v3962 = vpop.xlane.xlu0 %3961
        %3963 = vadd.xlane.f32.xlu0 %v3490
        %v3964 = vpop.xlane.xlu0 %3963
        %3965 = vadd.xlane.f32.xlu0 %v3495
        %v3966 = vpop.xlane.xlu0 %3965
        %3967 = vadd.xlane.f32.xlu0 %v3500
        %v3968 = vpop.xlane.xlu0 %3967
        %3969 = vadd.xlane.f32.xlu0 %v3505
        %v3970 = vpop.xlane.xlu0 %3969
        %3971 = vadd.xlane.f32.xlu0 %v3510
        %v3972 = vpop.xlane.xlu0 %3971
        %3973 = vadd.xlane.f32.xlu0 %v3515
        %v3974 = vpop.xlane.xlu0 %3973
        %3975 = vadd.xlane.f32.xlu0 %v3520
        %v3976 = vpop.xlane.xlu0 %3975
        %3977 = vadd.xlane.f32.xlu0 %v3525
        %v3978 = vpop.xlane.xlu0 %3977
        %3979 = vadd.xlane.f32.xlu0 %v3530
        %v3980 = vpop.xlane.xlu0 %3979
        %3981 = vadd.xlane.f32.xlu0 %v3535
        %v3982 = vpop.xlane.xlu0 %3981
        %3983 = vadd.xlane.f32.xlu0 %v3540
        %v3984 = vpop.xlane.xlu0 %3983
        %3985 = vadd.xlane.f32.xlu0 %v3545
        %v3986 = vpop.xlane.xlu0 %3985
        %3987 = vadd.xlane.f32.xlu0 %v3550
        %v3988 = vpop.xlane.xlu0 %3987
        %3989 = vadd.xlane.f32.xlu0 %v3555
        %v3990 = vpop.xlane.xlu0 %3989
        %3991 = vadd.xlane.f32.xlu0 %v3560
        %v3992 = vpop.xlane.xlu0 %3991
        %3993 = vadd.xlane.f32.xlu0 %v3565
        %v3994 = vpop.xlane.xlu0 %3993
        %3995 = vadd.xlane.f32.xlu0 %v3570
        %v3996 = vpop.xlane.xlu0 %3995
        %3997 = vadd.xlane.f32.xlu0 %v3575
        %v3998 = vpop.xlane.xlu0 %3997
        %3999 = vadd.xlane.f32.xlu0 %v3580
        %v4000 = vpop.xlane.xlu0 %3999
        %4001 = vadd.xlane.f32.xlu0 %v3585
        %v4002 = vpop.xlane.xlu0 %4001
        %4003 = vadd.xlane.f32.xlu0 %v3590
        %v4004 = vpop.xlane.xlu0 %4003
        %4005 = vadd.xlane.f32.xlu0 %v3595
        %v4006 = vpop.xlane.xlu0 %4005
        %4007 = vadd.xlane.f32.xlu0 %v3600
        %v4008 = vpop.xlane.xlu0 %4007
        %4009 = vadd.xlane.f32.xlu0 %v3605
        %v4010 = vpop.xlane.xlu0 %4009
        %4011 = vadd.xlane.f32.xlu0 %v3610
        %v4012 = vpop.xlane.xlu0 %4011
        %4013 = vadd.xlane.f32.xlu0 %v3615
        %v4014 = vpop.xlane.xlu0 %4013
        %4015 = vadd.xlane.f32.xlu0 %v3620
        %v4016 = vpop.xlane.xlu0 %4015
        %4017 = vadd.xlane.f32.xlu0 %v3625
        %v4018 = vpop.xlane.xlu0 %4017
        %4019 = vadd.xlane.f32.xlu0 %v3630
        %v4020 = vpop.xlane.xlu0 %4019
        %4021 = vadd.xlane.f32.xlu0 %v3635
        %v4022 = vpop.xlane.xlu0 %4021
        %4023 = vadd.xlane.f32.xlu0 %v3640
        %v4024 = vpop.xlane.xlu0 %4023
        %4025 = vadd.xlane.f32.xlu0 %v3645
        %v4026 = vpop.xlane.xlu0 %4025
        %4027 = vadd.xlane.f32.xlu0 %v3650
        %v4028 = vpop.xlane.xlu0 %4027
        %4029 = vadd.xlane.f32.xlu0 %v3655
        %v4030 = vpop.xlane.xlu0 %4029
        %4031 = vadd.xlane.f32.xlu0 %v3660
        %v4032 = vpop.xlane.xlu0 %4031
        %4033 = vadd.xlane.f32.xlu0 %v3665
        %v4034 = vpop.xlane.xlu0 %4033
        %4035 = vadd.xlane.f32.xlu0 %v3670
        %v4036 = vpop.xlane.xlu0 %4035
        %4037 = vadd.xlane.f32.xlu0 %v3675
        %v4038 = vpop.xlane.xlu0 %4037
        %4039 = vadd.xlane.f32.xlu0 %v3680
        %v4040 = vpop.xlane.xlu0 %4039
        %4041 = vadd.xlane.f32.xlu0 %v3685
        %v4042 = vpop.xlane.xlu0 %4041
        %4043 = vadd.xlane.f32.xlu0 %v3690
        %v4044 = vpop.xlane.xlu0 %4043
        %4045 = vadd.xlane.f32.xlu0 %v3695
        %v4046 = vpop.xlane.xlu0 %4045
        %4047 = vadd.xlane.f32.xlu0 %v3700
        %v4048 = vpop.xlane.xlu0 %4047
        %4049 = vadd.xlane.f32.xlu0 %v3705
        %v4050 = vpop.xlane.xlu0 %4049
        %4051 = vadd.xlane.f32.xlu0 %v3710
        %v4052 = vpop.xlane.xlu0 %4051
        %4053 = vadd.xlane.f32.xlu0 %v3715
        %v4054 = vpop.xlane.xlu0 %4053
        %4055 = vadd.xlane.f32.xlu0 %v3720
        %v4056 = vpop.xlane.xlu0 %4055
        %4057 = vadd.xlane.f32.xlu0 %v3725
        %v4058 = vpop.xlane.xlu0 %4057
        %4059 = vadd.xlane.f32.xlu0 %v3730
        %v4060 = vpop.xlane.xlu0 %4059
        %4061 = vadd.xlane.f32.xlu0 %v3735
        %v4062 = vpop.xlane.xlu0 %4061
        %4063 = vadd.xlane.f32.xlu0 %v3740
        %v4064 = vpop.xlane.xlu0 %4063
        %4065 = vadd.xlane.f32.xlu0 %v3745
        %v4066 = vpop.xlane.xlu0 %4065
        %4067 = vadd.xlane.f32.xlu0 %v3750
        %v4068 = vpop.xlane.xlu0 %4067
        %4069 = vadd.xlane.f32.xlu0 %v3755
        %v4070 = vpop.xlane.xlu0 %4069
        %4071 = vadd.xlane.f32.xlu0 %v3760
        %v4072 = vpop.xlane.xlu0 %4071
        %4073 = vadd.xlane.f32.xlu0 %v3765
        %v4074 = vpop.xlane.xlu0 %4073
        %4075 = vadd.xlane.f32.xlu0 %v3770
        %v4076 = vpop.xlane.xlu0 %4075
        %4077 = vadd.xlane.f32.xlu0 %v3775
        %v4078 = vpop.xlane.xlu0 %4077
        %4079 = vadd.xlane.f32.xlu0 %v3780
        %v4080 = vpop.xlane.xlu0 %4079
        %4081 = vadd.xlane.f32.xlu0 %v3785
        %v4082 = vpop.xlane.xlu0 %4081
        %4083 = vadd.xlane.f32.xlu0 %v3790
        %v4084 = vpop.xlane.xlu0 %4083
        %4085 = vadd.xlane.f32.xlu0 %v3795
        %v4086 = vpop.xlane.xlu0 %4085
        %4087 = vadd.xlane.f32.xlu0 %v3800
        %v4088 = vpop.xlane.xlu0 %4087
        %4089 = vadd.xlane.f32.xlu0 %v3805
        %v4090 = vpop.xlane.xlu0 %4089
        %4091 = vadd.xlane.f32.xlu0 %v3810
        %v4092 = vpop.xlane.xlu0 %4091
        %4093 = vadd.xlane.f32.xlu0 %v3815
        %v4094 = vpop.xlane.xlu0 %4093
        %4095 = vadd.xlane.f32.xlu0 %v3820
        %v4096 = vpop.xlane.xlu0 %4095
        %4097 = vadd.xlane.f32.xlu0 %v3825
        %v4098 = vpop.xlane.xlu0 %4097
        %4099 = vadd.xlane.f32.xlu0 %v3830
        %v4100 = vpop.xlane.xlu0 %4099
        %4101 = vadd.xlane.f32.xlu0 %v3835
        %v4102 = vpop.xlane.xlu0 %4101
        %4103 = vadd.xlane.f32.xlu0 %v3840
        %v4104 = vpop.xlane.xlu0 %4103
        %4105 = vadd.xlane.f32.xlu0 %v3845
        %v4106 = vpop.xlane.xlu0 %4105
        %4107 = vadd.xlane.f32.xlu0 %v3850
        %v4108 = vpop.xlane.xlu0 %4107
        %v4109 = vmul.f32 %v3854, %v1847
        %v4110 = vmul.f32 %v3856, %v1847
        %v4111 = vmul.f32 %v3858, %v1847
        %v4112 = vmul.f32 %v3860, %v1847
        %v4113 = vmul.f32 %v3862, %v1847
        %v4114 = vmul.f32 %v3864, %v1847
        %v4115 = vmul.f32 %v3866, %v1847
        %v4116 = vmul.f32 %v3868, %v1847
        %v4117 = vmul.f32 %v3870, %v1847
        %v4118 = vmul.f32 %v3872, %v1847
        %v4119 = vmul.f32 %v3874, %v1847
        %v4120 = vmul.f32 %v3876, %v1847
        %v4121 = vmul.f32 %v3878, %v1847
        %v4122 = vmul.f32 %v3880, %v1847
        %v4123 = vmul.f32 %v3882, %v1847
        %v4124 = vmul.f32 %v3884, %v1847
        %v4125 = vmul.f32 %v3886, %v1847
        %v4126 = vmul.f32 %v3888, %v1847
        %v4127 = vmul.f32 %v3890, %v1847
        %v4128 = vmul.f32 %v3892, %v1847
        %v4129 = vmul.f32 %v3894, %v1847
        %v4130 = vmul.f32 %v3896, %v1847
        %v4131 = vmul.f32 %v3898, %v1847
        %v4132 = vmul.f32 %v3900, %v1847
        %v4133 = vmul.f32 %v3902, %v1847
        %v4134 = vmul.f32 %v3904, %v1847
        %v4135 = vmul.f32 %v3906, %v1847
        %v4136 = vmul.f32 %v3908, %v1847
        %v4137 = vmul.f32 %v3910, %v1847
        %v4138 = vmul.f32 %v3912, %v1847
        %v4139 = vmul.f32 %v3914, %v1847
        %v4140 = vmul.f32 %v3916, %v1847
        %v4141 = vmul.f32 %v3918, %v1847
        %v4142 = vmul.f32 %v3920, %v1847
        %v4143 = vmul.f32 %v3922, %v1847
        %v4144 = vmul.f32 %v3924, %v1847
        %v4145 = vmul.f32 %v3926, %v1847
        %v4146 = vmul.f32 %v3928, %v1847
        %v4147 = vmul.f32 %v3930, %v1847
        %v4148 = vmul.f32 %v3932, %v1847
        %v4149 = vmul.f32 %v3934, %v1847
        %v4150 = vmul.f32 %v3936, %v1847
        %v4151 = vmul.f32 %v3938, %v1847
        %v4152 = vmul.f32 %v3940, %v1847
        %v4153 = vmul.f32 %v3942, %v1847
        %v4154 = vmul.f32 %v3944, %v1847
        %v4155 = vmul.f32 %v3946, %v1847
        %v4156 = vmul.f32 %v3948, %v1847
        %v4157 = vmul.f32 %v3950, %v1847
        %v4158 = vmul.f32 %v3952, %v1847
        %v4159 = vmul.f32 %v3954, %v1847
        %v4160 = vmul.f32 %v3956, %v1847
        %v4161 = vmul.f32 %v3958, %v1847
        %v4162 = vmul.f32 %v3960, %v1847
        %v4163 = vmul.f32 %v3962, %v1847
        %v4164 = vmul.f32 %v3964, %v1847
        %v4165 = vmul.f32 %v3966, %v1847
        %v4166 = vmul.f32 %v3968, %v1847
        %v4167 = vmul.f32 %v3970, %v1847
        %v4168 = vmul.f32 %v3972, %v1847
        %v4169 = vmul.f32 %v3974, %v1847
        %v4170 = vmul.f32 %v3976, %v1847
        %v4171 = vmul.f32 %v3978, %v1847
        %v4172 = vmul.f32 %v3980, %v1847
        %v4173 = vmul.f32 %v3982, %v1847
        %v4174 = vmul.f32 %v3984, %v1847
        %v4175 = vmul.f32 %v3986, %v1847
        %v4176 = vmul.f32 %v3988, %v1847
        %v4177 = vmul.f32 %v3990, %v1847
        %v4178 = vmul.f32 %v3992, %v1847
        %v4179 = vmul.f32 %v3994, %v1847
        %v4180 = vmul.f32 %v3996, %v1847
        %v4181 = vmul.f32 %v3998, %v1847
        %v4182 = vmul.f32 %v4000, %v1847
        %v4183 = vmul.f32 %v4002, %v1847
        %v4184 = vmul.f32 %v4004, %v1847
        %v4185 = vmul.f32 %v4006, %v1847
        %v4186 = vmul.f32 %v4008, %v1847
        %v4187 = vmul.f32 %v4010, %v1847
        %v4188 = vmul.f32 %v4012, %v1847
        %v4189 = vmul.f32 %v4014, %v1847
        %v4190 = vmul.f32 %v4016, %v1847
        %v4191 = vmul.f32 %v4018, %v1847
        %v4192 = vmul.f32 %v4020, %v1847
        %v4193 = vmul.f32 %v4022, %v1847
        %v4194 = vmul.f32 %v4024, %v1847
        %v4195 = vmul.f32 %v4026, %v1847
        %v4196 = vmul.f32 %v4028, %v1847
        %v4197 = vmul.f32 %v4030, %v1847
        %v4198 = vmul.f32 %v4032, %v1847
        %v4199 = vmul.f32 %v4034, %v1847
        %v4200 = vmul.f32 %v4036, %v1847
        %v4201 = vmul.f32 %v4038, %v1847
        %v4202 = vmul.f32 %v4040, %v1847
        %v4203 = vmul.f32 %v4042, %v1847
        %v4204 = vmul.f32 %v4044, %v1847
        %v4205 = vmul.f32 %v4046, %v1847
        %v4206 = vmul.f32 %v4048, %v1847
        %v4207 = vmul.f32 %v4050, %v1847
        %v4208 = vmul.f32 %v4052, %v1847
        %v4209 = vmul.f32 %v4054, %v1847
        %v4210 = vmul.f32 %v4056, %v1847
        %v4211 = vmul.f32 %v4058, %v1847
        %v4212 = vmul.f32 %v4060, %v1847
        %v4213 = vmul.f32 %v4062, %v1847
        %v4214 = vmul.f32 %v4064, %v1847
        %v4215 = vmul.f32 %v4066, %v1847
        %v4216 = vmul.f32 %v4068, %v1847
        %v4217 = vmul.f32 %v4070, %v1847
        %v4218 = vmul.f32 %v4072, %v1847
        %v4219 = vmul.f32 %v4074, %v1847
        %v4220 = vmul.f32 %v4076, %v1847
        %v4221 = vmul.f32 %v4078, %v1847
        %v4222 = vmul.f32 %v4080, %v1847
        %v4223 = vmul.f32 %v4082, %v1847
        %v4224 = vmul.f32 %v4084, %v1847
        %v4225 = vmul.f32 %v4086, %v1847
        %v4226 = vmul.f32 %v4088, %v1847
        %v4227 = vmul.f32 %v4090, %v1847
        %v4228 = vmul.f32 %v4092, %v1847
        %v4229 = vmul.f32 %v4094, %v1847
        %v4230 = vmul.f32 %v4096, %v1847
        %v4231 = vmul.f32 %v4098, %v1847
        %v4232 = vmul.f32 %v4100, %v1847
        %v4233 = vmul.f32 %v4102, %v1847
        %v4234 = vmul.f32 %v4104, %v1847
        %v4235 = vmul.f32 %v4106, %v1847
        %v4236 = vmul.f32 %v4108, %v1847
        %v4237 = vsub.f32 %v3215, %v4109
        %v4238 = vsub.f32 %v3220, %v4110
        %v4239 = vsub.f32 %v3225, %v4111
        %v4240 = vsub.f32 %v3230, %v4112
        %v4241 = vsub.f32 %v3235, %v4113
        %v4242 = vsub.f32 %v3240, %v4114
        %v4243 = vsub.f32 %v3245, %v4115
        %v4244 = vsub.f32 %v3250, %v4116
        %v4245 = vsub.f32 %v3255, %v4117
        %v4246 = vsub.f32 %v3260, %v4118
        %v4247 = vsub.f32 %v3265, %v4119
        %v4248 = vsub.f32 %v3270, %v4120
        %v4249 = vsub.f32 %v3275, %v4121
        %v4250 = vsub.f32 %v3280, %v4122
        %v4251 = vsub.f32 %v3285, %v4123
        %v4252 = vsub.f32 %v3290, %v4124
        %v4253 = vsub.f32 %v3295, %v4125
        %v4254 = vsub.f32 %v3300, %v4126
        %v4255 = vsub.f32 %v3305, %v4127
        %v4256 = vsub.f32 %v3310, %v4128
        %v4257 = vsub.f32 %v3315, %v4129
        %v4258 = vsub.f32 %v3320, %v4130
        %v4259 = vsub.f32 %v3325, %v4131
        %v4260 = vsub.f32 %v3330, %v4132
        %v4261 = vsub.f32 %v3335, %v4133
        %v4262 = vsub.f32 %v3340, %v4134
        %v4263 = vsub.f32 %v3345, %v4135
        %v4264 = vsub.f32 %v3350, %v4136
        %v4265 = vsub.f32 %v3355, %v4137
        %v4266 = vsub.f32 %v3360, %v4138
        %v4267 = vsub.f32 %v3365, %v4139
        %v4268 = vsub.f32 %v3370, %v4140
        %v4269 = vsub.f32 %v3375, %v4141
        %v4270 = vsub.f32 %v3380, %v4142
        %v4271 = vsub.f32 %v3385, %v4143
        %v4272 = vsub.f32 %v3390, %v4144
        %v4273 = vsub.f32 %v3395, %v4145
        %v4274 = vsub.f32 %v3400, %v4146
        %v4275 = vsub.f32 %v3405, %v4147
        %v4276 = vsub.f32 %v3410, %v4148
        %v4277 = vsub.f32 %v3415, %v4149
        %v4278 = vsub.f32 %v3420, %v4150
        %v4279 = vsub.f32 %v3425, %v4151
        %v4280 = vsub.f32 %v3430, %v4152
        %v4281 = vsub.f32 %v3435, %v4153
        %v4282 = vsub.f32 %v3440, %v4154
        %v4283 = vsub.f32 %v3445, %v4155
        %v4284 = vsub.f32 %v3450, %v4156
        %v4285 = vsub.f32 %v3455, %v4157
        %v4286 = vsub.f32 %v3460, %v4158
        %v4287 = vsub.f32 %v3465, %v4159
        %v4288 = vsub.f32 %v3470, %v4160
        %v4289 = vsub.f32 %v3475, %v4161
        %v4290 = vsub.f32 %v3480, %v4162
        %v4291 = vsub.f32 %v3485, %v4163
        %v4292 = vsub.f32 %v3490, %v4164
        %v4293 = vsub.f32 %v3495, %v4165
        %v4294 = vsub.f32 %v3500, %v4166
        %v4295 = vsub.f32 %v3505, %v4167
        %v4296 = vsub.f32 %v3510, %v4168
        %v4297 = vsub.f32 %v3515, %v4169
        %v4298 = vsub.f32 %v3520, %v4170
        %v4299 = vsub.f32 %v3525, %v4171
        %v4300 = vsub.f32 %v3530, %v4172
        %v4301 = vsub.f32 %v3535, %v4173
        %v4302 = vsub.f32 %v3540, %v4174
        %v4303 = vsub.f32 %v3545, %v4175
        %v4304 = vsub.f32 %v3550, %v4176
        %v4305 = vsub.f32 %v3555, %v4177
        %v4306 = vsub.f32 %v3560, %v4178
        %v4307 = vsub.f32 %v3565, %v4179
        %v4308 = vsub.f32 %v3570, %v4180
        %v4309 = vsub.f32 %v3575, %v4181
        %v4310 = vsub.f32 %v3580, %v4182
        %v4311 = vsub.f32 %v3585, %v4183
        %v4312 = vsub.f32 %v3590, %v4184
        %v4313 = vsub.f32 %v3595, %v4185
        %v4314 = vsub.f32 %v3600, %v4186
        %v4315 = vsub.f32 %v3605, %v4187
        %v4316 = vsub.f32 %v3610, %v4188
        %v4317 = vsub.f32 %v3615, %v4189
        %v4318 = vsub.f32 %v3620, %v4190
        %v4319 = vsub.f32 %v3625, %v4191
        %v4320 = vsub.f32 %v3630, %v4192
        %v4321 = vsub.f32 %v3635, %v4193
        %v4322 = vsub.f32 %v3640, %v4194
        %v4323 = vsub.f32 %v3645, %v4195
        %v4324 = vsub.f32 %v3650, %v4196
        %v4325 = vsub.f32 %v3655, %v4197
        %v4326 = vsub.f32 %v3660, %v4198
        %v4327 = vsub.f32 %v3665, %v4199
        %v4328 = vsub.f32 %v3670, %v4200
        %v4329 = vsub.f32 %v3675, %v4201
        %v4330 = vsub.f32 %v3680, %v4202
        %v4331 = vsub.f32 %v3685, %v4203
        %v4332 = vsub.f32 %v3690, %v4204
        %v4333 = vsub.f32 %v3695, %v4205
        %v4334 = vsub.f32 %v3700, %v4206
        %v4335 = vsub.f32 %v3705, %v4207
        %v4336 = vsub.f32 %v3710, %v4208
        %v4337 = vsub.f32 %v3715, %v4209
        %v4338 = vsub.f32 %v3720, %v4210
        %v4339 = vsub.f32 %v3725, %v4211
        %v4340 = vsub.f32 %v3730, %v4212
        %v4341 = vsub.f32 %v3735, %v4213
        %v4342 = vsub.f32 %v3740, %v4214
        %v4343 = vsub.f32 %v3745, %v4215
        %v4344 = vsub.f32 %v3750, %v4216
        %v4345 = vsub.f32 %v3755, %v4217
        %v4346 = vsub.f32 %v3760, %v4218
        %v4347 = vsub.f32 %v3765, %v4219
        %v4348 = vsub.f32 %v3770, %v4220
        %v4349 = vsub.f32 %v3775, %v4221
        %v4350 = vsub.f32 %v3780, %v4222
        %v4351 = vsub.f32 %v3785, %v4223
        %v4352 = vsub.f32 %v3790, %v4224
        %v4353 = vsub.f32 %v3795, %v4225
        %v4354 = vsub.f32 %v3800, %v4226
        %v4355 = vsub.f32 %v3805, %v4227
        %v4356 = vsub.f32 %v3810, %v4228
        %v4357 = vsub.f32 %v3815, %v4229
        %v4358 = vsub.f32 %v3820, %v4230
        %v4359 = vsub.f32 %v3825, %v4231
        %v4360 = vsub.f32 %v3830, %v4232
        %v4361 = vsub.f32 %v3835, %v4233
        %v4362 = vsub.f32 %v3840, %v4234
        %v4363 = vsub.f32 %v3845, %v4235
        %v4364 = vsub.f32 %v3850, %v4236
        %v4365 = vmul.f32 %v4237, %v4237
        %v4366 = vmul.f32 %v4238, %v4238
        %v4367 = vmul.f32 %v4239, %v4239
        %v4368 = vmul.f32 %v4240, %v4240
        %v4369 = vmul.f32 %v4241, %v4241
        %v4370 = vmul.f32 %v4242, %v4242
        %v4371 = vmul.f32 %v4243, %v4243
        %v4372 = vmul.f32 %v4244, %v4244
        %v4373 = vmul.f32 %v4245, %v4245
        %v4374 = vmul.f32 %v4246, %v4246
        %v4375 = vmul.f32 %v4247, %v4247
        %v4376 = vmul.f32 %v4248, %v4248
        %v4377 = vmul.f32 %v4249, %v4249
        %v4378 = vmul.f32 %v4250, %v4250
        %v4379 = vmul.f32 %v4251, %v4251
        %v4380 = vmul.f32 %v4252, %v4252
        %v4381 = vmul.f32 %v4253, %v4253
        %v4382 = vmul.f32 %v4254, %v4254
        %v4383 = vmul.f32 %v4255, %v4255
        %v4384 = vmul.f32 %v4256, %v4256
        %v4385 = vmul.f32 %v4257, %v4257
        %v4386 = vmul.f32 %v4258, %v4258
        %v4387 = vmul.f32 %v4259, %v4259
        %v4388 = vmul.f32 %v4260, %v4260
        %v4389 = vmul.f32 %v4261, %v4261
        %v4390 = vmul.f32 %v4262, %v4262
        %v4391 = vmul.f32 %v4263, %v4263
        %v4392 = vmul.f32 %v4264, %v4264
        %v4393 = vmul.f32 %v4265, %v4265
        %v4394 = vmul.f32 %v4266, %v4266
        %v4395 = vmul.f32 %v4267, %v4267
        %v4396 = vmul.f32 %v4268, %v4268
        %v4397 = vmul.f32 %v4269, %v4269
        %v4398 = vmul.f32 %v4270, %v4270
        %v4399 = vmul.f32 %v4271, %v4271
        %v4400 = vmul.f32 %v4272, %v4272
        %v4401 = vmul.f32 %v4273, %v4273
        %v4402 = vmul.f32 %v4274, %v4274
        %v4403 = vmul.f32 %v4275, %v4275
        %v4404 = vmul.f32 %v4276, %v4276
        %v4405 = vmul.f32 %v4277, %v4277
        %v4406 = vmul.f32 %v4278, %v4278
        %v4407 = vmul.f32 %v4279, %v4279
        %v4408 = vmul.f32 %v4280, %v4280
        %v4409 = vmul.f32 %v4281, %v4281
        %v4410 = vmul.f32 %v4282, %v4282
        %v4411 = vmul.f32 %v4283, %v4283
        %v4412 = vmul.f32 %v4284, %v4284
        %v4413 = vmul.f32 %v4285, %v4285
        %v4414 = vmul.f32 %v4286, %v4286
        %v4415 = vmul.f32 %v4287, %v4287
        %v4416 = vmul.f32 %v4288, %v4288
        %v4417 = vmul.f32 %v4289, %v4289
        %v4418 = vmul.f32 %v4290, %v4290
        %v4419 = vmul.f32 %v4291, %v4291
        %v4420 = vmul.f32 %v4292, %v4292
        %v4421 = vmul.f32 %v4293, %v4293
        %v4422 = vmul.f32 %v4294, %v4294
        %v4423 = vmul.f32 %v4295, %v4295
        %v4424 = vmul.f32 %v4296, %v4296
        %v4425 = vmul.f32 %v4297, %v4297
        %v4426 = vmul.f32 %v4298, %v4298
        %v4427 = vmul.f32 %v4299, %v4299
        %v4428 = vmul.f32 %v4300, %v4300
        %v4429 = vmul.f32 %v4301, %v4301
        %v4430 = vmul.f32 %v4302, %v4302
        %v4431 = vmul.f32 %v4303, %v4303
        %v4432 = vmul.f32 %v4304, %v4304
        %v4433 = vmul.f32 %v4305, %v4305
        %v4434 = vmul.f32 %v4306, %v4306
        %v4435 = vmul.f32 %v4307, %v4307
        %v4436 = vmul.f32 %v4308, %v4308
        %v4437 = vmul.f32 %v4309, %v4309
        %v4438 = vmul.f32 %v4310, %v4310
        %v4439 = vmul.f32 %v4311, %v4311
        %v4440 = vmul.f32 %v4312, %v4312
        %v4441 = vmul.f32 %v4313, %v4313
        %v4442 = vmul.f32 %v4314, %v4314
        %v4443 = vmul.f32 %v4315, %v4315
        %v4444 = vmul.f32 %v4316, %v4316
        %v4445 = vmul.f32 %v4317, %v4317
        %v4446 = vmul.f32 %v4318, %v4318
        %v4447 = vmul.f32 %v4319, %v4319
        %v4448 = vmul.f32 %v4320, %v4320
        %v4449 = vmul.f32 %v4321, %v4321
        %v4450 = vmul.f32 %v4322, %v4322
        %v4451 = vmul.f32 %v4323, %v4323
        %v4452 = vmul.f32 %v4324, %v4324
        %v4453 = vmul.f32 %v4325, %v4325
        %v4454 = vmul.f32 %v4326, %v4326
        %v4455 = vmul.f32 %v4327, %v4327
        %v4456 = vmul.f32 %v4328, %v4328
        %v4457 = vmul.f32 %v4329, %v4329
        %v4458 = vmul.f32 %v4330, %v4330
        %v4459 = vmul.f32 %v4331, %v4331
        %v4460 = vmul.f32 %v4332, %v4332
        %v4461 = vmul.f32 %v4333, %v4333
        %v4462 = vmul.f32 %v4334, %v4334
        %v4463 = vmul.f32 %v4335, %v4335
        %v4464 = vmul.f32 %v4336, %v4336
        %v4465 = vmul.f32 %v4337, %v4337
        %v4466 = vmul.f32 %v4338, %v4338
        %v4467 = vmul.f32 %v4339, %v4339
        %v4468 = vmul.f32 %v4340, %v4340
        %v4469 = vmul.f32 %v4341, %v4341
        %v4470 = vmul.f32 %v4342, %v4342
        %v4471 = vmul.f32 %v4343, %v4343
        %v4472 = vmul.f32 %v4344, %v4344
        %v4473 = vmul.f32 %v4345, %v4345
        %v4474 = vmul.f32 %v4346, %v4346
        %v4475 = vmul.f32 %v4347, %v4347
        %v4476 = vmul.f32 %v4348, %v4348
        %v4477 = vmul.f32 %v4349, %v4349
        %v4478 = vmul.f32 %v4350, %v4350
        %v4479 = vmul.f32 %v4351, %v4351
        %v4480 = vmul.f32 %v4352, %v4352
        %v4481 = vmul.f32 %v4353, %v4353
        %v4482 = vmul.f32 %v4354, %v4354
        %v4483 = vmul.f32 %v4355, %v4355
        %v4484 = vmul.f32 %v4356, %v4356
        %v4485 = vmul.f32 %v4357, %v4357
        %v4486 = vmul.f32 %v4358, %v4358
        %v4487 = vmul.f32 %v4359, %v4359
        %v4488 = vmul.f32 %v4360, %v4360
        %v4489 = vmul.f32 %v4361, %v4361
        %v4490 = vmul.f32 %v4362, %v4362
        %v4491 = vmul.f32 %v4363, %v4363
        %v4492 = vmul.f32 %v4364, %v4364
        %4493 = vadd.xlane.f32.xlu0 %v4365
        %v4494 = vpop.xlane.xlu0 %4493
        %4495 = vadd.xlane.f32.xlu0 %v4366
        %v4496 = vpop.xlane.xlu0 %4495
        %4497 = vadd.xlane.f32.xlu0 %v4367
        %v4498 = vpop.xlane.xlu0 %4497
        %4499 = vadd.xlane.f32.xlu0 %v4368
        %v4500 = vpop.xlane.xlu0 %4499
        %4501 = vadd.xlane.f32.xlu0 %v4369
        %v4502 = vpop.xlane.xlu0 %4501
        %4503 = vadd.xlane.f32.xlu0 %v4370
        %v4504 = vpop.xlane.xlu0 %4503
        %4505 = vadd.xlane.f32.xlu0 %v4371
        %v4506 = vpop.xlane.xlu0 %4505
        %4507 = vadd.xlane.f32.xlu0 %v4372
        %v4508 = vpop.xlane.xlu0 %4507
        %4509 = vadd.xlane.f32.xlu0 %v4373
        %v4510 = vpop.xlane.xlu0 %4509
        %4511 = vadd.xlane.f32.xlu0 %v4374
        %v4512 = vpop.xlane.xlu0 %4511
        %4513 = vadd.xlane.f32.xlu0 %v4375
        %v4514 = vpop.xlane.xlu0 %4513
        %4515 = vadd.xlane.f32.xlu0 %v4376
        %v4516 = vpop.xlane.xlu0 %4515
        %4517 = vadd.xlane.f32.xlu0 %v4377
        %v4518 = vpop.xlane.xlu0 %4517
        %4519 = vadd.xlane.f32.xlu0 %v4378
        %v4520 = vpop.xlane.xlu0 %4519
        %4521 = vadd.xlane.f32.xlu0 %v4379
        %v4522 = vpop.xlane.xlu0 %4521
        %4523 = vadd.xlane.f32.xlu0 %v4380
        %v4524 = vpop.xlane.xlu0 %4523
        %4525 = vadd.xlane.f32.xlu0 %v4381
        %v4526 = vpop.xlane.xlu0 %4525
        %4527 = vadd.xlane.f32.xlu0 %v4382
        %v4528 = vpop.xlane.xlu0 %4527
        %4529 = vadd.xlane.f32.xlu0 %v4383
        %v4530 = vpop.xlane.xlu0 %4529
        %4531 = vadd.xlane.f32.xlu0 %v4384
        %v4532 = vpop.xlane.xlu0 %4531
        %4533 = vadd.xlane.f32.xlu0 %v4385
        %v4534 = vpop.xlane.xlu0 %4533
        %4535 = vadd.xlane.f32.xlu0 %v4386
        %v4536 = vpop.xlane.xlu0 %4535
        %4537 = vadd.xlane.f32.xlu0 %v4387
        %v4538 = vpop.xlane.xlu0 %4537
        %4539 = vadd.xlane.f32.xlu0 %v4388
        %v4540 = vpop.xlane.xlu0 %4539
        %4541 = vadd.xlane.f32.xlu0 %v4389
        %v4542 = vpop.xlane.xlu0 %4541
        %4543 = vadd.xlane.f32.xlu0 %v4390
        %v4544 = vpop.xlane.xlu0 %4543
        %4545 = vadd.xlane.f32.xlu0 %v4391
        %v4546 = vpop.xlane.xlu0 %4545
        %4547 = vadd.xlane.f32.xlu0 %v4392
        %v4548 = vpop.xlane.xlu0 %4547
        %4549 = vadd.xlane.f32.xlu0 %v4393
        %v4550 = vpop.xlane.xlu0 %4549
        %4551 = vadd.xlane.f32.xlu0 %v4394
        %v4552 = vpop.xlane.xlu0 %4551
        %4553 = vadd.xlane.f32.xlu0 %v4395
        %v4554 = vpop.xlane.xlu0 %4553
        %4555 = vadd.xlane.f32.xlu0 %v4396
        %v4556 = vpop.xlane.xlu0 %4555
        %4557 = vadd.xlane.f32.xlu0 %v4397
        %v4558 = vpop.xlane.xlu0 %4557
        %4559 = vadd.xlane.f32.xlu0 %v4398
        %v4560 = vpop.xlane.xlu0 %4559
        %4561 = vadd.xlane.f32.xlu0 %v4399
        %v4562 = vpop.xlane.xlu0 %4561
        %4563 = vadd.xlane.f32.xlu0 %v4400
        %v4564 = vpop.xlane.xlu0 %4563
        %4565 = vadd.xlane.f32.xlu0 %v4401
        %v4566 = vpop.xlane.xlu0 %4565
        %4567 = vadd.xlane.f32.xlu0 %v4402
        %v4568 = vpop.xlane.xlu0 %4567
        %4569 = vadd.xlane.f32.xlu0 %v4403
        %v4570 = vpop.xlane.xlu0 %4569
        %4571 = vadd.xlane.f32.xlu0 %v4404
        %v4572 = vpop.xlane.xlu0 %4571
        %4573 = vadd.xlane.f32.xlu0 %v4405
        %v4574 = vpop.xlane.xlu0 %4573
        %4575 = vadd.xlane.f32.xlu0 %v4406
        %v4576 = vpop.xlane.xlu0 %4575
        %4577 = vadd.xlane.f32.xlu0 %v4407
        %v4578 = vpop.xlane.xlu0 %4577
        %4579 = vadd.xlane.f32.xlu0 %v4408
        %v4580 = vpop.xlane.xlu0 %4579
        %4581 = vadd.xlane.f32.xlu0 %v4409
        %v4582 = vpop.xlane.xlu0 %4581
        %4583 = vadd.xlane.f32.xlu0 %v4410
        %v4584 = vpop.xlane.xlu0 %4583
        %4585 = vadd.xlane.f32.xlu0 %v4411
        %v4586 = vpop.xlane.xlu0 %4585
        %4587 = vadd.xlane.f32.xlu0 %v4412
        %v4588 = vpop.xlane.xlu0 %4587
        %4589 = vadd.xlane.f32.xlu0 %v4413
        %v4590 = vpop.xlane.xlu0 %4589
        %4591 = vadd.xlane.f32.xlu0 %v4414
        %v4592 = vpop.xlane.xlu0 %4591
        %4593 = vadd.xlane.f32.xlu0 %v4415
        %v4594 = vpop.xlane.xlu0 %4593
        %4595 = vadd.xlane.f32.xlu0 %v4416
        %v4596 = vpop.xlane.xlu0 %4595
        %4597 = vadd.xlane.f32.xlu0 %v4417
        %v4598 = vpop.xlane.xlu0 %4597
        %4599 = vadd.xlane.f32.xlu0 %v4418
        %v4600 = vpop.xlane.xlu0 %4599
        %4601 = vadd.xlane.f32.xlu0 %v4419
        %v4602 = vpop.xlane.xlu0 %4601
        %4603 = vadd.xlane.f32.xlu0 %v4420
        %v4604 = vpop.xlane.xlu0 %4603
        %4605 = vadd.xlane.f32.xlu0 %v4421
        %v4606 = vpop.xlane.xlu0 %4605
        %4607 = vadd.xlane.f32.xlu0 %v4422
        %v4608 = vpop.xlane.xlu0 %4607
        %4609 = vadd.xlane.f32.xlu0 %v4423
        %v4610 = vpop.xlane.xlu0 %4609
        %4611 = vadd.xlane.f32.xlu0 %v4424
        %v4612 = vpop.xlane.xlu0 %4611
        %4613 = vadd.xlane.f32.xlu0 %v4425
        %v4614 = vpop.xlane.xlu0 %4613
        %4615 = vadd.xlane.f32.xlu0 %v4426
        %v4616 = vpop.xlane.xlu0 %4615
        %4617 = vadd.xlane.f32.xlu0 %v4427
        %v4618 = vpop.xlane.xlu0 %4617
        %4619 = vadd.xlane.f32.xlu0 %v4428
        %v4620 = vpop.xlane.xlu0 %4619
        %4621 = vadd.xlane.f32.xlu0 %v4429
        %v4622 = vpop.xlane.xlu0 %4621
        %4623 = vadd.xlane.f32.xlu0 %v4430
        %v4624 = vpop.xlane.xlu0 %4623
        %4625 = vadd.xlane.f32.xlu0 %v4431
        %v4626 = vpop.xlane.xlu0 %4625
        %4627 = vadd.xlane.f32.xlu0 %v4432
        %v4628 = vpop.xlane.xlu0 %4627
        %4629 = vadd.xlane.f32.xlu0 %v4433
        %v4630 = vpop.xlane.xlu0 %4629
        %4631 = vadd.xlane.f32.xlu0 %v4434
        %v4632 = vpop.xlane.xlu0 %4631
        %4633 = vadd.xlane.f32.xlu0 %v4435
        %v4634 = vpop.xlane.xlu0 %4633
        %4635 = vadd.xlane.f32.xlu0 %v4436
        %v4636 = vpop.xlane.xlu0 %4635
        %4637 = vadd.xlane.f32.xlu0 %v4437
        %v4638 = vpop.xlane.xlu0 %4637
        %4639 = vadd.xlane.f32.xlu0 %v4438
        %v4640 = vpop.xlane.xlu0 %4639
        %4641 = vadd.xlane.f32.xlu0 %v4439
        %v4642 = vpop.xlane.xlu0 %4641
        %4643 = vadd.xlane.f32.xlu0 %v4440
        %v4644 = vpop.xlane.xlu0 %4643
        %4645 = vadd.xlane.f32.xlu0 %v4441
        %v4646 = vpop.xlane.xlu0 %4645
        %4647 = vadd.xlane.f32.xlu0 %v4442
        %v4648 = vpop.xlane.xlu0 %4647
        %4649 = vadd.xlane.f32.xlu0 %v4443
        %v4650 = vpop.xlane.xlu0 %4649
        %4651 = vadd.xlane.f32.xlu0 %v4444
        %v4652 = vpop.xlane.xlu0 %4651
        %4653 = vadd.xlane.f32.xlu0 %v4445
        %v4654 = vpop.xlane.xlu0 %4653
        %4655 = vadd.xlane.f32.xlu0 %v4446
        %v4656 = vpop.xlane.xlu0 %4655
        %4657 = vadd.xlane.f32.xlu0 %v4447
        %v4658 = vpop.xlane.xlu0 %4657
        %4659 = vadd.xlane.f32.xlu0 %v4448
        %v4660 = vpop.xlane.xlu0 %4659
        %4661 = vadd.xlane.f32.xlu0 %v4449
        %v4662 = vpop.xlane.xlu0 %4661
        %4663 = vadd.xlane.f32.xlu0 %v4450
        %v4664 = vpop.xlane.xlu0 %4663
        %4665 = vadd.xlane.f32.xlu0 %v4451
        %v4666 = vpop.xlane.xlu0 %4665
        %4667 = vadd.xlane.f32.xlu0 %v4452
        %v4668 = vpop.xlane.xlu0 %4667
        %4669 = vadd.xlane.f32.xlu0 %v4453
        %v4670 = vpop.xlane.xlu0 %4669
        %4671 = vadd.xlane.f32.xlu0 %v4454
        %v4672 = vpop.xlane.xlu0 %4671
        %4673 = vadd.xlane.f32.xlu0 %v4455
        %v4674 = vpop.xlane.xlu0 %4673
        %4675 = vadd.xlane.f32.xlu0 %v4456
        %v4676 = vpop.xlane.xlu0 %4675
        %4677 = vadd.xlane.f32.xlu0 %v4457
        %v4678 = vpop.xlane.xlu0 %4677
        %4679 = vadd.xlane.f32.xlu0 %v4458
        %v4680 = vpop.xlane.xlu0 %4679
        %4681 = vadd.xlane.f32.xlu0 %v4459
        %v4682 = vpop.xlane.xlu0 %4681
        %4683 = vadd.xlane.f32.xlu0 %v4460
        %v4684 = vpop.xlane.xlu0 %4683
        %4685 = vadd.xlane.f32.xlu0 %v4461
        %v4686 = vpop.xlane.xlu0 %4685
        %4687 = vadd.xlane.f32.xlu0 %v4462
        %v4688 = vpop.xlane.xlu0 %4687
        %4689 = vadd.xlane.f32.xlu0 %v4463
        %v4690 = vpop.xlane.xlu0 %4689
        %4691 = vadd.xlane.f32.xlu0 %v4464
        %v4692 = vpop.xlane.xlu0 %4691
        %4693 = vadd.xlane.f32.xlu0 %v4465
        %v4694 = vpop.xlane.xlu0 %4693
        %4695 = vadd.xlane.f32.xlu0 %v4466
        %v4696 = vpop.xlane.xlu0 %4695
        %4697 = vadd.xlane.f32.xlu0 %v4467
        %v4698 = vpop.xlane.xlu0 %4697
        %4699 = vadd.xlane.f32.xlu0 %v4468
        %v4700 = vpop.xlane.xlu0 %4699
        %4701 = vadd.xlane.f32.xlu0 %v4469
        %v4702 = vpop.xlane.xlu0 %4701
        %4703 = vadd.xlane.f32.xlu0 %v4470
        %v4704 = vpop.xlane.xlu0 %4703
        %4705 = vadd.xlane.f32.xlu0 %v4471
        %v4706 = vpop.xlane.xlu0 %4705
        %4707 = vadd.xlane.f32.xlu0 %v4472
        %v4708 = vpop.xlane.xlu0 %4707
        %4709 = vadd.xlane.f32.xlu0 %v4473
        %v4710 = vpop.xlane.xlu0 %4709
        %4711 = vadd.xlane.f32.xlu0 %v4474
        %v4712 = vpop.xlane.xlu0 %4711
        %4713 = vadd.xlane.f32.xlu0 %v4475
        %v4714 = vpop.xlane.xlu0 %4713
        %4715 = vadd.xlane.f32.xlu0 %v4476
        %v4716 = vpop.xlane.xlu0 %4715
        %4717 = vadd.xlane.f32.xlu0 %v4477
        %v4718 = vpop.xlane.xlu0 %4717
        %4719 = vadd.xlane.f32.xlu0 %v4478
        %v4720 = vpop.xlane.xlu0 %4719
        %4721 = vadd.xlane.f32.xlu0 %v4479
        %v4722 = vpop.xlane.xlu0 %4721
        %4723 = vadd.xlane.f32.xlu0 %v4480
        %v4724 = vpop.xlane.xlu0 %4723
        %4725 = vadd.xlane.f32.xlu0 %v4481
        %v4726 = vpop.xlane.xlu0 %4725
        %4727 = vadd.xlane.f32.xlu0 %v4482
        %v4728 = vpop.xlane.xlu0 %4727
        %4729 = vadd.xlane.f32.xlu0 %v4483
        %v4730 = vpop.xlane.xlu0 %4729
        %4731 = vadd.xlane.f32.xlu0 %v4484
        %v4732 = vpop.xlane.xlu0 %4731
        %4733 = vadd.xlane.f32.xlu0 %v4485
        %v4734 = vpop.xlane.xlu0 %4733
        %4735 = vadd.xlane.f32.xlu0 %v4486
        %v4736 = vpop.xlane.xlu0 %4735
        %4737 = vadd.xlane.f32.xlu0 %v4487
        %v4738 = vpop.xlane.xlu0 %4737
        %4739 = vadd.xlane.f32.xlu0 %v4488
        %v4740 = vpop.xlane.xlu0 %4739
        %4741 = vadd.xlane.f32.xlu0 %v4489
        %v4742 = vpop.xlane.xlu0 %4741
        %4743 = vadd.xlane.f32.xlu0 %v4490
        %v4744 = vpop.xlane.xlu0 %4743
        %4745 = vadd.xlane.f32.xlu0 %v4491
        %v4746 = vpop.xlane.xlu0 %4745
        %4747 = vadd.xlane.f32.xlu0 %v4492
        %v4748 = vpop.xlane.xlu0 %4747
        %v4749 = vmul.f32 %v4494, %v1847
        %v4750 = vmul.f32 %v4496, %v1847
        %v4751 = vmul.f32 %v4498, %v1847
        %v4752 = vmul.f32 %v4500, %v1847
        %v4753 = vmul.f32 %v4502, %v1847
        %v4754 = vmul.f32 %v4504, %v1847
        %v4755 = vmul.f32 %v4506, %v1847
        %v4756 = vmul.f32 %v4508, %v1847
        %v4757 = vmul.f32 %v4510, %v1847
        %v4758 = vmul.f32 %v4512, %v1847
        %v4759 = vmul.f32 %v4514, %v1847
        %v4760 = vmul.f32 %v4516, %v1847
        %v4761 = vmul.f32 %v4518, %v1847
        %v4762 = vmul.f32 %v4520, %v1847
        %v4763 = vmul.f32 %v4522, %v1847
        %v4764 = vmul.f32 %v4524, %v1847
        %v4765 = vmul.f32 %v4526, %v1847
        %v4766 = vmul.f32 %v4528, %v1847
        %v4767 = vmul.f32 %v4530, %v1847
        %v4768 = vmul.f32 %v4532, %v1847
        %v4769 = vmul.f32 %v4534, %v1847
        %v4770 = vmul.f32 %v4536, %v1847
        %v4771 = vmul.f32 %v4538, %v1847
        %v4772 = vmul.f32 %v4540, %v1847
        %v4773 = vmul.f32 %v4542, %v1847
        %v4774 = vmul.f32 %v4544, %v1847
        %v4775 = vmul.f32 %v4546, %v1847
        %v4776 = vmul.f32 %v4548, %v1847
        %v4777 = vmul.f32 %v4550, %v1847
        %v4778 = vmul.f32 %v4552, %v1847
        %v4779 = vmul.f32 %v4554, %v1847
        %v4780 = vmul.f32 %v4556, %v1847
        %v4781 = vmul.f32 %v4558, %v1847
        %v4782 = vmul.f32 %v4560, %v1847
        %v4783 = vmul.f32 %v4562, %v1847
        %v4784 = vmul.f32 %v4564, %v1847
        %v4785 = vmul.f32 %v4566, %v1847
        %v4786 = vmul.f32 %v4568, %v1847
        %v4787 = vmul.f32 %v4570, %v1847
        %v4788 = vmul.f32 %v4572, %v1847
        %v4789 = vmul.f32 %v4574, %v1847
        %v4790 = vmul.f32 %v4576, %v1847
        %v4791 = vmul.f32 %v4578, %v1847
        %v4792 = vmul.f32 %v4580, %v1847
        %v4793 = vmul.f32 %v4582, %v1847
        %v4794 = vmul.f32 %v4584, %v1847
        %v4795 = vmul.f32 %v4586, %v1847
        %v4796 = vmul.f32 %v4588, %v1847
        %v4797 = vmul.f32 %v4590, %v1847
        %v4798 = vmul.f32 %v4592, %v1847
        %v4799 = vmul.f32 %v4594, %v1847
        %v4800 = vmul.f32 %v4596, %v1847
        %v4801 = vmul.f32 %v4598, %v1847
        %v4802 = vmul.f32 %v4600, %v1847
        %v4803 = vmul.f32 %v4602, %v1847
        %v4804 = vmul.f32 %v4604, %v1847
        %v4805 = vmul.f32 %v4606, %v1847
        %v4806 = vmul.f32 %v4608, %v1847
        %v4807 = vmul.f32 %v4610, %v1847
        %v4808 = vmul.f32 %v4612, %v1847
        %v4809 = vmul.f32 %v4614, %v1847
        %v4810 = vmul.f32 %v4616, %v1847
        %v4811 = vmul.f32 %v4618, %v1847
        %v4812 = vmul.f32 %v4620, %v1847
        %v4813 = vmul.f32 %v4622, %v1847
        %v4814 = vmul.f32 %v4624, %v1847
        %v4815 = vmul.f32 %v4626, %v1847
        %v4816 = vmul.f32 %v4628, %v1847
        %v4817 = vmul.f32 %v4630, %v1847
        %v4818 = vmul.f32 %v4632, %v1847
        %v4819 = vmul.f32 %v4634, %v1847
        %v4820 = vmul.f32 %v4636, %v1847
        %v4821 = vmul.f32 %v4638, %v1847
        %v4822 = vmul.f32 %v4640, %v1847
        %v4823 = vmul.f32 %v4642, %v1847
        %v4824 = vmul.f32 %v4644, %v1847
        %v4825 = vmul.f32 %v4646, %v1847
        %v4826 = vmul.f32 %v4648, %v1847
        %v4827 = vmul.f32 %v4650, %v1847
        %v4828 = vmul.f32 %v4652, %v1847
        %v4829 = vmul.f32 %v4654, %v1847
        %v4830 = vmul.f32 %v4656, %v1847
        %v4831 = vmul.f32 %v4658, %v1847
        %v4832 = vmul.f32 %v4660, %v1847
        %v4833 = vmul.f32 %v4662, %v1847
        %v4834 = vmul.f32 %v4664, %v1847
        %v4835 = vmul.f32 %v4666, %v1847
        %v4836 = vmul.f32 %v4668, %v1847
        %v4837 = vmul.f32 %v4670, %v1847
        %v4838 = vmul.f32 %v4672, %v1847
        %v4839 = vmul.f32 %v4674, %v1847
        %v4840 = vmul.f32 %v4676, %v1847
        %v4841 = vmul.f32 %v4678, %v1847
        %v4842 = vmul.f32 %v4680, %v1847
        %v4843 = vmul.f32 %v4682, %v1847
        %v4844 = vmul.f32 %v4684, %v1847
        %v4845 = vmul.f32 %v4686, %v1847
        %v4846 = vmul.f32 %v4688, %v1847
        %v4847 = vmul.f32 %v4690, %v1847
        %v4848 = vmul.f32 %v4692, %v1847
        %v4849 = vmul.f32 %v4694, %v1847
        %v4850 = vmul.f32 %v4696, %v1847
        %v4851 = vmul.f32 %v4698, %v1847
        %v4852 = vmul.f32 %v4700, %v1847
        %v4853 = vmul.f32 %v4702, %v1847
        %v4854 = vmul.f32 %v4704, %v1847
        %v4855 = vmul.f32 %v4706, %v1847
        %v4856 = vmul.f32 %v4708, %v1847
        %v4857 = vmul.f32 %v4710, %v1847
        %v4858 = vmul.f32 %v4712, %v1847
        %v4859 = vmul.f32 %v4714, %v1847
        %v4860 = vmul.f32 %v4716, %v1847
        %v4861 = vmul.f32 %v4718, %v1847
        %v4862 = vmul.f32 %v4720, %v1847
        %v4863 = vmul.f32 %v4722, %v1847
        %v4864 = vmul.f32 %v4724, %v1847
        %v4865 = vmul.f32 %v4726, %v1847
        %v4866 = vmul.f32 %v4728, %v1847
        %v4867 = vmul.f32 %v4730, %v1847
        %v4868 = vmul.f32 %v4732, %v1847
        %v4869 = vmul.f32 %v4734, %v1847
        %v4870 = vmul.f32 %v4736, %v1847
        %v4871 = vmul.f32 %v4738, %v1847
        %v4872 = vmul.f32 %v4740, %v1847
        %v4873 = vmul.f32 %v4742, %v1847
        %v4874 = vmul.f32 %v4744, %v1847
        %v4875 = vmul.f32 %v4746, %v1847
        %v4876 = vmul.f32 %v4748, %v1847
        %v4877 = vadd.f32 %v4749, 1e-05
        %v4878 = vadd.f32 %v4750, 1e-05
        %v4879 = vadd.f32 %v4751, 1e-05
        %v4880 = vadd.f32 %v4752, 1e-05
        %v4881 = vadd.f32 %v4753, 1e-05
        %v4882 = vadd.f32 %v4754, 1e-05
        %v4883 = vadd.f32 %v4755, 1e-05
        %v4884 = vadd.f32 %v4756, 1e-05
        %v4885 = vadd.f32 %v4757, 1e-05
        %v4886 = vadd.f32 %v4758, 1e-05
        %v4887 = vadd.f32 %v4759, 1e-05
        %v4888 = vadd.f32 %v4760, 1e-05
        %v4889 = vadd.f32 %v4761, 1e-05
        %v4890 = vadd.f32 %v4762, 1e-05
        %v4891 = vadd.f32 %v4763, 1e-05
        %v4892 = vadd.f32 %v4764, 1e-05
        %v4893 = vadd.f32 %v4765, 1e-05
        %v4894 = vadd.f32 %v4766, 1e-05
        %v4895 = vadd.f32 %v4767, 1e-05
        %v4896 = vadd.f32 %v4768, 1e-05
        %v4897 = vadd.f32 %v4769, 1e-05
        %v4898 = vadd.f32 %v4770, 1e-05
        %v4899 = vadd.f32 %v4771, 1e-05
        %v4900 = vadd.f32 %v4772, 1e-05
        %v4901 = vadd.f32 %v4773, 1e-05
        %v4902 = vadd.f32 %v4774, 1e-05
        %v4903 = vadd.f32 %v4775, 1e-05
        %v4904 = vadd.f32 %v4776, 1e-05
        %v4905 = vadd.f32 %v4777, 1e-05
        %v4906 = vadd.f32 %v4778, 1e-05
        %v4907 = vadd.f32 %v4779, 1e-05
        %v4908 = vadd.f32 %v4780, 1e-05
        %v4909 = vadd.f32 %v4781, 1e-05
        %v4910 = vadd.f32 %v4782, 1e-05
        %v4911 = vadd.f32 %v4783, 1e-05
        %v4912 = vadd.f32 %v4784, 1e-05
        %v4913 = vadd.f32 %v4785, 1e-05
        %v4914 = vadd.f32 %v4786, 1e-05
        %v4915 = vadd.f32 %v4787, 1e-05
        %v4916 = vadd.f32 %v4788, 1e-05
        %v4917 = vadd.f32 %v4789, 1e-05
        %v4918 = vadd.f32 %v4790, 1e-05
        %v4919 = vadd.f32 %v4791, 1e-05
        %v4920 = vadd.f32 %v4792, 1e-05
        %v4921 = vadd.f32 %v4793, 1e-05
        %v4922 = vadd.f32 %v4794, 1e-05
        %v4923 = vadd.f32 %v4795, 1e-05
        %v4924 = vadd.f32 %v4796, 1e-05
        %v4925 = vadd.f32 %v4797, 1e-05
        %v4926 = vadd.f32 %v4798, 1e-05
        %v4927 = vadd.f32 %v4799, 1e-05
        %v4928 = vadd.f32 %v4800, 1e-05
        %v4929 = vadd.f32 %v4801, 1e-05
        %v4930 = vadd.f32 %v4802, 1e-05
        %v4931 = vadd.f32 %v4803, 1e-05
        %v4932 = vadd.f32 %v4804, 1e-05
        %v4933 = vadd.f32 %v4805, 1e-05
        %v4934 = vadd.f32 %v4806, 1e-05
        %v4935 = vadd.f32 %v4807, 1e-05
        %v4936 = vadd.f32 %v4808, 1e-05
        %v4937 = vadd.f32 %v4809, 1e-05
        %v4938 = vadd.f32 %v4810, 1e-05
        %v4939 = vadd.f32 %v4811, 1e-05
        %v4940 = vadd.f32 %v4812, 1e-05
        %v4941 = vadd.f32 %v4813, 1e-05
        %v4942 = vadd.f32 %v4814, 1e-05
        %v4943 = vadd.f32 %v4815, 1e-05
        %v4944 = vadd.f32 %v4816, 1e-05
        %v4945 = vadd.f32 %v4817, 1e-05
        %v4946 = vadd.f32 %v4818, 1e-05
        %v4947 = vadd.f32 %v4819, 1e-05
        %v4948 = vadd.f32 %v4820, 1e-05
        %v4949 = vadd.f32 %v4821, 1e-05
        %v4950 = vadd.f32 %v4822, 1e-05
        %v4951 = vadd.f32 %v4823, 1e-05
        %v4952 = vadd.f32 %v4824, 1e-05
        %v4953 = vadd.f32 %v4825, 1e-05
        %v4954 = vadd.f32 %v4826, 1e-05
        %v4955 = vadd.f32 %v4827, 1e-05
        %v4956 = vadd.f32 %v4828, 1e-05
        %v4957 = vadd.f32 %v4829, 1e-05
        %v4958 = vadd.f32 %v4830, 1e-05
        %v4959 = vadd.f32 %v4831, 1e-05
        %v4960 = vadd.f32 %v4832, 1e-05
        %v4961 = vadd.f32 %v4833, 1e-05
        %v4962 = vadd.f32 %v4834, 1e-05
        %v4963 = vadd.f32 %v4835, 1e-05
        %v4964 = vadd.f32 %v4836, 1e-05
        %v4965 = vadd.f32 %v4837, 1e-05
        %v4966 = vadd.f32 %v4838, 1e-05
        %v4967 = vadd.f32 %v4839, 1e-05
        %v4968 = vadd.f32 %v4840, 1e-05
        %v4969 = vadd.f32 %v4841, 1e-05
        %v4970 = vadd.f32 %v4842, 1e-05
        %v4971 = vadd.f32 %v4843, 1e-05
        %v4972 = vadd.f32 %v4844, 1e-05
        %v4973 = vadd.f32 %v4845, 1e-05
        %v4974 = vadd.f32 %v4846, 1e-05
        %v4975 = vadd.f32 %v4847, 1e-05
        %v4976 = vadd.f32 %v4848, 1e-05
        %v4977 = vadd.f32 %v4849, 1e-05
        %v4978 = vadd.f32 %v4850, 1e-05
        %v4979 = vadd.f32 %v4851, 1e-05
        %v4980 = vadd.f32 %v4852, 1e-05
        %v4981 = vadd.f32 %v4853, 1e-05
        %v4982 = vadd.f32 %v4854, 1e-05
        %v4983 = vadd.f32 %v4855, 1e-05
        %v4984 = vadd.f32 %v4856, 1e-05
        %v4985 = vadd.f32 %v4857, 1e-05
        %v4986 = vadd.f32 %v4858, 1e-05
        %v4987 = vadd.f32 %v4859, 1e-05
        %v4988 = vadd.f32 %v4860, 1e-05
        %v4989 = vadd.f32 %v4861, 1e-05
        %v4990 = vadd.f32 %v4862, 1e-05
        %v4991 = vadd.f32 %v4863, 1e-05
        %v4992 = vadd.f32 %v4864, 1e-05
        %v4993 = vadd.f32 %v4865, 1e-05
        %v4994 = vadd.f32 %v4866, 1e-05
        %v4995 = vadd.f32 %v4867, 1e-05
        %v4996 = vadd.f32 %v4868, 1e-05
        %v4997 = vadd.f32 %v4869, 1e-05
        %v4998 = vadd.f32 %v4870, 1e-05
        %v4999 = vadd.f32 %v4871, 1e-05
        %v5000 = vadd.f32 %v4872, 1e-05
        %v5001 = vadd.f32 %v4873, 1e-05
        %v5002 = vadd.f32 %v4874, 1e-05
        %v5003 = vadd.f32 %v4875, 1e-05
        %v5004 = vadd.f32 %v4876, 1e-05
        %v5005 = vrsqrt.pop %v4877
        %v5006 = vrsqrt.pop %v4878
        %v5007 = vrsqrt.pop %v4879
        %v5008 = vrsqrt.pop %v4880
        %v5009 = vrsqrt.pop %v4881
        %v5010 = vrsqrt.pop %v4882
        %v5011 = vrsqrt.pop %v4883
        %v5012 = vrsqrt.pop %v4884
        %v5013 = vrsqrt.pop %v4885
        %v5014 = vrsqrt.pop %v4886
        %v5015 = vrsqrt.pop %v4887
        %v5016 = vrsqrt.pop %v4888
        %v5017 = vrsqrt.pop %v4889
        %v5018 = vrsqrt.pop %v4890
        %v5019 = vrsqrt.pop %v4891
        %v5020 = vrsqrt.pop %v4892
        %v5021 = vrsqrt.pop %v4893
        %v5022 = vrsqrt.pop %v4894
        %v5023 = vrsqrt.pop %v4895
        %v5024 = vrsqrt.pop %v4896
        %v5025 = vrsqrt.pop %v4897
        %v5026 = vrsqrt.pop %v4898
        %v5027 = vrsqrt.pop %v4899
        %v5028 = vrsqrt.pop %v4900
        %v5029 = vrsqrt.pop %v4901
        %v5030 = vrsqrt.pop %v4902
        %v5031 = vrsqrt.pop %v4903
        %v5032 = vrsqrt.pop %v4904
        %v5033 = vrsqrt.pop %v4905
        %v5034 = vrsqrt.pop %v4906
        %v5035 = vrsqrt.pop %v4907
        %v5036 = vrsqrt.pop %v4908
        %v5037 = vrsqrt.pop %v4909
        %v5038 = vrsqrt.pop %v4910
        %v5039 = vrsqrt.pop %v4911
        %v5040 = vrsqrt.pop %v4912
        %v5041 = vrsqrt.pop %v4913
        %v5042 = vrsqrt.pop %v4914
        %v5043 = vrsqrt.pop %v4915
        %v5044 = vrsqrt.pop %v4916
        %v5045 = vrsqrt.pop %v4917
        %v5046 = vrsqrt.pop %v4918
        %v5047 = vrsqrt.pop %v4919
        %v5048 = vrsqrt.pop %v4920
        %v5049 = vrsqrt.pop %v4921
        %v5050 = vrsqrt.pop %v4922
        %v5051 = vrsqrt.pop %v4923
        %v5052 = vrsqrt.pop %v4924
        %v5053 = vrsqrt.pop %v4925
        %v5054 = vrsqrt.pop %v4926
        %v5055 = vrsqrt.pop %v4927
        %v5056 = vrsqrt.pop %v4928
        %v5057 = vrsqrt.pop %v4929
        %v5058 = vrsqrt.pop %v4930
        %v5059 = vrsqrt.pop %v4931
        %v5060 = vrsqrt.pop %v4932
        %v5061 = vrsqrt.pop %v4933
        %v5062 = vrsqrt.pop %v4934
        %v5063 = vrsqrt.pop %v4935
        %v5064 = vrsqrt.pop %v4936
        %v5065 = vrsqrt.pop %v4937
        %v5066 = vrsqrt.pop %v4938
        %v5067 = vrsqrt.pop %v4939
        %v5068 = vrsqrt.pop %v4940
        %v5069 = vrsqrt.pop %v4941
        %v5070 = vrsqrt.pop %v4942
        %v5071 = vrsqrt.pop %v4943
        %v5072 = vrsqrt.pop %v4944
        %v5073 = vrsqrt.pop %v4945
        %v5074 = vrsqrt.pop %v4946
        %v5075 = vrsqrt.pop %v4947
        %v5076 = vrsqrt.pop %v4948
        %v5077 = vrsqrt.pop %v4949
        %v5078 = vrsqrt.pop %v4950
        %v5079 = vrsqrt.pop %v4951
        %v5080 = vrsqrt.pop %v4952
        %v5081 = vrsqrt.pop %v4953
        %v5082 = vrsqrt.pop %v4954
        %v5083 = vrsqrt.pop %v4955
        %v5084 = vrsqrt.pop %v4956
        %v5085 = vrsqrt.pop %v4957
        %v5086 = vrsqrt.pop %v4958
        %v5087 = vrsqrt.pop %v4959
        %v5088 = vrsqrt.pop %v4960
        %v5089 = vrsqrt.pop %v4961
        %v5090 = vrsqrt.pop %v4962
        %v5091 = vrsqrt.pop %v4963
        %v5092 = vrsqrt.pop %v4964
        %v5093 = vrsqrt.pop %v4965
        %v5094 = vrsqrt.pop %v4966
        %v5095 = vrsqrt.pop %v4967
        %v5096 = vrsqrt.pop %v4968
        %v5097 = vrsqrt.pop %v4969
        %v5098 = vrsqrt.pop %v4970
        %v5099 = vrsqrt.pop %v4971
        %v5100 = vrsqrt.pop %v4972
        %v5101 = vrsqrt.pop %v4973
        %v5102 = vrsqrt.pop %v4974
        %v5103 = vrsqrt.pop %v4975
        %v5104 = vrsqrt.pop %v4976
        %v5105 = vrsqrt.pop %v4977
        %v5106 = vrsqrt.pop %v4978
        %v5107 = vrsqrt.pop %v4979
        %v5108 = vrsqrt.pop %v4980
        %v5109 = vrsqrt.pop %v4981
        %v5110 = vrsqrt.pop %v4982
        %v5111 = vrsqrt.pop %v4983
        %v5112 = vrsqrt.pop %v4984
        %v5113 = vrsqrt.pop %v4985
        %v5114 = vrsqrt.pop %v4986
        %v5115 = vrsqrt.pop %v4987
        %v5116 = vrsqrt.pop %v4988
        %v5117 = vrsqrt.pop %v4989
        %v5118 = vrsqrt.pop %v4990
        %v5119 = vrsqrt.pop %v4991
        %v5120 = vrsqrt.pop %v4992
        %v5121 = vrsqrt.pop %v4993
        %v5122 = vrsqrt.pop %v4994
        %v5123 = vrsqrt.pop %v4995
        %v5124 = vrsqrt.pop %v4996
        %v5125 = vrsqrt.pop %v4997
        %v5126 = vrsqrt.pop %v4998
        %v5127 = vrsqrt.pop %v4999
        %v5128 = vrsqrt.pop %v5000
        %v5129 = vrsqrt.pop %v5001
        %v5130 = vrsqrt.pop %v5002
        %v5131 = vrsqrt.pop %v5003
        %v5132 = vrsqrt.pop %v5004
        %v5133 = vmul.f32 %v4237, %v5005
        %v5134 = vmul.f32 %v4238, %v5006
        %v5135 = vmul.f32 %v4239, %v5007
        %v5136 = vmul.f32 %v4240, %v5008
        %v5137 = vmul.f32 %v4241, %v5009
        %v5138 = vmul.f32 %v4242, %v5010
        %v5139 = vmul.f32 %v4243, %v5011
        %v5140 = vmul.f32 %v4244, %v5012
        %v5141 = vmul.f32 %v4245, %v5013
        %v5142 = vmul.f32 %v4246, %v5014
        %v5143 = vmul.f32 %v4247, %v5015
        %v5144 = vmul.f32 %v4248, %v5016
        %v5145 = vmul.f32 %v4249, %v5017
        %v5146 = vmul.f32 %v4250, %v5018
        %v5147 = vmul.f32 %v4251, %v5019
        %v5148 = vmul.f32 %v4252, %v5020
        %v5149 = vmul.f32 %v4253, %v5021
        %v5150 = vmul.f32 %v4254, %v5022
        %v5151 = vmul.f32 %v4255, %v5023
        %v5152 = vmul.f32 %v4256, %v5024
        %v5153 = vmul.f32 %v4257, %v5025
        %v5154 = vmul.f32 %v4258, %v5026
        %v5155 = vmul.f32 %v4259, %v5027
        %v5156 = vmul.f32 %v4260, %v5028
        %v5157 = vmul.f32 %v4261, %v5029
        %v5158 = vmul.f32 %v4262, %v5030
        %v5159 = vmul.f32 %v4263, %v5031
        %v5160 = vmul.f32 %v4264, %v5032
        %v5161 = vmul.f32 %v4265, %v5033
        %v5162 = vmul.f32 %v4266, %v5034
        %v5163 = vmul.f32 %v4267, %v5035
        %v5164 = vmul.f32 %v4268, %v5036
        %v5165 = vmul.f32 %v4269, %v5037
        %v5166 = vmul.f32 %v4270, %v5038
        %v5167 = vmul.f32 %v4271, %v5039
        %v5168 = vmul.f32 %v4272, %v5040
        %v5169 = vmul.f32 %v4273, %v5041
        %v5170 = vmul.f32 %v4274, %v5042
        %v5171 = vmul.f32 %v4275, %v5043
        %v5172 = vmul.f32 %v4276, %v5044
        %v5173 = vmul.f32 %v4277, %v5045
        %v5174 = vmul.f32 %v4278, %v5046
        %v5175 = vmul.f32 %v4279, %v5047
        %v5176 = vmul.f32 %v4280, %v5048
        %v5177 = vmul.f32 %v4281, %v5049
        %v5178 = vmul.f32 %v4282, %v5050
        %v5179 = vmul.f32 %v4283, %v5051
        %v5180 = vmul.f32 %v4284, %v5052
        %v5181 = vmul.f32 %v4285, %v5053
        %v5182 = vmul.f32 %v4286, %v5054
        %v5183 = vmul.f32 %v4287, %v5055
        %v5184 = vmul.f32 %v4288, %v5056
        %v5185 = vmul.f32 %v4289, %v5057
        %v5186 = vmul.f32 %v4290, %v5058
        %v5187 = vmul.f32 %v4291, %v5059
        %v5188 = vmul.f32 %v4292, %v5060
        %v5189 = vmul.f32 %v4293, %v5061
        %v5190 = vmul.f32 %v4294, %v5062
        %v5191 = vmul.f32 %v4295, %v5063
        %v5192 = vmul.f32 %v4296, %v5064
        %v5193 = vmul.f32 %v4297, %v5065
        %v5194 = vmul.f32 %v4298, %v5066
        %v5195 = vmul.f32 %v4299, %v5067
        %v5196 = vmul.f32 %v4300, %v5068
        %v5197 = vmul.f32 %v4301, %v5069
        %v5198 = vmul.f32 %v4302, %v5070
        %v5199 = vmul.f32 %v4303, %v5071
        %v5200 = vmul.f32 %v4304, %v5072
        %v5201 = vmul.f32 %v4305, %v5073
        %v5202 = vmul.f32 %v4306, %v5074
        %v5203 = vmul.f32 %v4307, %v5075
        %v5204 = vmul.f32 %v4308, %v5076
        %v5205 = vmul.f32 %v4309, %v5077
        %v5206 = vmul.f32 %v4310, %v5078
        %v5207 = vmul.f32 %v4311, %v5079
        %v5208 = vmul.f32 %v4312, %v5080
        %v5209 = vmul.f32 %v4313, %v5081
        %v5210 = vmul.f32 %v4314, %v5082
        %v5211 = vmul.f32 %v4315, %v5083
        %v5212 = vmul.f32 %v4316, %v5084
        %v5213 = vmul.f32 %v4317, %v5085
        %v5214 = vmul.f32 %v4318, %v5086
        %v5215 = vmul.f32 %v4319, %v5087
        %v5216 = vmul.f32 %v4320, %v5088
        %v5217 = vmul.f32 %v4321, %v5089
        %v5218 = vmul.f32 %v4322, %v5090
        %v5219 = vmul.f32 %v4323, %v5091
        %v5220 = vmul.f32 %v4324, %v5092
        %v5221 = vmul.f32 %v4325, %v5093
        %v5222 = vmul.f32 %v4326, %v5094
        %v5223 = vmul.f32 %v4327, %v5095
        %v5224 = vmul.f32 %v4328, %v5096
        %v5225 = vmul.f32 %v4329, %v5097
        %v5226 = vmul.f32 %v4330, %v5098
        %v5227 = vmul.f32 %v4331, %v5099
        %v5228 = vmul.f32 %v4332, %v5100
        %v5229 = vmul.f32 %v4333, %v5101
        %v5230 = vmul.f32 %v4334, %v5102
        %v5231 = vmul.f32 %v4335, %v5103
        %v5232 = vmul.f32 %v4336, %v5104
        %v5233 = vmul.f32 %v4337, %v5105
        %v5234 = vmul.f32 %v4338, %v5106
        %v5235 = vmul.f32 %v4339, %v5107
        %v5236 = vmul.f32 %v4340, %v5108
        %v5237 = vmul.f32 %v4341, %v5109
        %v5238 = vmul.f32 %v4342, %v5110
        %v5239 = vmul.f32 %v4343, %v5111
        %v5240 = vmul.f32 %v4344, %v5112
        %v5241 = vmul.f32 %v4345, %v5113
        %v5242 = vmul.f32 %v4346, %v5114
        %v5243 = vmul.f32 %v4347, %v5115
        %v5244 = vmul.f32 %v4348, %v5116
        %v5245 = vmul.f32 %v4349, %v5117
        %v5246 = vmul.f32 %v4350, %v5118
        %v5247 = vmul.f32 %v4351, %v5119
        %v5248 = vmul.f32 %v4352, %v5120
        %v5249 = vmul.f32 %v4353, %v5121
        %v5250 = vmul.f32 %v4354, %v5122
        %v5251 = vmul.f32 %v4355, %v5123
        %v5252 = vmul.f32 %v4356, %v5124
        %v5253 = vmul.f32 %v4357, %v5125
        %v5254 = vmul.f32 %v4358, %v5126
        %v5255 = vmul.f32 %v4359, %v5127
        %v5256 = vmul.f32 %v4360, %v5128
        %v5257 = vmul.f32 %v4361, %v5129
        %v5258 = vmul.f32 %v4362, %v5130
        %v5259 = vmul.f32 %v4363, %v5131
        %v5260 = vmul.f32 %v4364, %v5132
        %v5261 = vmax.f32 %v5133, 0.0
        %v5262 = vmax.f32 %v5134, 0.0
        %v5263 = vmax.f32 %v5135, 0.0
        %v5264 = vmax.f32 %v5136, 0.0
        %v5265 = vmax.f32 %v5137, 0.0
        %v5266 = vmax.f32 %v5138, 0.0
        %v5267 = vmax.f32 %v5139, 0.0
        %v5268 = vmax.f32 %v5140, 0.0
        %v5269 = vmax.f32 %v5141, 0.0
        %v5270 = vmax.f32 %v5142, 0.0
        %v5271 = vmax.f32 %v5143, 0.0
        %v5272 = vmax.f32 %v5144, 0.0
        %v5273 = vmax.f32 %v5145, 0.0
        %v5274 = vmax.f32 %v5146, 0.0
        %v5275 = vmax.f32 %v5147, 0.0
        %v5276 = vmax.f32 %v5148, 0.0
        %v5277 = vmax.f32 %v5149, 0.0
        %v5278 = vmax.f32 %v5150, 0.0
        %v5279 = vmax.f32 %v5151, 0.0
        %v5280 = vmax.f32 %v5152, 0.0
        %v5281 = vmax.f32 %v5153, 0.0
        %v5282 = vmax.f32 %v5154, 0.0
        %v5283 = vmax.f32 %v5155, 0.0
        %v5284 = vmax.f32 %v5156, 0.0
        %v5285 = vmax.f32 %v5157, 0.0
        %v5286 = vmax.f32 %v5158, 0.0
        %v5287 = vmax.f32 %v5159, 0.0
        %v5288 = vmax.f32 %v5160, 0.0
        %v5289 = vmax.f32 %v5161, 0.0
        %v5290 = vmax.f32 %v5162, 0.0
        %v5291 = vmax.f32 %v5163, 0.0
        %v5292 = vmax.f32 %v5164, 0.0
        %v5293 = vmax.f32 %v5165, 0.0
        %v5294 = vmax.f32 %v5166, 0.0
        %v5295 = vmax.f32 %v5167, 0.0
        %v5296 = vmax.f32 %v5168, 0.0
        %v5297 = vmax.f32 %v5169, 0.0
        %v5298 = vmax.f32 %v5170, 0.0
        %v5299 = vmax.f32 %v5171, 0.0
        %v5300 = vmax.f32 %v5172, 0.0
        %v5301 = vmax.f32 %v5173, 0.0
        %v5302 = vmax.f32 %v5174, 0.0
        %v5303 = vmax.f32 %v5175, 0.0
        %v5304 = vmax.f32 %v5176, 0.0
        %v5305 = vmax.f32 %v5177, 0.0
        %v5306 = vmax.f32 %v5178, 0.0
        %v5307 = vmax.f32 %v5179, 0.0
        %v5308 = vmax.f32 %v5180, 0.0
        %v5309 = vmax.f32 %v5181, 0.0
        %v5310 = vmax.f32 %v5182, 0.0
        %v5311 = vmax.f32 %v5183, 0.0
        %v5312 = vmax.f32 %v5184, 0.0
        %v5313 = vmax.f32 %v5185, 0.0
        %v5314 = vmax.f32 %v5186, 0.0
        %v5315 = vmax.f32 %v5187, 0.0
        %v5316 = vmax.f32 %v5188, 0.0
        %v5317 = vmax.f32 %v5189, 0.0
        %v5318 = vmax.f32 %v5190, 0.0
        %v5319 = vmax.f32 %v5191, 0.0
        %v5320 = vmax.f32 %v5192, 0.0
        %v5321 = vmax.f32 %v5193, 0.0
        %v5322 = vmax.f32 %v5194, 0.0
        %v5323 = vmax.f32 %v5195, 0.0
        %v5324 = vmax.f32 %v5196, 0.0
        %v5325 = vmax.f32 %v5197, 0.0
        %v5326 = vmax.f32 %v5198, 0.0
        %v5327 = vmax.f32 %v5199, 0.0
        %v5328 = vmax.f32 %v5200, 0.0
        %v5329 = vmax.f32 %v5201, 0.0
        %v5330 = vmax.f32 %v5202, 0.0
        %v5331 = vmax.f32 %v5203, 0.0
        %v5332 = vmax.f32 %v5204, 0.0
        %v5333 = vmax.f32 %v5205, 0.0
        %v5334 = vmax.f32 %v5206, 0.0
        %v5335 = vmax.f32 %v5207, 0.0
        %v5336 = vmax.f32 %v5208, 0.0
        %v5337 = vmax.f32 %v5209, 0.0
        %v5338 = vmax.f32 %v5210, 0.0
        %v5339 = vmax.f32 %v5211, 0.0
        %v5340 = vmax.f32 %v5212, 0.0
        %v5341 = vmax.f32 %v5213, 0.0
        %v5342 = vmax.f32 %v5214, 0.0
        %v5343 = vmax.f32 %v5215, 0.0
        %v5344 = vmax.f32 %v5216, 0.0
        %v5345 = vmax.f32 %v5217, 0.0
        %v5346 = vmax.f32 %v5218, 0.0
        %v5347 = vmax.f32 %v5219, 0.0
        %v5348 = vmax.f32 %v5220, 0.0
        %v5349 = vmax.f32 %v5221, 0.0
        %v5350 = vmax.f32 %v5222, 0.0
        %v5351 = vmax.f32 %v5223, 0.0
        %v5352 = vmax.f32 %v5224, 0.0
        %v5353 = vmax.f32 %v5225, 0.0
        %v5354 = vmax.f32 %v5226, 0.0
        %v5355 = vmax.f32 %v5227, 0.0
        %v5356 = vmax.f32 %v5228, 0.0
        %v5357 = vmax.f32 %v5229, 0.0
        %v5358 = vmax.f32 %v5230, 0.0
        %v5359 = vmax.f32 %v5231, 0.0
        %v5360 = vmax.f32 %v5232, 0.0
        %v5361 = vmax.f32 %v5233, 0.0
        %v5362 = vmax.f32 %v5234, 0.0
        %v5363 = vmax.f32 %v5235, 0.0
        %v5364 = vmax.f32 %v5236, 0.0
        %v5365 = vmax.f32 %v5237, 0.0
        %v5366 = vmax.f32 %v5238, 0.0
        %v5367 = vmax.f32 %v5239, 0.0
        %v5368 = vmax.f32 %v5240, 0.0
        %v5369 = vmax.f32 %v5241, 0.0
        %v5370 = vmax.f32 %v5242, 0.0
        %v5371 = vmax.f32 %v5243, 0.0
        %v5372 = vmax.f32 %v5244, 0.0
        %v5373 = vmax.f32 %v5245, 0.0
        %v5374 = vmax.f32 %v5246, 0.0
        %v5375 = vmax.f32 %v5247, 0.0
        %v5376 = vmax.f32 %v5248, 0.0
        %v5377 = vmax.f32 %v5249, 0.0
        %v5378 = vmax.f32 %v5250, 0.0
        %v5379 = vmax.f32 %v5251, 0.0
        %v5380 = vmax.f32 %v5252, 0.0
        %v5381 = vmax.f32 %v5253, 0.0
        %v5382 = vmax.f32 %v5254, 0.0
        %v5383 = vmax.f32 %v5255, 0.0
        %v5384 = vmax.f32 %v5256, 0.0
        %v5385 = vmax.f32 %v5257, 0.0
        %v5386 = vmax.f32 %v5258, 0.0
        %v5387 = vmax.f32 %v5259, 0.0
        %v5388 = vmax.f32 %v5260, 0.0
        %v5389 = vld [vmem:[%s363] sm:$0xff]
        %v5390 = vld [vmem:[%s363 + $0x8] sm:$0xff]
        %v5391 = vld [vmem:[%s363 + $0x10] sm:$0xff]
        %v5392 = vld [vmem:[%s363 + $0x18] sm:$0xff]
        %v5393 = vld [vmem:[%s363 + $0x20] sm:$0xff]
        %v5394 = vld [vmem:[%s363 + $0x28] sm:$0xff]
        %v5395 = vld [vmem:[%s363 + $0x30] sm:$0xff]
        %v5396 = vld [vmem:[%s363 + $0x38] sm:$0xff]
        %v5397 = vld [vmem:[%s363 + $0x40] sm:$0xff]
        %v5398 = vld [vmem:[%s363 + $0x48] sm:$0xff]
        %v5399 = vld [vmem:[%s363 + $0x50] sm:$0xff]
        %v5400 = vld [vmem:[%s363 + $0x58] sm:$0xff]
        %v5401 = vld [vmem:[%s363 + $0x60] sm:$0xff]
        %v5402 = vld [vmem:[%s363 + $0x68] sm:$0xff]
        %v5403 = vld [vmem:[%s363 + $0x70] sm:$0xff]
        %v5404 = vld [vmem:[%s363 + $0x78] sm:$0xff]
        %v5405 = vlaneseq
        %v5406 = vshrl.u32 %v5405, 7
        %v5407 = vsub.s32 2, %v5406
        %v5408 = vrot.slane %v366, %v5407
        %5409 = vmatprep.subr.mxu0 0.0
        %5410 = vmatpush1.msra.mxu0 %v5389
        %5411 = vmatprep.subr.mxu0 0.0
        %5412 = vmatpush1.msra.mxu0 %v5390
        %5413 = vmatprep.subr.mxu0 0.0
        %5414 = vmatpush1.msra.mxu0 %v5391
        %5415 = vmatprep.subr.mxu0 0.0
        %5416 = vmatpush1.msra.mxu0 %v5392
        %5417 = vmatprep.subr.mxu0 0.0
        %5418 = vmatpush1.msra.mxu0 %v5393
        %5419 = vmatprep.subr.mxu0 0.0
        %5420 = vmatpush1.msra.mxu0 %v5394
        %5421 = vmatprep.subr.mxu0 0.0
        %5422 = vmatpush1.msra.mxu0 %v5395
        %5423 = vmatprep.subr.mxu0 0.0
        %5424 = vmatpush1.msra.mxu0 %v5396
        %5425 = vmatprep.subr.mxu0 0.0
        %5426 = vmatpush1.msra.mxu0 %v5397
        %5427 = vmatprep.subr.mxu0 0.0
        %5428 = vmatpush1.msra.mxu0 %v5398
        %5429 = vmatprep.subr.mxu0 0.0
        %5430 = vmatpush1.msra.mxu0 %v5399
        %5431 = vmatprep.subr.mxu0 0.0
        %5432 = vmatpush1.msra.mxu0 %v5400
        %5433 = vmatprep.subr.mxu0 0.0
        %5434 = vmatpush1.msra.mxu0 %v5401
        %5435 = vmatprep.subr.mxu0 0.0
        %5436 = vmatpush1.msra.mxu0 %v5402
        %5437 = vmatprep.subr.mxu0 0.0
        %5438 = vmatpush1.msra.mxu0 %v5403
        %5439 = vmatprep.subr.mxu0 0.0
        %5440 = vmatpush1.msra.mxu0 %v5404
        %5441 = vmatprep.subr.mxu0 0.0
        %5442 = vmatpush1.msra.mxu0 0.0
        %5443 = vmatprep.subr.mxu0 0.0
        %5444 = vmatpush1.msra.mxu0 0.0
        %5445 = vmatprep.subr.mxu0 0.0
        %5446 = vmatpush1.msra.mxu0 0.0
        %5447 = vmatprep.subr.mxu0 0.0
        %5448 = vmatpush1.msra.mxu0 0.0
        %5449 = vmatprep.subr.mxu0 0.0
        %5450 = vmatpush1.msra.mxu0 0.0
        %5451 = vmatprep.subr.mxu0 0.0
        %5452 = vmatpush1.msra.mxu0 0.0
        %5453 = vmatprep.subr.mxu0 0.0
        %5454 = vmatpush1.msra.mxu0 0.0
        %5455 = vmatprep.subr.mxu0 0.0
        %5456 = vmatpush1.msra.mxu0 0.0
        %5457 = vmatprep.subr.mxu0 0.0
        %5458 = vmatpush1.msra.mxu0 0.0
        %5459 = vmatprep.subr.mxu0 0.0
        %5460 = vmatpush1.msra.mxu0 0.0
        %5461 = vmatprep.subr.mxu0 0.0
        %5462 = vmatpush1.msra.mxu0 0.0
        %5463 = vmatprep.subr.mxu0 0.0
        %5464 = vmatpush1.msra.mxu0 0.0
        %5465 = vmatprep.subr.mxu0 0.0
        %5466 = vmatpush1.msra.mxu0 0.0
        %5467 = vmatprep.subr.mxu0 0.0
        %5468 = vmatpush1.msra.mxu0 0.0
        %5469 = vmatprep.subr.mxu0 0.0
        %5470 = vmatpush1.msra.mxu0 0.0
        %5471 = vmatprep.subr.mxu0 0.0
        %5472 = vmatpush1.msra.mxu0 0.0
        %5473 = vmatprep.mubr.f32.mxu0 0.0
        %5474 = vmatmul.mubr.f32.gmra.mrb[0].mxu0 %v5261
        %v5475 = vpop.f32.mrb[0].mxu0
        %v5476 = vadd.f32 %v5408, %v5475
        %v5477 = vpop.f32.mrb[0].mxu0
        %5478 = vmatprep.mubr.f32.mxu0 0.0
        %5479 = vmatmul.mubr.f32.gmra.mrb[0].mxu0 %v5262
        %v5480 = vpop.f32.mrb[0].mxu0
        %v5481 = vadd.f32 %v5408, %v5480
        %v5482 = vpop.f32.mrb[0].mxu0
        %5483 = vmatprep.mubr.f32.mxu0 0.0
        %5484 = vmatmul.mubr.f32.gmra.mrb[0].mxu0 %v5263
        %v5485 = vpop.f32.mrb[0].mxu0
        %v5486 = vadd.f32 %v5408, %v5485
        %v5487 = vpop.f32.mrb[0].mxu0
        %5488 = vmatprep.mubr.f32.mxu0 0.0
        %5489 = vmatmul.mubr.f32.gmra.mrb[0].mxu0 %v5264
        %v5490 = vpop.f32.mrb[0].mxu0
        %v5491 = vadd.f32 %v5408, %v5490
        %v5492 = vpop.f32.mrb[0].mxu0
        %5493 = vmatprep.mubr.f32.mxu0 0.0
        %5494 = vmatmul.mubr.f32.gmra.mrb[0].mxu0 %v5265
        %v5495 = vpop.f32.mrb[0].mxu0
        %v5496 = vadd.f32 %v5408, %v5495
        %v5497 = vpop.f32.mrb[0].mxu0
        %5498 = vmatprep.mubr.f32.mxu0 0.0
        %5499 = vmatmul.mubr.f32.gmra.mrb[0].mxu0 %v5266
        %v5500 = vpop.f32.mrb[0].mxu0
        %v5501 = vadd.f32 %v5408, %v5500
        %v5502 = vpop.f32.mrb[0].mxu0
        %5503 = vmatprep.mubr.f32.mxu0 0.0
        %5504 = vmatmul.mubr.f32.gmra.mrb[0].mxu0 %v5267
        %v5505 = vpop.f32.mrb[0].mxu0
        %v5506 = vadd.f32 %v5408, %v5505
        %v5507 = vpop.f32.mrb[0].mxu0
        %5508 = vmatprep.mubr.f32.mxu0 0.0
        %5509 = vmatmul.mubr.f32.gmra.mrb[0].mxu0 %v5268
        %v5510 = vpop.f32.mrb[0].mxu0
        %v5511 = vadd.f32 %v5408, %v5510
        %v5512 = vpop.f32.mrb[0].mxu0
        %5513 = vmatprep.mubr.f32.mxu0 0.0
        %5514 = vmatmul.mubr.f32.gmra.mrb[0].mxu0 %v5269
        %v5515 = vpop.f32.mrb[0].mxu0
        %v5516 = vadd.f32 %v5408, %v5515
        %v5517 = vpop.f32.mrb[0].mxu0
        %5518 = vmatprep.mubr.f32.mxu0 0.0
        %5519 = vmatmul.mubr.f32.gmra.mrb[0].mxu0 %v5270
        %v5520 = vpop.f32.mrb[0].mxu0
        %v5521 = vadd.f32 %v5408, %v5520
        %v5522 = vpop.f32.mrb[0].mxu0
        %5523 = vmatprep.mubr.f32.mxu0 0.0
        %5524 = vmatmul.mubr.f32.gmra.mrb[0].mxu0 %v5271
        %v5525 = vpop.f32.mrb[0].mxu0
        %v5526 = vadd.f32 %v5408, %v5525
        %v5527 = vpop.f32.mrb[0].mxu0
        %5528 = vmatprep.mubr.f32.mxu0 0.0
        %5529 = vmatmul.mubr.f32.gmra.mrb[0].mxu0 %v5272
        %v5530 = vpop.f32.mrb[0].mxu0
        %v5531 = vadd.f32 %v5408, %v5530
        %v5532 = vpop.f32.mrb[0].mxu0
        %5533 = vmatprep.mubr.f32.mxu0 0.0
        %5534 = vmatmul.mubr.f32.gmra.mrb[0].mxu0 %v5273
        %v5535 = vpop.f32.mrb[0].mxu0
        %v5536 = vadd.f32 %v5408, %v5535
        %v5537 = vpop.f32.mrb[0].mxu0
        %5538 = vmatprep.mubr.f32.mxu0 0.0
        %5539 = vmatmul.mubr.f32.gmra.mrb[0].mxu0 %v5274
        %v5540 = vpop.f32.mrb[0].mxu0
        %v5541 = vadd.f32 %v5408, %v5540
        %v5542 = vpop.f32.mrb[0].mxu0
        %5543 = vmatprep.mubr.f32.mxu0 0.0
        %5544 = vmatmul.mubr.f32.gmra.mrb[0].mxu0 %v5275
        %v5545 = vpop.f32.mrb[0].mxu0
        %v5546 = vadd.f32 %v5408, %v5545
        %v5547 = vpop.f32.mrb[0].mxu0
        %5548 = vmatprep.mubr.f32.mxu0 0.0
        %5549 = vmatmul.mubr.f32.gmra.mrb[0].mxu0 %v5276
        %v5550 = vpop.f32.mrb[0].mxu0
        %v5551 = vadd.f32 %v5408, %v5550
        %v5552 = vpop.f32.mrb[0].mxu0
        %5553 = vmatprep.mubr.f32.mxu0 0.0
        %5554 = vmatmul.mubr.f32.gmra.mrb[0].mxu0 %v5277
        %v5555 = vpop.f32.mrb[0].mxu0
        %v5556 = vadd.f32 %v5408, %v5555
        %v5557 = vpop.f32.mrb[0].mxu0
        %5558 = vmatprep.mubr.f32.mxu0 0.0
        %5559 = vmatmul.mubr.f32.gmra.mrb[0].mxu0 %v5278
        %v5560 = vpop.f32.mrb[0].mxu0
        %v5561 = vadd.f32 %v5408, %v5560
        %v5562 = vpop.f32.mrb[0].mxu0
        %5563 = vmatprep.mubr.f32.mxu0 0.0
        %5564 = vmatmul.mubr.f32.gmra.mrb[0].mxu0 %v5279
        %v5565 = vpop.f32.mrb[0].mxu0
        %v5566 = vadd.f32 %v5408, %v5565
        %v5567 = vpop.f32.mrb[0].mxu0
        %5568 = vmatprep.mubr.f32.mxu0 0.0
        %5569 = vmatmul.mubr.f32.gmra.mrb[0].mxu0 %v5280
        %v5570 = vpop.f32.mrb[0].mxu0
        %v5571 = vadd.f32 %v5408, %v5570
        %v5572 = vpop.f32.mrb[0].mxu0
        %5573 = vmatprep.mubr.f32.mxu0 0.0
        %5574 = vmatmul.mubr.f32.gmra.mrb[0].mxu0 %v5281
        %v5575 = vpop.f32.mrb[0].mxu0
        %v5576 = vadd.f32 %v5408, %v5575
        %v5577 = vpop.f32.mrb[0].mxu0
        %5578 = vmatprep.mubr.f32.mxu0 0.0
        %5579 = vmatmul.mubr.f32.gmra.mrb[0].mxu0 %v5282
        %v5580 = vpop.f32.mrb[0].mxu0
        %v5581 = vadd.f32 %v5408, %v5580
        %v5582 = vpop.f32.mrb[0].mxu0
        %5583 = vmatprep.mubr.f32.mxu0 0.0
        %5584 = vmatmul.mubr.f32.gmra.mrb[0].mxu0 %v5283
        %v5585 = vpop.f32.mrb[0].mxu0
        %v5586 = vadd.f32 %v5408, %v5585
        %v5587 = vpop.f32.mrb[0].mxu0
        %5588 = vmatprep.mubr.f32.mxu0 0.0
        %5589 = vmatmul.mubr.f32.gmra.mrb[0].mxu0 %v5284
        %v5590 = vpop.f32.mrb[0].mxu0
        %v5591 = vadd.f32 %v5408, %v5590
        %v5592 = vpop.f32.mrb[0].mxu0
        %5593 = vmatprep.mubr.f32.mxu0 0.0
        %5594 = vmatmul.mubr.f32.gmra.mrb[0].mxu0 %v5285
        %v5595 = vpop.f32.mrb[0].mxu0
        %v5596 = vadd.f32 %v5408, %v5595
        %v5597 = vpop.f32.mrb[0].mxu0
        %5598 = vmatprep.mubr.f32.mxu0 0.0
        %5599 = vmatmul.mubr.f32.gmra.mrb[0].mxu0 %v5286
        %v5600 = vpop.f32.mrb[0].mxu0
        %v5601 = vadd.f32 %v5408, %v5600
        %v5602 = vpop.f32.mrb[0].mxu0
        %5603 = vmatprep.mubr.f32.mxu0 0.0
        %5604 = vmatmul.mubr.f32.gmra.mrb[0].mxu0 %v5287
        %v5605 = vpop.f32.mrb[0].mxu0
        %v5606 = vadd.f32 %v5408, %v5605
        %v5607 = vpop.f32.mrb[0].mxu0
        %5608 = vmatprep.mubr.f32.mxu0 0.0
        %5609 = vmatmul.mubr.f32.gmra.mrb[0].mxu0 %v5288
        %v5610 = vpop.f32.mrb[0].mxu0
        %v5611 = vadd.f32 %v5408, %v5610
        %v5612 = vpop.f32.mrb[0].mxu0
        %5613 = vmatprep.mubr.f32.mxu0 0.0
        %5614 = vmatmul.mubr.f32.gmra.mrb[0].mxu0 %v5289
        %v5615 = vpop.f32.mrb[0].mxu0
        %v5616 = vadd.f32 %v5408, %v5615
        %v5617 = vpop.f32.mrb[0].mxu0
        %5618 = vmatprep.mubr.f32.mxu0 0.0
        %5619 = vmatmul.mubr.f32.gmra.mrb[0].mxu0 %v5290
        %v5620 = vpop.f32.mrb[0].mxu0
        %v5621 = vadd.f32 %v5408, %v5620
        %v5622 = vpop.f32.mrb[0].mxu0
        %5623 = vmatprep.mubr.f32.mxu0 0.0
        %5624 = vmatmul.mubr.f32.gmra.mrb[0].mxu0 %v5291
        %v5625 = vpop.f32.mrb[0].mxu0
        %v5626 = vadd.f32 %v5408, %v5625
        %v5627 = vpop.f32.mrb[0].mxu0
        %5628 = vmatprep.mubr.f32.mxu0 0.0
        %5629 = vmatmul.mubr.f32.gmra.mrb[0].mxu0 %v5292
        %v5630 = vpop.f32.mrb[0].mxu0
        %v5631 = vadd.f32 %v5408, %v5630
        %v5632 = vpop.f32.mrb[0].mxu0
        %5633 = vmatprep.mubr.f32.mxu0 0.0
        %5634 = vmatmul.mubr.f32.gmra.mrb[0].mxu0 %v5293
        %v5635 = vpop.f32.mrb[0].mxu0
        %v5636 = vadd.f32 %v5408, %v5635
        %v5637 = vpop.f32.mrb[0].mxu0
        %5638 = vmatprep.mubr.f32.mxu0 0.0
        %5639 = vmatmul.mubr.f32.gmra.mrb[0].mxu0 %v5294
        %v5640 = vpop.f32.mrb[0].mxu0
        %v5641 = vadd.f32 %v5408, %v5640
        %v5642 = vpop.f32.mrb[0].mxu0
        %5643 = vmatprep.mubr.f32.mxu0 0.0
        %5644 = vmatmul.mubr.f32.gmra.mrb[0].mxu0 %v5295
        %v5645 = vpop.f32.mrb[0].mxu0
        %v5646 = vadd.f32 %v5408, %v5645
        %v5647 = vpop.f32.mrb[0].mxu0
        %5648 = vmatprep.mubr.f32.mxu0 0.0
        %5649 = vmatmul.mubr.f32.gmra.mrb[0].mxu0 %v5296
        %v5650 = vpop.f32.mrb[0].mxu0
        %v5651 = vadd.f32 %v5408, %v5650
        %v5652 = vpop.f32.mrb[0].mxu0
        %5653 = vmatprep.mubr.f32.mxu0 0.0
        %5654 = vmatmul.mubr.f32.gmra.mrb[0].mxu0 %v5297
        %v5655 = vpop.f32.mrb[0].mxu0
        %v5656 = vadd.f32 %v5408, %v5655
        %v5657 = vpop.f32.mrb[0].mxu0
        %5658 = vmatprep.mubr.f32.mxu0 0.0
        %5659 = vmatmul.mubr.f32.gmra.mrb[0].mxu0 %v5298
        %v5660 = vpop.f32.mrb[0].mxu0
        %v5661 = vadd.f32 %v5408, %v5660
        %v5662 = vpop.f32.mrb[0].mxu0
        %5663 = vmatprep.mubr.f32.mxu0 0.0
        %5664 = vmatmul.mubr.f32.gmra.mrb[0].mxu0 %v5299
        %v5665 = vpop.f32.mrb[0].mxu0
        %v5666 = vadd.f32 %v5408, %v5665
        %v5667 = vpop.f32.mrb[0].mxu0
        %5668 = vmatprep.mubr.f32.mxu0 0.0
        %5669 = vmatmul.mubr.f32.gmra.mrb[0].mxu0 %v5300
        %v5670 = vpop.f32.mrb[0].mxu0
        %v5671 = vadd.f32 %v5408, %v5670
        %v5672 = vpop.f32.mrb[0].mxu0
        %5673 = vmatprep.mubr.f32.mxu0 0.0
        %5674 = vmatmul.mubr.f32.gmra.mrb[0].mxu0 %v5301
        %v5675 = vpop.f32.mrb[0].mxu0
        %v5676 = vadd.f32 %v5408, %v5675
        %v5677 = vpop.f32.mrb[0].mxu0
        %5678 = vmatprep.mubr.f32.mxu0 0.0
        %5679 = vmatmul.mubr.f32.gmra.mrb[0].mxu0 %v5302
        %v5680 = vpop.f32.mrb[0].mxu0
        %v5681 = vadd.f32 %v5408, %v5680
        %v5682 = vpop.f32.mrb[0].mxu0
        %5683 = vmatprep.mubr.f32.mxu0 0.0
        %5684 = vmatmul.mubr.f32.gmra.mrb[0].mxu0 %v5303
        %v5685 = vpop.f32.mrb[0].mxu0
        %v5686 = vadd.f32 %v5408, %v5685
        %v5687 = vpop.f32.mrb[0].mxu0
        %5688 = vmatprep.mubr.f32.mxu0 0.0
        %5689 = vmatmul.mubr.f32.gmra.mrb[0].mxu0 %v5304
        %v5690 = vpop.f32.mrb[0].mxu0
        %v5691 = vadd.f32 %v5408, %v5690
        %v5692 = vpop.f32.mrb[0].mxu0
        %5693 = vmatprep.mubr.f32.mxu0 0.0
        %5694 = vmatmul.mubr.f32.gmra.mrb[0].mxu0 %v5305
        %v5695 = vpop.f32.mrb[0].mxu0
        %v5696 = vadd.f32 %v5408, %v5695
        %v5697 = vpop.f32.mrb[0].mxu0
        %5698 = vmatprep.mubr.f32.mxu0 0.0
        %5699 = vmatmul.mubr.f32.gmra.mrb[0].mxu0 %v5306
        %v5700 = vpop.f32.mrb[0].mxu0
        %v5701 = vadd.f32 %v5408, %v5700
        %v5702 = vpop.f32.mrb[0].mxu0
        %5703 = vmatprep.mubr.f32.mxu0 0.0
        %5704 = vmatmul.mubr.f32.gmra.mrb[0].mxu0 %v5307
        %v5705 = vpop.f32.mrb[0].mxu0
        %v5706 = vadd.f32 %v5408, %v5705
        %v5707 = vpop.f32.mrb[0].mxu0
        %5708 = vmatprep.mubr.f32.mxu0 0.0
        %5709 = vmatmul.mubr.f32.gmra.mrb[0].mxu0 %v5308
        %v5710 = vpop.f32.mrb[0].mxu0
        %v5711 = vadd.f32 %v5408, %v5710
        %v5712 = vpop.f32.mrb[0].mxu0
        %5713 = vmatprep.mubr.f32.mxu0 0.0
        %5714 = vmatmul.mubr.f32.gmra.mrb[0].mxu0 %v5309
        %v5715 = vpop.f32.mrb[0].mxu0
        %v5716 = vadd.f32 %v5408, %v5715
        %v5717 = vpop.f32.mrb[0].mxu0
        %5718 = vmatprep.mubr.f32.mxu0 0.0
        %5719 = vmatmul.mubr.f32.gmra.mrb[0].mxu0 %v5310
        %v5720 = vpop.f32.mrb[0].mxu0
        %v5721 = vadd.f32 %v5408, %v5720
        %v5722 = vpop.f32.mrb[0].mxu0
        %5723 = vmatprep.mubr.f32.mxu0 0.0
        %5724 = vmatmul.mubr.f32.gmra.mrb[0].mxu0 %v5311
        %v5725 = vpop.f32.mrb[0].mxu0
        %v5726 = vadd.f32 %v5408, %v5725
        %v5727 = vpop.f32.mrb[0].mxu0
        %5728 = vmatprep.mubr.f32.mxu0 0.0
        %5729 = vmatmul.mubr.f32.gmra.mrb[0].mxu0 %v5312
        %v5730 = vpop.f32.mrb[0].mxu0
        %v5731 = vadd.f32 %v5408, %v5730
        %v5732 = vpop.f32.mrb[0].mxu0
        %5733 = vmatprep.mubr.f32.mxu0 0.0
        %5734 = vmatmul.mubr.f32.gmra.mrb[0].mxu0 %v5313
        %v5735 = vpop.f32.mrb[0].mxu0
        %v5736 = vadd.f32 %v5408, %v5735
        %v5737 = vpop.f32.mrb[0].mxu0
        %5738 = vmatprep.mubr.f32.mxu0 0.0
        %5739 = vmatmul.mubr.f32.gmra.mrb[0].mxu0 %v5314
        %v5740 = vpop.f32.mrb[0].mxu0
        %v5741 = vadd.f32 %v5408, %v5740
        %v5742 = vpop.f32.mrb[0].mxu0
        %5743 = vmatprep.mubr.f32.mxu0 0.0
        %5744 = vmatmul.mubr.f32.gmra.mrb[0].mxu0 %v5315
        %v5745 = vpop.f32.mrb[0].mxu0
        %v5746 = vadd.f32 %v5408, %v5745
        %v5747 = vpop.f32.mrb[0].mxu0
        %5748 = vmatprep.mubr.f32.mxu0 0.0
        %5749 = vmatmul.mubr.f32.gmra.mrb[0].mxu0 %v5316
        %v5750 = vpop.f32.mrb[0].mxu0
        %v5751 = vadd.f32 %v5408, %v5750
        %v5752 = vpop.f32.mrb[0].mxu0
        %5753 = vmatprep.mubr.f32.mxu0 0.0
        %5754 = vmatmul.mubr.f32.gmra.mrb[0].mxu0 %v5317
        %v5755 = vpop.f32.mrb[0].mxu0
        %v5756 = vadd.f32 %v5408, %v5755
        %v5757 = vpop.f32.mrb[0].mxu0
        %5758 = vmatprep.mubr.f32.mxu0 0.0
        %5759 = vmatmul.mubr.f32.gmra.mrb[0].mxu0 %v5318
        %v5760 = vpop.f32.mrb[0].mxu0
        %v5761 = vadd.f32 %v5408, %v5760
        %v5762 = vpop.f32.mrb[0].mxu0
        %5763 = vmatprep.mubr.f32.mxu0 0.0
        %5764 = vmatmul.mubr.f32.gmra.mrb[0].mxu0 %v5319
        %v5765 = vpop.f32.mrb[0].mxu0
        %v5766 = vadd.f32 %v5408, %v5765
        %v5767 = vpop.f32.mrb[0].mxu0
        %5768 = vmatprep.mubr.f32.mxu0 0.0
        %5769 = vmatmul.mubr.f32.gmra.mrb[0].mxu0 %v5320
        %v5770 = vpop.f32.mrb[0].mxu0
        %v5771 = vadd.f32 %v5408, %v5770
        %v5772 = vpop.f32.mrb[0].mxu0
        %5773 = vmatprep.mubr.f32.mxu0 0.0
        %5774 = vmatmul.mubr.f32.gmra.mrb[0].mxu0 %v5321
        %v5775 = vpop.f32.mrb[0].mxu0
        %v5776 = vadd.f32 %v5408, %v5775
        %v5777 = vpop.f32.mrb[0].mxu0
        %5778 = vmatprep.mubr.f32.mxu0 0.0
        %5779 = vmatmul.mubr.f32.gmra.mrb[0].mxu0 %v5322
        %v5780 = vpop.f32.mrb[0].mxu0
        %v5781 = vadd.f32 %v5408, %v5780
        %v5782 = vpop.f32.mrb[0].mxu0
        %5783 = vmatprep.mubr.f32.mxu0 0.0
        %5784 = vmatmul.mubr.f32.gmra.mrb[0].mxu0 %v5323
        %v5785 = vpop.f32.mrb[0].mxu0
        %v5786 = vadd.f32 %v5408, %v5785
        %v5787 = vpop.f32.mrb[0].mxu0
        %5788 = vmatprep.mubr.f32.mxu0 0.0
        %5789 = vmatmul.mubr.f32.gmra.mrb[0].mxu0 %v5324
        %v5790 = vpop.f32.mrb[0].mxu0
        %v5791 = vadd.f32 %v5408, %v5790
        %v5792 = vpop.f32.mrb[0].mxu0
        %5793 = vmatprep.mubr.f32.mxu0 0.0
        %5794 = vmatmul.mubr.f32.gmra.mrb[0].mxu0 %v5325
        %v5795 = vpop.f32.mrb[0].mxu0
        %v5796 = vadd.f32 %v5408, %v5795
        %v5797 = vpop.f32.mrb[0].mxu0
        %5798 = vmatprep.mubr.f32.mxu0 0.0
        %5799 = vmatmul.mubr.f32.gmra.mrb[0].mxu0 %v5326
        %v5800 = vpop.f32.mrb[0].mxu0
        %v5801 = vadd.f32 %v5408, %v5800
        %v5802 = vpop.f32.mrb[0].mxu0
        %5803 = vmatprep.mubr.f32.mxu0 0.0
        %5804 = vmatmul.mubr.f32.gmra.mrb[0].mxu0 %v5327
        %v5805 = vpop.f32.mrb[0].mxu0
        %v5806 = vadd.f32 %v5408, %v5805
        %v5807 = vpop.f32.mrb[0].mxu0
        %5808 = vmatprep.mubr.f32.mxu0 0.0
        %5809 = vmatmul.mubr.f32.gmra.mrb[0].mxu0 %v5328
        %v5810 = vpop.f32.mrb[0].mxu0
        %v5811 = vadd.f32 %v5408, %v5810
        %v5812 = vpop.f32.mrb[0].mxu0
        %5813 = vmatprep.mubr.f32.mxu0 0.0
        %5814 = vmatmul.mubr.f32.gmra.mrb[0].mxu0 %v5329
        %v5815 = vpop.f32.mrb[0].mxu0
        %v5816 = vadd.f32 %v5408, %v5815
        %v5817 = vpop.f32.mrb[0].mxu0
        %5818 = vmatprep.mubr.f32.mxu0 0.0
        %5819 = vmatmul.mubr.f32.gmra.mrb[0].mxu0 %v5330
        %v5820 = vpop.f32.mrb[0].mxu0
        %v5821 = vadd.f32 %v5408, %v5820
        %v5822 = vpop.f32.mrb[0].mxu0
        %5823 = vmatprep.mubr.f32.mxu0 0.0
        %5824 = vmatmul.mubr.f32.gmra.mrb[0].mxu0 %v5331
        %v5825 = vpop.f32.mrb[0].mxu0
        %v5826 = vadd.f32 %v5408, %v5825
        %v5827 = vpop.f32.mrb[0].mxu0
        %5828 = vmatprep.mubr.f32.mxu0 0.0
        %5829 = vmatmul.mubr.f32.gmra.mrb[0].mxu0 %v5332
        %v5830 = vpop.f32.mrb[0].mxu0
        %v5831 = vadd.f32 %v5408, %v5830
        %v5832 = vpop.f32.mrb[0].mxu0
        %5833 = vmatprep.mubr.f32.mxu0 0.0
        %5834 = vmatmul.mubr.f32.gmra.mrb[0].mxu0 %v5333
        %v5835 = vpop.f32.mrb[0].mxu0
        %v5836 = vadd.f32 %v5408, %v5835
        %v5837 = vpop.f32.mrb[0].mxu0
        %5838 = vmatprep.mubr.f32.mxu0 0.0
        %5839 = vmatmul.mubr.f32.gmra.mrb[0].mxu0 %v5334
        %v5840 = vpop.f32.mrb[0].mxu0
        %v5841 = vadd.f32 %v5408, %v5840
        %v5842 = vpop.f32.mrb[0].mxu0
        %5843 = vmatprep.mubr.f32.mxu0 0.0
        %5844 = vmatmul.mubr.f32.gmra.mrb[0].mxu0 %v5335
        %v5845 = vpop.f32.mrb[0].mxu0
        %v5846 = vadd.f32 %v5408, %v5845
        %v5847 = vpop.f32.mrb[0].mxu0
        %5848 = vmatprep.mubr.f32.mxu0 0.0
        %5849 = vmatmul.mubr.f32.gmra.mrb[0].mxu0 %v5336
        %v5850 = vpop.f32.mrb[0].mxu0
        %v5851 = vadd.f32 %v5408, %v5850
        %v5852 = vpop.f32.mrb[0].mxu0
        %5853 = vmatprep.mubr.f32.mxu0 0.0
        %5854 = vmatmul.mubr.f32.gmra.mrb[0].mxu0 %v5337
        %v5855 = vpop.f32.mrb[0].mxu0
        %v5856 = vadd.f32 %v5408, %v5855
        %v5857 = vpop.f32.mrb[0].mxu0
        %5858 = vmatprep.mubr.f32.mxu0 0.0
        %5859 = vmatmul.mubr.f32.gmra.mrb[0].mxu0 %v5338
        %v5860 = vpop.f32.mrb[0].mxu0
        %v5861 = vadd.f32 %v5408, %v5860
        %v5862 = vpop.f32.mrb[0].mxu0
        %5863 = vmatprep.mubr.f32.mxu0 0.0
        %5864 = vmatmul.mubr.f32.gmra.mrb[0].mxu0 %v5339
        %v5865 = vpop.f32.mrb[0].mxu0
        %v5866 = vadd.f32 %v5408, %v5865
        %v5867 = vpop.f32.mrb[0].mxu0
        %5868 = vmatprep.mubr.f32.mxu0 0.0
        %5869 = vmatmul.mubr.f32.gmra.mrb[0].mxu0 %v5340
        %v5870 = vpop.f32.mrb[0].mxu0
        %v5871 = vadd.f32 %v5408, %v5870
        %v5872 = vpop.f32.mrb[0].mxu0
        %5873 = vmatprep.mubr.f32.mxu0 0.0
        %5874 = vmatmul.mubr.f32.gmra.mrb[0].mxu0 %v5341
        %v5875 = vpop.f32.mrb[0].mxu0
        %v5876 = vadd.f32 %v5408, %v5875
        %v5877 = vpop.f32.mrb[0].mxu0
        %5878 = vmatprep.mubr.f32.mxu0 0.0
        %5879 = vmatmul.mubr.f32.gmra.mrb[0].mxu0 %v5342
        %v5880 = vpop.f32.mrb[0].mxu0
        %v5881 = vadd.f32 %v5408, %v5880
        %v5882 = vpop.f32.mrb[0].mxu0
        %5883 = vmatprep.mubr.f32.mxu0 0.0
        %5884 = vmatmul.mubr.f32.gmra.mrb[0].mxu0 %v5343
        %v5885 = vpop.f32.mrb[0].mxu0
        %v5886 = vadd.f32 %v5408, %v5885
        %v5887 = vpop.f32.mrb[0].mxu0
        %5888 = vmatprep.mubr.f32.mxu0 0.0
        %5889 = vmatmul.mubr.f32.gmra.mrb[0].mxu0 %v5344
        %v5890 = vpop.f32.mrb[0].mxu0
        %v5891 = vadd.f32 %v5408, %v5890
        %v5892 = vpop.f32.mrb[0].mxu0
        %5893 = vmatprep.mubr.f32.mxu0 0.0
        %5894 = vmatmul.mubr.f32.gmra.mrb[0].mxu0 %v5345
        %v5895 = vpop.f32.mrb[0].mxu0
        %v5896 = vadd.f32 %v5408, %v5895
        %v5897 = vpop.f32.mrb[0].mxu0
        %5898 = vmatprep.mubr.f32.mxu0 0.0
        %5899 = vmatmul.mubr.f32.gmra.mrb[0].mxu0 %v5346
        %v5900 = vpop.f32.mrb[0].mxu0
        %v5901 = vadd.f32 %v5408, %v5900
        %v5902 = vpop.f32.mrb[0].mxu0
        %5903 = vmatprep.mubr.f32.mxu0 0.0
        %5904 = vmatmul.mubr.f32.gmra.mrb[0].mxu0 %v5347
        %v5905 = vpop.f32.mrb[0].mxu0
        %v5906 = vadd.f32 %v5408, %v5905
        %v5907 = vpop.f32.mrb[0].mxu0
        %5908 = vmatprep.mubr.f32.mxu0 0.0
        %5909 = vmatmul.mubr.f32.gmra.mrb[0].mxu0 %v5348
        %v5910 = vpop.f32.mrb[0].mxu0
        %v5911 = vadd.f32 %v5408, %v5910
        %v5912 = vpop.f32.mrb[0].mxu0
        %5913 = vmatprep.mubr.f32.mxu0 0.0
        %5914 = vmatmul.mubr.f32.gmra.mrb[0].mxu0 %v5349
        %v5915 = vpop.f32.mrb[0].mxu0
        %v5916 = vadd.f32 %v5408, %v5915
        %v5917 = vpop.f32.mrb[0].mxu0
        %5918 = vmatprep.mubr.f32.mxu0 0.0
        %5919 = vmatmul.mubr.f32.gmra.mrb[0].mxu0 %v5350
        %v5920 = vpop.f32.mrb[0].mxu0
        %v5921 = vadd.f32 %v5408, %v5920
        %v5922 = vpop.f32.mrb[0].mxu0
        %5923 = vmatprep.mubr.f32.mxu0 0.0
        %5924 = vmatmul.mubr.f32.gmra.mrb[0].mxu0 %v5351
        %v5925 = vpop.f32.mrb[0].mxu0
        %v5926 = vadd.f32 %v5408, %v5925
        %v5927 = vpop.f32.mrb[0].mxu0
        %5928 = vmatprep.mubr.f32.mxu0 0.0
        %5929 = vmatmul.mubr.f32.gmra.mrb[0].mxu0 %v5352
        %v5930 = vpop.f32.mrb[0].mxu0
        %v5931 = vadd.f32 %v5408, %v5930
        %v5932 = vpop.f32.mrb[0].mxu0
        %5933 = vmatprep.mubr.f32.mxu0 0.0
        %5934 = vmatmul.mubr.f32.gmra.mrb[0].mxu0 %v5353
        %v5935 = vpop.f32.mrb[0].mxu0
        %v5936 = vadd.f32 %v5408, %v5935
        %v5937 = vpop.f32.mrb[0].mxu0
        %5938 = vmatprep.mubr.f32.mxu0 0.0
        %5939 = vmatmul.mubr.f32.gmra.mrb[0].mxu0 %v5354
        %v5940 = vpop.f32.mrb[0].mxu0
        %v5941 = vadd.f32 %v5408, %v5940
        %v5942 = vpop.f32.mrb[0].mxu0
        %5943 = vmatprep.mubr.f32.mxu0 0.0
        %5944 = vmatmul.mubr.f32.gmra.mrb[0].mxu0 %v5355
        %v5945 = vpop.f32.mrb[0].mxu0
        %v5946 = vadd.f32 %v5408, %v5945
        %v5947 = vpop.f32.mrb[0].mxu0
        %5948 = vmatprep.mubr.f32.mxu0 0.0
        %5949 = vmatmul.mubr.f32.gmra.mrb[0].mxu0 %v5356
        %v5950 = vpop.f32.mrb[0].mxu0
        %v5951 = vadd.f32 %v5408, %v5950
        %v5952 = vpop.f32.mrb[0].mxu0
        %5953 = vmatprep.mubr.f32.mxu0 0.0
        %5954 = vmatmul.mubr.f32.gmra.mrb[0].mxu0 %v5357
        %v5955 = vpop.f32.mrb[0].mxu0
        %v5956 = vadd.f32 %v5408, %v5955
        %v5957 = vpop.f32.mrb[0].mxu0
        %5958 = vmatprep.mubr.f32.mxu0 0.0
        %5959 = vmatmul.mubr.f32.gmra.mrb[0].mxu0 %v5358
        %v5960 = vpop.f32.mrb[0].mxu0
        %v5961 = vadd.f32 %v5408, %v5960
        %v5962 = vpop.f32.mrb[0].mxu0
        %5963 = vmatprep.mubr.f32.mxu0 0.0
        %5964 = vmatmul.mubr.f32.gmra.mrb[0].mxu0 %v5359
        %v5965 = vpop.f32.mrb[0].mxu0
        %v5966 = vadd.f32 %v5408, %v5965
        %v5967 = vpop.f32.mrb[0].mxu0
        %5968 = vmatprep.mubr.f32.mxu0 0.0
        %5969 = vmatmul.mubr.f32.gmra.mrb[0].mxu0 %v5360
        %v5970 = vpop.f32.mrb[0].mxu0
        %v5971 = vadd.f32 %v5408, %v5970
        %v5972 = vpop.f32.mrb[0].mxu0
        %5973 = vmatprep.mubr.f32.mxu0 0.0
        %5974 = vmatmul.mubr.f32.gmra.mrb[0].mxu0 %v5361
        %v5975 = vpop.f32.mrb[0].mxu0
        %v5976 = vadd.f32 %v5408, %v5975
        %v5977 = vpop.f32.mrb[0].mxu0
        %5978 = vmatprep.mubr.f32.mxu0 0.0
        %5979 = vmatmul.mubr.f32.gmra.mrb[0].mxu0 %v5362
        %v5980 = vpop.f32.mrb[0].mxu0
        %v5981 = vadd.f32 %v5408, %v5980
        %v5982 = vpop.f32.mrb[0].mxu0
        %5983 = vmatprep.mubr.f32.mxu0 0.0
        %5984 = vmatmul.mubr.f32.gmra.mrb[0].mxu0 %v5363
        %v5985 = vpop.f32.mrb[0].mxu0
        %v5986 = vadd.f32 %v5408, %v5985
        %v5987 = vpop.f32.mrb[0].mxu0
        %5988 = vmatprep.mubr.f32.mxu0 0.0
        %5989 = vmatmul.mubr.f32.gmra.mrb[0].mxu0 %v5364
        %v5990 = vpop.f32.mrb[0].mxu0
        %v5991 = vadd.f32 %v5408, %v5990
        %v5992 = vpop.f32.mrb[0].mxu0
        %5993 = vmatprep.mubr.f32.mxu0 0.0
        %5994 = vmatmul.mubr.f32.gmra.mrb[0].mxu0 %v5365
        %v5995 = vpop.f32.mrb[0].mxu0
        %v5996 = vadd.f32 %v5408, %v5995
        %v5997 = vpop.f32.mrb[0].mxu0
        %5998 = vmatprep.mubr.f32.mxu0 0.0
        %5999 = vmatmul.mubr.f32.gmra.mrb[0].mxu0 %v5366
        %v6000 = vpop.f32.mrb[0].mxu0
        %v6001 = vadd.f32 %v5408, %v6000
        %v6002 = vpop.f32.mrb[0].mxu0
        %6003 = vmatprep.mubr.f32.mxu0 0.0
        %6004 = vmatmul.mubr.f32.gmra.mrb[0].mxu0 %v5367
        %v6005 = vpop.f32.mrb[0].mxu0
        %v6006 = vadd.f32 %v5408, %v6005
        %v6007 = vpop.f32.mrb[0].mxu0
        %6008 = vmatprep.mubr.f32.mxu0 0.0
        %6009 = vmatmul.mubr.f32.gmra.mrb[0].mxu0 %v5368
        %v6010 = vpop.f32.mrb[0].mxu0
        %v6011 = vadd.f32 %v5408, %v6010
        %v6012 = vpop.f32.mrb[0].mxu0
        %6013 = vmatprep.mubr.f32.mxu0 0.0
        %6014 = vmatmul.mubr.f32.gmra.mrb[0].mxu0 %v5369
        %v6015 = vpop.f32.mrb[0].mxu0
        %v6016 = vadd.f32 %v5408, %v6015
        %v6017 = vpop.f32.mrb[0].mxu0
        %6018 = vmatprep.mubr.f32.mxu0 0.0
        %6019 = vmatmul.mubr.f32.gmra.mrb[0].mxu0 %v5370
        %v6020 = vpop.f32.mrb[0].mxu0
        %v6021 = vadd.f32 %v5408, %v6020
        %v6022 = vpop.f32.mrb[0].mxu0
        %6023 = vmatprep.mubr.f32.mxu0 0.0
        %6024 = vmatmul.mubr.f32.gmra.mrb[0].mxu0 %v5371
        %v6025 = vpop.f32.mrb[0].mxu0
        %v6026 = vadd.f32 %v5408, %v6025
        %v6027 = vpop.f32.mrb[0].mxu0
        %6028 = vmatprep.mubr.f32.mxu0 0.0
        %6029 = vmatmul.mubr.f32.gmra.mrb[0].mxu0 %v5372
        %v6030 = vpop.f32.mrb[0].mxu0
        %v6031 = vadd.f32 %v5408, %v6030
        %v6032 = vpop.f32.mrb[0].mxu0
        %6033 = vmatprep.mubr.f32.mxu0 0.0
        %6034 = vmatmul.mubr.f32.gmra.mrb[0].mxu0 %v5373
        %v6035 = vpop.f32.mrb[0].mxu0
        %v6036 = vadd.f32 %v5408, %v6035
        %v6037 = vpop.f32.mrb[0].mxu0
        %6038 = vmatprep.mubr.f32.mxu0 0.0
        %6039 = vmatmul.mubr.f32.gmra.mrb[0].mxu0 %v5374
        %v6040 = vpop.f32.mrb[0].mxu0
        %v6041 = vadd.f32 %v5408, %v6040
        %v6042 = vpop.f32.mrb[0].mxu0
        %6043 = vmatprep.mubr.f32.mxu0 0.0
        %6044 = vmatmul.mubr.f32.gmra.mrb[0].mxu0 %v5375
        %v6045 = vpop.f32.mrb[0].mxu0
        %v6046 = vadd.f32 %v5408, %v6045
        %v6047 = vpop.f32.mrb[0].mxu0
        %6048 = vmatprep.mubr.f32.mxu0 0.0
        %6049 = vmatmul.mubr.f32.gmra.mrb[0].mxu0 %v5376
        %v6050 = vpop.f32.mrb[0].mxu0
        %v6051 = vadd.f32 %v5408, %v6050
        %v6052 = vpop.f32.mrb[0].mxu0
        %6053 = vmatprep.mubr.f32.mxu0 0.0
        %6054 = vmatmul.mubr.f32.gmra.mrb[0].mxu0 %v5377
        %v6055 = vpop.f32.mrb[0].mxu0
        %v6056 = vadd.f32 %v5408, %v6055
        %v6057 = vpop.f32.mrb[0].mxu0
        %6058 = vmatprep.mubr.f32.mxu0 0.0
        %6059 = vmatmul.mubr.f32.gmra.mrb[0].mxu0 %v5378
        %v6060 = vpop.f32.mrb[0].mxu0
        %v6061 = vadd.f32 %v5408, %v6060
        %v6062 = vpop.f32.mrb[0].mxu0
        %6063 = vmatprep.mubr.f32.mxu0 0.0
        %6064 = vmatmul.mubr.f32.gmra.mrb[0].mxu0 %v5379
        %v6065 = vpop.f32.mrb[0].mxu0
        %v6066 = vadd.f32 %v5408, %v6065
        %v6067 = vpop.f32.mrb[0].mxu0
        %6068 = vmatprep.mubr.f32.mxu0 0.0
        %6069 = vmatmul.mubr.f32.gmra.mrb[0].mxu0 %v5380
        %v6070 = vpop.f32.mrb[0].mxu0
        %v6071 = vadd.f32 %v5408, %v6070
        %v6072 = vpop.f32.mrb[0].mxu0
        %6073 = vmatprep.mubr.f32.mxu0 0.0
        %6074 = vmatmul.mubr.f32.gmra.mrb[0].mxu0 %v5381
        %v6075 = vpop.f32.mrb[0].mxu0
        %v6076 = vadd.f32 %v5408, %v6075
        %v6077 = vpop.f32.mrb[0].mxu0
        %6078 = vmatprep.mubr.f32.mxu0 0.0
        %6079 = vmatmul.mubr.f32.gmra.mrb[0].mxu0 %v5382
        %v6080 = vpop.f32.mrb[0].mxu0
        %v6081 = vadd.f32 %v5408, %v6080
        %v6082 = vpop.f32.mrb[0].mxu0
        %6083 = vmatprep.mubr.f32.mxu0 0.0
        %6084 = vmatmul.mubr.f32.gmra.mrb[0].mxu0 %v5383
        %v6085 = vpop.f32.mrb[0].mxu0
        %v6086 = vadd.f32 %v5408, %v6085
        %v6087 = vpop.f32.mrb[0].mxu0
        %6088 = vmatprep.mubr.f32.mxu0 0.0
        %6089 = vmatmul.mubr.f32.gmra.mrb[0].mxu0 %v5384
        %v6090 = vpop.f32.mrb[0].mxu0
        %v6091 = vadd.f32 %v5408, %v6090
        %v6092 = vpop.f32.mrb[0].mxu0
        %6093 = vmatprep.mubr.f32.mxu0 0.0
        %6094 = vmatmul.mubr.f32.gmra.mrb[0].mxu0 %v5385
        %v6095 = vpop.f32.mrb[0].mxu0
        %v6096 = vadd.f32 %v5408, %v6095
        %v6097 = vpop.f32.mrb[0].mxu0
        %6098 = vmatprep.mubr.f32.mxu0 0.0
        %6099 = vmatmul.mubr.f32.gmra.mrb[0].mxu0 %v5386
        %v6100 = vpop.f32.mrb[0].mxu0
        %v6101 = vadd.f32 %v5408, %v6100
        %v6102 = vpop.f32.mrb[0].mxu0
        %6103 = vmatprep.mubr.f32.mxu0 0.0
        %6104 = vmatmul.mubr.f32.gmra.mrb[0].mxu0 %v5387
        %v6105 = vpop.f32.mrb[0].mxu0
        %v6106 = vadd.f32 %v5408, %v6105
        %v6107 = vpop.f32.mrb[0].mxu0
        %6108 = vmatprep.mubr.f32.mxu0 0.0
        %6109 = vmatmul.mubr.f32.gmra.mrb[0].mxu0 %v5388
        %v6110 = vpop.f32.mrb[0].mxu0
        %v6111 = vadd.f32 %v5408, %v6110
        %v6112 = vpop.f32.mrb[0].mxu0
        %6113 = vdwg.mxu0
        %6114 = vadd.xlane.f32.xlu0 %v5476
        %v6115 = vpop.xlane.xlu0 %6114
        %6116 = vadd.xlane.f32.xlu0 %v5481
        %v6117 = vpop.xlane.xlu0 %6116
        %6118 = vadd.xlane.f32.xlu0 %v5486
        %v6119 = vpop.xlane.xlu0 %6118
        %6120 = vadd.xlane.f32.xlu0 %v5491
        %v6121 = vpop.xlane.xlu0 %6120
        %6122 = vadd.xlane.f32.xlu0 %v5496
        %v6123 = vpop.xlane.xlu0 %6122
        %6124 = vadd.xlane.f32.xlu0 %v5501
        %v6125 = vpop.xlane.xlu0 %6124
        %6126 = vadd.xlane.f32.xlu0 %v5506
        %v6127 = vpop.xlane.xlu0 %6126
        %6128 = vadd.xlane.f32.xlu0 %v5511
        %v6129 = vpop.xlane.xlu0 %6128
        %6130 = vadd.xlane.f32.xlu0 %v5516
        %v6131 = vpop.xlane.xlu0 %6130
        %6132 = vadd.xlane.f32.xlu0 %v5521
        %v6133 = vpop.xlane.xlu0 %6132
        %6134 = vadd.xlane.f32.xlu0 %v5526
        %v6135 = vpop.xlane.xlu0 %6134
        %6136 = vadd.xlane.f32.xlu0 %v5531
        %v6137 = vpop.xlane.xlu0 %6136
        %6138 = vadd.xlane.f32.xlu0 %v5536
        %v6139 = vpop.xlane.xlu0 %6138
        %6140 = vadd.xlane.f32.xlu0 %v5541
        %v6141 = vpop.xlane.xlu0 %6140
        %6142 = vadd.xlane.f32.xlu0 %v5546
        %v6143 = vpop.xlane.xlu0 %6142
        %6144 = vadd.xlane.f32.xlu0 %v5551
        %v6145 = vpop.xlane.xlu0 %6144
        %6146 = vadd.xlane.f32.xlu0 %v5556
        %v6147 = vpop.xlane.xlu0 %6146
        %6148 = vadd.xlane.f32.xlu0 %v5561
        %v6149 = vpop.xlane.xlu0 %6148
        %6150 = vadd.xlane.f32.xlu0 %v5566
        %v6151 = vpop.xlane.xlu0 %6150
        %6152 = vadd.xlane.f32.xlu0 %v5571
        %v6153 = vpop.xlane.xlu0 %6152
        %6154 = vadd.xlane.f32.xlu0 %v5576
        %v6155 = vpop.xlane.xlu0 %6154
        %6156 = vadd.xlane.f32.xlu0 %v5581
        %v6157 = vpop.xlane.xlu0 %6156
        %6158 = vadd.xlane.f32.xlu0 %v5586
        %v6159 = vpop.xlane.xlu0 %6158
        %6160 = vadd.xlane.f32.xlu0 %v5591
        %v6161 = vpop.xlane.xlu0 %6160
        %6162 = vadd.xlane.f32.xlu0 %v5596
        %v6163 = vpop.xlane.xlu0 %6162
        %6164 = vadd.xlane.f32.xlu0 %v5601
        %v6165 = vpop.xlane.xlu0 %6164
        %6166 = vadd.xlane.f32.xlu0 %v5606
        %v6167 = vpop.xlane.xlu0 %6166
        %6168 = vadd.xlane.f32.xlu0 %v5611
        %v6169 = vpop.xlane.xlu0 %6168
        %6170 = vadd.xlane.f32.xlu0 %v5616
        %v6171 = vpop.xlane.xlu0 %6170
        %6172 = vadd.xlane.f32.xlu0 %v5621
        %v6173 = vpop.xlane.xlu0 %6172
        %6174 = vadd.xlane.f32.xlu0 %v5626
        %v6175 = vpop.xlane.xlu0 %6174
        %6176 = vadd.xlane.f32.xlu0 %v5631
        %v6177 = vpop.xlane.xlu0 %6176
        %6178 = vadd.xlane.f32.xlu0 %v5636
        %v6179 = vpop.xlane.xlu0 %6178
        %6180 = vadd.xlane.f32.xlu0 %v5641
        %v6181 = vpop.xlane.xlu0 %6180
        %6182 = vadd.xlane.f32.xlu0 %v5646
        %v6183 = vpop.xlane.xlu0 %6182
        %6184 = vadd.xlane.f32.xlu0 %v5651
        %v6185 = vpop.xlane.xlu0 %6184
        %6186 = vadd.xlane.f32.xlu0 %v5656
        %v6187 = vpop.xlane.xlu0 %6186
        %6188 = vadd.xlane.f32.xlu0 %v5661
        %v6189 = vpop.xlane.xlu0 %6188
        %6190 = vadd.xlane.f32.xlu0 %v5666
        %v6191 = vpop.xlane.xlu0 %6190
        %6192 = vadd.xlane.f32.xlu0 %v5671
        %v6193 = vpop.xlane.xlu0 %6192
        %6194 = vadd.xlane.f32.xlu0 %v5676
        %v6195 = vpop.xlane.xlu0 %6194
        %6196 = vadd.xlane.f32.xlu0 %v5681
        %v6197 = vpop.xlane.xlu0 %6196
        %6198 = vadd.xlane.f32.xlu0 %v5686
        %v6199 = vpop.xlane.xlu0 %6198
        %6200 = vadd.xlane.f32.xlu0 %v5691
        %v6201 = vpop.xlane.xlu0 %6200
        %6202 = vadd.xlane.f32.xlu0 %v5696
        %v6203 = vpop.xlane.xlu0 %6202
        %6204 = vadd.xlane.f32.xlu0 %v5701
        %v6205 = vpop.xlane.xlu0 %6204
        %6206 = vadd.xlane.f32.xlu0 %v5706
        %v6207 = vpop.xlane.xlu0 %6206
        %6208 = vadd.xlane.f32.xlu0 %v5711
        %v6209 = vpop.xlane.xlu0 %6208
        %6210 = vadd.xlane.f32.xlu0 %v5716
        %v6211 = vpop.xlane.xlu0 %6210
        %6212 = vadd.xlane.f32.xlu0 %v5721
        %v6213 = vpop.xlane.xlu0 %6212
        %6214 = vadd.xlane.f32.xlu0 %v5726
        %v6215 = vpop.xlane.xlu0 %6214
        %6216 = vadd.xlane.f32.xlu0 %v5731
        %v6217 = vpop.xlane.xlu0 %6216
        %6218 = vadd.xlane.f32.xlu0 %v5736
        %v6219 = vpop.xlane.xlu0 %6218
        %6220 = vadd.xlane.f32.xlu0 %v5741
        %v6221 = vpop.xlane.xlu0 %6220
        %6222 = vadd.xlane.f32.xlu0 %v5746
        %v6223 = vpop.xlane.xlu0 %6222
        %6224 = vadd.xlane.f32.xlu0 %v5751
        %v6225 = vpop.xlane.xlu0 %6224
        %6226 = vadd.xlane.f32.xlu0 %v5756
        %v6227 = vpop.xlane.xlu0 %6226
        %6228 = vadd.xlane.f32.xlu0 %v5761
        %v6229 = vpop.xlane.xlu0 %6228
        %6230 = vadd.xlane.f32.xlu0 %v5766
        %v6231 = vpop.xlane.xlu0 %6230
        %6232 = vadd.xlane.f32.xlu0 %v5771
        %v6233 = vpop.xlane.xlu0 %6232
        %6234 = vadd.xlane.f32.xlu0 %v5776
        %v6235 = vpop.xlane.xlu0 %6234
        %6236 = vadd.xlane.f32.xlu0 %v5781
        %v6237 = vpop.xlane.xlu0 %6236
        %6238 = vadd.xlane.f32.xlu0 %v5786
        %v6239 = vpop.xlane.xlu0 %6238
        %6240 = vadd.xlane.f32.xlu0 %v5791
        %v6241 = vpop.xlane.xlu0 %6240
        %6242 = vadd.xlane.f32.xlu0 %v5796
        %v6243 = vpop.xlane.xlu0 %6242
        %6244 = vadd.xlane.f32.xlu0 %v5801
        %v6245 = vpop.xlane.xlu0 %6244
        %6246 = vadd.xlane.f32.xlu0 %v5806
        %v6247 = vpop.xlane.xlu0 %6246
        %6248 = vadd.xlane.f32.xlu0 %v5811
        %v6249 = vpop.xlane.xlu0 %6248
        %6250 = vadd.xlane.f32.xlu0 %v5816
        %v6251 = vpop.xlane.xlu0 %6250
        %6252 = vadd.xlane.f32.xlu0 %v5821
        %v6253 = vpop.xlane.xlu0 %6252
        %6254 = vadd.xlane.f32.xlu0 %v5826
        %v6255 = vpop.xlane.xlu0 %6254
        %6256 = vadd.xlane.f32.xlu0 %v5831
        %v6257 = vpop.xlane.xlu0 %6256
        %6258 = vadd.xlane.f32.xlu0 %v5836
        %v6259 = vpop.xlane.xlu0 %6258
        %6260 = vadd.xlane.f32.xlu0 %v5841
        %v6261 = vpop.xlane.xlu0 %6260
        %6262 = vadd.xlane.f32.xlu0 %v5846
        %v6263 = vpop.xlane.xlu0 %6262
        %6264 = vadd.xlane.f32.xlu0 %v5851
        %v6265 = vpop.xlane.xlu0 %6264
        %6266 = vadd.xlane.f32.xlu0 %v5856
        %v6267 = vpop.xlane.xlu0 %6266
        %6268 = vadd.xlane.f32.xlu0 %v5861
        %v6269 = vpop.xlane.xlu0 %6268
        %6270 = vadd.xlane.f32.xlu0 %v5866
        %v6271 = vpop.xlane.xlu0 %6270
        %6272 = vadd.xlane.f32.xlu0 %v5871
        %v6273 = vpop.xlane.xlu0 %6272
        %6274 = vadd.xlane.f32.xlu0 %v5876
        %v6275 = vpop.xlane.xlu0 %6274
        %6276 = vadd.xlane.f32.xlu0 %v5881
        %v6277 = vpop.xlane.xlu0 %6276
        %6278 = vadd.xlane.f32.xlu0 %v5886
        %v6279 = vpop.xlane.xlu0 %6278
        %6280 = vadd.xlane.f32.xlu0 %v5891
        %v6281 = vpop.xlane.xlu0 %6280
        %6282 = vadd.xlane.f32.xlu0 %v5896
        %v6283 = vpop.xlane.xlu0 %6282
        %6284 = vadd.xlane.f32.xlu0 %v5901
        %v6285 = vpop.xlane.xlu0 %6284
        %6286 = vadd.xlane.f32.xlu0 %v5906
        %v6287 = vpop.xlane.xlu0 %6286
        %6288 = vadd.xlane.f32.xlu0 %v5911
        %v6289 = vpop.xlane.xlu0 %6288
        %6290 = vadd.xlane.f32.xlu0 %v5916
        %v6291 = vpop.xlane.xlu0 %6290
        %6292 = vadd.xlane.f32.xlu0 %v5921
        %v6293 = vpop.xlane.xlu0 %6292
        %6294 = vadd.xlane.f32.xlu0 %v5926
        %v6295 = vpop.xlane.xlu0 %6294
        %6296 = vadd.xlane.f32.xlu0 %v5931
        %v6297 = vpop.xlane.xlu0 %6296
        %6298 = vadd.xlane.f32.xlu0 %v5936
        %v6299 = vpop.xlane.xlu0 %6298
        %6300 = vadd.xlane.f32.xlu0 %v5941
        %v6301 = vpop.xlane.xlu0 %6300
        %6302 = vadd.xlane.f32.xlu0 %v5946
        %v6303 = vpop.xlane.xlu0 %6302
        %6304 = vadd.xlane.f32.xlu0 %v5951
        %v6305 = vpop.xlane.xlu0 %6304
        %6306 = vadd.xlane.f32.xlu0 %v5956
        %v6307 = vpop.xlane.xlu0 %6306
        %6308 = vadd.xlane.f32.xlu0 %v5961
        %v6309 = vpop.xlane.xlu0 %6308
        %6310 = vadd.xlane.f32.xlu0 %v5966
        %v6311 = vpop.xlane.xlu0 %6310
        %6312 = vadd.xlane.f32.xlu0 %v5971
        %v6313 = vpop.xlane.xlu0 %6312
        %6314 = vadd.xlane.f32.xlu0 %v5976
        %v6315 = vpop.xlane.xlu0 %6314
        %6316 = vadd.xlane.f32.xlu0 %v5981
        %v6317 = vpop.xlane.xlu0 %6316
        %6318 = vadd.xlane.f32.xlu0 %v5986
        %v6319 = vpop.xlane.xlu0 %6318
        %6320 = vadd.xlane.f32.xlu0 %v5991
        %v6321 = vpop.xlane.xlu0 %6320
        %6322 = vadd.xlane.f32.xlu0 %v5996
        %v6323 = vpop.xlane.xlu0 %6322
        %6324 = vadd.xlane.f32.xlu0 %v6001
        %v6325 = vpop.xlane.xlu0 %6324
        %6326 = vadd.xlane.f32.xlu0 %v6006
        %v6327 = vpop.xlane.xlu0 %6326
        %6328 = vadd.xlane.f32.xlu0 %v6011
        %v6329 = vpop.xlane.xlu0 %6328
        %6330 = vadd.xlane.f32.xlu0 %v6016
        %v6331 = vpop.xlane.xlu0 %6330
        %6332 = vadd.xlane.f32.xlu0 %v6021
        %v6333 = vpop.xlane.xlu0 %6332
        %6334 = vadd.xlane.f32.xlu0 %v6026
        %v6335 = vpop.xlane.xlu0 %6334
        %6336 = vadd.xlane.f32.xlu0 %v6031
        %v6337 = vpop.xlane.xlu0 %6336
        %6338 = vadd.xlane.f32.xlu0 %v6036
        %v6339 = vpop.xlane.xlu0 %6338
        %6340 = vadd.xlane.f32.xlu0 %v6041
        %v6341 = vpop.xlane.xlu0 %6340
        %6342 = vadd.xlane.f32.xlu0 %v6046
        %v6343 = vpop.xlane.xlu0 %6342
        %6344 = vadd.xlane.f32.xlu0 %v6051
        %v6345 = vpop.xlane.xlu0 %6344
        %6346 = vadd.xlane.f32.xlu0 %v6056
        %v6347 = vpop.xlane.xlu0 %6346
        %6348 = vadd.xlane.f32.xlu0 %v6061
        %v6349 = vpop.xlane.xlu0 %6348
        %6350 = vadd.xlane.f32.xlu0 %v6066
        %v6351 = vpop.xlane.xlu0 %6350
        %6352 = vadd.xlane.f32.xlu0 %v6071
        %v6353 = vpop.xlane.xlu0 %6352
        %6354 = vadd.xlane.f32.xlu0 %v6076
        %v6355 = vpop.xlane.xlu0 %6354
        %6356 = vadd.xlane.f32.xlu0 %v6081
        %v6357 = vpop.xlane.xlu0 %6356
        %6358 = vadd.xlane.f32.xlu0 %v6086
        %v6359 = vpop.xlane.xlu0 %6358
        %6360 = vadd.xlane.f32.xlu0 %v6091
        %v6361 = vpop.xlane.xlu0 %6360
        %6362 = vadd.xlane.f32.xlu0 %v6096
        %v6363 = vpop.xlane.xlu0 %6362
        %6364 = vadd.xlane.f32.xlu0 %v6101
        %v6365 = vpop.xlane.xlu0 %6364
        %6366 = vadd.xlane.f32.xlu0 %v6106
        %v6367 = vpop.xlane.xlu0 %6366
        %6368 = vadd.xlane.f32.xlu0 %v6111
        %v6369 = vpop.xlane.xlu0 %6368
        %v6370 = vmul.f32 %v6115, %v1847
        %v6371 = vmul.f32 %v6117, %v1847
        %v6372 = vmul.f32 %v6119, %v1847
        %v6373 = vmul.f32 %v6121, %v1847
        %v6374 = vmul.f32 %v6123, %v1847
        %v6375 = vmul.f32 %v6125, %v1847
        %v6376 = vmul.f32 %v6127, %v1847
        %v6377 = vmul.f32 %v6129, %v1847
        %v6378 = vmul.f32 %v6131, %v1847
        %v6379 = vmul.f32 %v6133, %v1847
        %v6380 = vmul.f32 %v6135, %v1847
        %v6381 = vmul.f32 %v6137, %v1847
        %v6382 = vmul.f32 %v6139, %v1847
        %v6383 = vmul.f32 %v6141, %v1847
        %v6384 = vmul.f32 %v6143, %v1847
        %v6385 = vmul.f32 %v6145, %v1847
        %v6386 = vmul.f32 %v6147, %v1847
        %v6387 = vmul.f32 %v6149, %v1847
        %v6388 = vmul.f32 %v6151, %v1847
        %v6389 = vmul.f32 %v6153, %v1847
        %v6390 = vmul.f32 %v6155, %v1847
        %v6391 = vmul.f32 %v6157, %v1847
        %v6392 = vmul.f32 %v6159, %v1847
        %v6393 = vmul.f32 %v6161, %v1847
        %v6394 = vmul.f32 %v6163, %v1847
        %v6395 = vmul.f32 %v6165, %v1847
        %v6396 = vmul.f32 %v6167, %v1847
        %v6397 = vmul.f32 %v6169, %v1847
        %v6398 = vmul.f32 %v6171, %v1847
        %v6399 = vmul.f32 %v6173, %v1847
        %v6400 = vmul.f32 %v6175, %v1847
        %v6401 = vmul.f32 %v6177, %v1847
        %v6402 = vmul.f32 %v6179, %v1847
        %v6403 = vmul.f32 %v6181, %v1847
        %v6404 = vmul.f32 %v6183, %v1847
        %v6405 = vmul.f32 %v6185, %v1847
        %v6406 = vmul.f32 %v6187, %v1847
        %v6407 = vmul.f32 %v6189, %v1847
        %v6408 = vmul.f32 %v6191, %v1847
        %v6409 = vmul.f32 %v6193, %v1847
        %v6410 = vmul.f32 %v6195, %v1847
        %v6411 = vmul.f32 %v6197, %v1847
        %v6412 = vmul.f32 %v6199, %v1847
        %v6413 = vmul.f32 %v6201, %v1847
        %v6414 = vmul.f32 %v6203, %v1847
        %v6415 = vmul.f32 %v6205, %v1847
        %v6416 = vmul.f32 %v6207, %v1847
        %v6417 = vmul.f32 %v6209, %v1847
        %v6418 = vmul.f32 %v6211, %v1847
        %v6419 = vmul.f32 %v6213, %v1847
        %v6420 = vmul.f32 %v6215, %v1847
        %v6421 = vmul.f32 %v6217, %v1847
        %v6422 = vmul.f32 %v6219, %v1847
        %v6423 = vmul.f32 %v6221, %v1847
        %v6424 = vmul.f32 %v6223, %v1847
        %v6425 = vmul.f32 %v6225, %v1847
        %v6426 = vmul.f32 %v6227, %v1847
        %v6427 = vmul.f32 %v6229, %v1847
        %v6428 = vmul.f32 %v6231, %v1847
        %v6429 = vmul.f32 %v6233, %v1847
        %v6430 = vmul.f32 %v6235, %v1847
        %v6431 = vmul.f32 %v6237, %v1847
        %v6432 = vmul.f32 %v6239, %v1847
        %v6433 = vmul.f32 %v6241, %v1847
        %v6434 = vmul.f32 %v6243, %v1847
        %v6435 = vmul.f32 %v6245, %v1847
        %v6436 = vmul.f32 %v6247, %v1847
        %v6437 = vmul.f32 %v6249, %v1847
        %v6438 = vmul.f32 %v6251, %v1847
        %v6439 = vmul.f32 %v6253, %v1847
        %v6440 = vmul.f32 %v6255, %v1847
        %v6441 = vmul.f32 %v6257, %v1847
        %v6442 = vmul.f32 %v6259, %v1847
        %v6443 = vmul.f32 %v6261, %v1847
        %v6444 = vmul.f32 %v6263, %v1847
        %v6445 = vmul.f32 %v6265, %v1847
        %v6446 = vmul.f32 %v6267, %v1847
        %v6447 = vmul.f32 %v6269, %v1847
        %v6448 = vmul.f32 %v6271, %v1847
        %v6449 = vmul.f32 %v6273, %v1847
        %v6450 = vmul.f32 %v6275, %v1847
        %v6451 = vmul.f32 %v6277, %v1847
        %v6452 = vmul.f32 %v6279, %v1847
        %v6453 = vmul.f32 %v6281, %v1847
        %v6454 = vmul.f32 %v6283, %v1847
        %v6455 = vmul.f32 %v6285, %v1847
        %v6456 = vmul.f32 %v6287, %v1847
        %v6457 = vmul.f32 %v6289, %v1847
        %v6458 = vmul.f32 %v6291, %v1847
        %v6459 = vmul.f32 %v6293, %v1847
        %v6460 = vmul.f32 %v6295, %v1847
        %v6461 = vmul.f32 %v6297, %v1847
        %v6462 = vmul.f32 %v6299, %v1847
        %v6463 = vmul.f32 %v6301, %v1847
        %v6464 = vmul.f32 %v6303, %v1847
        %v6465 = vmul.f32 %v6305, %v1847
        %v6466 = vmul.f32 %v6307, %v1847
        %v6467 = vmul.f32 %v6309, %v1847
        %v6468 = vmul.f32 %v6311, %v1847
        %v6469 = vmul.f32 %v6313, %v1847
        %v6470 = vmul.f32 %v6315, %v1847
        %v6471 = vmul.f32 %v6317, %v1847
        %v6472 = vmul.f32 %v6319, %v1847
        %v6473 = vmul.f32 %v6321, %v1847
        %v6474 = vmul.f32 %v6323, %v1847
        %v6475 = vmul.f32 %v6325, %v1847
        %v6476 = vmul.f32 %v6327, %v1847
        %v6477 = vmul.f32 %v6329, %v1847
        %v6478 = vmul.f32 %v6331, %v1847
        %v6479 = vmul.f32 %v6333, %v1847
        %v6480 = vmul.f32 %v6335, %v1847
        %v6481 = vmul.f32 %v6337, %v1847
        %v6482 = vmul.f32 %v6339, %v1847
        %v6483 = vmul.f32 %v6341, %v1847
        %v6484 = vmul.f32 %v6343, %v1847
        %v6485 = vmul.f32 %v6345, %v1847
        %v6486 = vmul.f32 %v6347, %v1847
        %v6487 = vmul.f32 %v6349, %v1847
        %v6488 = vmul.f32 %v6351, %v1847
        %v6489 = vmul.f32 %v6353, %v1847
        %v6490 = vmul.f32 %v6355, %v1847
        %v6491 = vmul.f32 %v6357, %v1847
        %v6492 = vmul.f32 %v6359, %v1847
        %v6493 = vmul.f32 %v6361, %v1847
        %v6494 = vmul.f32 %v6363, %v1847
        %v6495 = vmul.f32 %v6365, %v1847
        %v6496 = vmul.f32 %v6367, %v1847
        %v6497 = vmul.f32 %v6369, %v1847
        %v6498 = vsub.f32 %v5476, %v6370
        %v6499 = vsub.f32 %v5481, %v6371
        %v6500 = vsub.f32 %v5486, %v6372
        %v6501 = vsub.f32 %v5491, %v6373
        %v6502 = vsub.f32 %v5496, %v6374
        %v6503 = vsub.f32 %v5501, %v6375
        %v6504 = vsub.f32 %v5506, %v6376
        %v6505 = vsub.f32 %v5511, %v6377
        %v6506 = vsub.f32 %v5516, %v6378
        %v6507 = vsub.f32 %v5521, %v6379
        %v6508 = vsub.f32 %v5526, %v6380
        %v6509 = vsub.f32 %v5531, %v6381
        %v6510 = vsub.f32 %v5536, %v6382
        %v6511 = vsub.f32 %v5541, %v6383
        %v6512 = vsub.f32 %v5546, %v6384
        %v6513 = vsub.f32 %v5551, %v6385
        %v6514 = vsub.f32 %v5556, %v6386
        %v6515 = vsub.f32 %v5561, %v6387
        %v6516 = vsub.f32 %v5566, %v6388
        %v6517 = vsub.f32 %v5571, %v6389
        %v6518 = vsub.f32 %v5576, %v6390
        %v6519 = vsub.f32 %v5581, %v6391
        %v6520 = vsub.f32 %v5586, %v6392
        %v6521 = vsub.f32 %v5591, %v6393
        %v6522 = vsub.f32 %v5596, %v6394
        %v6523 = vsub.f32 %v5601, %v6395
        %v6524 = vsub.f32 %v5606, %v6396
        %v6525 = vsub.f32 %v5611, %v6397
        %v6526 = vsub.f32 %v5616, %v6398
        %v6527 = vsub.f32 %v5621, %v6399
        %v6528 = vsub.f32 %v5626, %v6400
        %v6529 = vsub.f32 %v5631, %v6401
        %v6530 = vsub.f32 %v5636, %v6402
        %v6531 = vsub.f32 %v5641, %v6403
        %v6532 = vsub.f32 %v5646, %v6404
        %v6533 = vsub.f32 %v5651, %v6405
        %v6534 = vsub.f32 %v5656, %v6406
        %v6535 = vsub.f32 %v5661, %v6407
        %v6536 = vsub.f32 %v5666, %v6408
        %v6537 = vsub.f32 %v5671, %v6409
        %v6538 = vsub.f32 %v5676, %v6410
        %v6539 = vsub.f32 %v5681, %v6411
        %v6540 = vsub.f32 %v5686, %v6412
        %v6541 = vsub.f32 %v5691, %v6413
        %v6542 = vsub.f32 %v5696, %v6414
        %v6543 = vsub.f32 %v5701, %v6415
        %v6544 = vsub.f32 %v5706, %v6416
        %v6545 = vsub.f32 %v5711, %v6417
        %v6546 = vsub.f32 %v5716, %v6418
        %v6547 = vsub.f32 %v5721, %v6419
        %v6548 = vsub.f32 %v5726, %v6420
        %v6549 = vsub.f32 %v5731, %v6421
        %v6550 = vsub.f32 %v5736, %v6422
        %v6551 = vsub.f32 %v5741, %v6423
        %v6552 = vsub.f32 %v5746, %v6424
        %v6553 = vsub.f32 %v5751, %v6425
        %v6554 = vsub.f32 %v5756, %v6426
        %v6555 = vsub.f32 %v5761, %v6427
        %v6556 = vsub.f32 %v5766, %v6428
        %v6557 = vsub.f32 %v5771, %v6429
        %v6558 = vsub.f32 %v5776, %v6430
        %v6559 = vsub.f32 %v5781, %v6431
        %v6560 = vsub.f32 %v5786, %v6432
        %v6561 = vsub.f32 %v5791, %v6433
        %v6562 = vsub.f32 %v5796, %v6434
        %v6563 = vsub.f32 %v5801, %v6435
        %v6564 = vsub.f32 %v5806, %v6436
        %v6565 = vsub.f32 %v5811, %v6437
        %v6566 = vsub.f32 %v5816, %v6438
        %v6567 = vsub.f32 %v5821, %v6439
        %v6568 = vsub.f32 %v5826, %v6440
        %v6569 = vsub.f32 %v5831, %v6441
        %v6570 = vsub.f32 %v5836, %v6442
        %v6571 = vsub.f32 %v5841, %v6443
        %v6572 = vsub.f32 %v5846, %v6444
        %v6573 = vsub.f32 %v5851, %v6445
        %v6574 = vsub.f32 %v5856, %v6446
        %v6575 = vsub.f32 %v5861, %v6447
        %v6576 = vsub.f32 %v5866, %v6448
        %v6577 = vsub.f32 %v5871, %v6449
        %v6578 = vsub.f32 %v5876, %v6450
        %v6579 = vsub.f32 %v5881, %v6451
        %v6580 = vsub.f32 %v5886, %v6452
        %v6581 = vsub.f32 %v5891, %v6453
        %v6582 = vsub.f32 %v5896, %v6454
        %v6583 = vsub.f32 %v5901, %v6455
        %v6584 = vsub.f32 %v5906, %v6456
        %v6585 = vsub.f32 %v5911, %v6457
        %v6586 = vsub.f32 %v5916, %v6458
        %v6587 = vsub.f32 %v5921, %v6459
        %v6588 = vsub.f32 %v5926, %v6460
        %v6589 = vsub.f32 %v5931, %v6461
        %v6590 = vsub.f32 %v5936, %v6462
        %v6591 = vsub.f32 %v5941, %v6463
        %v6592 = vsub.f32 %v5946, %v6464
        %v6593 = vsub.f32 %v5951, %v6465
        %v6594 = vsub.f32 %v5956, %v6466
        %v6595 = vsub.f32 %v5961, %v6467
        %v6596 = vsub.f32 %v5966, %v6468
        %v6597 = vsub.f32 %v5971, %v6469
        %v6598 = vsub.f32 %v5976, %v6470
        %v6599 = vsub.f32 %v5981, %v6471
        %v6600 = vsub.f32 %v5986, %v6472
        %v6601 = vsub.f32 %v5991, %v6473
        %v6602 = vsub.f32 %v5996, %v6474
        %v6603 = vsub.f32 %v6001, %v6475
        %v6604 = vsub.f32 %v6006, %v6476
        %v6605 = vsub.f32 %v6011, %v6477
        %v6606 = vsub.f32 %v6016, %v6478
        %v6607 = vsub.f32 %v6021, %v6479
        %v6608 = vsub.f32 %v6026, %v6480
        %v6609 = vsub.f32 %v6031, %v6481
        %v6610 = vsub.f32 %v6036, %v6482
        %v6611 = vsub.f32 %v6041, %v6483
        %v6612 = vsub.f32 %v6046, %v6484
        %v6613 = vsub.f32 %v6051, %v6485
        %v6614 = vsub.f32 %v6056, %v6486
        %v6615 = vsub.f32 %v6061, %v6487
        %v6616 = vsub.f32 %v6066, %v6488
        %v6617 = vsub.f32 %v6071, %v6489
        %v6618 = vsub.f32 %v6076, %v6490
        %v6619 = vsub.f32 %v6081, %v6491
        %v6620 = vsub.f32 %v6086, %v6492
        %v6621 = vsub.f32 %v6091, %v6493
        %v6622 = vsub.f32 %v6096, %v6494
        %v6623 = vsub.f32 %v6101, %v6495
        %v6624 = vsub.f32 %v6106, %v6496
        %v6625 = vsub.f32 %v6111, %v6497
        %v6626 = vmul.f32 %v6498, %v6498
        %v6627 = vmul.f32 %v6499, %v6499
        %v6628 = vmul.f32 %v6500, %v6500
        %v6629 = vmul.f32 %v6501, %v6501
        %v6630 = vmul.f32 %v6502, %v6502
        %v6631 = vmul.f32 %v6503, %v6503
        %v6632 = vmul.f32 %v6504, %v6504
        %v6633 = vmul.f32 %v6505, %v6505
        %v6634 = vmul.f32 %v6506, %v6506
        %v6635 = vmul.f32 %v6507, %v6507
        %v6636 = vmul.f32 %v6508, %v6508
        %v6637 = vmul.f32 %v6509, %v6509
        %v6638 = vmul.f32 %v6510, %v6510
        %v6639 = vmul.f32 %v6511, %v6511
        %v6640 = vmul.f32 %v6512, %v6512
        %v6641 = vmul.f32 %v6513, %v6513
        %v6642 = vmul.f32 %v6514, %v6514
        %v6643 = vmul.f32 %v6515, %v6515
        %v6644 = vmul.f32 %v6516, %v6516
        %v6645 = vmul.f32 %v6517, %v6517
        %v6646 = vmul.f32 %v6518, %v6518
        %v6647 = vmul.f32 %v6519, %v6519
        %v6648 = vmul.f32 %v6520, %v6520
        %v6649 = vmul.f32 %v6521, %v6521
        %v6650 = vmul.f32 %v6522, %v6522
        %v6651 = vmul.f32 %v6523, %v6523
        %v6652 = vmul.f32 %v6524, %v6524
        %v6653 = vmul.f32 %v6525, %v6525
        %v6654 = vmul.f32 %v6526, %v6526
        %v6655 = vmul.f32 %v6527, %v6527
        %v6656 = vmul.f32 %v6528, %v6528
        %v6657 = vmul.f32 %v6529, %v6529
        %v6658 = vmul.f32 %v6530, %v6530
        %v6659 = vmul.f32 %v6531, %v6531
        %v6660 = vmul.f32 %v6532, %v6532
        %v6661 = vmul.f32 %v6533, %v6533
        %v6662 = vmul.f32 %v6534, %v6534
        %v6663 = vmul.f32 %v6535, %v6535
        %v6664 = vmul.f32 %v6536, %v6536
        %v6665 = vmul.f32 %v6537, %v6537
        %v6666 = vmul.f32 %v6538, %v6538
        %v6667 = vmul.f32 %v6539, %v6539
        %v6668 = vmul.f32 %v6540, %v6540
        %v6669 = vmul.f32 %v6541, %v6541
        %v6670 = vmul.f32 %v6542, %v6542
        %v6671 = vmul.f32 %v6543, %v6543
        %v6672 = vmul.f32 %v6544, %v6544
        %v6673 = vmul.f32 %v6545, %v6545
        %v6674 = vmul.f32 %v6546, %v6546
        %v6675 = vmul.f32 %v6547, %v6547
        %v6676 = vmul.f32 %v6548, %v6548
        %v6677 = vmul.f32 %v6549, %v6549
        %v6678 = vmul.f32 %v6550, %v6550
        %v6679 = vmul.f32 %v6551, %v6551
        %v6680 = vmul.f32 %v6552, %v6552
        %v6681 = vmul.f32 %v6553, %v6553
        %v6682 = vmul.f32 %v6554, %v6554
        %v6683 = vmul.f32 %v6555, %v6555
        %v6684 = vmul.f32 %v6556, %v6556
        %v6685 = vmul.f32 %v6557, %v6557
        %v6686 = vmul.f32 %v6558, %v6558
        %v6687 = vmul.f32 %v6559, %v6559
        %v6688 = vmul.f32 %v6560, %v6560
        %v6689 = vmul.f32 %v6561, %v6561
        %v6690 = vmul.f32 %v6562, %v6562
        %v6691 = vmul.f32 %v6563, %v6563
        %v6692 = vmul.f32 %v6564, %v6564
        %v6693 = vmul.f32 %v6565, %v6565
        %v6694 = vmul.f32 %v6566, %v6566
        %v6695 = vmul.f32 %v6567, %v6567
        %v6696 = vmul.f32 %v6568, %v6568
        %v6697 = vmul.f32 %v6569, %v6569
        %v6698 = vmul.f32 %v6570, %v6570
        %v6699 = vmul.f32 %v6571, %v6571
        %v6700 = vmul.f32 %v6572, %v6572
        %v6701 = vmul.f32 %v6573, %v6573
        %v6702 = vmul.f32 %v6574, %v6574
        %v6703 = vmul.f32 %v6575, %v6575
        %v6704 = vmul.f32 %v6576, %v6576
        %v6705 = vmul.f32 %v6577, %v6577
        %v6706 = vmul.f32 %v6578, %v6578
        %v6707 = vmul.f32 %v6579, %v6579
        %v6708 = vmul.f32 %v6580, %v6580
        %v6709 = vmul.f32 %v6581, %v6581
        %v6710 = vmul.f32 %v6582, %v6582
        %v6711 = vmul.f32 %v6583, %v6583
        %v6712 = vmul.f32 %v6584, %v6584
        %v6713 = vmul.f32 %v6585, %v6585
        %v6714 = vmul.f32 %v6586, %v6586
        %v6715 = vmul.f32 %v6587, %v6587
        %v6716 = vmul.f32 %v6588, %v6588
        %v6717 = vmul.f32 %v6589, %v6589
        %v6718 = vmul.f32 %v6590, %v6590
        %v6719 = vmul.f32 %v6591, %v6591
        %v6720 = vmul.f32 %v6592, %v6592
        %v6721 = vmul.f32 %v6593, %v6593
        %v6722 = vmul.f32 %v6594, %v6594
        %v6723 = vmul.f32 %v6595, %v6595
        %v6724 = vmul.f32 %v6596, %v6596
        %v6725 = vmul.f32 %v6597, %v6597
        %v6726 = vmul.f32 %v6598, %v6598
        %v6727 = vmul.f32 %v6599, %v6599
        %v6728 = vmul.f32 %v6600, %v6600
        %v6729 = vmul.f32 %v6601, %v6601
        %v6730 = vmul.f32 %v6602, %v6602
        %v6731 = vmul.f32 %v6603, %v6603
        %v6732 = vmul.f32 %v6604, %v6604
        %v6733 = vmul.f32 %v6605, %v6605
        %v6734 = vmul.f32 %v6606, %v6606
        %v6735 = vmul.f32 %v6607, %v6607
        %v6736 = vmul.f32 %v6608, %v6608
        %v6737 = vmul.f32 %v6609, %v6609
        %v6738 = vmul.f32 %v6610, %v6610
        %v6739 = vmul.f32 %v6611, %v6611
        %v6740 = vmul.f32 %v6612, %v6612
        %v6741 = vmul.f32 %v6613, %v6613
        %v6742 = vmul.f32 %v6614, %v6614
        %v6743 = vmul.f32 %v6615, %v6615
        %v6744 = vmul.f32 %v6616, %v6616
        %v6745 = vmul.f32 %v6617, %v6617
        %v6746 = vmul.f32 %v6618, %v6618
        %v6747 = vmul.f32 %v6619, %v6619
        %v6748 = vmul.f32 %v6620, %v6620
        %v6749 = vmul.f32 %v6621, %v6621
        %v6750 = vmul.f32 %v6622, %v6622
        %v6751 = vmul.f32 %v6623, %v6623
        %v6752 = vmul.f32 %v6624, %v6624
        %v6753 = vmul.f32 %v6625, %v6625
        %6754 = vadd.xlane.f32.xlu0 %v6626
        %v6755 = vpop.xlane.xlu0 %6754
        %6756 = vadd.xlane.f32.xlu0 %v6627
        %v6757 = vpop.xlane.xlu0 %6756
        %6758 = vadd.xlane.f32.xlu0 %v6628
        %v6759 = vpop.xlane.xlu0 %6758
        %6760 = vadd.xlane.f32.xlu0 %v6629
        %v6761 = vpop.xlane.xlu0 %6760
        %6762 = vadd.xlane.f32.xlu0 %v6630
        %v6763 = vpop.xlane.xlu0 %6762
        %6764 = vadd.xlane.f32.xlu0 %v6631
        %v6765 = vpop.xlane.xlu0 %6764
        %6766 = vadd.xlane.f32.xlu0 %v6632
        %v6767 = vpop.xlane.xlu0 %6766
        %6768 = vadd.xlane.f32.xlu0 %v6633
        %v6769 = vpop.xlane.xlu0 %6768
        %6770 = vadd.xlane.f32.xlu0 %v6634
        %v6771 = vpop.xlane.xlu0 %6770
        %6772 = vadd.xlane.f32.xlu0 %v6635
        %v6773 = vpop.xlane.xlu0 %6772
        %6774 = vadd.xlane.f32.xlu0 %v6636
        %v6775 = vpop.xlane.xlu0 %6774
        %6776 = vadd.xlane.f32.xlu0 %v6637
        %v6777 = vpop.xlane.xlu0 %6776
        %6778 = vadd.xlane.f32.xlu0 %v6638
        %v6779 = vpop.xlane.xlu0 %6778
        %6780 = vadd.xlane.f32.xlu0 %v6639
        %v6781 = vpop.xlane.xlu0 %6780
        %6782 = vadd.xlane.f32.xlu0 %v6640
        %v6783 = vpop.xlane.xlu0 %6782
        %6784 = vadd.xlane.f32.xlu0 %v6641
        %v6785 = vpop.xlane.xlu0 %6784
        %6786 = vadd.xlane.f32.xlu0 %v6642
        %v6787 = vpop.xlane.xlu0 %6786
        %6788 = vadd.xlane.f32.xlu0 %v6643
        %v6789 = vpop.xlane.xlu0 %6788
        %6790 = vadd.xlane.f32.xlu0 %v6644
        %v6791 = vpop.xlane.xlu0 %6790
        %6792 = vadd.xlane.f32.xlu0 %v6645
        %v6793 = vpop.xlane.xlu0 %6792
        %6794 = vadd.xlane.f32.xlu0 %v6646
        %v6795 = vpop.xlane.xlu0 %6794
        %6796 = vadd.xlane.f32.xlu0 %v6647
        %v6797 = vpop.xlane.xlu0 %6796
        %6798 = vadd.xlane.f32.xlu0 %v6648
        %v6799 = vpop.xlane.xlu0 %6798
        %6800 = vadd.xlane.f32.xlu0 %v6649
        %v6801 = vpop.xlane.xlu0 %6800
        %6802 = vadd.xlane.f32.xlu0 %v6650
        %v6803 = vpop.xlane.xlu0 %6802
        %6804 = vadd.xlane.f32.xlu0 %v6651
        %v6805 = vpop.xlane.xlu0 %6804
        %6806 = vadd.xlane.f32.xlu0 %v6652
        %v6807 = vpop.xlane.xlu0 %6806
        %6808 = vadd.xlane.f32.xlu0 %v6653
        %v6809 = vpop.xlane.xlu0 %6808
        %6810 = vadd.xlane.f32.xlu0 %v6654
        %v6811 = vpop.xlane.xlu0 %6810
        %6812 = vadd.xlane.f32.xlu0 %v6655
        %v6813 = vpop.xlane.xlu0 %6812
        %6814 = vadd.xlane.f32.xlu0 %v6656
        %v6815 = vpop.xlane.xlu0 %6814
        %6816 = vadd.xlane.f32.xlu0 %v6657
        %v6817 = vpop.xlane.xlu0 %6816
        %6818 = vadd.xlane.f32.xlu0 %v6658
        %v6819 = vpop.xlane.xlu0 %6818
        %6820 = vadd.xlane.f32.xlu0 %v6659
        %v6821 = vpop.xlane.xlu0 %6820
        %6822 = vadd.xlane.f32.xlu0 %v6660
        %v6823 = vpop.xlane.xlu0 %6822
        %6824 = vadd.xlane.f32.xlu0 %v6661
        %v6825 = vpop.xlane.xlu0 %6824
        %6826 = vadd.xlane.f32.xlu0 %v6662
        %v6827 = vpop.xlane.xlu0 %6826
        %6828 = vadd.xlane.f32.xlu0 %v6663
        %v6829 = vpop.xlane.xlu0 %6828
        %6830 = vadd.xlane.f32.xlu0 %v6664
        %v6831 = vpop.xlane.xlu0 %6830
        %6832 = vadd.xlane.f32.xlu0 %v6665
        %v6833 = vpop.xlane.xlu0 %6832
        %6834 = vadd.xlane.f32.xlu0 %v6666
        %v6835 = vpop.xlane.xlu0 %6834
        %6836 = vadd.xlane.f32.xlu0 %v6667
        %v6837 = vpop.xlane.xlu0 %6836
        %6838 = vadd.xlane.f32.xlu0 %v6668
        %v6839 = vpop.xlane.xlu0 %6838
        %6840 = vadd.xlane.f32.xlu0 %v6669
        %v6841 = vpop.xlane.xlu0 %6840
        %6842 = vadd.xlane.f32.xlu0 %v6670
        %v6843 = vpop.xlane.xlu0 %6842
        %6844 = vadd.xlane.f32.xlu0 %v6671
        %v6845 = vpop.xlane.xlu0 %6844
        %6846 = vadd.xlane.f32.xlu0 %v6672
        %v6847 = vpop.xlane.xlu0 %6846
        %6848 = vadd.xlane.f32.xlu0 %v6673
        %v6849 = vpop.xlane.xlu0 %6848
        %6850 = vadd.xlane.f32.xlu0 %v6674
        %v6851 = vpop.xlane.xlu0 %6850
        %6852 = vadd.xlane.f32.xlu0 %v6675
        %v6853 = vpop.xlane.xlu0 %6852
        %6854 = vadd.xlane.f32.xlu0 %v6676
        %v6855 = vpop.xlane.xlu0 %6854
        %6856 = vadd.xlane.f32.xlu0 %v6677
        %v6857 = vpop.xlane.xlu0 %6856
        %6858 = vadd.xlane.f32.xlu0 %v6678
        %v6859 = vpop.xlane.xlu0 %6858
        %6860 = vadd.xlane.f32.xlu0 %v6679
        %v6861 = vpop.xlane.xlu0 %6860
        %6862 = vadd.xlane.f32.xlu0 %v6680
        %v6863 = vpop.xlane.xlu0 %6862
        %6864 = vadd.xlane.f32.xlu0 %v6681
        %v6865 = vpop.xlane.xlu0 %6864
        %6866 = vadd.xlane.f32.xlu0 %v6682
        %v6867 = vpop.xlane.xlu0 %6866
        %6868 = vadd.xlane.f32.xlu0 %v6683
        %v6869 = vpop.xlane.xlu0 %6868
        %6870 = vadd.xlane.f32.xlu0 %v6684
        %v6871 = vpop.xlane.xlu0 %6870
        %6872 = vadd.xlane.f32.xlu0 %v6685
        %v6873 = vpop.xlane.xlu0 %6872
        %6874 = vadd.xlane.f32.xlu0 %v6686
        %v6875 = vpop.xlane.xlu0 %6874
        %6876 = vadd.xlane.f32.xlu0 %v6687
        %v6877 = vpop.xlane.xlu0 %6876
        %6878 = vadd.xlane.f32.xlu0 %v6688
        %v6879 = vpop.xlane.xlu0 %6878
        %6880 = vadd.xlane.f32.xlu0 %v6689
        %v6881 = vpop.xlane.xlu0 %6880
        %6882 = vadd.xlane.f32.xlu0 %v6690
        %v6883 = vpop.xlane.xlu0 %6882
        %6884 = vadd.xlane.f32.xlu0 %v6691
        %v6885 = vpop.xlane.xlu0 %6884
        %6886 = vadd.xlane.f32.xlu0 %v6692
        %v6887 = vpop.xlane.xlu0 %6886
        %6888 = vadd.xlane.f32.xlu0 %v6693
        %v6889 = vpop.xlane.xlu0 %6888
        %6890 = vadd.xlane.f32.xlu0 %v6694
        %v6891 = vpop.xlane.xlu0 %6890
        %6892 = vadd.xlane.f32.xlu0 %v6695
        %v6893 = vpop.xlane.xlu0 %6892
        %6894 = vadd.xlane.f32.xlu0 %v6696
        %v6895 = vpop.xlane.xlu0 %6894
        %6896 = vadd.xlane.f32.xlu0 %v6697
        %v6897 = vpop.xlane.xlu0 %6896
        %6898 = vadd.xlane.f32.xlu0 %v6698
        %v6899 = vpop.xlane.xlu0 %6898
        %6900 = vadd.xlane.f32.xlu0 %v6699
        %v6901 = vpop.xlane.xlu0 %6900
        %6902 = vadd.xlane.f32.xlu0 %v6700
        %v6903 = vpop.xlane.xlu0 %6902
        %6904 = vadd.xlane.f32.xlu0 %v6701
        %v6905 = vpop.xlane.xlu0 %6904
        %6906 = vadd.xlane.f32.xlu0 %v6702
        %v6907 = vpop.xlane.xlu0 %6906
        %6908 = vadd.xlane.f32.xlu0 %v6703
        %v6909 = vpop.xlane.xlu0 %6908
        %6910 = vadd.xlane.f32.xlu0 %v6704
        %v6911 = vpop.xlane.xlu0 %6910
        %6912 = vadd.xlane.f32.xlu0 %v6705
        %v6913 = vpop.xlane.xlu0 %6912
        %6914 = vadd.xlane.f32.xlu0 %v6706
        %v6915 = vpop.xlane.xlu0 %6914
        %6916 = vadd.xlane.f32.xlu0 %v6707
        %v6917 = vpop.xlane.xlu0 %6916
        %6918 = vadd.xlane.f32.xlu0 %v6708
        %v6919 = vpop.xlane.xlu0 %6918
        %6920 = vadd.xlane.f32.xlu0 %v6709
        %v6921 = vpop.xlane.xlu0 %6920
        %6922 = vadd.xlane.f32.xlu0 %v6710
        %v6923 = vpop.xlane.xlu0 %6922
        %6924 = vadd.xlane.f32.xlu0 %v6711
        %v6925 = vpop.xlane.xlu0 %6924
        %6926 = vadd.xlane.f32.xlu0 %v6712
        %v6927 = vpop.xlane.xlu0 %6926
        %6928 = vadd.xlane.f32.xlu0 %v6713
        %v6929 = vpop.xlane.xlu0 %6928
        %6930 = vadd.xlane.f32.xlu0 %v6714
        %v6931 = vpop.xlane.xlu0 %6930
        %6932 = vadd.xlane.f32.xlu0 %v6715
        %v6933 = vpop.xlane.xlu0 %6932
        %6934 = vadd.xlane.f32.xlu0 %v6716
        %v6935 = vpop.xlane.xlu0 %6934
        %6936 = vadd.xlane.f32.xlu0 %v6717
        %v6937 = vpop.xlane.xlu0 %6936
        %6938 = vadd.xlane.f32.xlu0 %v6718
        %v6939 = vpop.xlane.xlu0 %6938
        %6940 = vadd.xlane.f32.xlu0 %v6719
        %v6941 = vpop.xlane.xlu0 %6940
        %6942 = vadd.xlane.f32.xlu0 %v6720
        %v6943 = vpop.xlane.xlu0 %6942
        %6944 = vadd.xlane.f32.xlu0 %v6721
        %v6945 = vpop.xlane.xlu0 %6944
        %6946 = vadd.xlane.f32.xlu0 %v6722
        %v6947 = vpop.xlane.xlu0 %6946
        %6948 = vadd.xlane.f32.xlu0 %v6723
        %v6949 = vpop.xlane.xlu0 %6948
        %6950 = vadd.xlane.f32.xlu0 %v6724
        %v6951 = vpop.xlane.xlu0 %6950
        %6952 = vadd.xlane.f32.xlu0 %v6725
        %v6953 = vpop.xlane.xlu0 %6952
        %6954 = vadd.xlane.f32.xlu0 %v6726
        %v6955 = vpop.xlane.xlu0 %6954
        %6956 = vadd.xlane.f32.xlu0 %v6727
        %v6957 = vpop.xlane.xlu0 %6956
        %6958 = vadd.xlane.f32.xlu0 %v6728
        %v6959 = vpop.xlane.xlu0 %6958
        %6960 = vadd.xlane.f32.xlu0 %v6729
        %v6961 = vpop.xlane.xlu0 %6960
        %6962 = vadd.xlane.f32.xlu0 %v6730
        %v6963 = vpop.xlane.xlu0 %6962
        %6964 = vadd.xlane.f32.xlu0 %v6731
        %v6965 = vpop.xlane.xlu0 %6964
        %6966 = vadd.xlane.f32.xlu0 %v6732
        %v6967 = vpop.xlane.xlu0 %6966
        %6968 = vadd.xlane.f32.xlu0 %v6733
        %v6969 = vpop.xlane.xlu0 %6968
        %6970 = vadd.xlane.f32.xlu0 %v6734
        %v6971 = vpop.xlane.xlu0 %6970
        %6972 = vadd.xlane.f32.xlu0 %v6735
        %v6973 = vpop.xlane.xlu0 %6972
        %6974 = vadd.xlane.f32.xlu0 %v6736
        %v6975 = vpop.xlane.xlu0 %6974
        %6976 = vadd.xlane.f32.xlu0 %v6737
        %v6977 = vpop.xlane.xlu0 %6976
        %6978 = vadd.xlane.f32.xlu0 %v6738
        %v6979 = vpop.xlane.xlu0 %6978
        %6980 = vadd.xlane.f32.xlu0 %v6739
        %v6981 = vpop.xlane.xlu0 %6980
        %6982 = vadd.xlane.f32.xlu0 %v6740
        %v6983 = vpop.xlane.xlu0 %6982
        %6984 = vadd.xlane.f32.xlu0 %v6741
        %v6985 = vpop.xlane.xlu0 %6984
        %6986 = vadd.xlane.f32.xlu0 %v6742
        %v6987 = vpop.xlane.xlu0 %6986
        %6988 = vadd.xlane.f32.xlu0 %v6743
        %v6989 = vpop.xlane.xlu0 %6988
        %6990 = vadd.xlane.f32.xlu0 %v6744
        %v6991 = vpop.xlane.xlu0 %6990
        %6992 = vadd.xlane.f32.xlu0 %v6745
        %v6993 = vpop.xlane.xlu0 %6992
        %6994 = vadd.xlane.f32.xlu0 %v6746
        %v6995 = vpop.xlane.xlu0 %6994
        %6996 = vadd.xlane.f32.xlu0 %v6747
        %v6997 = vpop.xlane.xlu0 %6996
        %6998 = vadd.xlane.f32.xlu0 %v6748
        %v6999 = vpop.xlane.xlu0 %6998
        %7000 = vadd.xlane.f32.xlu0 %v6749
        %v7001 = vpop.xlane.xlu0 %7000
        %7002 = vadd.xlane.f32.xlu0 %v6750
        %v7003 = vpop.xlane.xlu0 %7002
        %7004 = vadd.xlane.f32.xlu0 %v6751
        %v7005 = vpop.xlane.xlu0 %7004
        %7006 = vadd.xlane.f32.xlu0 %v6752
        %v7007 = vpop.xlane.xlu0 %7006
        %7008 = vadd.xlane.f32.xlu0 %v6753
        %v7009 = vpop.xlane.xlu0 %7008
        %v7010 = vmul.f32 %v6755, %v1847
        %v7011 = vmul.f32 %v6757, %v1847
        %v7012 = vmul.f32 %v6759, %v1847
        %v7013 = vmul.f32 %v6761, %v1847
        %v7014 = vmul.f32 %v6763, %v1847
        %v7015 = vmul.f32 %v6765, %v1847
        %v7016 = vmul.f32 %v6767, %v1847
        %v7017 = vmul.f32 %v6769, %v1847
        %v7018 = vmul.f32 %v6771, %v1847
        %v7019 = vmul.f32 %v6773, %v1847
        %v7020 = vmul.f32 %v6775, %v1847
        %v7021 = vmul.f32 %v6777, %v1847
        %v7022 = vmul.f32 %v6779, %v1847
        %v7023 = vmul.f32 %v6781, %v1847
        %v7024 = vmul.f32 %v6783, %v1847
        %v7025 = vmul.f32 %v6785, %v1847
        %v7026 = vmul.f32 %v6787, %v1847
        %v7027 = vmul.f32 %v6789, %v1847
        %v7028 = vmul.f32 %v6791, %v1847
        %v7029 = vmul.f32 %v6793, %v1847
        %v7030 = vmul.f32 %v6795, %v1847
        %v7031 = vmul.f32 %v6797, %v1847
        %v7032 = vmul.f32 %v6799, %v1847
        %v7033 = vmul.f32 %v6801, %v1847
        %v7034 = vmul.f32 %v6803, %v1847
        %v7035 = vmul.f32 %v6805, %v1847
        %v7036 = vmul.f32 %v6807, %v1847
        %v7037 = vmul.f32 %v6809, %v1847
        %v7038 = vmul.f32 %v6811, %v1847
        %v7039 = vmul.f32 %v6813, %v1847
        %v7040 = vmul.f32 %v6815, %v1847
        %v7041 = vmul.f32 %v6817, %v1847
        %v7042 = vmul.f32 %v6819, %v1847
        %v7043 = vmul.f32 %v6821, %v1847
        %v7044 = vmul.f32 %v6823, %v1847
        %v7045 = vmul.f32 %v6825, %v1847
        %v7046 = vmul.f32 %v6827, %v1847
        %v7047 = vmul.f32 %v6829, %v1847
        %v7048 = vmul.f32 %v6831, %v1847
        %v7049 = vmul.f32 %v6833, %v1847
        %v7050 = vmul.f32 %v6835, %v1847
        %v7051 = vmul.f32 %v6837, %v1847
        %v7052 = vmul.f32 %v6839, %v1847
        %v7053 = vmul.f32 %v6841, %v1847
        %v7054 = vmul.f32 %v6843, %v1847
        %v7055 = vmul.f32 %v6845, %v1847
        %v7056 = vmul.f32 %v6847, %v1847
        %v7057 = vmul.f32 %v6849, %v1847
        %v7058 = vmul.f32 %v6851, %v1847
        %v7059 = vmul.f32 %v6853, %v1847
        %v7060 = vmul.f32 %v6855, %v1847
        %v7061 = vmul.f32 %v6857, %v1847
        %v7062 = vmul.f32 %v6859, %v1847
        %v7063 = vmul.f32 %v6861, %v1847
        %v7064 = vmul.f32 %v6863, %v1847
        %v7065 = vmul.f32 %v6865, %v1847
        %v7066 = vmul.f32 %v6867, %v1847
        %v7067 = vmul.f32 %v6869, %v1847
        %v7068 = vmul.f32 %v6871, %v1847
        %v7069 = vmul.f32 %v6873, %v1847
        %v7070 = vmul.f32 %v6875, %v1847
        %v7071 = vmul.f32 %v6877, %v1847
        %v7072 = vmul.f32 %v6879, %v1847
        %v7073 = vmul.f32 %v6881, %v1847
        %v7074 = vmul.f32 %v6883, %v1847
        %v7075 = vmul.f32 %v6885, %v1847
        %v7076 = vmul.f32 %v6887, %v1847
        %v7077 = vmul.f32 %v6889, %v1847
        %v7078 = vmul.f32 %v6891, %v1847
        %v7079 = vmul.f32 %v6893, %v1847
        %v7080 = vmul.f32 %v6895, %v1847
        %v7081 = vmul.f32 %v6897, %v1847
        %v7082 = vmul.f32 %v6899, %v1847
        %v7083 = vmul.f32 %v6901, %v1847
        %v7084 = vmul.f32 %v6903, %v1847
        %v7085 = vmul.f32 %v6905, %v1847
        %v7086 = vmul.f32 %v6907, %v1847
        %v7087 = vmul.f32 %v6909, %v1847
        %v7088 = vmul.f32 %v6911, %v1847
        %v7089 = vmul.f32 %v6913, %v1847
        %v7090 = vmul.f32 %v6915, %v1847
        %v7091 = vmul.f32 %v6917, %v1847
        %v7092 = vmul.f32 %v6919, %v1847
        %v7093 = vmul.f32 %v6921, %v1847
        %v7094 = vmul.f32 %v6923, %v1847
        %v7095 = vmul.f32 %v6925, %v1847
        %v7096 = vmul.f32 %v6927, %v1847
        %v7097 = vmul.f32 %v6929, %v1847
        %v7098 = vmul.f32 %v6931, %v1847
        %v7099 = vmul.f32 %v6933, %v1847
        %v7100 = vmul.f32 %v6935, %v1847
        %v7101 = vmul.f32 %v6937, %v1847
        %v7102 = vmul.f32 %v6939, %v1847
        %v7103 = vmul.f32 %v6941, %v1847
        %v7104 = vmul.f32 %v6943, %v1847
        %v7105 = vmul.f32 %v6945, %v1847
        %v7106 = vmul.f32 %v6947, %v1847
        %v7107 = vmul.f32 %v6949, %v1847
        %v7108 = vmul.f32 %v6951, %v1847
        %v7109 = vmul.f32 %v6953, %v1847
        %v7110 = vmul.f32 %v6955, %v1847
        %v7111 = vmul.f32 %v6957, %v1847
        %v7112 = vmul.f32 %v6959, %v1847
        %v7113 = vmul.f32 %v6961, %v1847
        %v7114 = vmul.f32 %v6963, %v1847
        %v7115 = vmul.f32 %v6965, %v1847
        %v7116 = vmul.f32 %v6967, %v1847
        %v7117 = vmul.f32 %v6969, %v1847
        %v7118 = vmul.f32 %v6971, %v1847
        %v7119 = vmul.f32 %v6973, %v1847
        %v7120 = vmul.f32 %v6975, %v1847
        %v7121 = vmul.f32 %v6977, %v1847
        %v7122 = vmul.f32 %v6979, %v1847
        %v7123 = vmul.f32 %v6981, %v1847
        %v7124 = vmul.f32 %v6983, %v1847
        %v7125 = vmul.f32 %v6985, %v1847
        %v7126 = vmul.f32 %v6987, %v1847
        %v7127 = vmul.f32 %v6989, %v1847
        %v7128 = vmul.f32 %v6991, %v1847
        %v7129 = vmul.f32 %v6993, %v1847
        %v7130 = vmul.f32 %v6995, %v1847
        %v7131 = vmul.f32 %v6997, %v1847
        %v7132 = vmul.f32 %v6999, %v1847
        %v7133 = vmul.f32 %v7001, %v1847
        %v7134 = vmul.f32 %v7003, %v1847
        %v7135 = vmul.f32 %v7005, %v1847
        %v7136 = vmul.f32 %v7007, %v1847
        %v7137 = vmul.f32 %v7009, %v1847
        %v7138 = vadd.f32 %v7010, 1e-05
        %v7139 = vadd.f32 %v7011, 1e-05
        %v7140 = vadd.f32 %v7012, 1e-05
        %v7141 = vadd.f32 %v7013, 1e-05
        %v7142 = vadd.f32 %v7014, 1e-05
        %v7143 = vadd.f32 %v7015, 1e-05
        %v7144 = vadd.f32 %v7016, 1e-05
        %v7145 = vadd.f32 %v7017, 1e-05
        %v7146 = vadd.f32 %v7018, 1e-05
        %v7147 = vadd.f32 %v7019, 1e-05
        %v7148 = vadd.f32 %v7020, 1e-05
        %v7149 = vadd.f32 %v7021, 1e-05
        %v7150 = vadd.f32 %v7022, 1e-05
        %v7151 = vadd.f32 %v7023, 1e-05
        %v7152 = vadd.f32 %v7024, 1e-05
        %v7153 = vadd.f32 %v7025, 1e-05
        %v7154 = vadd.f32 %v7026, 1e-05
        %v7155 = vadd.f32 %v7027, 1e-05
        %v7156 = vadd.f32 %v7028, 1e-05
        %v7157 = vadd.f32 %v7029, 1e-05
        %v7158 = vadd.f32 %v7030, 1e-05
        %v7159 = vadd.f32 %v7031, 1e-05
        %v7160 = vadd.f32 %v7032, 1e-05
        %v7161 = vadd.f32 %v7033, 1e-05
        %v7162 = vadd.f32 %v7034, 1e-05
        %v7163 = vadd.f32 %v7035, 1e-05
        %v7164 = vadd.f32 %v7036, 1e-05
        %v7165 = vadd.f32 %v7037, 1e-05
        %v7166 = vadd.f32 %v7038, 1e-05
        %v7167 = vadd.f32 %v7039, 1e-05
        %v7168 = vadd.f32 %v7040, 1e-05
        %v7169 = vadd.f32 %v7041, 1e-05
        %v7170 = vadd.f32 %v7042, 1e-05
        %v7171 = vadd.f32 %v7043, 1e-05
        %v7172 = vadd.f32 %v7044, 1e-05
        %v7173 = vadd.f32 %v7045, 1e-05
        %v7174 = vadd.f32 %v7046, 1e-05
        %v7175 = vadd.f32 %v7047, 1e-05
        %v7176 = vadd.f32 %v7048, 1e-05
        %v7177 = vadd.f32 %v7049, 1e-05
        %v7178 = vadd.f32 %v7050, 1e-05
        %v7179 = vadd.f32 %v7051, 1e-05
        %v7180 = vadd.f32 %v7052, 1e-05
        %v7181 = vadd.f32 %v7053, 1e-05
        %v7182 = vadd.f32 %v7054, 1e-05
        %v7183 = vadd.f32 %v7055, 1e-05
        %v7184 = vadd.f32 %v7056, 1e-05
        %v7185 = vadd.f32 %v7057, 1e-05
        %v7186 = vadd.f32 %v7058, 1e-05
        %v7187 = vadd.f32 %v7059, 1e-05
        %v7188 = vadd.f32 %v7060, 1e-05
        %v7189 = vadd.f32 %v7061, 1e-05
        %v7190 = vadd.f32 %v7062, 1e-05
        %v7191 = vadd.f32 %v7063, 1e-05
        %v7192 = vadd.f32 %v7064, 1e-05
        %v7193 = vadd.f32 %v7065, 1e-05
        %v7194 = vadd.f32 %v7066, 1e-05
        %v7195 = vadd.f32 %v7067, 1e-05
        %v7196 = vadd.f32 %v7068, 1e-05
        %v7197 = vadd.f32 %v7069, 1e-05
        %v7198 = vadd.f32 %v7070, 1e-05
        %v7199 = vadd.f32 %v7071, 1e-05
        %v7200 = vadd.f32 %v7072, 1e-05
        %v7201 = vadd.f32 %v7073, 1e-05
        %v7202 = vadd.f32 %v7074, 1e-05
        %v7203 = vadd.f32 %v7075, 1e-05
        %v7204 = vadd.f32 %v7076, 1e-05
        %v7205 = vadd.f32 %v7077, 1e-05
        %v7206 = vadd.f32 %v7078, 1e-05
        %v7207 = vadd.f32 %v7079, 1e-05
        %v7208 = vadd.f32 %v7080, 1e-05
        %v7209 = vadd.f32 %v7081, 1e-05
        %v7210 = vadd.f32 %v7082, 1e-05
        %v7211 = vadd.f32 %v7083, 1e-05
        %v7212 = vadd.f32 %v7084, 1e-05
        %v7213 = vadd.f32 %v7085, 1e-05
        %v7214 = vadd.f32 %v7086, 1e-05
        %v7215 = vadd.f32 %v7087, 1e-05
        %v7216 = vadd.f32 %v7088, 1e-05
        %v7217 = vadd.f32 %v7089, 1e-05
        %v7218 = vadd.f32 %v7090, 1e-05
        %v7219 = vadd.f32 %v7091, 1e-05
        %v7220 = vadd.f32 %v7092, 1e-05
        %v7221 = vadd.f32 %v7093, 1e-05
        %v7222 = vadd.f32 %v7094, 1e-05
        %v7223 = vadd.f32 %v7095, 1e-05
        %v7224 = vadd.f32 %v7096, 1e-05
        %v7225 = vadd.f32 %v7097, 1e-05
        %v7226 = vadd.f32 %v7098, 1e-05
        %v7227 = vadd.f32 %v7099, 1e-05
        %v7228 = vadd.f32 %v7100, 1e-05
        %v7229 = vadd.f32 %v7101, 1e-05
        %v7230 = vadd.f32 %v7102, 1e-05
        %v7231 = vadd.f32 %v7103, 1e-05
        %v7232 = vadd.f32 %v7104, 1e-05
        %v7233 = vadd.f32 %v7105, 1e-05
        %v7234 = vadd.f32 %v7106, 1e-05
        %v7235 = vadd.f32 %v7107, 1e-05
        %v7236 = vadd.f32 %v7108, 1e-05
        %v7237 = vadd.f32 %v7109, 1e-05
        %v7238 = vadd.f32 %v7110, 1e-05
        %v7239 = vadd.f32 %v7111, 1e-05
        %v7240 = vadd.f32 %v7112, 1e-05
        %v7241 = vadd.f32 %v7113, 1e-05
        %v7242 = vadd.f32 %v7114, 1e-05
        %v7243 = vadd.f32 %v7115, 1e-05
        %v7244 = vadd.f32 %v7116, 1e-05
        %v7245 = vadd.f32 %v7117, 1e-05
        %v7246 = vadd.f32 %v7118, 1e-05
        %v7247 = vadd.f32 %v7119, 1e-05
        %v7248 = vadd.f32 %v7120, 1e-05
        %v7249 = vadd.f32 %v7121, 1e-05
        %v7250 = vadd.f32 %v7122, 1e-05
        %v7251 = vadd.f32 %v7123, 1e-05
        %v7252 = vadd.f32 %v7124, 1e-05
        %v7253 = vadd.f32 %v7125, 1e-05
        %v7254 = vadd.f32 %v7126, 1e-05
        %v7255 = vadd.f32 %v7127, 1e-05
        %v7256 = vadd.f32 %v7128, 1e-05
        %v7257 = vadd.f32 %v7129, 1e-05
        %v7258 = vadd.f32 %v7130, 1e-05
        %v7259 = vadd.f32 %v7131, 1e-05
        %v7260 = vadd.f32 %v7132, 1e-05
        %v7261 = vadd.f32 %v7133, 1e-05
        %v7262 = vadd.f32 %v7134, 1e-05
        %v7263 = vadd.f32 %v7135, 1e-05
        %v7264 = vadd.f32 %v7136, 1e-05
        %v7265 = vadd.f32 %v7137, 1e-05
        %v7266 = vrsqrt.pop %v7138
        %v7267 = vrsqrt.pop %v7139
        %v7268 = vrsqrt.pop %v7140
        %v7269 = vrsqrt.pop %v7141
        %v7270 = vrsqrt.pop %v7142
        %v7271 = vrsqrt.pop %v7143
        %v7272 = vrsqrt.pop %v7144
        %v7273 = vrsqrt.pop %v7145
        %v7274 = vrsqrt.pop %v7146
        %v7275 = vrsqrt.pop %v7147
        %v7276 = vrsqrt.pop %v7148
        %v7277 = vrsqrt.pop %v7149
        %v7278 = vrsqrt.pop %v7150
        %v7279 = vrsqrt.pop %v7151
        %v7280 = vrsqrt.pop %v7152
        %v7281 = vrsqrt.pop %v7153
        %v7282 = vrsqrt.pop %v7154
        %v7283 = vrsqrt.pop %v7155
        %v7284 = vrsqrt.pop %v7156
        %v7285 = vrsqrt.pop %v7157
        %v7286 = vrsqrt.pop %v7158
        %v7287 = vrsqrt.pop %v7159
        %v7288 = vrsqrt.pop %v7160
        %v7289 = vrsqrt.pop %v7161
        %v7290 = vrsqrt.pop %v7162
        %v7291 = vrsqrt.pop %v7163
        %v7292 = vrsqrt.pop %v7164
        %v7293 = vrsqrt.pop %v7165
        %v7294 = vrsqrt.pop %v7166
        %v7295 = vrsqrt.pop %v7167
        %v7296 = vrsqrt.pop %v7168
        %v7297 = vrsqrt.pop %v7169
        %v7298 = vrsqrt.pop %v7170
        %v7299 = vrsqrt.pop %v7171
        %v7300 = vrsqrt.pop %v7172
        %v7301 = vrsqrt.pop %v7173
        %v7302 = vrsqrt.pop %v7174
        %v7303 = vrsqrt.pop %v7175
        %v7304 = vrsqrt.pop %v7176
        %v7305 = vrsqrt.pop %v7177
        %v7306 = vrsqrt.pop %v7178
        %v7307 = vrsqrt.pop %v7179
        %v7308 = vrsqrt.pop %v7180
        %v7309 = vrsqrt.pop %v7181
        %v7310 = vrsqrt.pop %v7182
        %v7311 = vrsqrt.pop %v7183
        %v7312 = vrsqrt.pop %v7184
        %v7313 = vrsqrt.pop %v7185
        %v7314 = vrsqrt.pop %v7186
        %v7315 = vrsqrt.pop %v7187
        %v7316 = vrsqrt.pop %v7188
        %v7317 = vrsqrt.pop %v7189
        %v7318 = vrsqrt.pop %v7190
        %v7319 = vrsqrt.pop %v7191
        %v7320 = vrsqrt.pop %v7192
        %v7321 = vrsqrt.pop %v7193
        %v7322 = vrsqrt.pop %v7194
        %v7323 = vrsqrt.pop %v7195
        %v7324 = vrsqrt.pop %v7196
        %v7325 = vrsqrt.pop %v7197
        %v7326 = vrsqrt.pop %v7198
        %v7327 = vrsqrt.pop %v7199
        %v7328 = vrsqrt.pop %v7200
        %v7329 = vrsqrt.pop %v7201
        %v7330 = vrsqrt.pop %v7202
        %v7331 = vrsqrt.pop %v7203
        %v7332 = vrsqrt.pop %v7204
        %v7333 = vrsqrt.pop %v7205
        %v7334 = vrsqrt.pop %v7206
        %v7335 = vrsqrt.pop %v7207
        %v7336 = vrsqrt.pop %v7208
        %v7337 = vrsqrt.pop %v7209
        %v7338 = vrsqrt.pop %v7210
        %v7339 = vrsqrt.pop %v7211
        %v7340 = vrsqrt.pop %v7212
        %v7341 = vrsqrt.pop %v7213
        %v7342 = vrsqrt.pop %v7214
        %v7343 = vrsqrt.pop %v7215
        %v7344 = vrsqrt.pop %v7216
        %v7345 = vrsqrt.pop %v7217
        %v7346 = vrsqrt.pop %v7218
        %v7347 = vrsqrt.pop %v7219
        %v7348 = vrsqrt.pop %v7220
        %v7349 = vrsqrt.pop %v7221
        %v7350 = vrsqrt.pop %v7222
        %v7351 = vrsqrt.pop %v7223
        %v7352 = vrsqrt.pop %v7224
        %v7353 = vrsqrt.pop %v7225
        %v7354 = vrsqrt.pop %v7226
        %v7355 = vrsqrt.pop %v7227
        %v7356 = vrsqrt.pop %v7228
        %v7357 = vrsqrt.pop %v7229
        %v7358 = vrsqrt.pop %v7230
        %v7359 = vrsqrt.pop %v7231
        %v7360 = vrsqrt.pop %v7232
        %v7361 = vrsqrt.pop %v7233
        %v7362 = vrsqrt.pop %v7234
        %v7363 = vrsqrt.pop %v7235
        %v7364 = vrsqrt.pop %v7236
        %v7365 = vrsqrt.pop %v7237
        %v7366 = vrsqrt.pop %v7238
        %v7367 = vrsqrt.pop %v7239
        %v7368 = vrsqrt.pop %v7240
        %v7369 = vrsqrt.pop %v7241
        %v7370 = vrsqrt.pop %v7242
        %v7371 = vrsqrt.pop %v7243
        %v7372 = vrsqrt.pop %v7244
        %v7373 = vrsqrt.pop %v7245
        %v7374 = vrsqrt.pop %v7246
        %v7375 = vrsqrt.pop %v7247
        %v7376 = vrsqrt.pop %v7248
        %v7377 = vrsqrt.pop %v7249
        %v7378 = vrsqrt.pop %v7250
        %v7379 = vrsqrt.pop %v7251
        %v7380 = vrsqrt.pop %v7252
        %v7381 = vrsqrt.pop %v7253
        %v7382 = vrsqrt.pop %v7254
        %v7383 = vrsqrt.pop %v7255
        %v7384 = vrsqrt.pop %v7256
        %v7385 = vrsqrt.pop %v7257
        %v7386 = vrsqrt.pop %v7258
        %v7387 = vrsqrt.pop %v7259
        %v7388 = vrsqrt.pop %v7260
        %v7389 = vrsqrt.pop %v7261
        %v7390 = vrsqrt.pop %v7262
        %v7391 = vrsqrt.pop %v7263
        %v7392 = vrsqrt.pop %v7264
        %v7393 = vrsqrt.pop %v7265
        %v7394 = vmul.f32 %v6498, %v7266
        %v7395 = vmul.f32 %v6499, %v7267
        %v7396 = vmul.f32 %v6500, %v7268
        %v7397 = vmul.f32 %v6501, %v7269
        %v7398 = vmul.f32 %v6502, %v7270
        %v7399 = vmul.f32 %v6503, %v7271
        %v7400 = vmul.f32 %v6504, %v7272
        %v7401 = vmul.f32 %v6505, %v7273
        %v7402 = vmul.f32 %v6506, %v7274
        %v7403 = vmul.f32 %v6507, %v7275
        %v7404 = vmul.f32 %v6508, %v7276
        %v7405 = vmul.f32 %v6509, %v7277
        %v7406 = vmul.f32 %v6510, %v7278
        %v7407 = vmul.f32 %v6511, %v7279
        %v7408 = vmul.f32 %v6512, %v7280
        %v7409 = vmul.f32 %v6513, %v7281
        %v7410 = vmul.f32 %v6514, %v7282
        %v7411 = vmul.f32 %v6515, %v7283
        %v7412 = vmul.f32 %v6516, %v7284
        %v7413 = vmul.f32 %v6517, %v7285
        %v7414 = vmul.f32 %v6518, %v7286
        %v7415 = vmul.f32 %v6519, %v7287
        %v7416 = vmul.f32 %v6520, %v7288
        %v7417 = vmul.f32 %v6521, %v7289
        %v7418 = vmul.f32 %v6522, %v7290
        %v7419 = vmul.f32 %v6523, %v7291
        %v7420 = vmul.f32 %v6524, %v7292
        %v7421 = vmul.f32 %v6525, %v7293
        %v7422 = vmul.f32 %v6526, %v7294
        %v7423 = vmul.f32 %v6527, %v7295
        %v7424 = vmul.f32 %v6528, %v7296
        %v7425 = vmul.f32 %v6529, %v7297
        %v7426 = vmul.f32 %v6530, %v7298
        %v7427 = vmul.f32 %v6531, %v7299
        %v7428 = vmul.f32 %v6532, %v7300
        %v7429 = vmul.f32 %v6533, %v7301
        %v7430 = vmul.f32 %v6534, %v7302
        %v7431 = vmul.f32 %v6535, %v7303
        %v7432 = vmul.f32 %v6536, %v7304
        %v7433 = vmul.f32 %v6537, %v7305
        %v7434 = vmul.f32 %v6538, %v7306
        %v7435 = vmul.f32 %v6539, %v7307
        %v7436 = vmul.f32 %v6540, %v7308
        %v7437 = vmul.f32 %v6541, %v7309
        %v7438 = vmul.f32 %v6542, %v7310
        %v7439 = vmul.f32 %v6543, %v7311
        %v7440 = vmul.f32 %v6544, %v7312
        %v7441 = vmul.f32 %v6545, %v7313
        %v7442 = vmul.f32 %v6546, %v7314
        %v7443 = vmul.f32 %v6547, %v7315
        %v7444 = vmul.f32 %v6548, %v7316
        %v7445 = vmul.f32 %v6549, %v7317
        %v7446 = vmul.f32 %v6550, %v7318
        %v7447 = vmul.f32 %v6551, %v7319
        %v7448 = vmul.f32 %v6552, %v7320
        %v7449 = vmul.f32 %v6553, %v7321
        %v7450 = vmul.f32 %v6554, %v7322
        %v7451 = vmul.f32 %v6555, %v7323
        %v7452 = vmul.f32 %v6556, %v7324
        %v7453 = vmul.f32 %v6557, %v7325
        %v7454 = vmul.f32 %v6558, %v7326
        %v7455 = vmul.f32 %v6559, %v7327
        %v7456 = vmul.f32 %v6560, %v7328
        %v7457 = vmul.f32 %v6561, %v7329
        %v7458 = vmul.f32 %v6562, %v7330
        %v7459 = vmul.f32 %v6563, %v7331
        %v7460 = vmul.f32 %v6564, %v7332
        %v7461 = vmul.f32 %v6565, %v7333
        %v7462 = vmul.f32 %v6566, %v7334
        %v7463 = vmul.f32 %v6567, %v7335
        %v7464 = vmul.f32 %v6568, %v7336
        %v7465 = vmul.f32 %v6569, %v7337
        %v7466 = vmul.f32 %v6570, %v7338
        %v7467 = vmul.f32 %v6571, %v7339
        %v7468 = vmul.f32 %v6572, %v7340
        %v7469 = vmul.f32 %v6573, %v7341
        %v7470 = vmul.f32 %v6574, %v7342
        %v7471 = vmul.f32 %v6575, %v7343
        %v7472 = vmul.f32 %v6576, %v7344
        %v7473 = vmul.f32 %v6577, %v7345
        %v7474 = vmul.f32 %v6578, %v7346
        %v7475 = vmul.f32 %v6579, %v7347
        %v7476 = vmul.f32 %v6580, %v7348
        %v7477 = vmul.f32 %v6581, %v7349
        %v7478 = vmul.f32 %v6582, %v7350
        %v7479 = vmul.f32 %v6583, %v7351
        %v7480 = vmul.f32 %v6584, %v7352
        %v7481 = vmul.f32 %v6585, %v7353
        %v7482 = vmul.f32 %v6586, %v7354
        %v7483 = vmul.f32 %v6587, %v7355
        %v7484 = vmul.f32 %v6588, %v7356
        %v7485 = vmul.f32 %v6589, %v7357
        %v7486 = vmul.f32 %v6590, %v7358
        %v7487 = vmul.f32 %v6591, %v7359
        %v7488 = vmul.f32 %v6592, %v7360
        %v7489 = vmul.f32 %v6593, %v7361
        %v7490 = vmul.f32 %v6594, %v7362
        %v7491 = vmul.f32 %v6595, %v7363
        %v7492 = vmul.f32 %v6596, %v7364
        %v7493 = vmul.f32 %v6597, %v7365
        %v7494 = vmul.f32 %v6598, %v7366
        %v7495 = vmul.f32 %v6599, %v7367
        %v7496 = vmul.f32 %v6600, %v7368
        %v7497 = vmul.f32 %v6601, %v7369
        %v7498 = vmul.f32 %v6602, %v7370
        %v7499 = vmul.f32 %v6603, %v7371
        %v7500 = vmul.f32 %v6604, %v7372
        %v7501 = vmul.f32 %v6605, %v7373
        %v7502 = vmul.f32 %v6606, %v7374
        %v7503 = vmul.f32 %v6607, %v7375
        %v7504 = vmul.f32 %v6608, %v7376
        %v7505 = vmul.f32 %v6609, %v7377
        %v7506 = vmul.f32 %v6610, %v7378
        %v7507 = vmul.f32 %v6611, %v7379
        %v7508 = vmul.f32 %v6612, %v7380
        %v7509 = vmul.f32 %v6613, %v7381
        %v7510 = vmul.f32 %v6614, %v7382
        %v7511 = vmul.f32 %v6615, %v7383
        %v7512 = vmul.f32 %v6616, %v7384
        %v7513 = vmul.f32 %v6617, %v7385
        %v7514 = vmul.f32 %v6618, %v7386
        %v7515 = vmul.f32 %v6619, %v7387
        %v7516 = vmul.f32 %v6620, %v7388
        %v7517 = vmul.f32 %v6621, %v7389
        %v7518 = vmul.f32 %v6622, %v7390
        %v7519 = vmul.f32 %v6623, %v7391
        %v7520 = vmul.f32 %v6624, %v7392
        %v7521 = vmul.f32 %v6625, %v7393
        %v7522 = vmax.f32 %v7394, 0.0
        %v7523 = vmax.f32 %v7395, 0.0
        %v7524 = vmax.f32 %v7396, 0.0
        %v7525 = vmax.f32 %v7397, 0.0
        %v7526 = vmax.f32 %v7398, 0.0
        %v7527 = vmax.f32 %v7399, 0.0
        %v7528 = vmax.f32 %v7400, 0.0
        %v7529 = vmax.f32 %v7401, 0.0
        %v7530 = vmax.f32 %v7402, 0.0
        %v7531 = vmax.f32 %v7403, 0.0
        %v7532 = vmax.f32 %v7404, 0.0
        %v7533 = vmax.f32 %v7405, 0.0
        %v7534 = vmax.f32 %v7406, 0.0
        %v7535 = vmax.f32 %v7407, 0.0
        %v7536 = vmax.f32 %v7408, 0.0
        %v7537 = vmax.f32 %v7409, 0.0
        %v7538 = vmax.f32 %v7410, 0.0
        %v7539 = vmax.f32 %v7411, 0.0
        %v7540 = vmax.f32 %v7412, 0.0
        %v7541 = vmax.f32 %v7413, 0.0
        %v7542 = vmax.f32 %v7414, 0.0
        %v7543 = vmax.f32 %v7415, 0.0
        %v7544 = vmax.f32 %v7416, 0.0
        %v7545 = vmax.f32 %v7417, 0.0
        %v7546 = vmax.f32 %v7418, 0.0
        %v7547 = vmax.f32 %v7419, 0.0
        %v7548 = vmax.f32 %v7420, 0.0
        %v7549 = vmax.f32 %v7421, 0.0
        %v7550 = vmax.f32 %v7422, 0.0
        %v7551 = vmax.f32 %v7423, 0.0
        %v7552 = vmax.f32 %v7424, 0.0
        %v7553 = vmax.f32 %v7425, 0.0
        %v7554 = vmax.f32 %v7426, 0.0
        %v7555 = vmax.f32 %v7427, 0.0
        %v7556 = vmax.f32 %v7428, 0.0
        %v7557 = vmax.f32 %v7429, 0.0
        %v7558 = vmax.f32 %v7430, 0.0
        %v7559 = vmax.f32 %v7431, 0.0
        %v7560 = vmax.f32 %v7432, 0.0
        %v7561 = vmax.f32 %v7433, 0.0
        %v7562 = vmax.f32 %v7434, 0.0
        %v7563 = vmax.f32 %v7435, 0.0
        %v7564 = vmax.f32 %v7436, 0.0
        %v7565 = vmax.f32 %v7437, 0.0
        %v7566 = vmax.f32 %v7438, 0.0
        %v7567 = vmax.f32 %v7439, 0.0
        %v7568 = vmax.f32 %v7440, 0.0
        %v7569 = vmax.f32 %v7441, 0.0
        %v7570 = vmax.f32 %v7442, 0.0
        %v7571 = vmax.f32 %v7443, 0.0
        %v7572 = vmax.f32 %v7444, 0.0
        %v7573 = vmax.f32 %v7445, 0.0
        %v7574 = vmax.f32 %v7446, 0.0
        %v7575 = vmax.f32 %v7447, 0.0
        %v7576 = vmax.f32 %v7448, 0.0
        %v7577 = vmax.f32 %v7449, 0.0
        %v7578 = vmax.f32 %v7450, 0.0
        %v7579 = vmax.f32 %v7451, 0.0
        %v7580 = vmax.f32 %v7452, 0.0
        %v7581 = vmax.f32 %v7453, 0.0
        %v7582 = vmax.f32 %v7454, 0.0
        %v7583 = vmax.f32 %v7455, 0.0
        %v7584 = vmax.f32 %v7456, 0.0
        %v7585 = vmax.f32 %v7457, 0.0
        %v7586 = vmax.f32 %v7458, 0.0
        %v7587 = vmax.f32 %v7459, 0.0
        %v7588 = vmax.f32 %v7460, 0.0
        %v7589 = vmax.f32 %v7461, 0.0
        %v7590 = vmax.f32 %v7462, 0.0
        %v7591 = vmax.f32 %v7463, 0.0
        %v7592 = vmax.f32 %v7464, 0.0
        %v7593 = vmax.f32 %v7465, 0.0
        %v7594 = vmax.f32 %v7466, 0.0
        %v7595 = vmax.f32 %v7467, 0.0
        %v7596 = vmax.f32 %v7468, 0.0
        %v7597 = vmax.f32 %v7469, 0.0
        %v7598 = vmax.f32 %v7470, 0.0
        %v7599 = vmax.f32 %v7471, 0.0
        %v7600 = vmax.f32 %v7472, 0.0
        %v7601 = vmax.f32 %v7473, 0.0
        %v7602 = vmax.f32 %v7474, 0.0
        %v7603 = vmax.f32 %v7475, 0.0
        %v7604 = vmax.f32 %v7476, 0.0
        %v7605 = vmax.f32 %v7477, 0.0
        %v7606 = vmax.f32 %v7478, 0.0
        %v7607 = vmax.f32 %v7479, 0.0
        %v7608 = vmax.f32 %v7480, 0.0
        %v7609 = vmax.f32 %v7481, 0.0
        %v7610 = vmax.f32 %v7482, 0.0
        %v7611 = vmax.f32 %v7483, 0.0
        %v7612 = vmax.f32 %v7484, 0.0
        %v7613 = vmax.f32 %v7485, 0.0
        %v7614 = vmax.f32 %v7486, 0.0
        %v7615 = vmax.f32 %v7487, 0.0
        %v7616 = vmax.f32 %v7488, 0.0
        %v7617 = vmax.f32 %v7489, 0.0
        %v7618 = vmax.f32 %v7490, 0.0
        %v7619 = vmax.f32 %v7491, 0.0
        %v7620 = vmax.f32 %v7492, 0.0
        %v7621 = vmax.f32 %v7493, 0.0
        %v7622 = vmax.f32 %v7494, 0.0
        %v7623 = vmax.f32 %v7495, 0.0
        %v7624 = vmax.f32 %v7496, 0.0
        %v7625 = vmax.f32 %v7497, 0.0
        %v7626 = vmax.f32 %v7498, 0.0
        %v7627 = vmax.f32 %v7499, 0.0
        %v7628 = vmax.f32 %v7500, 0.0
        %v7629 = vmax.f32 %v7501, 0.0
        %v7630 = vmax.f32 %v7502, 0.0
        %v7631 = vmax.f32 %v7503, 0.0
        %v7632 = vmax.f32 %v7504, 0.0
        %v7633 = vmax.f32 %v7505, 0.0
        %v7634 = vmax.f32 %v7506, 0.0
        %v7635 = vmax.f32 %v7507, 0.0
        %v7636 = vmax.f32 %v7508, 0.0
        %v7637 = vmax.f32 %v7509, 0.0
        %v7638 = vmax.f32 %v7510, 0.0
        %v7639 = vmax.f32 %v7511, 0.0
        %v7640 = vmax.f32 %v7512, 0.0
        %v7641 = vmax.f32 %v7513, 0.0
        %v7642 = vmax.f32 %v7514, 0.0
        %v7643 = vmax.f32 %v7515, 0.0
        %v7644 = vmax.f32 %v7516, 0.0
        %v7645 = vmax.f32 %v7517, 0.0
        %v7646 = vmax.f32 %v7518, 0.0
        %v7647 = vmax.f32 %v7519, 0.0
        %v7648 = vmax.f32 %v7520, 0.0
        %v7649 = vmax.f32 %v7521, 0.0
        %7650 = vst [vmem:[%s327] sm:$0xff] %v7522
        %7651 = vst [vmem:[%s327 + $0x8] sm:$0xff] %v7523
        %7652 = vst [vmem:[%s327 + $0x10] sm:$0xff] %v7524
        %7653 = vst [vmem:[%s327 + $0x18] sm:$0xff] %v7525
        %7654 = vst [vmem:[%s327 + $0x20] sm:$0xff] %v7526
        %7655 = vst [vmem:[%s327 + $0x28] sm:$0xff] %v7527
        %7656 = vst [vmem:[%s327 + $0x30] sm:$0xff] %v7528
        %7657 = vst [vmem:[%s327 + $0x38] sm:$0xff] %v7529
        %7658 = vst [vmem:[%s327 + $0x40] sm:$0xff] %v7530
        %7659 = vst [vmem:[%s327 + $0x48] sm:$0xff] %v7531
        %7660 = vst [vmem:[%s327 + $0x50] sm:$0xff] %v7532
        %7661 = vst [vmem:[%s327 + $0x58] sm:$0xff] %v7533
        %7662 = vst [vmem:[%s327 + $0x60] sm:$0xff] %v7534
        %7663 = vst [vmem:[%s327 + $0x68] sm:$0xff] %v7535
        %7664 = vst [vmem:[%s327 + $0x70] sm:$0xff] %v7536
        %7665 = vst [vmem:[%s327 + $0x78] sm:$0xff] %v7537
        %7666 = vst [vmem:[%s327 + $0x80] sm:$0xff] %v7538
        %7667 = vst [vmem:[%s327 + $0x88] sm:$0xff] %v7539
        %7668 = vst [vmem:[%s327 + $0x90] sm:$0xff] %v7540
        %7669 = vst [vmem:[%s327 + $0x98] sm:$0xff] %v7541
        %7670 = vst [vmem:[%s327 + $0xa0] sm:$0xff] %v7542
        %7671 = vst [vmem:[%s327 + $0xa8] sm:$0xff] %v7543
        %7672 = vst [vmem:[%s327 + $0xb0] sm:$0xff] %v7544
        %7673 = vst [vmem:[%s327 + $0xb8] sm:$0xff] %v7545
        %7674 = vst [vmem:[%s327 + $0xc0] sm:$0xff] %v7546
        %7675 = vst [vmem:[%s327 + $0xc8] sm:$0xff] %v7547
        %7676 = vst [vmem:[%s327 + $0xd0] sm:$0xff] %v7548
        %7677 = vst [vmem:[%s327 + $0xd8] sm:$0xff] %v7549
        %7678 = vst [vmem:[%s327 + $0xe0] sm:$0xff] %v7550
        %7679 = vst [vmem:[%s327 + $0xe8] sm:$0xff] %v7551
        %7680 = vst [vmem:[%s327 + $0xf0] sm:$0xff] %v7552
        %7681 = vst [vmem:[%s327 + $0xf8] sm:$0xff] %v7553
        %7682 = vst [vmem:[%s327 + $0x100] sm:$0xff] %v7554
        %7683 = vst [vmem:[%s327 + $0x108] sm:$0xff] %v7555
        %7684 = vst [vmem:[%s327 + $0x110] sm:$0xff] %v7556
        %7685 = vst [vmem:[%s327 + $0x118] sm:$0xff] %v7557
        %7686 = vst [vmem:[%s327 + $0x120] sm:$0xff] %v7558
        %7687 = vst [vmem:[%s327 + $0x128] sm:$0xff] %v7559
        %7688 = vst [vmem:[%s327 + $0x130] sm:$0xff] %v7560
        %7689 = vst [vmem:[%s327 + $0x138] sm:$0xff] %v7561
        %7690 = vst [vmem:[%s327 + $0x140] sm:$0xff] %v7562
        %7691 = vst [vmem:[%s327 + $0x148] sm:$0xff] %v7563
        %7692 = vst [vmem:[%s327 + $0x150] sm:$0xff] %v7564
        %7693 = vst [vmem:[%s327 + $0x158] sm:$0xff] %v7565
        %7694 = vst [vmem:[%s327 + $0x160] sm:$0xff] %v7566
        %7695 = vst [vmem:[%s327 + $0x168] sm:$0xff] %v7567
        %7696 = vst [vmem:[%s327 + $0x170] sm:$0xff] %v7568
        %7697 = vst [vmem:[%s327 + $0x178] sm:$0xff] %v7569
        %7698 = vst [vmem:[%s327 + $0x180] sm:$0xff] %v7570
        %7699 = vst [vmem:[%s327 + $0x188] sm:$0xff] %v7571
        %7700 = vst [vmem:[%s327 + $0x190] sm:$0xff] %v7572
        %7701 = vst [vmem:[%s327 + $0x198] sm:$0xff] %v7573
        %7702 = vst [vmem:[%s327 + $0x1a0] sm:$0xff] %v7574
        %7703 = vst [vmem:[%s327 + $0x1a8] sm:$0xff] %v7575
        %7704 = vst [vmem:[%s327 + $0x1b0] sm:$0xff] %v7576
        %7705 = vst [vmem:[%s327 + $0x1b8] sm:$0xff] %v7577
        %7706 = vst [vmem:[%s327 + $0x1c0] sm:$0xff] %v7578
        %7707 = vst [vmem:[%s327 + $0x1c8] sm:$0xff] %v7579
        %7708 = vst [vmem:[%s327 + $0x1d0] sm:$0xff] %v7580
        %7709 = vst [vmem:[%s327 + $0x1d8] sm:$0xff] %v7581
        %7710 = vst [vmem:[%s327 + $0x1e0] sm:$0xff] %v7582
        %7711 = vst [vmem:[%s327 + $0x1e8] sm:$0xff] %v7583
        %7712 = vst [vmem:[%s327 + $0x1f0] sm:$0xff] %v7584
        %7713 = vst [vmem:[%s327 + $0x1f8] sm:$0xff] %v7585
        %7714 = vst [vmem:[%s327 + $0x200] sm:$0xff] %v7586
        %7715 = vst [vmem:[%s327 + $0x208] sm:$0xff] %v7587
        %7716 = vst [vmem:[%s327 + $0x210] sm:$0xff] %v7588
        %7717 = vst [vmem:[%s327 + $0x218] sm:$0xff] %v7589
        %7718 = vst [vmem:[%s327 + $0x220] sm:$0xff] %v7590
        %7719 = vst [vmem:[%s327 + $0x228] sm:$0xff] %v7591
        %7720 = vst [vmem:[%s327 + $0x230] sm:$0xff] %v7592
        %7721 = vst [vmem:[%s327 + $0x238] sm:$0xff] %v7593
        %7722 = vst [vmem:[%s327 + $0x240] sm:$0xff] %v7594
        %7723 = vst [vmem:[%s327 + $0x248] sm:$0xff] %v7595
        %7724 = vst [vmem:[%s327 + $0x250] sm:$0xff] %v7596
        %7725 = vst [vmem:[%s327 + $0x258] sm:$0xff] %v7597
        %7726 = vst [vmem:[%s327 + $0x260] sm:$0xff] %v7598
        %7727 = vst [vmem:[%s327 + $0x268] sm:$0xff] %v7599
        %7728 = vst [vmem:[%s327 + $0x270] sm:$0xff] %v7600
        %7729 = vst [vmem:[%s327 + $0x278] sm:$0xff] %v7601
        %7730 = vst [vmem:[%s327 + $0x280] sm:$0xff] %v7602
        %7731 = vst [vmem:[%s327 + $0x288] sm:$0xff] %v7603
        %7732 = vst [vmem:[%s327 + $0x290] sm:$0xff] %v7604
        %7733 = vst [vmem:[%s327 + $0x298] sm:$0xff] %v7605
        %7734 = vst [vmem:[%s327 + $0x2a0] sm:$0xff] %v7606
        %7735 = vst [vmem:[%s327 + $0x2a8] sm:$0xff] %v7607
        %7736 = vst [vmem:[%s327 + $0x2b0] sm:$0xff] %v7608
        %7737 = vst [vmem:[%s327 + $0x2b8] sm:$0xff] %v7609
        %7738 = vst [vmem:[%s327 + $0x2c0] sm:$0xff] %v7610
        %7739 = vst [vmem:[%s327 + $0x2c8] sm:$0xff] %v7611
        %7740 = vst [vmem:[%s327 + $0x2d0] sm:$0xff] %v7612
        %7741 = vst [vmem:[%s327 + $0x2d8] sm:$0xff] %v7613
        %7742 = vst [vmem:[%s327 + $0x2e0] sm:$0xff] %v7614
        %7743 = vst [vmem:[%s327 + $0x2e8] sm:$0xff] %v7615
        %7744 = vst [vmem:[%s327 + $0x2f0] sm:$0xff] %v7616
        %7745 = vst [vmem:[%s327 + $0x2f8] sm:$0xff] %v7617
        %7746 = vst [vmem:[%s327 + $0x300] sm:$0xff] %v7618
        %7747 = vst [vmem:[%s327 + $0x308] sm:$0xff] %v7619
        %7748 = vst [vmem:[%s327 + $0x310] sm:$0xff] %v7620
        %7749 = vst [vmem:[%s327 + $0x318] sm:$0xff] %v7621
        %7750 = vst [vmem:[%s327 + $0x320] sm:$0xff] %v7622
        %7751 = vst [vmem:[%s327 + $0x328] sm:$0xff] %v7623
        %7752 = vst [vmem:[%s327 + $0x330] sm:$0xff] %v7624
        %7753 = vst [vmem:[%s327 + $0x338] sm:$0xff] %v7625
        %7754 = vst [vmem:[%s327 + $0x340] sm:$0xff] %v7626
        %7755 = vst [vmem:[%s327 + $0x348] sm:$0xff] %v7627
        %7756 = vst [vmem:[%s327 + $0x350] sm:$0xff] %v7628
        %7757 = vst [vmem:[%s327 + $0x358] sm:$0xff] %v7629
        %7758 = vst [vmem:[%s327 + $0x360] sm:$0xff] %v7630
        %7759 = vst [vmem:[%s327 + $0x368] sm:$0xff] %v7631
        %7760 = vst [vmem:[%s327 + $0x370] sm:$0xff] %v7632
        %7761 = vst [vmem:[%s327 + $0x378] sm:$0xff] %v7633
        %7762 = vst [vmem:[%s327 + $0x380] sm:$0xff] %v7634
        %7763 = vst [vmem:[%s327 + $0x388] sm:$0xff] %v7635
        %7764 = vst [vmem:[%s327 + $0x390] sm:$0xff] %v7636
        %7765 = vst [vmem:[%s327 + $0x398] sm:$0xff] %v7637
        %7766 = vst [vmem:[%s327 + $0x3a0] sm:$0xff] %v7638
        %7767 = vst [vmem:[%s327 + $0x3a8] sm:$0xff] %v7639
        %7768 = vst [vmem:[%s327 + $0x3b0] sm:$0xff] %v7640
        %7769 = vst [vmem:[%s327 + $0x3b8] sm:$0xff] %v7641
        %7770 = vst [vmem:[%s327 + $0x3c0] sm:$0xff] %v7642
        %7771 = vst [vmem:[%s327 + $0x3c8] sm:$0xff] %v7643
        %7772 = vst [vmem:[%s327 + $0x3d0] sm:$0xff] %v7644
        %7773 = vst [vmem:[%s327 + $0x3d8] sm:$0xff] %v7645
        %7774 = vst [vmem:[%s327 + $0x3e0] sm:$0xff] %v7646
        %7775 = vst [vmem:[%s327 + $0x3e8] sm:$0xff] %v7647
        %7776 = vst [vmem:[%s327 + $0x3f0] sm:$0xff] %v7648
        %7777 = vst [vmem:[%s327 + $0x3f8] sm:$0xff] %v7649
        %s7778 = sand.u32 %s188, 1
        %s7779 = scalar_lea.sflag [#allocation5], %s7778
        %s7780 = sand.u32 %s188, 1
        %s7781 = smul.addr %s7780, 1024
        %s7782 = scalar_lea.vmem [#allocation4], %s7781
        // Predicated region
        $region41: #{tpu_custom_call.1} parent=39 // pred_check
          %p7783 = pneg %p198
        $region42: #{tpu_custom_call.1} parent=39 // pred_check_branch
          %7785 = sbr.rel (%p7783) target = $region44
        $region43: #{tpu_custom_call.1} parent=39 // pred_region
          %s7786 = smul.u32 128, %s31
          %s7788 = ssub.s32 16384, 16384
          %7789 = vsyncadd %s7779, %s7788
          %s7790 = smul.addr %s30, 256
          %s7791 = sadd.s32 %s7786, %s7790
          %s7792 = smul.addr %s7791, 128
          %s7793 = scalar_lea.hbm %s6, %s7792
          %s7794 = sshll.u32 %s7782, 4
          %s7795 = int_to_ptr.vmem [resolvable:$true] %s7794
          %7800 = dma.vmem_to_hbm [thread:$0]  %s7795, 16384, %s7793, %s7779, 128, 128, 8
        $region44: #{tpu_custom_call.1} parent=39 // pred_fallthru
          _
      $region40: #{tpu_custom_call.1} parent=5 // pred_fallthru
        _
      %p7801 = scmp.le.s32.totalorder 2, %s21
      // Predicated region
      $region45: #{tpu_custom_call.1} parent=5 // pred_check
        %p7802 = pneg %p7801
      $region46: #{tpu_custom_call.1} parent=5 // pred_check_branch
        %7804 = sbr.rel (%p7802) target = $region48
      $region47: #{tpu_custom_call.1} parent=5 // pred_region
        %s7805 = ssub.s32 %s21, 2
        // Predicated region
        $region49: #{tpu_custom_call.1} parent=47 // pred_check
          %p7806 = pneg %p204
        $region50: #{tpu_custom_call.1} parent=47 // pred_check_branch
          %7808 = sbr.rel (%p7806) target = $region52
        $region51: #{tpu_custom_call.1} parent=47 // pred_region
          %s7809 = sand.u32 %s189, 1
          %s7810 = scalar_lea.sflag [#allocation5], %s7809
          %s7811 = sand.u32 %s189, 1
          %s7812 = smul.addr %s7811, 1024
          %s7813 = scalar_lea.vmem [#allocation4], %s7812
          %7814 = dma.done %s7810, 16384
        $region52: #{tpu_custom_call.1} parent=47 // pred_fallthru
          _
      $region48: #{tpu_custom_call.1} parent=5 // pred_fallthru
        _
    $region6: #{tpu_custom_call.1} parent=1 // loop_footer
      %s25 = sadd.s32 1, %s21
    $region7: #{tpu_custom_call.1} parent=1 // loop_footer_branch
      %20 = sbr.rel target = $region3
    $region8: #{tpu_custom_call.1} parent=1 // loop_exit
      _
    %7815 = vsyncpa [#allocation5], 1
    %s7816 = scalar_lea.sflag [#allocation5], 1
    %7817 = vsyncpa %s7816, 1

</llo_original>
